<compile_context>
chip_gen: v5e
topology: v5e:2x2
jax: 0.10.0
libtpu: 0.0.40
codegen_flags: <defaults>
</compile_context>

<pallas_src>
import functools

import jax
import jax.numpy as jnp
from jax.experimental import pallas as pl
from jax.experimental.pallas import tpu as pltpu


# ---------------------------------------------------------------------------
# In-kernel helpers (value-level, traced inside the fused kernels).
# ---------------------------------------------------------------------------

def _masked_mha(q, k, v, bias, wo, n_heads):
    """Masked MHA + output projection on lane-dense (L, dim) values.

    q: (Lq, dim) f32, k/v: (Lk, dim) f32, bias: (1, Lk) f32 additive key mask
    (0 valid / -1e9 padded), wo: (dim, dim) bf16.
    Returns (Lq, dim) f32 == concat_heads(softmax(qk^T/sqrt(dh)+bias) v) @ wo.
    """
    lq, dim = q.shape
    dh = dim // n_heads
    scale = 1.0 / float(dh) ** 0.5
    proj = jnp.zeros((lq, dim), jnp.float32)
    for h in range(n_heads):
        lo = h * dh
        qh = q[:, lo:lo + dh].astype(jnp.bfloat16)
        kh = k[:, lo:lo + dh].astype(jnp.bfloat16)
        vh = v[:, lo:lo + dh].astype(jnp.bfloat16)
        # s = qh @ kh.T  (contract last dims of both; no explicit transpose copy)
        s = jax.lax.dot_general(qh, kh, (((1,), (1,)), ((), ())),
                                preferred_element_type=jnp.float32) * scale
        s = s + bias
        s = s - jnp.max(s, axis=-1, keepdims=True)
        p = jnp.exp(s)
        p = p * pl.reciprocal(jnp.sum(p, axis=-1, keepdims=True), approx=True)
        oh = jnp.dot(p.astype(jnp.bfloat16), vh,
                     preferred_element_type=jnp.float32)
        # fold the per-head output directly into the O-projection (no concat)
        proj = proj + jnp.dot(oh.astype(jnp.bfloat16), wo[lo:lo + dh, :],
                              preferred_element_type=jnp.float32)
    return proj


def _conv1d_same(h, wc_ref, bc, kernel_size):
    """'same'-padded 1-D conv over the VMEM-resident (L, dim) activation.

    The K-1 halo is handled with tiny (L,L) shift matmuls (zero beyond edges),
    so no host-side padding / extra HBM pass is needed.
    """
    L, dim = h.shape
    pad = (kernel_size - 1) // 2
    h_bf = h.astype(jnp.bfloat16)
    rows = jax.lax.broadcasted_iota(jnp.int32, (L, L), 0)
    cols = jax.lax.broadcasted_iota(jnp.int32, (L, L), 1)
    conv = jnp.zeros((L, dim), jnp.float32)
    for k in range(kernel_size):
        o = k - pad
        if o == 0:
            xk = h_bf
        else:
            shift = jnp.where(cols == rows + o, 1.0, 0.0).astype(jnp.bfloat16)
            xk = jnp.dot(shift, h_bf,
                         preferred_element_type=jnp.float32).astype(jnp.bfloat16)
        conv = conv + jnp.dot(xk, wc_ref[0, k],
                              preferred_element_type=jnp.float32)
    return conv + bc


# ---------------------------------------------------------------------------
# Fused geom_graph stack: one pallas_call, grid = (batch, layer).
# ---------------------------------------------------------------------------

def _geom_layer_kernel(seq_ref, mcol_ref, mbias_ref,
                       w_in_ref, b_in_ref,
                       wc_ref, bc_ref, wqkv_ref, bqkv_ref, wo_ref, bo_ref,
                       o_ref, h_ref, *, n_heads):
    layer = pl.program_id(1)
    L, dim = h_ref.shape

    # input projection (in_dim -> dim), first layer only
    @pl.when(layer == 0)
    def _():
        x0 = seq_ref[0].astype(jnp.bfloat16)
        h_ref[...] = (jnp.dot(x0, w_in_ref[...],
                              preferred_element_type=jnp.float32)
                      + b_in_ref[...])

    h = h_ref[...]                                   # (L, dim) f32, VMEM-resident

    # local mixing: 1-D conv (same padding) + ReLU, residual
    conv = _conv1d_same(h, wc_ref, bc_ref[0], wc_ref.shape[1])
    h = h + jnp.maximum(conv, 0.0)

    # masked multi-head self-attention with fused QKV projection, residual, mask
    qkv = (jnp.dot(h.astype(jnp.bfloat16), wqkv_ref[0],
                   preferred_element_type=jnp.float32) + bqkv_ref[0])
    q = qkv[:, 0:dim]
    k = qkv[:, dim:2 * dim]
    v = qkv[:, 2 * dim:3 * dim]
    proj = _masked_mha(q, k, v, mbias_ref[0], wo_ref[0], n_heads)
    h = (h + proj + bo_ref[0]) * mcol_ref[0]
    h_ref[...] = h

    @pl.when(layer == pl.num_programs(1) - 1)
    def _():
        o_ref[...] = h[None].astype(o_ref.dtype)


def geom_graph_forward(params, seq, mask, n_heads):
    B, L, in_dim = seq.shape
    dim = params['W_in'].shape[1]
    n_layers, K = params['Wc'].shape[0], params['Wc'].shape[1]

    mask_col = mask[:, :, None].astype(jnp.float32)                   # (B, L, 1)
    mask_bias = ((mask - 1.0) * 1e9)[:, None, :].astype(jnp.float32)  # (B, 1, L)

    kernel = functools.partial(_geom_layer_kernel, n_heads=n_heads)
    return pl.pallas_call(
        kernel,
        out_shape=jax.ShapeDtypeStruct((B, L, dim), jnp.float32),
        grid=(B, n_layers),
        in_specs=[
            pl.BlockSpec((1, L, in_dim), lambda b, l: (b, 0, 0)),       # seq
            pl.BlockSpec((1, L, 1), lambda b, l: (b, 0, 0)),            # mult. mask
            pl.BlockSpec((1, 1, L), lambda b, l: (b, 0, 0)),            # key-mask bias
            pl.BlockSpec((in_dim, dim), lambda b, l: (0, 0)),           # W_in
            pl.BlockSpec((1, dim), lambda b, l: (0, 0)),                # b_in
            pl.BlockSpec((1, K, dim, dim), lambda b, l: (l, 0, 0, 0)),  # Wc
            pl.BlockSpec((1, 1, dim), lambda b, l: (l, 0, 0)),          # bc
            pl.BlockSpec((1, dim, 3 * dim), lambda b, l: (l, 0, 0)),    # Wqkv (fused)
            pl.BlockSpec((1, 1, 3 * dim), lambda b, l: (l, 0, 0)),      # bqkv
            pl.BlockSpec((1, dim, dim), lambda b, l: (l, 0, 0)),        # Wo
            pl.BlockSpec((1, 1, dim), lambda b, l: (l, 0, 0)),          # bo
        ],
        out_specs=pl.BlockSpec((1, L, dim), lambda b, l: (b, 0, 0)),
        scratch_shapes=[pltpu.VMEM((L, dim), jnp.float32)],             # resident h
        compiler_params=pltpu.CompilerParams(
            dimension_semantics=("parallel", "arbitrary")),
    )(seq, mask_col, mask_bias,
      params['W_in'], params['b_in'],
      params['Wc'], params['bc'],
      params['Wqkv'], params['bqkv'],
      params['Wo'], params['bo'])


# ---------------------------------------------------------------------------
# Fused attn_graph (cross-attention) stack: one pallas_call, grid = (batch, layer).
# ---------------------------------------------------------------------------

def _cross_layer_kernel(x_ref, y_ref, m1col_ref, m2bias_ref,
                        wq_ref, bq_ref, wkv_ref, bkv_ref, wo_ref, bo_ref,
                        o_ref, x_sc, *, n_heads):
    layer = pl.program_id(1)
    Lx, dim = x_sc.shape

    @pl.when(layer == 0)
    def _():
        x_sc[...] = x_ref[0]

    x = x_sc[...]                                    # (Lx, dim) f32, VMEM-resident
    q = (jnp.dot(x.astype(jnp.bfloat16), wq_ref[0],
                 preferred_element_type=jnp.float32) + bq_ref[0])
    kv = (jnp.dot(y_ref[0].astype(jnp.bfloat16), wkv_ref[0],
                  preferred_element_type=jnp.float32) + bkv_ref[0])
    k = kv[:, 0:dim]
    v = kv[:, dim:2 * dim]
    proj = _masked_mha(q, k, v, m2bias_ref[0], wo_ref[0], n_heads)
    x = (x + proj + bo_ref[0]) * m1col_ref[0]
    x_sc[...] = x

    @pl.when(layer == pl.num_programs(1) - 1)
    def _():
        o_ref[...] = x[None].astype(o_ref.dtype)


def attn_graph_forward(params, x, y, mask1, mask2, n_heads):
    B, Lx, dim = x.shape
    Ly = y.shape[1]
    n_layers = params['Wq'].shape[0]

    m1_col = mask1[:, :, None].astype(jnp.float32)                     # (B, Lx, 1)
    m2_bias = ((mask2 - 1.0) * 1e9)[:, None, :].astype(jnp.float32)    # (B, 1, Ly)

    kernel = functools.partial(_cross_layer_kernel, n_heads=n_heads)
    return pl.pallas_call(
        kernel,
        out_shape=jax.ShapeDtypeStruct((B, Lx, dim), jnp.float32),
        grid=(B, n_layers),
        in_specs=[
            pl.BlockSpec((1, Lx, dim), lambda b, l: (b, 0, 0)),        # x
            pl.BlockSpec((1, Ly, dim), lambda b, l: (b, 0, 0)),        # y
            pl.BlockSpec((1, Lx, 1), lambda b, l: (b, 0, 0)),          # mask1 (mult.)
            pl.BlockSpec((1, 1, Ly), lambda b, l: (b, 0, 0)),          # mask2 bias
            pl.BlockSpec((1, dim, dim), lambda b, l: (l, 0, 0)),       # Wq
            pl.BlockSpec((1, 1, dim), lambda b, l: (l, 0, 0)),         # bq
            pl.BlockSpec((1, dim, 2 * dim), lambda b, l: (l, 0, 0)),   # Wkv (fused)
            pl.BlockSpec((1, 1, 2 * dim), lambda b, l: (l, 0, 0)),     # bkv
            pl.BlockSpec((1, dim, dim), lambda b, l: (l, 0, 0)),       # Wo
            pl.BlockSpec((1, 1, dim), lambda b, l: (l, 0, 0)),         # bo
        ],
        out_specs=pl.BlockSpec((1, Lx, dim), lambda b, l: (b, 0, 0)),
        scratch_shapes=[pltpu.VMEM((Lx, dim), jnp.float32)],            # resident x
        compiler_params=pltpu.CompilerParams(
            dimension_semantics=("parallel", "arbitrary")),
    )(x, y, m1_col, m2_bias,
      params['Wq'], params['bq'], params['Wkv'], params['bkv'],
      params['Wo'], params['bo'])


# ------------------------------ model (glue) --------------------------------

@functools.partial(jax.jit, static_argnames=("n_heads",))
def net_forward(params, seq_x, seq_y, mask1, mask2, n_heads):
    x = geom_graph_forward(params['geom_x'], seq_x, mask1, n_heads)
    y = geom_graph_forward(params['geom_y'], seq_y, mask2, n_heads)
    return attn_graph_forward(params['out'], x, y, mask1, mask2, n_heads)


# --------------------------- deterministic init ------------------------------

def init_params(key, in_dim, dim, n_heads, kernel_size, x_layer, y_layer, out_layer):
    # weights stored bf16 (MXU-native on v6e/v7x), biases f32.
    def w(k, shape, fan_in):
        return (jax.random.normal(k, shape, jnp.float32)
                * float(fan_in) ** -0.5).astype(jnp.bfloat16)

    def geom_params(k, n_layers):
        k_in, k_c, k_qkv, k_o = jax.random.split(k, 4)
        return dict(
            W_in=w(k_in, (in_dim, dim), in_dim),
            b_in=jnp.zeros((1, dim), jnp.float32),
            Wc=w(k_c, (n_layers, kernel_size, dim, dim), kernel_size * dim),
            bc=jnp.zeros((n_layers, 1, dim), jnp.float32),
            Wqkv=w(k_qkv, (n_layers, dim, 3 * dim), dim),
            bqkv=jnp.zeros((n_layers, 1, 3 * dim), jnp.float32),
            Wo=w(k_o, (n_layers, dim, dim), dim),
            bo=jnp.zeros((n_layers, 1, dim), jnp.float32),
        )

    def attn_params(k, n_layers):
        kq, kkv, ko = jax.random.split(k, 3)
        return dict(
            Wq=w(kq, (n_layers, dim, dim), dim),
            bq=jnp.zeros((n_layers, 1, dim), jnp.float32),
            Wkv=w(kkv, (n_layers, dim, 2 * dim), dim),
            bkv=jnp.zeros((n_layers, 1, 2 * dim), jnp.float32),
            Wo=w(ko, (n_layers, dim, dim), dim),
            bo=jnp.zeros((n_layers, 1, dim), jnp.float32),
        )

    kx, ky, ko = jax.random.split(key, 3)
    return dict(geom_x=geom_params(kx, x_layer),
                geom_y=geom_params(ky, y_layer),
                out=attn_params(ko, out_layer))


# ---------------------------------- main -------------------------------------

if __name__ == "__main__":
    B, L = 2, 8
    in_dim, dim, n_heads = 20, 128, 8
    kernel_size = 3
    x_layer, y_layer, out_layer = 4, 4, 2

    key = jax.random.PRNGKey(0)
    kx, ky, kp = jax.random.split(key, 3)
    seq_x = jax.random.normal(kx, (B, L, in_dim), jnp.float32)
    seq_y = jax.random.normal(ky, (B, L, in_dim), jnp.float32)
    mask1 = jnp.ones((B, L), jnp.float32)
    mask2 = jnp.ones((B, L), jnp.float32).at[:, L - 2:].set(0.0)  # last 2 y-pos padded

    params = init_params(kp, in_dim, dim, n_heads, kernel_size,
                         x_layer, y_layer, out_layer)

    out = net_forward(params, seq_x, seq_y, mask1, mask2, n_heads=n_heads)
    jax.block_until_ready(out)
    assert out.shape == (B, L, dim) and out.dtype == jnp.float32
    assert bool(jnp.all(jnp.isfinite(out)))
    print("KERNEL_OK")
</pallas_src>

<mosaic_0001>
module attributes {stable_mosaic.version = 11 : i64} {
  func.func @_geom_layer_kernel(%arg0: i32, %arg1: i32, %arg2: memref<1x8x20xf32, #tpu.memory_space<vmem>>, %arg3: memref<1x8x1xf32, #tpu.memory_space<vmem>>, %arg4: memref<1x1x8xf32, #tpu.memory_space<vmem>>, %arg5: memref<20x128xbf16, #tpu.memory_space<vmem>>, %arg6: memref<1x128xf32, #tpu.memory_space<vmem>>, %arg7: memref<1x3x128x128xbf16, #tpu.memory_space<vmem>>, %arg8: memref<1x1x128xf32, #tpu.memory_space<vmem>>, %arg9: memref<1x128x384xbf16, #tpu.memory_space<vmem>>, %arg10: memref<1x1x384xf32, #tpu.memory_space<vmem>>, %arg11: memref<1x128x128xbf16, #tpu.memory_space<vmem>>, %arg12: memref<1x1x128xf32, #tpu.memory_space<vmem>>, %arg13: memref<1x8x128xf32, #tpu.memory_space<vmem>>, %arg14: memref<8x128xf32, #tpu.memory_space<vmem>>) attributes {dimension_semantics = [#tpu.dimension_semantics<parallel>, #tpu.dimension_semantics<arbitrary>], iteration_bounds = array<i64: 2, 4>, scalar_prefetch = 0 : i64, scratch_operands = 1 : i64, tpu.core_type = #tpu.core_type<tc>, window_params = [{transform_indices = @transform_0, window_bounds = array<i64: 1, 8, 20>}, {transform_indices = @transform_1, window_bounds = array<i64: 1, 8, 1>}, {transform_indices = @transform_2, window_bounds = array<i64: 1, 1, 8>}, {pipeline_mode = #tpu.pipeline_mode<synchronous>, transform_indices = @transform_3, window_bounds = array<i64: 20, 128>}, {pipeline_mode = #tpu.pipeline_mode<synchronous>, transform_indices = @transform_4, window_bounds = array<i64: 1, 128>}, {transform_indices = @transform_5, window_bounds = array<i64: 1, 3, 128, 128>}, {transform_indices = @transform_6, window_bounds = array<i64: 1, 1, 128>}, {transform_indices = @transform_7, window_bounds = array<i64: 1, 128, 384>}, {transform_indices = @transform_8, window_bounds = array<i64: 1, 1, 384>}, {transform_indices = @transform_9, window_bounds = array<i64: 1, 128, 128>}, {transform_indices = @transform_10, window_bounds = array<i64: 1, 1, 128>}, {transform_indices = @transform_11, window_bounds = array<i64: 1, 8, 128>}]} {
    %c0_i32 = arith.constant 0 : i32
    %0 = arith.cmpi eq, %arg1, %c0_i32 : i32
    %1 = arith.extui %0 : i1 to i32
    %c0_i32_0 = arith.constant 0 : i32
    %2 = arith.cmpi ne, %1, %c0_i32_0 : i32
    scf.if %2 {
      %c0_96 = arith.constant 0 : index
      %c0_97 = arith.constant 0 : index
      %c0_98 = arith.constant 0 : index
      %290 = vector.load %arg2[%c0_96, %c0_97, %c0_98] : memref<1x8x20xf32, #tpu.memory_space<vmem>>, vector<1x8x20xf32>
      %291 = vector.shape_cast %290 : vector<1x8x20xf32> to vector<8x20xf32>
      %292 = arith.truncf %291 : vector<8x20xf32> to vector<8x20xbf16>
      %c0_99 = arith.constant 0 : index
      %c0_100 = arith.constant 0 : index
      %293 = vector.load %arg5[%c0_99, %c0_100] : memref<20x128xbf16, #tpu.memory_space<vmem>>, vector<20x128xbf16>
      %cst_101 = arith.constant dense<0.000000e+00> : vector<8x128xf32>
      %294 = tpu.matmul %292, %293, %cst_101 {dimension_numbers = #tpu.dot_dimension_numbers<[1], [0], [0], [1], [0, 0, 1, 1], [], []>} : vector<8x20xbf16>, vector<20x128xbf16>, vector<8x128xf32> -> vector<8x128xf32>
      %c0_102 = arith.constant 0 : index
      %c0_103 = arith.constant 0 : index
      %295 = vector.load %arg6[%c0_102, %c0_103] : memref<1x128xf32, #tpu.memory_space<vmem>>, vector<1x128xf32>
      %296 = vector.broadcast %295 : vector<1x128xf32> to vector<8x128xf32>
      %297 = arith.addf %294, %296 : vector<8x128xf32>
      %c0_104 = arith.constant 0 : index
      %c0_105 = arith.constant 0 : index
      %298 = vector.load %arg14[%c0_104, %c0_105] : memref<8x128xf32, #tpu.memory_space<vmem>>, vector<8x128xf32>
      tpu.vector_store %arg14[%c0_104, %c0_105], %297 {strides = array<i32>} : memref<8x128xf32, #tpu.memory_space<vmem>>, vector<8x128xf32>,
    } else {
    }
    %c0 = arith.constant 0 : index
    %c0_1 = arith.constant 0 : index
    %3 = vector.load %arg14[%c0, %c0_1] : memref<8x128xf32, #tpu.memory_space<vmem>>, vector<8x128xf32>
    %c0_2 = arith.constant 0 : index
    %c0_3 = arith.constant 0 : index
    %c0_4 = arith.constant 0 : index
    %4 = vector.load %arg8[%c0_2, %c0_3, %c0_4] : memref<1x1x128xf32, #tpu.memory_space<vmem>>, vector<1x1x128xf32>
    %5 = vector.shape_cast %4 : vector<1x1x128xf32> to vector<1x128xf32>
    %6 = arith.truncf %3 : vector<8x128xf32> to vector<8x128xbf16>
    %7 = tpu.iota {dimensions = array<i32: 0>} : vector<8x8xi32>
    %8 = tpu.iota {dimensions = array<i32: 1>} : vector<8x8xi32>
    %cst = arith.constant 0.000000e+00 : f32
    %9 = vector.broadcast %cst : f32 to vector<8x128xf32>
    %c-1_i32 = arith.constant -1 : i32
    %10 = vector.broadcast %c-1_i32 : i32 to vector<8x8xi32>
    %11 = arith.addi %7, %10 : vector<8x8xi32>
    %12 = arith.cmpi eq, %8, %11 : vector<8x8xi32>
    %cst_5 = arith.constant 1.000000e+00 : f32
    %cst_6 = arith.constant 0.000000e+00 : f32
    %13 = vector.broadcast %cst_5 : f32 to vector<8x8xf32>
    %14 = vector.broadcast %cst_6 : f32 to vector<8x8xf32>
    %15 = arith.select %12, %13, %14 : vector<8x8xi1>, vector<8x8xf32>
    %16 = arith.truncf %15 : vector<8x8xf32> to vector<8x8xbf16>
    %cst_7 = arith.constant dense<0.000000e+00> : vector<8x128xf32>
    %17 = tpu.matmul %16, %6, %cst_7 {dimension_numbers = #tpu.dot_dimension_numbers<[1], [0], [0], [1], [0, 0, 1, 1], [], []>} : vector<8x8xbf16>, vector<8x128xbf16>, vector<8x128xf32> -> vector<8x128xf32>
    %18 = arith.truncf %17 : vector<8x128xf32> to vector<8x128xbf16>
    %c0_8 = arith.constant 0 : index
    %c0_9 = arith.constant 0 : index
    %c0_10 = arith.constant 0 : index
    %c0_11 = arith.constant 0 : index
    %19 = vector.load %arg7[%c0_8, %c0_9, %c0_10, %c0_11] : memref<1x3x128x128xbf16, #tpu.memory_space<vmem>>, vector<1x1x128x128xbf16>
    %20 = vector.shape_cast %19 : vector<1x1x128x128xbf16> to vector<128x128xbf16>
    %cst_12 = arith.constant dense<0.000000e+00> : vector<8x128xf32>
    %21 = tpu.matmul %18, %20, %cst_12 {dimension_numbers = #tpu.dot_dimension_numbers<[1], [0], [0], [1], [0, 0, 1, 1], [], []>} : vector<8x128xbf16>, vector<128x128xbf16>, vector<8x128xf32> -> vector<8x128xf32>
    %22 = arith.addf %9, %21 : vector<8x128xf32>
    %c0_13 = arith.constant 0 : index
    %c1 = arith.constant 1 : index
    %c0_14 = arith.constant 0 : index
    %c0_15 = arith.constant 0 : index
    %23 = vector.load %arg7[%c0_13, %c1, %c0_14, %c0_15] : memref<1x3x128x128xbf16, #tpu.memory_space<vmem>>, vector<1x1x128x128xbf16>
    %24 = vector.shape_cast %23 : vector<1x1x128x128xbf16> to vector<128x128xbf16>
    %cst_16 = arith.constant dense<0.000000e+00> : vector<8x128xf32>
    %25 = tpu.matmul %6, %24, %cst_16 {dimension_numbers = #tpu.dot_dimension_numbers<[1], [0], [0], [1], [0, 0, 1, 1], [], []>} : vector<8x128xbf16>, vector<128x128xbf16>, vector<8x128xf32> -> vector<8x128xf32>
    %26 = arith.addf %22, %25 : vector<8x128xf32>
    %c1_i32 = arith.constant 1 : i32
    %27 = vector.broadcast %c1_i32 : i32 to vector<8x8xi32>
    %28 = arith.addi %7, %27 : vector<8x8xi32>
    %29 = arith.cmpi eq, %8, %28 : vector<8x8xi32>
    %cst_17 = arith.constant 1.000000e+00 : f32
    %cst_18 = arith.constant 0.000000e+00 : f32
    %30 = vector.broadcast %cst_17 : f32 to vector<8x8xf32>
    %31 = vector.broadcast %cst_18 : f32 to vector<8x8xf32>
    %32 = arith.select %29, %30, %31 : vector<8x8xi1>, vector<8x8xf32>
    %33 = arith.truncf %32 : vector<8x8xf32> to vector<8x8xbf16>
    %cst_19 = arith.constant dense<0.000000e+00> : vector<8x128xf32>
    %34 = tpu.matmul %33, %6, %cst_19 {dimension_numbers = #tpu.dot_dimension_numbers<[1], [0], [0], [1], [0, 0, 1, 1], [], []>} : vector<8x8xbf16>, vector<8x128xbf16>, vector<8x128xf32> -> vector<8x128xf32>
    %35 = arith.truncf %34 : vector<8x128xf32> to vector<8x128xbf16>
    %c0_20 = arith.constant 0 : index
    %c2 = arith.constant 2 : index
    %c0_21 = arith.constant 0 : index
    %c0_22 = arith.constant 0 : index
    %36 = vector.load %arg7[%c0_20, %c2, %c0_21, %c0_22] : memref<1x3x128x128xbf16, #tpu.memory_space<vmem>>, vector<1x1x128x128xbf16>
    %37 = vector.shape_cast %36 : vector<1x1x128x128xbf16> to vector<128x128xbf16>
    %cst_23 = arith.constant dense<0.000000e+00> : vector<8x128xf32>
    %38 = tpu.matmul %35, %37, %cst_23 {dimension_numbers = #tpu.dot_dimension_numbers<[1], [0], [0], [1], [0, 0, 1, 1], [], []>} : vector<8x128xbf16>, vector<128x128xbf16>, vector<8x128xf32> -> vector<8x128xf32>
    %39 = arith.addf %26, %38 : vector<8x128xf32>
    %40 = vector.broadcast %5 : vector<1x128xf32> to vector<8x128xf32>
    %41 = arith.addf %39, %40 : vector<8x128xf32>
    %cst_24 = arith.constant 0.000000e+00 : f32
    %42 = vector.broadcast %cst_24 : f32 to vector<8x128xf32>
    %43 = arith.maximumf %41, %42 : vector<8x128xf32>
    %44 = arith.addf %3, %43 : vector<8x128xf32>
    %45 = arith.truncf %44 : vector<8x128xf32> to vector<8x128xbf16>
    %c0_25 = arith.constant 0 : index
    %c0_26 = arith.constant 0 : index
    %c0_27 = arith.constant 0 : index
    %46 = vector.load %arg9[%c0_25, %c0_26, %c0_27] : memref<1x128x384xbf16, #tpu.memory_space<vmem>>, vector<1x128x384xbf16>
    %47 = vector.shape_cast %46 : vector<1x128x384xbf16> to vector<128x384xbf16>
    %cst_28 = arith.constant dense<0.000000e+00> : vector<8x384xf32>
    %48 = tpu.matmul %45, %47, %cst_28 {dimension_numbers = #tpu.dot_dimension_numbers<[1], [0], [0], [1], [0, 0, 1, 1], [], []>} : vector<8x128xbf16>, vector<128x384xbf16>, vector<8x384xf32> -> vector<8x384xf32>
    %c0_29 = arith.constant 0 : index
    %c0_30 = arith.constant 0 : index
    %c0_31 = arith.constant 0 : index
    %49 = vector.load %arg10[%c0_29, %c0_30, %c0_31] : memref<1x1x384xf32, #tpu.memory_space<vmem>>, vector<1x1x384xf32>
    %50 = vector.shape_cast %49 : vector<1x1x384xf32> to vector<1x384xf32>
    %51 = vector.broadcast %50 : vector<1x384xf32> to vector<8x384xf32>
    %52 = arith.addf %48, %51 : vector<8x384xf32>
    %53 = vector.extract_strided_slice %52 {offsets = [0, 0], sizes = [8, 128], strides = [1, 1]} : vector<8x384xf32> to vector<8x128xf32>
    %54 = vector.extract_strided_slice %52 {offsets = [0, 128], sizes = [8, 128], strides = [1, 1]} : vector<8x384xf32> to vector<8x128xf32>
    %55 = vector.extract_strided_slice %52 {offsets = [0, 256], sizes = [8, 128], strides = [1, 1]} : vector<8x384xf32> to vector<8x128xf32>
    %c0_32 = arith.constant 0 : index
    %c0_33 = arith.constant 0 : index
    %c0_34 = arith.constant 0 : index
    %56 = vector.load %arg4[%c0_32, %c0_33, %c0_34] : memref<1x1x8xf32, #tpu.memory_space<vmem>>, vector<1x1x8xf32>
    %57 = vector.shape_cast %56 : vector<1x1x8xf32> to vector<1x8xf32>
    %c0_35 = arith.constant 0 : index
    %c0_36 = arith.constant 0 : index
    %c0_37 = arith.constant 0 : index
    %58 = vector.load %arg11[%c0_35, %c0_36, %c0_37] : memref<1x128x128xbf16, #tpu.memory_space<vmem>>, vector<1x128x128xbf16>
    %59 = vector.shape_cast %58 : vector<1x128x128xbf16> to vector<128x128xbf16>
    %cst_38 = arith.constant 0.000000e+00 : f32
    %60 = vector.broadcast %cst_38 : f32 to vector<8x128xf32>
    %61 = vector.extract_strided_slice %53 {offsets = [0, 0], sizes = [8, 16], strides = [1, 1]} : vector<8x128xf32> to vector<8x16xf32>
    %62 = arith.truncf %61 : vector<8x16xf32> to vector<8x16xbf16>
    %63 = vector.extract_strided_slice %54 {offsets = [0, 0], sizes = [8, 16], strides = [1, 1]} : vector<8x128xf32> to vector<8x16xf32>
    %64 = arith.truncf %63 : vector<8x16xf32> to vector<8x16xbf16>
    %65 = vector.extract_strided_slice %55 {offsets = [0, 0], sizes = [8, 16], strides = [1, 1]} : vector<8x128xf32> to vector<8x16xf32>
    %66 = arith.truncf %65 : vector<8x16xf32> to vector<8x16xbf16>
    %cst_39 = arith.constant dense<0.000000e+00> : vector<8x8xf32>
    %67 = tpu.matmul %62, %64, %cst_39 {dimension_numbers = #tpu.dot_dimension_numbers<[1], [1], [0], [0], [0, 0, 1, 0], [], []>} : vector<8x16xbf16>, vector<8x16xbf16>, vector<8x8xf32> -> vector<8x8xf32>
    %cst_40 = arith.constant 2.500000e-01 : f32
    %68 = vector.broadcast %cst_40 : f32 to vector<8x8xf32>
    %69 = arith.mulf %67, %68 : vector<8x8xf32>
    %70 = vector.broadcast %57 : vector<1x8xf32> to vector<8x8xf32>
    %71 = arith.addf %69, %70 : vector<8x8xf32>
    %cst_41 = arith.constant dense<0xFF800000> : vector<8xf32>
    %72 = vector.multi_reduction <maximumf>, %71, %cst_41 [1] : vector<8x8xf32> to vector<8xf32>
    %73 = vector.shape_cast %72 : vector<8xf32> to vector<8x1xf32>
    %74 = vector.broadcast %73 : vector<8x1xf32> to vector<8x8xf32>
    %75 = arith.subf %71, %74 : vector<8x8xf32>
    %76 = math.exp %75 : vector<8x8xf32>
    %cst_42 = arith.constant dense<0.000000e+00> : vector<8xf32>
    %77 = vector.multi_reduction <add>, %76, %cst_42 [1] : vector<8x8xf32> to vector<8xf32>
    %78 = vector.shape_cast %77 : vector<8xf32> to vector<8x1xf32>
    %79 = tpu.reciprocal %78 {approx = true} : vector<8x1xf32> -> vector<8x1xf32>
    %80 = vector.broadcast %79 : vector<8x1xf32> to vector<8x8xf32>
    %81 = arith.mulf %76, %80 : vector<8x8xf32>
    %82 = arith.truncf %81 : vector<8x8xf32> to vector<8x8xbf16>
    %cst_43 = arith.constant dense<0.000000e+00> : vector<8x16xf32>
    %83 = tpu.matmul %82, %66, %cst_43 {dimension_numbers = #tpu.dot_dimension_numbers<[1], [0], [0], [1], [0, 0, 1, 1], [], []>} : vector<8x8xbf16>, vector<8x16xbf16>, vector<8x16xf32> -> vector<8x16xf32>
    %84 = arith.truncf %83 : vector<8x16xf32> to vector<8x16xbf16>
    %85 = vector.extract_strided_slice %59 {offsets = [0, 0], sizes = [16, 128], strides = [1, 1]} : vector<128x128xbf16> to vector<16x128xbf16>
    %cst_44 = arith.constant dense<0.000000e+00> : vector<8x128xf32>
    %86 = tpu.matmul %84, %85, %cst_44 {dimension_numbers = #tpu.dot_dimension_numbers<[1], [0], [0], [1], [0, 0, 1, 1], [], []>} : vector<8x16xbf16>, vector<16x128xbf16>, vector<8x128xf32> -> vector<8x128xf32>
    %87 = arith.addf %60, %86 : vector<8x128xf32>
    %88 = vector.extract_strided_slice %53 {offsets = [0, 16], sizes = [8, 16], strides = [1, 1]} : vector<8x128xf32> to vector<8x16xf32>
    %89 = arith.truncf %88 : vector<8x16xf32> to vector<8x16xbf16>
    %90 = vector.extract_strided_slice %54 {offsets = [0, 16], sizes = [8, 16], strides = [1, 1]} : vector<8x128xf32> to vector<8x16xf32>
    %91 = arith.truncf %90 : vector<8x16xf32> to vector<8x16xbf16>
    %92 = vector.extract_strided_slice %55 {offsets = [0, 16], sizes = [8, 16], strides = [1, 1]} : vector<8x128xf32> to vector<8x16xf32>
    %93 = arith.truncf %92 : vector<8x16xf32> to vector<8x16xbf16>
    %cst_45 = arith.constant dense<0.000000e+00> : vector<8x8xf32>
    %94 = tpu.matmul %89, %91, %cst_45 {dimension_numbers = #tpu.dot_dimension_numbers<[1], [1], [0], [0], [0, 0, 1, 0], [], []>} : vector<8x16xbf16>, vector<8x16xbf16>, vector<8x8xf32> -> vector<8x8xf32>
    %cst_46 = arith.constant 2.500000e-01 : f32
    %95 = vector.broadcast %cst_46 : f32 to vector<8x8xf32>
    %96 = arith.mulf %94, %95 : vector<8x8xf32>
    %97 = vector.broadcast %57 : vector<1x8xf32> to vector<8x8xf32>
    %98 = arith.addf %96, %97 : vector<8x8xf32>
    %cst_47 = arith.constant dense<0xFF800000> : vector<8xf32>
    %99 = vector.multi_reduction <maximumf>, %98, %cst_47 [1] : vector<8x8xf32> to vector<8xf32>
    %100 = vector.shape_cast %99 : vector<8xf32> to vector<8x1xf32>
    %101 = vector.broadcast %100 : vector<8x1xf32> to vector<8x8xf32>
    %102 = arith.subf %98, %101 : vector<8x8xf32>
    %103 = math.exp %102 : vector<8x8xf32>
    %cst_48 = arith.constant dense<0.000000e+00> : vector<8xf32>
    %104 = vector.multi_reduction <add>, %103, %cst_48 [1] : vector<8x8xf32> to vector<8xf32>
    %105 = vector.shape_cast %104 : vector<8xf32> to vector<8x1xf32>
    %106 = tpu.reciprocal %105 {approx = true} : vector<8x1xf32> -> vector<8x1xf32>
    %107 = vector.broadcast %106 : vector<8x1xf32> to vector<8x8xf32>
    %108 = arith.mulf %103, %107 : vector<8x8xf32>
    %109 = arith.truncf %108 : vector<8x8xf32> to vector<8x8xbf16>
    %cst_49 = arith.constant dense<0.000000e+00> : vector<8x16xf32>
    %110 = tpu.matmul %109, %93, %cst_49 {dimension_numbers = #tpu.dot_dimension_numbers<[1], [0], [0], [1], [0, 0, 1, 1], [], []>} : vector<8x8xbf16>, vector<8x16xbf16>, vector<8x16xf32> -> vector<8x16xf32>
    %111 = arith.truncf %110 : vector<8x16xf32> to vector<8x16xbf16>
    %112 = vector.extract_strided_slice %59 {offsets = [16, 0], sizes = [16, 128], strides = [1, 1]} : vector<128x128xbf16> to vector<16x128xbf16>
    %cst_50 = arith.constant dense<0.000000e+00> : vector<8x128xf32>
    %113 = tpu.matmul %111, %112, %cst_50 {dimension_numbers = #tpu.dot_dimension_numbers<[1], [0], [0], [1], [0, 0, 1, 1], [], []>} : vector<8x16xbf16>, vector<16x128xbf16>, vector<8x128xf32> -> vector<8x128xf32>
    %114 = arith.addf %87, %113 : vector<8x128xf32>
    %115 = vector.extract_strided_slice %53 {offsets = [0, 32], sizes = [8, 16], strides = [1, 1]} : vector<8x128xf32> to vector<8x16xf32>
    %116 = arith.truncf %115 : vector<8x16xf32> to vector<8x16xbf16>
    %117 = vector.extract_strided_slice %54 {offsets = [0, 32], sizes = [8, 16], strides = [1, 1]} : vector<8x128xf32> to vector<8x16xf32>
    %118 = arith.truncf %117 : vector<8x16xf32> to vector<8x16xbf16>
    %119 = vector.extract_strided_slice %55 {offsets = [0, 32], sizes = [8, 16], strides = [1, 1]} : vector<8x128xf32> to vector<8x16xf32>
    %120 = arith.truncf %119 : vector<8x16xf32> to vector<8x16xbf16>
    %cst_51 = arith.constant dense<0.000000e+00> : vector<8x8xf32>
    %121 = tpu.matmul %116, %118, %cst_51 {dimension_numbers = #tpu.dot_dimension_numbers<[1], [1], [0], [0], [0, 0, 1, 0], [], []>} : vector<8x16xbf16>, vector<8x16xbf16>, vector<8x8xf32> -> vector<8x8xf32>
    %cst_52 = arith.constant 2.500000e-01 : f32
    %122 = vector.broadcast %cst_52 : f32 to vector<8x8xf32>
    %123 = arith.mulf %121, %122 : vector<8x8xf32>
    %124 = vector.broadcast %57 : vector<1x8xf32> to vector<8x8xf32>
    %125 = arith.addf %123, %124 : vector<8x8xf32>
    %cst_53 = arith.constant dense<0xFF800000> : vector<8xf32>
    %126 = vector.multi_reduction <maximumf>, %125, %cst_53 [1] : vector<8x8xf32> to vector<8xf32>
    %127 = vector.shape_cast %126 : vector<8xf32> to vector<8x1xf32>
    %128 = vector.broadcast %127 : vector<8x1xf32> to vector<8x8xf32>
    %129 = arith.subf %125, %128 : vector<8x8xf32>
    %130 = math.exp %129 : vector<8x8xf32>
    %cst_54 = arith.constant dense<0.000000e+00> : vector<8xf32>
    %131 = vector.multi_reduction <add>, %130, %cst_54 [1] : vector<8x8xf32> to vector<8xf32>
    %132 = vector.shape_cast %131 : vector<8xf32> to vector<8x1xf32>
    %133 = tpu.reciprocal %132 {approx = true} : vector<8x1xf32> -> vector<8x1xf32>
    %134 = vector.broadcast %133 : vector<8x1xf32> to vector<8x8xf32>
    %135 = arith.mulf %130, %134 : vector<8x8xf32>
    %136 = arith.truncf %135 : vector<8x8xf32> to vector<8x8xbf16>
    %cst_55 = arith.constant dense<0.000000e+00> : vector<8x16xf32>
    %137 = tpu.matmul %136, %120, %cst_55 {dimension_numbers = #tpu.dot_dimension_numbers<[1], [0], [0], [1], [0, 0, 1, 1], [], []>} : vector<8x8xbf16>, vector<8x16xbf16>, vector<8x16xf32> -> vector<8x16xf32>
    %138 = arith.truncf %137 : vector<8x16xf32> to vector<8x16xbf16>
    %139 = vector.extract_strided_slice %59 {offsets = [32, 0], sizes = [16, 128], strides = [1, 1]} : vector<128x128xbf16> to vector<16x128xbf16>
    %cst_56 = arith.constant dense<0.000000e+00> : vector<8x128xf32>
    %140 = tpu.matmul %138, %139, %cst_56 {dimension_numbers = #tpu.dot_dimension_numbers<[1], [0], [0], [1], [0, 0, 1, 1], [], []>} : vector<8x16xbf16>, vector<16x128xbf16>, vector<8x128xf32> -> vector<8x128xf32>
    %141 = arith.addf %114, %140 : vector<8x128xf32>
    %142 = vector.extract_strided_slice %53 {offsets = [0, 48], sizes = [8, 16], strides = [1, 1]} : vector<8x128xf32> to vector<8x16xf32>
    %143 = arith.truncf %142 : vector<8x16xf32> to vector<8x16xbf16>
    %144 = vector.extract_strided_slice %54 {offsets = [0, 48], sizes = [8, 16], strides = [1, 1]} : vector<8x128xf32> to vector<8x16xf32>
    %145 = arith.truncf %144 : vector<8x16xf32> to vector<8x16xbf16>
    %146 = vector.extract_strided_slice %55 {offsets = [0, 48], sizes = [8, 16], strides = [1, 1]} : vector<8x128xf32> to vector<8x16xf32>
    %147 = arith.truncf %146 : vector<8x16xf32> to vector<8x16xbf16>
    %cst_57 = arith.constant dense<0.000000e+00> : vector<8x8xf32>
    %148 = tpu.matmul %143, %145, %cst_57 {dimension_numbers = #tpu.dot_dimension_numbers<[1], [1], [0], [0], [0, 0, 1, 0], [], []>} : vector<8x16xbf16>, vector<8x16xbf16>, vector<8x8xf32> -> vector<8x8xf32>
    %cst_58 = arith.constant 2.500000e-01 : f32
    %149 = vector.broadcast %cst_58 : f32 to vector<8x8xf32>
    %150 = arith.mulf %148, %149 : vector<8x8xf32>
    %151 = vector.broadcast %57 : vector<1x8xf32> to vector<8x8xf32>
    %152 = arith.addf %150, %151 : vector<8x8xf32>
    %cst_59 = arith.constant dense<0xFF800000> : vector<8xf32>
    %153 = vector.multi_reduction <maximumf>, %152, %cst_59 [1] : vector<8x8xf32> to vector<8xf32>
    %154 = vector.shape_cast %153 : vector<8xf32> to vector<8x1xf32>
    %155 = vector.broadcast %154 : vector<8x1xf32> to vector<8x8xf32>
    %156 = arith.subf %152, %155 : vector<8x8xf32>
    %157 = math.exp %156 : vector<8x8xf32>
    %cst_60 = arith.constant dense<0.000000e+00> : vector<8xf32>
    %158 = vector.multi_reduction <add>, %157, %cst_60 [1] : vector<8x8xf32> to vector<8xf32>
    %159 = vector.shape_cast %158 : vector<8xf32> to vector<8x1xf32>
    %160 = tpu.reciprocal %159 {approx = true} : vector<8x1xf32> -> vector<8x1xf32>
    %161 = vector.broadcast %160 : vector<8x1xf32> to vector<8x8xf32>
    %162 = arith.mulf %157, %161 : vector<8x8xf32>
    %163 = arith.truncf %162 : vector<8x8xf32> to vector<8x8xbf16>
    %cst_61 = arith.constant dense<0.000000e+00> : vector<8x16xf32>
    %164 = tpu.matmul %163, %147, %cst_61 {dimension_numbers = #tpu.dot_dimension_numbers<[1], [0], [0], [1], [0, 0, 1, 1], [], []>} : vector<8x8xbf16>, vector<8x16xbf16>, vector<8x16xf32> -> vector<8x16xf32>
    %165 = arith.truncf %164 : vector<8x16xf32> to vector<8x16xbf16>
    %166 = vector.extract_strided_slice %59 {offsets = [48, 0], sizes = [16, 128], strides = [1, 1]} : vector<128x128xbf16> to vector<16x128xbf16>
    %cst_62 = arith.constant dense<0.000000e+00> : vector<8x128xf32>
    %167 = tpu.matmul %165, %166, %cst_62 {dimension_numbers = #tpu.dot_dimension_numbers<[1], [0], [0], [1], [0, 0, 1, 1], [], []>} : vector<8x16xbf16>, vector<16x128xbf16>, vector<8x128xf32> -> vector<8x128xf32>
    %168 = arith.addf %141, %167 : vector<8x128xf32>
    %169 = vector.extract_strided_slice %53 {offsets = [0, 64], sizes = [8, 16], strides = [1, 1]} : vector<8x128xf32> to vector<8x16xf32>
    %170 = arith.truncf %169 : vector<8x16xf32> to vector<8x16xbf16>
    %171 = vector.extract_strided_slice %54 {offsets = [0, 64], sizes = [8, 16], strides = [1, 1]} : vector<8x128xf32> to vector<8x16xf32>
    %172 = arith.truncf %171 : vector<8x16xf32> to vector<8x16xbf16>
    %173 = vector.extract_strided_slice %55 {offsets = [0, 64], sizes = [8, 16], strides = [1, 1]} : vector<8x128xf32> to vector<8x16xf32>
    %174 = arith.truncf %173 : vector<8x16xf32> to vector<8x16xbf16>
    %cst_63 = arith.constant dense<0.000000e+00> : vector<8x8xf32>
    %175 = tpu.matmul %170, %172, %cst_63 {dimension_numbers = #tpu.dot_dimension_numbers<[1], [1], [0], [0], [0, 0, 1, 0], [], []>} : vector<8x16xbf16>, vector<8x16xbf16>, vector<8x8xf32> -> vector<8x8xf32>
    %cst_64 = arith.constant 2.500000e-01 : f32
    %176 = vector.broadcast %cst_64 : f32 to vector<8x8xf32>
    %177 = arith.mulf %175, %176 : vector<8x8xf32>
    %178 = vector.broadcast %57 : vector<1x8xf32> to vector<8x8xf32>
    %179 = arith.addf %177, %178 : vector<8x8xf32>
    %cst_65 = arith.constant dense<0xFF800000> : vector<8xf32>
    %180 = vector.multi_reduction <maximumf>, %179, %cst_65 [1] : vector<8x8xf32> to vector<8xf32>
    %181 = vector.shape_cast %180 : vector<8xf32> to vector<8x1xf32>
    %182 = vector.broadcast %181 : vector<8x1xf32> to vector<8x8xf32>
    %183 = arith.subf %179, %182 : vector<8x8xf32>
    %184 = math.exp %183 : vector<8x8xf32>
    %cst_66 = arith.constant dense<0.000000e+00> : vector<8xf32>
    %185 = vector.multi_reduction <add>, %184, %cst_66 [1] : vector<8x8xf32> to vector<8xf32>
    %186 = vector.shape_cast %185 : vector<8xf32> to vector<8x1xf32>
    %187 = tpu.reciprocal %186 {approx = true} : vector<8x1xf32> -> vector<8x1xf32>
    %188 = vector.broadcast %187 : vector<8x1xf32> to vector<8x8xf32>
    %189 = arith.mulf %184, %188 : vector<8x8xf32>
    %190 = arith.truncf %189 : vector<8x8xf32> to vector<8x8xbf16>
    %cst_67 = arith.constant dense<0.000000e+00> : vector<8x16xf32>
    %191 = tpu.matmul %190, %174, %cst_67 {dimension_numbers = #tpu.dot_dimension_numbers<[1], [0], [0], [1], [0, 0, 1, 1], [], []>} : vector<8x8xbf16>, vector<8x16xbf16>, vector<8x16xf32> -> vector<8x16xf32>
    %192 = arith.truncf %191 : vector<8x16xf32> to vector<8x16xbf16>
    %193 = vector.extract_strided_slice %59 {offsets = [64, 0], sizes = [16, 128], strides = [1, 1]} : vector<128x128xbf16> to vector<16x128xbf16>
    %cst_68 = arith.constant dense<0.000000e+00> : vector<8x128xf32>
    %194 = tpu.matmul %192, %193, %cst_68 {dimension_numbers = #tpu.dot_dimension_numbers<[1], [0], [0], [1], [0, 0, 1, 1], [], []>} : vector<8x16xbf16>, vector<16x128xbf16>, vector<8x128xf32> -> vector<8x128xf32>
    %195 = arith.addf %168, %194 : vector<8x128xf32>
    %196 = vector.extract_strided_slice %53 {offsets = [0, 80], sizes = [8, 16], strides = [1, 1]} : vector<8x128xf32> to vector<8x16xf32>
    %197 = arith.truncf %196 : vector<8x16xf32> to vector<8x16xbf16>
    %198 = vector.extract_strided_slice %54 {offsets = [0, 80], sizes = [8, 16], strides = [1, 1]} : vector<8x128xf32> to vector<8x16xf32>
    %199 = arith.truncf %198 : vector<8x16xf32> to vector<8x16xbf16>
    %200 = vector.extract_strided_slice %55 {offsets = [0, 80], sizes = [8, 16], strides = [1, 1]} : vector<8x128xf32> to vector<8x16xf32>
    %201 = arith.truncf %200 : vector<8x16xf32> to vector<8x16xbf16>
    %cst_69 = arith.constant dense<0.000000e+00> : vector<8x8xf32>
    %202 = tpu.matmul %197, %199, %cst_69 {dimension_numbers = #tpu.dot_dimension_numbers<[1], [1], [0], [0], [0, 0, 1, 0], [], []>} : vector<8x16xbf16>, vector<8x16xbf16>, vector<8x8xf32> -> vector<8x8xf32>
    %cst_70 = arith.constant 2.500000e-01 : f32
    %203 = vector.broadcast %cst_70 : f32 to vector<8x8xf32>
    %204 = arith.mulf %202, %203 : vector<8x8xf32>
    %205 = vector.broadcast %57 : vector<1x8xf32> to vector<8x8xf32>
    %206 = arith.addf %204, %205 : vector<8x8xf32>
    %cst_71 = arith.constant dense<0xFF800000> : vector<8xf32>
    %207 = vector.multi_reduction <maximumf>, %206, %cst_71 [1] : vector<8x8xf32> to vector<8xf32>
    %208 = vector.shape_cast %207 : vector<8xf32> to vector<8x1xf32>
    %209 = vector.broadcast %208 : vector<8x1xf32> to vector<8x8xf32>
    %210 = arith.subf %206, %209 : vector<8x8xf32>
    %211 = math.exp %210 : vector<8x8xf32>
    %cst_72 = arith.constant dense<0.000000e+00> : vector<8xf32>
    %212 = vector.multi_reduction <add>, %211, %cst_72 [1] : vector<8x8xf32> to vector<8xf32>
    %213 = vector.shape_cast %212 : vector<8xf32> to vector<8x1xf32>
    %214 = tpu.reciprocal %213 {approx = true} : vector<8x1xf32> -> vector<8x1xf32>
    %215 = vector.broadcast %214 : vector<8x1xf32> to vector<8x8xf32>
    %216 = arith.mulf %211, %215 : vector<8x8xf32>
    %217 = arith.truncf %216 : vector<8x8xf32> to vector<8x8xbf16>
    %cst_73 = arith.constant dense<0.000000e+00> : vector<8x16xf32>
    %218 = tpu.matmul %217, %201, %cst_73 {dimension_numbers = #tpu.dot_dimension_numbers<[1], [0], [0], [1], [0, 0, 1, 1], [], []>} : vector<8x8xbf16>, vector<8x16xbf16>, vector<8x16xf32> -> vector<8x16xf32>
    %219 = arith.truncf %218 : vector<8x16xf32> to vector<8x16xbf16>
    %220 = vector.extract_strided_slice %59 {offsets = [80, 0], sizes = [16, 128], strides = [1, 1]} : vector<128x128xbf16> to vector<16x128xbf16>
    %cst_74 = arith.constant dense<0.000000e+00> : vector<8x128xf32>
    %221 = tpu.matmul %219, %220, %cst_74 {dimension_numbers = #tpu.dot_dimension_numbers<[1], [0], [0], [1], [0, 0, 1, 1], [], []>} : vector<8x16xbf16>, vector<16x128xbf16>, vector<8x128xf32> -> vector<8x128xf32>
    %222 = arith.addf %195, %221 : vector<8x128xf32>
    %223 = vector.extract_strided_slice %53 {offsets = [0, 96], sizes = [8, 16], strides = [1, 1]} : vector<8x128xf32> to vector<8x16xf32>
    %224 = arith.truncf %223 : vector<8x16xf32> to vector<8x16xbf16>
    %225 = vector.extract_strided_slice %54 {offsets = [0, 96], sizes = [8, 16], strides = [1, 1]} : vector<8x128xf32> to vector<8x16xf32>
    %226 = arith.truncf %225 : vector<8x16xf32> to vector<8x16xbf16>
    %227 = vector.extract_strided_slice %55 {offsets = [0, 96], sizes = [8, 16], strides = [1, 1]} : vector<8x128xf32> to vector<8x16xf32>
    %228 = arith.truncf %227 : vector<8x16xf32> to vector<8x16xbf16>
    %cst_75 = arith.constant dense<0.000000e+00> : vector<8x8xf32>
    %229 = tpu.matmul %224, %226, %cst_75 {dimension_numbers = #tpu.dot_dimension_numbers<[1], [1], [0], [0], [0, 0, 1, 0], [], []>} : vector<8x16xbf16>, vector<8x16xbf16>, vector<8x8xf32> -> vector<8x8xf32>
    %cst_76 = arith.constant 2.500000e-01 : f32
    %230 = vector.broadcast %cst_76 : f32 to vector<8x8xf32>
    %231 = arith.mulf %229, %230 : vector<8x8xf32>
    %232 = vector.broadcast %57 : vector<1x8xf32> to vector<8x8xf32>
    %233 = arith.addf %231, %232 : vector<8x8xf32>
    %cst_77 = arith.constant dense<0xFF800000> : vector<8xf32>
    %234 = vector.multi_reduction <maximumf>, %233, %cst_77 [1] : vector<8x8xf32> to vector<8xf32>
    %235 = vector.shape_cast %234 : vector<8xf32> to vector<8x1xf32>
    %236 = vector.broadcast %235 : vector<8x1xf32> to vector<8x8xf32>
    %237 = arith.subf %233, %236 : vector<8x8xf32>
    %238 = math.exp %237 : vector<8x8xf32>
    %cst_78 = arith.constant dense<0.000000e+00> : vector<8xf32>
    %239 = vector.multi_reduction <add>, %238, %cst_78 [1] : vector<8x8xf32> to vector<8xf32>
    %240 = vector.shape_cast %239 : vector<8xf32> to vector<8x1xf32>
    %241 = tpu.reciprocal %240 {approx = true} : vector<8x1xf32> -> vector<8x1xf32>
    %242 = vector.broadcast %241 : vector<8x1xf32> to vector<8x8xf32>
    %243 = arith.mulf %238, %242 : vector<8x8xf32>
    %244 = arith.truncf %243 : vector<8x8xf32> to vector<8x8xbf16>
    %cst_79 = arith.constant dense<0.000000e+00> : vector<8x16xf32>
    %245 = tpu.matmul %244, %228, %cst_79 {dimension_numbers = #tpu.dot_dimension_numbers<[1], [0], [0], [1], [0, 0, 1, 1], [], []>} : vector<8x8xbf16>, vector<8x16xbf16>, vector<8x16xf32> -> vector<8x16xf32>
    %246 = arith.truncf %245 : vector<8x16xf32> to vector<8x16xbf16>
    %247 = vector.extract_strided_slice %59 {offsets = [96, 0], sizes = [16, 128], strides = [1, 1]} : vector<128x128xbf16> to vector<16x128xbf16>
    %cst_80 = arith.constant dense<0.000000e+00> : vector<8x128xf32>
    %248 = tpu.matmul %246, %247, %cst_80 {dimension_numbers = #tpu.dot_dimension_numbers<[1], [0], [0], [1], [0, 0, 1, 1], [], []>} : vector<8x16xbf16>, vector<16x128xbf16>, vector<8x128xf32> -> vector<8x128xf32>
    %249 = arith.addf %222, %248 : vector<8x128xf32>
    %250 = vector.extract_strided_slice %53 {offsets = [0, 112], sizes = [8, 16], strides = [1, 1]} : vector<8x128xf32> to vector<8x16xf32>
    %251 = arith.truncf %250 : vector<8x16xf32> to vector<8x16xbf16>
    %252 = vector.extract_strided_slice %54 {offsets = [0, 112], sizes = [8, 16], strides = [1, 1]} : vector<8x128xf32> to vector<8x16xf32>
    %253 = arith.truncf %252 : vector<8x16xf32> to vector<8x16xbf16>
    %254 = vector.extract_strided_slice %55 {offsets = [0, 112], sizes = [8, 16], strides = [1, 1]} : vector<8x128xf32> to vector<8x16xf32>
    %255 = arith.truncf %254 : vector<8x16xf32> to vector<8x16xbf16>
    %cst_81 = arith.constant dense<0.000000e+00> : vector<8x8xf32>
    %256 = tpu.matmul %251, %253, %cst_81 {dimension_numbers = #tpu.dot_dimension_numbers<[1], [1], [0], [0], [0, 0, 1, 0], [], []>} : vector<8x16xbf16>, vector<8x16xbf16>, vector<8x8xf32> -> vector<8x8xf32>
    %cst_82 = arith.constant 2.500000e-01 : f32
    %257 = vector.broadcast %cst_82 : f32 to vector<8x8xf32>
    %258 = arith.mulf %256, %257 : vector<8x8xf32>
    %259 = vector.broadcast %57 : vector<1x8xf32> to vector<8x8xf32>
    %260 = arith.addf %258, %259 : vector<8x8xf32>
    %cst_83 = arith.constant dense<0xFF800000> : vector<8xf32>
    %261 = vector.multi_reduction <maximumf>, %260, %cst_83 [1] : vector<8x8xf32> to vector<8xf32>
    %262 = vector.shape_cast %261 : vector<8xf32> to vector<8x1xf32>
    %263 = vector.broadcast %262 : vector<8x1xf32> to vector<8x8xf32>
    %264 = arith.subf %260, %263 : vector<8x8xf32>
    %265 = math.exp %264 : vector<8x8xf32>
    %cst_84 = arith.constant dense<0.000000e+00> : vector<8xf32>
    %266 = vector.multi_reduction <add>, %265, %cst_84 [1] : vector<8x8xf32> to vector<8xf32>
    %267 = vector.shape_cast %266 : vector<8xf32> to vector<8x1xf32>
    %268 = tpu.reciprocal %267 {approx = true} : vector<8x1xf32> -> vector<8x1xf32>
    %269 = vector.broadcast %268 : vector<8x1xf32> to vector<8x8xf32>
    %270 = arith.mulf %265, %269 : vector<8x8xf32>
    %271 = arith.truncf %270 : vector<8x8xf32> to vector<8x8xbf16>
    %cst_85 = arith.constant dense<0.000000e+00> : vector<8x16xf32>
    %272 = tpu.matmul %271, %255, %cst_85 {dimension_numbers = #tpu.dot_dimension_numbers<[1], [0], [0], [1], [0, 0, 1, 1], [], []>} : vector<8x8xbf16>, vector<8x16xbf16>, vector<8x16xf32> -> vector<8x16xf32>
    %273 = arith.truncf %272 : vector<8x16xf32> to vector<8x16xbf16>
    %274 = vector.extract_strided_slice %59 {offsets = [112, 0], sizes = [16, 128], strides = [1, 1]} : vector<128x128xbf16> to vector<16x128xbf16>
    %cst_86 = arith.constant dense<0.000000e+00> : vector<8x128xf32>
    %275 = tpu.matmul %273, %274, %cst_86 {dimension_numbers = #tpu.dot_dimension_numbers<[1], [0], [0], [1], [0, 0, 1, 1], [], []>} : vector<8x16xbf16>, vector<16x128xbf16>, vector<8x128xf32> -> vector<8x128xf32>
    %276 = arith.addf %249, %275 : vector<8x128xf32>
    %277 = arith.addf %44, %276 : vector<8x128xf32>
    %c0_87 = arith.constant 0 : index
    %c0_88 = arith.constant 0 : index
    %c0_89 = arith.constant 0 : index
    %278 = vector.load %arg12[%c0_87, %c0_88, %c0_89] : memref<1x1x128xf32, #tpu.memory_space<vmem>>, vector<1x1x128xf32>
    %279 = vector.shape_cast %278 : vector<1x1x128xf32> to vector<1x128xf32>
    %280 = vector.broadcast %279 : vector<1x128xf32> to vector<8x128xf32>
    %281 = arith.addf %277, %280 : vector<8x128xf32>
    %c0_90 = arith.constant 0 : index
    %c0_91 = arith.constant 0 : index
    %c0_92 = arith.constant 0 : index
    %282 = vector.load %arg3[%c0_90, %c0_91, %c0_92] : memref<1x8x1xf32, #tpu.memory_space<vmem>>, vector<1x8x1xf32>
    %283 = vector.shape_cast %282 : vector<1x8x1xf32> to vector<8x1xf32>
    %284 = vector.broadcast %283 : vector<8x1xf32> to vector<8x128xf32>
    %285 = arith.mulf %281, %284 : vector<8x128xf32>
    %c0_93 = arith.constant 0 : index
    %c0_94 = arith.constant 0 : index
    %286 = vector.load %arg14[%c0_93, %c0_94] : memref<8x128xf32, #tpu.memory_space<vmem>>, vector<8x128xf32>
    tpu.vector_store %arg14[%c0_93, %c0_94], %285 {strides = array<i32>} : memref<8x128xf32, #tpu.memory_space<vmem>>, vector<8x128xf32>,
    %c3_i32 = arith.constant 3 : i32
    %287 = arith.cmpi eq, %arg1, %c3_i32 : i32
    %288 = arith.extui %287 : i1 to i32
    %c0_i32_95 = arith.constant 0 : i32
    %289 = arith.cmpi ne, %288, %c0_i32_95 : i32
    scf.if %289 {
      %290 = vector.shape_cast %285 : vector<8x128xf32> to vector<1x8x128xf32>
      %c0_96 = arith.constant 0 : index
      %c0_97 = arith.constant 0 : index
      %c0_98 = arith.constant 0 : index
      %291 = vector.load %arg13[%c0_96, %c0_97, %c0_98] : memref<1x8x128xf32, #tpu.memory_space<vmem>>, vector<1x8x128xf32>
      tpu.vector_store %arg13[%c0_96, %c0_97, %c0_98], %290 {strides = array<i32>} : memref<1x8x128xf32, #tpu.memory_space<vmem>>, vector<1x8x128xf32>,
    } else {
    }
    return
  }
  func.func @transform_0(%arg0: i32, %arg1: i32) -> (i32, i32, i32) {
    %c0_i32 = arith.constant 0 : i32
    %c0_i32_0 = arith.constant 0 : i32
    %c0_i32_1 = arith.constant 0 : i32
    return %arg0, %c0_i32, %c0_i32_0 : i32, i32, i32
  }
  func.func @transform_1(%arg0: i32, %arg1: i32) -> (i32, i32, i32) {
    %c0_i32 = arith.constant 0 : i32
    %c0_i32_0 = arith.constant 0 : i32
    %c0_i32_1 = arith.constant 0 : i32
    return %arg0, %c0_i32, %c0_i32_0 : i32, i32, i32
  }
  func.func @transform_2(%arg0: i32, %arg1: i32) -> (i32, i32, i32) {
    %c0_i32 = arith.constant 0 : i32
    %c0_i32_0 = arith.constant 0 : i32
    %c0_i32_1 = arith.constant 0 : i32
    return %arg0, %c0_i32, %c0_i32_0 : i32, i32, i32
  }
  func.func @transform_3(%arg0: i32, %arg1: i32) -> (i32, i32) {
    %c0_i32 = arith.constant 0 : i32
    %c0_i32_0 = arith.constant 0 : i32
    %c0_i32_1 = arith.constant 0 : i32
    return %c0_i32, %c0_i32_0 : i32, i32
  }
  func.func @transform_4(%arg0: i32, %arg1: i32) -> (i32, i32) {
    %c0_i32 = arith.constant 0 : i32
    %c0_i32_0 = arith.constant 0 : i32
    %c0_i32_1 = arith.constant 0 : i32
    return %c0_i32, %c0_i32_0 : i32, i32
  }
  func.func @transform_5(%arg0: i32, %arg1: i32) -> (i32, i32, i32, i32) {
    %c0_i32 = arith.constant 0 : i32
    %c0_i32_0 = arith.constant 0 : i32
    %c0_i32_1 = arith.constant 0 : i32
    %c0_i32_2 = arith.constant 0 : i32
    return %arg1, %c0_i32, %c0_i32_0, %c0_i32_1 : i32, i32, i32, i32
  }
  func.func @transform_6(%arg0: i32, %arg1: i32) -> (i32, i32, i32) {
    %c0_i32 = arith.constant 0 : i32
    %c0_i32_0 = arith.constant 0 : i32
    %c0_i32_1 = arith.constant 0 : i32
    return %arg1, %c0_i32, %c0_i32_0 : i32, i32, i32
  }
  func.func @transform_7(%arg0: i32, %arg1: i32) -> (i32, i32, i32) {
    %c0_i32 = arith.constant 0 : i32
    %c0_i32_0 = arith.constant 0 : i32
    %c0_i32_1 = arith.constant 0 : i32
    return %arg1, %c0_i32, %c0_i32_0 : i32, i32, i32
  }
  func.func @transform_8(%arg0: i32, %arg1: i32) -> (i32, i32, i32) {
    %c0_i32 = arith.constant 0 : i32
    %c0_i32_0 = arith.constant 0 : i32
    %c0_i32_1 = arith.constant 0 : i32
    return %arg1, %c0_i32, %c0_i32_0 : i32, i32, i32
  }
  func.func @transform_9(%arg0: i32, %arg1: i32) -> (i32, i32, i32) {
    %c0_i32 = arith.constant 0 : i32
    %c0_i32_0 = arith.constant 0 : i32
    %c0_i32_1 = arith.constant 0 : i32
    return %arg1, %c0_i32, %c0_i32_0 : i32, i32, i32
  }
  func.func @transform_10(%arg0: i32, %arg1: i32) -> (i32, i32, i32) {
    %c0_i32 = arith.constant 0 : i32
    %c0_i32_0 = arith.constant 0 : i32
    %c0_i32_1 = arith.constant 0 : i32
    return %arg1, %c0_i32, %c0_i32_0 : i32, i32, i32
  }
  func.func @transform_11(%arg0: i32, %arg1: i32) -> (i32, i32, i32) {
    %c0_i32 = arith.constant 0 : i32
    %c0_i32_0 = arith.constant 0 : i32
    %c0_i32_1 = arith.constant 0 : i32
    return %arg0, %c0_i32, %c0_i32_0 : i32, i32, i32
  }
}

module attributes {stable_mosaic.version = 11 : i64} {
  func.func @_geom_layer_kernel(%arg0: i32, %arg1: i32, %arg2: memref<1x8x20xf32, #tpu.memory_space<vmem>>, %arg3: memref<1x8x1xf32, #tpu.memory_space<vmem>>, %arg4: memref<1x1x8xf32, #tpu.memory_space<vmem>>, %arg5: memref<20x128xbf16, #tpu.memory_space<vmem>>, %arg6: memref<1x128xf32, #tpu.memory_space<vmem>>, %arg7: memref<1x3x128x128xbf16, #tpu.memory_space<vmem>>, %arg8: memref<1x1x128xf32, #tpu.memory_space<vmem>>, %arg9: memref<1x128x384xbf16, #tpu.memory_space<vmem>>, %arg10: memref<1x1x384xf32, #tpu.memory_space<vmem>>, %arg11: memref<1x128x128xbf16, #tpu.memory_space<vmem>>, %arg12: memref<1x1x128xf32, #tpu.memory_space<vmem>>, %arg13: memref<1x8x128xf32, #tpu.memory_space<vmem>>, %arg14: memref<8x128xf32, #tpu.memory_space<vmem>>) attributes {dimension_semantics = [#tpu.dimension_semantics<parallel>, #tpu.dimension_semantics<arbitrary>], iteration_bounds = array<i64: 2, 4>, scalar_prefetch = 0 : i64, scratch_operands = 1 : i64, tpu.core_type = #tpu.core_type<tc>, window_params = [{transform_indices = @transform_0, window_bounds = array<i64: 1, 8, 20>}, {transform_indices = @transform_1, window_bounds = array<i64: 1, 8, 1>}, {transform_indices = @transform_2, window_bounds = array<i64: 1, 1, 8>}, {pipeline_mode = #tpu.pipeline_mode<synchronous>, transform_indices = @transform_3, window_bounds = array<i64: 20, 128>}, {pipeline_mode = #tpu.pipeline_mode<synchronous>, transform_indices = @transform_4, window_bounds = array<i64: 1, 128>}, {transform_indices = @transform_5, window_bounds = array<i64: 1, 3, 128, 128>}, {transform_indices = @transform_6, window_bounds = array<i64: 1, 1, 128>}, {transform_indices = @transform_7, window_bounds = array<i64: 1, 128, 384>}, {transform_indices = @transform_8, window_bounds = array<i64: 1, 1, 384>}, {transform_indices = @transform_9, window_bounds = array<i64: 1, 128, 128>}, {transform_indices = @transform_10, window_bounds = array<i64: 1, 1, 128>}, {transform_indices = @transform_11, window_bounds = array<i64: 1, 8, 128>}]} {
    %c0_i32 = arith.constant 0 : i32
    %0 = arith.cmpi eq, %arg1, %c0_i32 : i32
    %1 = arith.extui %0 : i1 to i32
    %c0_i32_0 = arith.constant 0 : i32
    %2 = arith.cmpi ne, %1, %c0_i32_0 : i32
    scf.if %2 {
      %c0_96 = arith.constant 0 : index
      %c0_97 = arith.constant 0 : index
      %c0_98 = arith.constant 0 : index
      %290 = vector.load %arg2[%c0_96, %c0_97, %c0_98] : memref<1x8x20xf32, #tpu.memory_space<vmem>>, vector<1x8x20xf32>
      %291 = vector.shape_cast %290 : vector<1x8x20xf32> to vector<8x20xf32>
      %292 = arith.truncf %291 : vector<8x20xf32> to vector<8x20xbf16>
      %c0_99 = arith.constant 0 : index
      %c0_100 = arith.constant 0 : index
      %293 = vector.load %arg5[%c0_99, %c0_100] : memref<20x128xbf16, #tpu.memory_space<vmem>>, vector<20x128xbf16>
      %cst_101 = arith.constant dense<0.000000e+00> : vector<8x128xf32>
      %294 = tpu.matmul %292, %293, %cst_101 {dimension_numbers = #tpu.dot_dimension_numbers<[1], [0], [0], [1], [0, 0, 1, 1], [], []>} : vector<8x20xbf16>, vector<20x128xbf16>, vector<8x128xf32> -> vector<8x128xf32>
      %c0_102 = arith.constant 0 : index
      %c0_103 = arith.constant 0 : index
      %295 = vector.load %arg6[%c0_102, %c0_103] : memref<1x128xf32, #tpu.memory_space<vmem>>, vector<1x128xf32>
      %296 = vector.broadcast %295 : vector<1x128xf32> to vector<8x128xf32>
      %297 = arith.addf %294, %296 : vector<8x128xf32>
      %c0_104 = arith.constant 0 : index
      %c0_105 = arith.constant 0 : index
      %298 = vector.load %arg14[%c0_104, %c0_105] : memref<8x128xf32, #tpu.memory_space<vmem>>, vector<8x128xf32>
      tpu.vector_store %arg14[%c0_104, %c0_105], %297 {strides = array<i32>} : memref<8x128xf32, #tpu.memory_space<vmem>>, vector<8x128xf32>,
    } else {
    }
    %c0 = arith.constant 0 : index
    %c0_1 = arith.constant 0 : index
    %3 = vector.load %arg14[%c0, %c0_1] : memref<8x128xf32, #tpu.memory_space<vmem>>, vector<8x128xf32>
    %c0_2 = arith.constant 0 : index
    %c0_3 = arith.constant 0 : index
    %c0_4 = arith.constant 0 : index
    %4 = vector.load %arg8[%c0_2, %c0_3, %c0_4] : memref<1x1x128xf32, #tpu.memory_space<vmem>>, vector<1x1x128xf32>
    %5 = vector.shape_cast %4 : vector<1x1x128xf32> to vector<1x128xf32>
    %6 = arith.truncf %3 : vector<8x128xf32> to vector<8x128xbf16>
    %7 = tpu.iota {dimensions = array<i32: 0>} : vector<8x8xi32>
    %8 = tpu.iota {dimensions = array<i32: 1>} : vector<8x8xi32>
    %cst = arith.constant 0.000000e+00 : f32
    %9 = vector.broadcast %cst : f32 to vector<8x128xf32>
    %c-1_i32 = arith.constant -1 : i32
    %10 = vector.broadcast %c-1_i32 : i32 to vector<8x8xi32>
    %11 = arith.addi %7, %10 : vector<8x8xi32>
    %12 = arith.cmpi eq, %8, %11 : vector<8x8xi32>
    %cst_5 = arith.constant 1.000000e+00 : f32
    %cst_6 = arith.constant 0.000000e+00 : f32
    %13 = vector.broadcast %cst_5 : f32 to vector<8x8xf32>
    %14 = vector.broadcast %cst_6 : f32 to vector<8x8xf32>
    %15 = arith.select %12, %13, %14 : vector<8x8xi1>, vector<8x8xf32>
    %16 = arith.truncf %15 : vector<8x8xf32> to vector<8x8xbf16>
    %cst_7 = arith.constant dense<0.000000e+00> : vector<8x128xf32>
    %17 = tpu.matmul %16, %6, %cst_7 {dimension_numbers = #tpu.dot_dimension_numbers<[1], [0], [0], [1], [0, 0, 1, 1], [], []>} : vector<8x8xbf16>, vector<8x128xbf16>, vector<8x128xf32> -> vector<8x128xf32>
    %18 = arith.truncf %17 : vector<8x128xf32> to vector<8x128xbf16>
    %c0_8 = arith.constant 0 : index
    %c0_9 = arith.constant 0 : index
    %c0_10 = arith.constant 0 : index
    %c0_11 = arith.constant 0 : index
    %19 = vector.load %arg7[%c0_8, %c0_9, %c0_10, %c0_11] : memref<1x3x128x128xbf16, #tpu.memory_space<vmem>>, vector<1x1x128x128xbf16>
    %20 = vector.shape_cast %19 : vector<1x1x128x128xbf16> to vector<128x128xbf16>
    %cst_12 = arith.constant dense<0.000000e+00> : vector<8x128xf32>
    %21 = tpu.matmul %18, %20, %cst_12 {dimension_numbers = #tpu.dot_dimension_numbers<[1], [0], [0], [1], [0, 0, 1, 1], [], []>} : vector<8x128xbf16>, vector<128x128xbf16>, vector<8x128xf32> -> vector<8x128xf32>
    %22 = arith.addf %9, %21 : vector<8x128xf32>
    %c0_13 = arith.constant 0 : index
    %c1 = arith.constant 1 : index
    %c0_14 = arith.constant 0 : index
    %c0_15 = arith.constant 0 : index
    %23 = vector.load %arg7[%c0_13, %c1, %c0_14, %c0_15] : memref<1x3x128x128xbf16, #tpu.memory_space<vmem>>, vector<1x1x128x128xbf16>
    %24 = vector.shape_cast %23 : vector<1x1x128x128xbf16> to vector<128x128xbf16>
    %cst_16 = arith.constant dense<0.000000e+00> : vector<8x128xf32>
    %25 = tpu.matmul %6, %24, %cst_16 {dimension_numbers = #tpu.dot_dimension_numbers<[1], [0], [0], [1], [0, 0, 1, 1], [], []>} : vector<8x128xbf16>, vector<128x128xbf16>, vector<8x128xf32> -> vector<8x128xf32>
    %26 = arith.addf %22, %25 : vector<8x128xf32>
    %c1_i32 = arith.constant 1 : i32
    %27 = vector.broadcast %c1_i32 : i32 to vector<8x8xi32>
    %28 = arith.addi %7, %27 : vector<8x8xi32>
    %29 = arith.cmpi eq, %8, %28 : vector<8x8xi32>
    %cst_17 = arith.constant 1.000000e+00 : f32
    %cst_18 = arith.constant 0.000000e+00 : f32
    %30 = vector.broadcast %cst_17 : f32 to vector<8x8xf32>
    %31 = vector.broadcast %cst_18 : f32 to vector<8x8xf32>
    %32 = arith.select %29, %30, %31 : vector<8x8xi1>, vector<8x8xf32>
    %33 = arith.truncf %32 : vector<8x8xf32> to vector<8x8xbf16>
    %cst_19 = arith.constant dense<0.000000e+00> : vector<8x128xf32>
    %34 = tpu.matmul %33, %6, %cst_19 {dimension_numbers = #tpu.dot_dimension_numbers<[1], [0], [0], [1], [0, 0, 1, 1], [], []>} : vector<8x8xbf16>, vector<8x128xbf16>, vector<8x128xf32> -> vector<8x128xf32>
    %35 = arith.truncf %34 : vector<8x128xf32> to vector<8x128xbf16>
    %c0_20 = arith.constant 0 : index
    %c2 = arith.constant 2 : index
    %c0_21 = arith.constant 0 : index
    %c0_22 = arith.constant 0 : index
    %36 = vector.load %arg7[%c0_20, %c2, %c0_21, %c0_22] : memref<1x3x128x128xbf16, #tpu.memory_space<vmem>>, vector<1x1x128x128xbf16>
    %37 = vector.shape_cast %36 : vector<1x1x128x128xbf16> to vector<128x128xbf16>
    %cst_23 = arith.constant dense<0.000000e+00> : vector<8x128xf32>
    %38 = tpu.matmul %35, %37, %cst_23 {dimension_numbers = #tpu.dot_dimension_numbers<[1], [0], [0], [1], [0, 0, 1, 1], [], []>} : vector<8x128xbf16>, vector<128x128xbf16>, vector<8x128xf32> -> vector<8x128xf32>
    %39 = arith.addf %26, %38 : vector<8x128xf32>
    %40 = vector.broadcast %5 : vector<1x128xf32> to vector<8x128xf32>
    %41 = arith.addf %39, %40 : vector<8x128xf32>
    %cst_24 = arith.constant 0.000000e+00 : f32
    %42 = vector.broadcast %cst_24 : f32 to vector<8x128xf32>
    %43 = arith.maximumf %41, %42 : vector<8x128xf32>
    %44 = arith.addf %3, %43 : vector<8x128xf32>
    %45 = arith.truncf %44 : vector<8x128xf32> to vector<8x128xbf16>
    %c0_25 = arith.constant 0 : index
    %c0_26 = arith.constant 0 : index
    %c0_27 = arith.constant 0 : index
    %46 = vector.load %arg9[%c0_25, %c0_26, %c0_27] : memref<1x128x384xbf16, #tpu.memory_space<vmem>>, vector<1x128x384xbf16>
    %47 = vector.shape_cast %46 : vector<1x128x384xbf16> to vector<128x384xbf16>
    %cst_28 = arith.constant dense<0.000000e+00> : vector<8x384xf32>
    %48 = tpu.matmul %45, %47, %cst_28 {dimension_numbers = #tpu.dot_dimension_numbers<[1], [0], [0], [1], [0, 0, 1, 1], [], []>} : vector<8x128xbf16>, vector<128x384xbf16>, vector<8x384xf32> -> vector<8x384xf32>
    %c0_29 = arith.constant 0 : index
    %c0_30 = arith.constant 0 : index
    %c0_31 = arith.constant 0 : index
    %49 = vector.load %arg10[%c0_29, %c0_30, %c0_31] : memref<1x1x384xf32, #tpu.memory_space<vmem>>, vector<1x1x384xf32>
    %50 = vector.shape_cast %49 : vector<1x1x384xf32> to vector<1x384xf32>
    %51 = vector.broadcast %50 : vector<1x384xf32> to vector<8x384xf32>
    %52 = arith.addf %48, %51 : vector<8x384xf32>
    %53 = vector.extract_strided_slice %52 {offsets = [0, 0], sizes = [8, 128], strides = [1, 1]} : vector<8x384xf32> to vector<8x128xf32>
    %54 = vector.extract_strided_slice %52 {offsets = [0, 128], sizes = [8, 128], strides = [1, 1]} : vector<8x384xf32> to vector<8x128xf32>
    %55 = vector.extract_strided_slice %52 {offsets = [0, 256], sizes = [8, 128], strides = [1, 1]} : vector<8x384xf32> to vector<8x128xf32>
    %c0_32 = arith.constant 0 : index
    %c0_33 = arith.constant 0 : index
    %c0_34 = arith.constant 0 : index
    %56 = vector.load %arg4[%c0_32, %c0_33, %c0_34] : memref<1x1x8xf32, #tpu.memory_space<vmem>>, vector<1x1x8xf32>
    %57 = vector.shape_cast %56 : vector<1x1x8xf32> to vector<1x8xf32>
    %c0_35 = arith.constant 0 : index
    %c0_36 = arith.constant 0 : index
    %c0_37 = arith.constant 0 : index
    %58 = vector.load %arg11[%c0_35, %c0_36, %c0_37] : memref<1x128x128xbf16, #tpu.memory_space<vmem>>, vector<1x128x128xbf16>
    %59 = vector.shape_cast %58 : vector<1x128x128xbf16> to vector<128x128xbf16>
    %cst_38 = arith.constant 0.000000e+00 : f32
    %60 = vector.broadcast %cst_38 : f32 to vector<8x128xf32>
    %61 = vector.extract_strided_slice %53 {offsets = [0, 0], sizes = [8, 16], strides = [1, 1]} : vector<8x128xf32> to vector<8x16xf32>
    %62 = arith.truncf %61 : vector<8x16xf32> to vector<8x16xbf16>
    %63 = vector.extract_strided_slice %54 {offsets = [0, 0], sizes = [8, 16], strides = [1, 1]} : vector<8x128xf32> to vector<8x16xf32>
    %64 = arith.truncf %63 : vector<8x16xf32> to vector<8x16xbf16>
    %65 = vector.extract_strided_slice %55 {offsets = [0, 0], sizes = [8, 16], strides = [1, 1]} : vector<8x128xf32> to vector<8x16xf32>
    %66 = arith.truncf %65 : vector<8x16xf32> to vector<8x16xbf16>
    %cst_39 = arith.constant dense<0.000000e+00> : vector<8x8xf32>
    %67 = tpu.matmul %62, %64, %cst_39 {dimension_numbers = #tpu.dot_dimension_numbers<[1], [1], [0], [0], [0, 0, 1, 0], [], []>} : vector<8x16xbf16>, vector<8x16xbf16>, vector<8x8xf32> -> vector<8x8xf32>
    %cst_40 = arith.constant 2.500000e-01 : f32
    %68 = vector.broadcast %cst_40 : f32 to vector<8x8xf32>
    %69 = arith.mulf %67, %68 : vector<8x8xf32>
    %70 = vector.broadcast %57 : vector<1x8xf32> to vector<8x8xf32>
    %71 = arith.addf %69, %70 : vector<8x8xf32>
    %cst_41 = arith.constant dense<0xFF800000> : vector<8xf32>
    %72 = vector.multi_reduction <maximumf>, %71, %cst_41 [1] : vector<8x8xf32> to vector<8xf32>
    %73 = vector.shape_cast %72 : vector<8xf32> to vector<8x1xf32>
    %74 = vector.broadcast %73 : vector<8x1xf32> to vector<8x8xf32>
    %75 = arith.subf %71, %74 : vector<8x8xf32>
    %76 = math.exp %75 : vector<8x8xf32>
    %cst_42 = arith.constant dense<0.000000e+00> : vector<8xf32>
    %77 = vector.multi_reduction <add>, %76, %cst_42 [1] : vector<8x8xf32> to vector<8xf32>
    %78 = vector.shape_cast %77 : vector<8xf32> to vector<8x1xf32>
    %79 = tpu.reciprocal %78 {approx = true} : vector<8x1xf32> -> vector<8x1xf32>
    %80 = vector.broadcast %79 : vector<8x1xf32> to vector<8x8xf32>
    %81 = arith.mulf %76, %80 : vector<8x8xf32>
    %82 = arith.truncf %81 : vector<8x8xf32> to vector<8x8xbf16>
    %cst_43 = arith.constant dense<0.000000e+00> : vector<8x16xf32>
    %83 = tpu.matmul %82, %66, %cst_43 {dimension_numbers = #tpu.dot_dimension_numbers<[1], [0], [0], [1], [0, 0, 1, 1], [], []>} : vector<8x8xbf16>, vector<8x16xbf16>, vector<8x16xf32> -> vector<8x16xf32>
    %84 = arith.truncf %83 : vector<8x16xf32> to vector<8x16xbf16>
    %85 = vector.extract_strided_slice %59 {offsets = [0, 0], sizes = [16, 128], strides = [1, 1]} : vector<128x128xbf16> to vector<16x128xbf16>
    %cst_44 = arith.constant dense<0.000000e+00> : vector<8x128xf32>
    %86 = tpu.matmul %84, %85, %cst_44 {dimension_numbers = #tpu.dot_dimension_numbers<[1], [0], [0], [1], [0, 0, 1, 1], [], []>} : vector<8x16xbf16>, vector<16x128xbf16>, vector<8x128xf32> -> vector<8x128xf32>
    %87 = arith.addf %60, %86 : vector<8x128xf32>
    %88 = vector.extract_strided_slice %53 {offsets = [0, 16], sizes = [8, 16], strides = [1, 1]} : vector<8x128xf32> to vector<8x16xf32>
    %89 = arith.truncf %88 : vector<8x16xf32> to vector<8x16xbf16>
    %90 = vector.extract_strided_slice %54 {offsets = [0, 16], sizes = [8, 16], strides = [1, 1]} : vector<8x128xf32> to vector<8x16xf32>
    %91 = arith.truncf %90 : vector<8x16xf32> to vector<8x16xbf16>
    %92 = vector.extract_strided_slice %55 {offsets = [0, 16], sizes = [8, 16], strides = [1, 1]} : vector<8x128xf32> to vector<8x16xf32>
    %93 = arith.truncf %92 : vector<8x16xf32> to vector<8x16xbf16>
    %cst_45 = arith.constant dense<0.000000e+00> : vector<8x8xf32>
    %94 = tpu.matmul %89, %91, %cst_45 {dimension_numbers = #tpu.dot_dimension_numbers<[1], [1], [0], [0], [0, 0, 1, 0], [], []>} : vector<8x16xbf16>, vector<8x16xbf16>, vector<8x8xf32> -> vector<8x8xf32>
    %cst_46 = arith.constant 2.500000e-01 : f32
    %95 = vector.broadcast %cst_46 : f32 to vector<8x8xf32>
    %96 = arith.mulf %94, %95 : vector<8x8xf32>
    %97 = vector.broadcast %57 : vector<1x8xf32> to vector<8x8xf32>
    %98 = arith.addf %96, %97 : vector<8x8xf32>
    %cst_47 = arith.constant dense<0xFF800000> : vector<8xf32>
    %99 = vector.multi_reduction <maximumf>, %98, %cst_47 [1] : vector<8x8xf32> to vector<8xf32>
    %100 = vector.shape_cast %99 : vector<8xf32> to vector<8x1xf32>
    %101 = vector.broadcast %100 : vector<8x1xf32> to vector<8x8xf32>
    %102 = arith.subf %98, %101 : vector<8x8xf32>
    %103 = math.exp %102 : vector<8x8xf32>
    %cst_48 = arith.constant dense<0.000000e+00> : vector<8xf32>
    %104 = vector.multi_reduction <add>, %103, %cst_48 [1] : vector<8x8xf32> to vector<8xf32>
    %105 = vector.shape_cast %104 : vector<8xf32> to vector<8x1xf32>
    %106 = tpu.reciprocal %105 {approx = true} : vector<8x1xf32> -> vector<8x1xf32>
    %107 = vector.broadcast %106 : vector<8x1xf32> to vector<8x8xf32>
    %108 = arith.mulf %103, %107 : vector<8x8xf32>
    %109 = arith.truncf %108 : vector<8x8xf32> to vector<8x8xbf16>
    %cst_49 = arith.constant dense<0.000000e+00> : vector<8x16xf32>
    %110 = tpu.matmul %109, %93, %cst_49 {dimension_numbers = #tpu.dot_dimension_numbers<[1], [0], [0], [1], [0, 0, 1, 1], [], []>} : vector<8x8xbf16>, vector<8x16xbf16>, vector<8x16xf32> -> vector<8x16xf32>
    %111 = arith.truncf %110 : vector<8x16xf32> to vector<8x16xbf16>
    %112 = vector.extract_strided_slice %59 {offsets = [16, 0], sizes = [16, 128], strides = [1, 1]} : vector<128x128xbf16> to vector<16x128xbf16>
    %cst_50 = arith.constant dense<0.000000e+00> : vector<8x128xf32>
    %113 = tpu.matmul %111, %112, %cst_50 {dimension_numbers = #tpu.dot_dimension_numbers<[1], [0], [0], [1], [0, 0, 1, 1], [], []>} : vector<8x16xbf16>, vector<16x128xbf16>, vector<8x128xf32> -> vector<8x128xf32>
    %114 = arith.addf %87, %113 : vector<8x128xf32>
    %115 = vector.extract_strided_slice %53 {offsets = [0, 32], sizes = [8, 16], strides = [1, 1]} : vector<8x128xf32> to vector<8x16xf32>
    %116 = arith.truncf %115 : vector<8x16xf32> to vector<8x16xbf16>
    %117 = vector.extract_strided_slice %54 {offsets = [0, 32], sizes = [8, 16], strides = [1, 1]} : vector<8x128xf32> to vector<8x16xf32>
    %118 = arith.truncf %117 : vector<8x16xf32> to vector<8x16xbf16>
    %119 = vector.extract_strided_slice %55 {offsets = [0, 32], sizes = [8, 16], strides = [1, 1]} : vector<8x128xf32> to vector<8x16xf32>
    %120 = arith.truncf %119 : vector<8x16xf32> to vector<8x16xbf16>
    %cst_51 = arith.constant dense<0.000000e+00> : vector<8x8xf32>
    %121 = tpu.matmul %116, %118, %cst_51 {dimension_numbers = #tpu.dot_dimension_numbers<[1], [1], [0], [0], [0, 0, 1, 0], [], []>} : vector<8x16xbf16>, vector<8x16xbf16>, vector<8x8xf32> -> vector<8x8xf32>
    %cst_52 = arith.constant 2.500000e-01 : f32
    %122 = vector.broadcast %cst_52 : f32 to vector<8x8xf32>
    %123 = arith.mulf %121, %122 : vector<8x8xf32>
    %124 = vector.broadcast %57 : vector<1x8xf32> to vector<8x8xf32>
    %125 = arith.addf %123, %124 : vector<8x8xf32>
    %cst_53 = arith.constant dense<0xFF800000> : vector<8xf32>
    %126 = vector.multi_reduction <maximumf>, %125, %cst_53 [1] : vector<8x8xf32> to vector<8xf32>
    %127 = vector.shape_cast %126 : vector<8xf32> to vector<8x1xf32>
    %128 = vector.broadcast %127 : vector<8x1xf32> to vector<8x8xf32>
    %129 = arith.subf %125, %128 : vector<8x8xf32>
    %130 = math.exp %129 : vector<8x8xf32>
    %cst_54 = arith.constant dense<0.000000e+00> : vector<8xf32>
    %131 = vector.multi_reduction <add>, %130, %cst_54 [1] : vector<8x8xf32> to vector<8xf32>
    %132 = vector.shape_cast %131 : vector<8xf32> to vector<8x1xf32>
    %133 = tpu.reciprocal %132 {approx = true} : vector<8x1xf32> -> vector<8x1xf32>
    %134 = vector.broadcast %133 : vector<8x1xf32> to vector<8x8xf32>
    %135 = arith.mulf %130, %134 : vector<8x8xf32>
    %136 = arith.truncf %135 : vector<8x8xf32> to vector<8x8xbf16>
    %cst_55 = arith.constant dense<0.000000e+00> : vector<8x16xf32>
    %137 = tpu.matmul %136, %120, %cst_55 {dimension_numbers = #tpu.dot_dimension_numbers<[1], [0], [0], [1], [0, 0, 1, 1], [], []>} : vector<8x8xbf16>, vector<8x16xbf16>, vector<8x16xf32> -> vector<8x16xf32>
    %138 = arith.truncf %137 : vector<8x16xf32> to vector<8x16xbf16>
    %139 = vector.extract_strided_slice %59 {offsets = [32, 0], sizes = [16, 128], strides = [1, 1]} : vector<128x128xbf16> to vector<16x128xbf16>
    %cst_56 = arith.constant dense<0.000000e+00> : vector<8x128xf32>
    %140 = tpu.matmul %138, %139, %cst_56 {dimension_numbers = #tpu.dot_dimension_numbers<[1], [0], [0], [1], [0, 0, 1, 1], [], []>} : vector<8x16xbf16>, vector<16x128xbf16>, vector<8x128xf32> -> vector<8x128xf32>
    %141 = arith.addf %114, %140 : vector<8x128xf32>
    %142 = vector.extract_strided_slice %53 {offsets = [0, 48], sizes = [8, 16], strides = [1, 1]} : vector<8x128xf32> to vector<8x16xf32>
    %143 = arith.truncf %142 : vector<8x16xf32> to vector<8x16xbf16>
    %144 = vector.extract_strided_slice %54 {offsets = [0, 48], sizes = [8, 16], strides = [1, 1]} : vector<8x128xf32> to vector<8x16xf32>
    %145 = arith.truncf %144 : vector<8x16xf32> to vector<8x16xbf16>
    %146 = vector.extract_strided_slice %55 {offsets = [0, 48], sizes = [8, 16], strides = [1, 1]} : vector<8x128xf32> to vector<8x16xf32>
    %147 = arith.truncf %146 : vector<8x16xf32> to vector<8x16xbf16>
    %cst_57 = arith.constant dense<0.000000e+00> : vector<8x8xf32>
    %148 = tpu.matmul %143, %145, %cst_57 {dimension_numbers = #tpu.dot_dimension_numbers<[1], [1], [0], [0], [0, 0, 1, 0], [], []>} : vector<8x16xbf16>, vector<8x16xbf16>, vector<8x8xf32> -> vector<8x8xf32>
    %cst_58 = arith.constant 2.500000e-01 : f32
    %149 = vector.broadcast %cst_58 : f32 to vector<8x8xf32>
    %150 = arith.mulf %148, %149 : vector<8x8xf32>
    %151 = vector.broadcast %57 : vector<1x8xf32> to vector<8x8xf32>
    %152 = arith.addf %150, %151 : vector<8x8xf32>
    %cst_59 = arith.constant dense<0xFF800000> : vector<8xf32>
    %153 = vector.multi_reduction <maximumf>, %152, %cst_59 [1] : vector<8x8xf32> to vector<8xf32>
    %154 = vector.shape_cast %153 : vector<8xf32> to vector<8x1xf32>
    %155 = vector.broadcast %154 : vector<8x1xf32> to vector<8x8xf32>
    %156 = arith.subf %152, %155 : vector<8x8xf32>
    %157 = math.exp %156 : vector<8x8xf32>
    %cst_60 = arith.constant dense<0.000000e+00> : vector<8xf32>
    %158 = vector.multi_reduction <add>, %157, %cst_60 [1] : vector<8x8xf32> to vector<8xf32>
    %159 = vector.shape_cast %158 : vector<8xf32> to vector<8x1xf32>
    %160 = tpu.reciprocal %159 {approx = true} : vector<8x1xf32> -> vector<8x1xf32>
    %161 = vector.broadcast %160 : vector<8x1xf32> to vector<8x8xf32>
    %162 = arith.mulf %157, %161 : vector<8x8xf32>
    %163 = arith.truncf %162 : vector<8x8xf32> to vector<8x8xbf16>
    %cst_61 = arith.constant dense<0.000000e+00> : vector<8x16xf32>
    %164 = tpu.matmul %163, %147, %cst_61 {dimension_numbers = #tpu.dot_dimension_numbers<[1], [0], [0], [1], [0, 0, 1, 1], [], []>} : vector<8x8xbf16>, vector<8x16xbf16>, vector<8x16xf32> -> vector<8x16xf32>
    %165 = arith.truncf %164 : vector<8x16xf32> to vector<8x16xbf16>
    %166 = vector.extract_strided_slice %59 {offsets = [48, 0], sizes = [16, 128], strides = [1, 1]} : vector<128x128xbf16> to vector<16x128xbf16>
    %cst_62 = arith.constant dense<0.000000e+00> : vector<8x128xf32>
    %167 = tpu.matmul %165, %166, %cst_62 {dimension_numbers = #tpu.dot_dimension_numbers<[1], [0], [0], [1], [0, 0, 1, 1], [], []>} : vector<8x16xbf16>, vector<16x128xbf16>, vector<8x128xf32> -> vector<8x128xf32>
    %168 = arith.addf %141, %167 : vector<8x128xf32>
    %169 = vector.extract_strided_slice %53 {offsets = [0, 64], sizes = [8, 16], strides = [1, 1]} : vector<8x128xf32> to vector<8x16xf32>
    %170 = arith.truncf %169 : vector<8x16xf32> to vector<8x16xbf16>
    %171 = vector.extract_strided_slice %54 {offsets = [0, 64], sizes = [8, 16], strides = [1, 1]} : vector<8x128xf32> to vector<8x16xf32>
    %172 = arith.truncf %171 : vector<8x16xf32> to vector<8x16xbf16>
    %173 = vector.extract_strided_slice %55 {offsets = [0, 64], sizes = [8, 16], strides = [1, 1]} : vector<8x128xf32> to vector<8x16xf32>
    %174 = arith.truncf %173 : vector<8x16xf32> to vector<8x16xbf16>
    %cst_63 = arith.constant dense<0.000000e+00> : vector<8x8xf32>
    %175 = tpu.matmul %170, %172, %cst_63 {dimension_numbers = #tpu.dot_dimension_numbers<[1], [1], [0], [0], [0, 0, 1, 0], [], []>} : vector<8x16xbf16>, vector<8x16xbf16>, vector<8x8xf32> -> vector<8x8xf32>
    %cst_64 = arith.constant 2.500000e-01 : f32
    %176 = vector.broadcast %cst_64 : f32 to vector<8x8xf32>
    %177 = arith.mulf %175, %176 : vector<8x8xf32>
    %178 = vector.broadcast %57 : vector<1x8xf32> to vector<8x8xf32>
    %179 = arith.addf %177, %178 : vector<8x8xf32>
    %cst_65 = arith.constant dense<0xFF800000> : vector<8xf32>
    %180 = vector.multi_reduction <maximumf>, %179, %cst_65 [1] : vector<8x8xf32> to vector<8xf32>
    %181 = vector.shape_cast %180 : vector<8xf32> to vector<8x1xf32>
    %182 = vector.broadcast %181 : vector<8x1xf32> to vector<8x8xf32>
    %183 = arith.subf %179, %182 : vector<8x8xf32>
    %184 = math.exp %183 : vector<8x8xf32>
    %cst_66 = arith.constant dense<0.000000e+00> : vector<8xf32>
    %185 = vector.multi_reduction <add>, %184, %cst_66 [1] : vector<8x8xf32> to vector<8xf32>
    %186 = vector.shape_cast %185 : vector<8xf32> to vector<8x1xf32>
    %187 = tpu.reciprocal %186 {approx = true} : vector<8x1xf32> -> vector<8x1xf32>
    %188 = vector.broadcast %187 : vector<8x1xf32> to vector<8x8xf32>
    %189 = arith.mulf %184, %188 : vector<8x8xf32>
    %190 = arith.truncf %189 : vector<8x8xf32> to vector<8x8xbf16>
    %cst_67 = arith.constant dense<0.000000e+00> : vector<8x16xf32>
    %191 = tpu.matmul %190, %174, %cst_67 {dimension_numbers = #tpu.dot_dimension_numbers<[1], [0], [0], [1], [0, 0, 1, 1], [], []>} : vector<8x8xbf16>, vector<8x16xbf16>, vector<8x16xf32> -> vector<8x16xf32>
    %192 = arith.truncf %191 : vector<8x16xf32> to vector<8x16xbf16>
    %193 = vector.extract_strided_slice %59 {offsets = [64, 0], sizes = [16, 128], strides = [1, 1]} : vector<128x128xbf16> to vector<16x128xbf16>
    %cst_68 = arith.constant dense<0.000000e+00> : vector<8x128xf32>
    %194 = tpu.matmul %192, %193, %cst_68 {dimension_numbers = #tpu.dot_dimension_numbers<[1], [0], [0], [1], [0, 0, 1, 1], [], []>} : vector<8x16xbf16>, vector<16x128xbf16>, vector<8x128xf32> -> vector<8x128xf32>
    %195 = arith.addf %168, %194 : vector<8x128xf32>
    %196 = vector.extract_strided_slice %53 {offsets = [0, 80], sizes = [8, 16], strides = [1, 1]} : vector<8x128xf32> to vector<8x16xf32>
    %197 = arith.truncf %196 : vector<8x16xf32> to vector<8x16xbf16>
    %198 = vector.extract_strided_slice %54 {offsets = [0, 80], sizes = [8, 16], strides = [1, 1]} : vector<8x128xf32> to vector<8x16xf32>
    %199 = arith.truncf %198 : vector<8x16xf32> to vector<8x16xbf16>
    %200 = vector.extract_strided_slice %55 {offsets = [0, 80], sizes = [8, 16], strides = [1, 1]} : vector<8x128xf32> to vector<8x16xf32>
    %201 = arith.truncf %200 : vector<8x16xf32> to vector<8x16xbf16>
    %cst_69 = arith.constant dense<0.000000e+00> : vector<8x8xf32>
    %202 = tpu.matmul %197, %199, %cst_69 {dimension_numbers = #tpu.dot_dimension_numbers<[1], [1], [0], [0], [0, 0, 1, 0], [], []>} : vector<8x16xbf16>, vector<8x16xbf16>, vector<8x8xf32> -> vector<8x8xf32>
    %cst_70 = arith.constant 2.500000e-01 : f32
    %203 = vector.broadcast %cst_70 : f32 to vector<8x8xf32>
    %204 = arith.mulf %202, %203 : vector<8x8xf32>
    %205 = vector.broadcast %57 : vector<1x8xf32> to vector<8x8xf32>
    %206 = arith.addf %204, %205 : vector<8x8xf32>
    %cst_71 = arith.constant dense<0xFF800000> : vector<8xf32>
    %207 = vector.multi_reduction <maximumf>, %206, %cst_71 [1] : vector<8x8xf32> to vector<8xf32>
    %208 = vector.shape_cast %207 : vector<8xf32> to vector<8x1xf32>
    %209 = vector.broadcast %208 : vector<8x1xf32> to vector<8x8xf32>
    %210 = arith.subf %206, %209 : vector<8x8xf32>
    %211 = math.exp %210 : vector<8x8xf32>
    %cst_72 = arith.constant dense<0.000000e+00> : vector<8xf32>
    %212 = vector.multi_reduction <add>, %211, %cst_72 [1] : vector<8x8xf32> to vector<8xf32>
    %213 = vector.shape_cast %212 : vector<8xf32> to vector<8x1xf32>
    %214 = tpu.reciprocal %213 {approx = true} : vector<8x1xf32> -> vector<8x1xf32>
    %215 = vector.broadcast %214 : vector<8x1xf32> to vector<8x8xf32>
    %216 = arith.mulf %211, %215 : vector<8x8xf32>
    %217 = arith.truncf %216 : vector<8x8xf32> to vector<8x8xbf16>
    %cst_73 = arith.constant dense<0.000000e+00> : vector<8x16xf32>
    %218 = tpu.matmul %217, %201, %cst_73 {dimension_numbers = #tpu.dot_dimension_numbers<[1], [0], [0], [1], [0, 0, 1, 1], [], []>} : vector<8x8xbf16>, vector<8x16xbf16>, vector<8x16xf32> -> vector<8x16xf32>
    %219 = arith.truncf %218 : vector<8x16xf32> to vector<8x16xbf16>
    %220 = vector.extract_strided_slice %59 {offsets = [80, 0], sizes = [16, 128], strides = [1, 1]} : vector<128x128xbf16> to vector<16x128xbf16>
    %cst_74 = arith.constant dense<0.000000e+00> : vector<8x128xf32>
    %221 = tpu.matmul %219, %220, %cst_74 {dimension_numbers = #tpu.dot_dimension_numbers<[1], [0], [0], [1], [0, 0, 1, 1], [], []>} : vector<8x16xbf16>, vector<16x128xbf16>, vector<8x128xf32> -> vector<8x128xf32>
    %222 = arith.addf %195, %221 : vector<8x128xf32>
    %223 = vector.extract_strided_slice %53 {offsets = [0, 96], sizes = [8, 16], strides = [1, 1]} : vector<8x128xf32> to vector<8x16xf32>
    %224 = arith.truncf %223 : vector<8x16xf32> to vector<8x16xbf16>
    %225 = vector.extract_strided_slice %54 {offsets = [0, 96], sizes = [8, 16], strides = [1, 1]} : vector<8x128xf32> to vector<8x16xf32>
    %226 = arith.truncf %225 : vector<8x16xf32> to vector<8x16xbf16>
    %227 = vector.extract_strided_slice %55 {offsets = [0, 96], sizes = [8, 16], strides = [1, 1]} : vector<8x128xf32> to vector<8x16xf32>
    %228 = arith.truncf %227 : vector<8x16xf32> to vector<8x16xbf16>
    %cst_75 = arith.constant dense<0.000000e+00> : vector<8x8xf32>
    %229 = tpu.matmul %224, %226, %cst_75 {dimension_numbers = #tpu.dot_dimension_numbers<[1], [1], [0], [0], [0, 0, 1, 0], [], []>} : vector<8x16xbf16>, vector<8x16xbf16>, vector<8x8xf32> -> vector<8x8xf32>
    %cst_76 = arith.constant 2.500000e-01 : f32
    %230 = vector.broadcast %cst_76 : f32 to vector<8x8xf32>
    %231 = arith.mulf %229, %230 : vector<8x8xf32>
    %232 = vector.broadcast %57 : vector<1x8xf32> to vector<8x8xf32>
    %233 = arith.addf %231, %232 : vector<8x8xf32>
    %cst_77 = arith.constant dense<0xFF800000> : vector<8xf32>
    %234 = vector.multi_reduction <maximumf>, %233, %cst_77 [1] : vector<8x8xf32> to vector<8xf32>
    %235 = vector.shape_cast %234 : vector<8xf32> to vector<8x1xf32>
    %236 = vector.broadcast %235 : vector<8x1xf32> to vector<8x8xf32>
    %237 = arith.subf %233, %236 : vector<8x8xf32>
    %238 = math.exp %237 : vector<8x8xf32>
    %cst_78 = arith.constant dense<0.000000e+00> : vector<8xf32>
    %239 = vector.multi_reduction <add>, %238, %cst_78 [1] : vector<8x8xf32> to vector<8xf32>
    %240 = vector.shape_cast %239 : vector<8xf32> to vector<8x1xf32>
    %241 = tpu.reciprocal %240 {approx = true} : vector<8x1xf32> -> vector<8x1xf32>
    %242 = vector.broadcast %241 : vector<8x1xf32> to vector<8x8xf32>
    %243 = arith.mulf %238, %242 : vector<8x8xf32>
    %244 = arith.truncf %243 : vector<8x8xf32> to vector<8x8xbf16>
    %cst_79 = arith.constant dense<0.000000e+00> : vector<8x16xf32>
    %245 = tpu.matmul %244, %228, %cst_79 {dimension_numbers = #tpu.dot_dimension_numbers<[1], [0], [0], [1], [0, 0, 1, 1], [], []>} : vector<8x8xbf16>, vector<8x16xbf16>, vector<8x16xf32> -> vector<8x16xf32>
    %246 = arith.truncf %245 : vector<8x16xf32> to vector<8x16xbf16>
    %247 = vector.extract_strided_slice %59 {offsets = [96, 0], sizes = [16, 128], strides = [1, 1]} : vector<128x128xbf16> to vector<16x128xbf16>
    %cst_80 = arith.constant dense<0.000000e+00> : vector<8x128xf32>
    %248 = tpu.matmul %246, %247, %cst_80 {dimension_numbers = #tpu.dot_dimension_numbers<[1], [0], [0], [1], [0, 0, 1, 1], [], []>} : vector<8x16xbf16>, vector<16x128xbf16>, vector<8x128xf32> -> vector<8x128xf32>
    %249 = arith.addf %222, %248 : vector<8x128xf32>
    %250 = vector.extract_strided_slice %53 {offsets = [0, 112], sizes = [8, 16], strides = [1, 1]} : vector<8x128xf32> to vector<8x16xf32>
    %251 = arith.truncf %250 : vector<8x16xf32> to vector<8x16xbf16>
    %252 = vector.extract_strided_slice %54 {offsets = [0, 112], sizes = [8, 16], strides = [1, 1]} : vector<8x128xf32> to vector<8x16xf32>
    %253 = arith.truncf %252 : vector<8x16xf32> to vector<8x16xbf16>
    %254 = vector.extract_strided_slice %55 {offsets = [0, 112], sizes = [8, 16], strides = [1, 1]} : vector<8x128xf32> to vector<8x16xf32>
    %255 = arith.truncf %254 : vector<8x16xf32> to vector<8x16xbf16>
    %cst_81 = arith.constant dense<0.000000e+00> : vector<8x8xf32>
    %256 = tpu.matmul %251, %253, %cst_81 {dimension_numbers = #tpu.dot_dimension_numbers<[1], [1], [0], [0], [0, 0, 1, 0], [], []>} : vector<8x16xbf16>, vector<8x16xbf16>, vector<8x8xf32> -> vector<8x8xf32>
    %cst_82 = arith.constant 2.500000e-01 : f32
    %257 = vector.broadcast %cst_82 : f32 to vector<8x8xf32>
    %258 = arith.mulf %256, %257 : vector<8x8xf32>
    %259 = vector.broadcast %57 : vector<1x8xf32> to vector<8x8xf32>
    %260 = arith.addf %258, %259 : vector<8x8xf32>
    %cst_83 = arith.constant dense<0xFF800000> : vector<8xf32>
    %261 = vector.multi_reduction <maximumf>, %260, %cst_83 [1] : vector<8x8xf32> to vector<8xf32>
    %262 = vector.shape_cast %261 : vector<8xf32> to vector<8x1xf32>
    %263 = vector.broadcast %262 : vector<8x1xf32> to vector<8x8xf32>
    %264 = arith.subf %260, %263 : vector<8x8xf32>
    %265 = math.exp %264 : vector<8x8xf32>
    %cst_84 = arith.constant dense<0.000000e+00> : vector<8xf32>
    %266 = vector.multi_reduction <add>, %265, %cst_84 [1] : vector<8x8xf32> to vector<8xf32>
    %267 = vector.shape_cast %266 : vector<8xf32> to vector<8x1xf32>
    %268 = tpu.reciprocal %267 {approx = true} : vector<8x1xf32> -> vector<8x1xf32>
    %269 = vector.broadcast %268 : vector<8x1xf32> to vector<8x8xf32>
    %270 = arith.mulf %265, %269 : vector<8x8xf32>
    %271 = arith.truncf %270 : vector<8x8xf32> to vector<8x8xbf16>
    %cst_85 = arith.constant dense<0.000000e+00> : vector<8x16xf32>
    %272 = tpu.matmul %271, %255, %cst_85 {dimension_numbers = #tpu.dot_dimension_numbers<[1], [0], [0], [1], [0, 0, 1, 1], [], []>} : vector<8x8xbf16>, vector<8x16xbf16>, vector<8x16xf32> -> vector<8x16xf32>
    %273 = arith.truncf %272 : vector<8x16xf32> to vector<8x16xbf16>
    %274 = vector.extract_strided_slice %59 {offsets = [112, 0], sizes = [16, 128], strides = [1, 1]} : vector<128x128xbf16> to vector<16x128xbf16>
    %cst_86 = arith.constant dense<0.000000e+00> : vector<8x128xf32>
    %275 = tpu.matmul %273, %274, %cst_86 {dimension_numbers = #tpu.dot_dimension_numbers<[1], [0], [0], [1], [0, 0, 1, 1], [], []>} : vector<8x16xbf16>, vector<16x128xbf16>, vector<8x128xf32> -> vector<8x128xf32>
    %276 = arith.addf %249, %275 : vector<8x128xf32>
    %277 = arith.addf %44, %276 : vector<8x128xf32>
    %c0_87 = arith.constant 0 : index
    %c0_88 = arith.constant 0 : index
    %c0_89 = arith.constant 0 : index
    %278 = vector.load %arg12[%c0_87, %c0_88, %c0_89] : memref<1x1x128xf32, #tpu.memory_space<vmem>>, vector<1x1x128xf32>
    %279 = vector.shape_cast %278 : vector<1x1x128xf32> to vector<1x128xf32>
    %280 = vector.broadcast %279 : vector<1x128xf32> to vector<8x128xf32>
    %281 = arith.addf %277, %280 : vector<8x128xf32>
    %c0_90 = arith.constant 0 : index
    %c0_91 = arith.constant 0 : index
    %c0_92 = arith.constant 0 : index
    %282 = vector.load %arg3[%c0_90, %c0_91, %c0_92] : memref<1x8x1xf32, #tpu.memory_space<vmem>>, vector<1x8x1xf32>
    %283 = vector.shape_cast %282 : vector<1x8x1xf32> to vector<8x1xf32>
    %284 = vector.broadcast %283 : vector<8x1xf32> to vector<8x128xf32>
    %285 = arith.mulf %281, %284 : vector<8x128xf32>
    %c0_93 = arith.constant 0 : index
    %c0_94 = arith.constant 0 : index
    %286 = vector.load %arg14[%c0_93, %c0_94] : memref<8x128xf32, #tpu.memory_space<vmem>>, vector<8x128xf32>
    tpu.vector_store %arg14[%c0_93, %c0_94], %285 {strides = array<i32>} : memref<8x128xf32, #tpu.memory_space<vmem>>, vector<8x128xf32>,
    %c3_i32 = arith.constant 3 : i32
    %287 = arith.cmpi eq, %arg1, %c3_i32 : i32
    %288 = arith.extui %287 : i1 to i32
    %c0_i32_95 = arith.constant 0 : i32
    %289 = arith.cmpi ne, %288, %c0_i32_95 : i32
    scf.if %289 {
      %290 = vector.shape_cast %285 : vector<8x128xf32> to vector<1x8x128xf32>
      %c0_96 = arith.constant 0 : index
      %c0_97 = arith.constant 0 : index
      %c0_98 = arith.constant 0 : index
      %291 = vector.load %arg13[%c0_96, %c0_97, %c0_98] : memref<1x8x128xf32, #tpu.memory_space<vmem>>, vector<1x8x128xf32>
      tpu.vector_store %arg13[%c0_96, %c0_97, %c0_98], %290 {strides = array<i32>} : memref<1x8x128xf32, #tpu.memory_space<vmem>>, vector<1x8x128xf32>,
    } else {
    }
    return
  }
  func.func @transform_0(%arg0: i32, %arg1: i32) -> (i32, i32, i32) {
    %c0_i32 = arith.constant 0 : i32
    %c0_i32_0 = arith.constant 0 : i32
    %c0_i32_1 = arith.constant 0 : i32
    return %arg0, %c0_i32, %c0_i32_0 : i32, i32, i32
  }
  func.func @transform_1(%arg0: i32, %arg1: i32) -> (i32, i32, i32) {
    %c0_i32 = arith.constant 0 : i32
    %c0_i32_0 = arith.constant 0 : i32
    %c0_i32_1 = arith.constant 0 : i32
    return %arg0, %c0_i32, %c0_i32_0 : i32, i32, i32
  }
  func.func @transform_2(%arg0: i32, %arg1: i32) -> (i32, i32, i32) {
    %c0_i32 = arith.constant 0 : i32
    %c0_i32_0 = arith.constant 0 : i32
    %c0_i32_1 = arith.constant 0 : i32
    return %arg0, %c0_i32, %c0_i32_0 : i32, i32, i32
  }
  func.func @transform_3(%arg0: i32, %arg1: i32) -> (i32, i32) {
    %c0_i32 = arith.constant 0 : i32
    %c0_i32_0 = arith.constant 0 : i32
    %c0_i32_1 = arith.constant 0 : i32
    return %c0_i32, %c0_i32_0 : i32, i32
  }
  func.func @transform_4(%arg0: i32, %arg1: i32) -> (i32, i32) {
    %c0_i32 = arith.constant 0 : i32
    %c0_i32_0 = arith.constant 0 : i32
    %c0_i32_1 = arith.constant 0 : i32
    return %c0_i32, %c0_i32_0 : i32, i32
  }
  func.func @transform_5(%arg0: i32, %arg1: i32) -> (i32, i32, i32, i32) {
    %c0_i32 = arith.constant 0 : i32
    %c0_i32_0 = arith.constant 0 : i32
    %c0_i32_1 = arith.constant 0 : i32
    %c0_i32_2 = arith.constant 0 : i32
    return %arg1, %c0_i32, %c0_i32_0, %c0_i32_1 : i32, i32, i32, i32
  }
  func.func @transform_6(%arg0: i32, %arg1: i32) -> (i32, i32, i32) {
    %c0_i32 = arith.constant 0 : i32
    %c0_i32_0 = arith.constant 0 : i32
    %c0_i32_1 = arith.constant 0 : i32
    return %arg1, %c0_i32, %c0_i32_0 : i32, i32, i32
  }
  func.func @transform_7(%arg0: i32, %arg1: i32) -> (i32, i32, i32) {
    %c0_i32 = arith.constant 0 : i32
    %c0_i32_0 = arith.constant 0 : i32
    %c0_i32_1 = arith.constant 0 : i32
    return %arg1, %c0_i32, %c0_i32_0 : i32, i32, i32
  }
  func.func @transform_8(%arg0: i32, %arg1: i32) -> (i32, i32, i32) {
    %c0_i32 = arith.constant 0 : i32
    %c0_i32_0 = arith.constant 0 : i32
    %c0_i32_1 = arith.constant 0 : i32
    return %arg1, %c0_i32, %c0_i32_0 : i32, i32, i32
  }
  func.func @transform_9(%arg0: i32, %arg1: i32) -> (i32, i32, i32) {
    %c0_i32 = arith.constant 0 : i32
    %c0_i32_0 = arith.constant 0 : i32
    %c0_i32_1 = arith.constant 0 : i32
    return %arg1, %c0_i32, %c0_i32_0 : i32, i32, i32
  }
  func.func @transform_10(%arg0: i32, %arg1: i32) -> (i32, i32, i32) {
    %c0_i32 = arith.constant 0 : i32
    %c0_i32_0 = arith.constant 0 : i32
    %c0_i32_1 = arith.constant 0 : i32
    return %arg1, %c0_i32, %c0_i32_0 : i32, i32, i32
  }
  func.func @transform_11(%arg0: i32, %arg1: i32) -> (i32, i32, i32) {
    %c0_i32 = arith.constant 0 : i32
    %c0_i32_0 = arith.constant 0 : i32
    %c0_i32_1 = arith.constant 0 : i32
    return %arg0, %c0_i32, %c0_i32_0 : i32, i32, i32
  }
}

module attributes {stable_mosaic.version = 11 : i64} {
  func.func @_cross_layer_kernel(%arg0: i32, %arg1: i32, %arg2: memref<1x8x128xf32, #tpu.memory_space<vmem>>, %arg3: memref<1x8x128xf32, #tpu.memory_space<vmem>>, %arg4: memref<1x8x1xf32, #tpu.memory_space<vmem>>, %arg5: memref<1x1x8xf32, #tpu.memory_space<vmem>>, %arg6: memref<1x128x128xbf16, #tpu.memory_space<vmem>>, %arg7: memref<1x1x128xf32, #tpu.memory_space<vmem>>, %arg8: memref<1x128x256xbf16, #tpu.memory_space<vmem>>, %arg9: memref<1x1x256xf32, #tpu.memory_space<vmem>>, %arg10: memref<1x128x128xbf16, #tpu.memory_space<vmem>>, %arg11: memref<1x1x128xf32, #tpu.memory_space<vmem>>, %arg12: memref<1x8x128xf32, #tpu.memory_space<vmem>>, %arg13: memref<8x128xf32, #tpu.memory_space<vmem>>) attributes {dimension_semantics = [#tpu.dimension_semantics<parallel>, #tpu.dimension_semantics<arbitrary>], iteration_bounds = array<i64: 2, 2>, scalar_prefetch = 0 : i64, scratch_operands = 1 : i64, tpu.core_type = #tpu.core_type<tc>, window_params = [{transform_indices = @transform_0, window_bounds = array<i64: 1, 8, 128>}, {transform_indices = @transform_1, window_bounds = array<i64: 1, 8, 128>}, {transform_indices = @transform_2, window_bounds = array<i64: 1, 8, 1>}, {transform_indices = @transform_3, window_bounds = array<i64: 1, 1, 8>}, {transform_indices = @transform_4, window_bounds = array<i64: 1, 128, 128>}, {transform_indices = @transform_5, window_bounds = array<i64: 1, 1, 128>}, {transform_indices = @transform_6, window_bounds = array<i64: 1, 128, 256>}, {transform_indices = @transform_7, window_bounds = array<i64: 1, 1, 256>}, {transform_indices = @transform_8, window_bounds = array<i64: 1, 128, 128>}, {transform_indices = @transform_9, window_bounds = array<i64: 1, 1, 128>}, {transform_indices = @transform_10, window_bounds = array<i64: 1, 8, 128>}]} {
    %c0_i32 = arith.constant 0 : i32
    %0 = arith.cmpi eq, %arg1, %c0_i32 : i32
    %1 = arith.extui %0 : i1 to i32
    %c0_i32_0 = arith.constant 0 : i32
    %2 = arith.cmpi ne, %1, %c0_i32_0 : i32
    scf.if %2 {
      %c0_82 = arith.constant 0 : index
      %c0_83 = arith.constant 0 : index
      %c0_84 = arith.constant 0 : index
      %258 = vector.load %arg2[%c0_82, %c0_83, %c0_84] : memref<1x8x128xf32, #tpu.memory_space<vmem>>, vector<1x8x128xf32>
      %259 = vector.shape_cast %258 : vector<1x8x128xf32> to vector<8x128xf32>
      %c0_85 = arith.constant 0 : index
      %c0_86 = arith.constant 0 : index
      %260 = vector.load %arg13[%c0_85, %c0_86] : memref<8x128xf32, #tpu.memory_space<vmem>>, vector<8x128xf32>
      tpu.vector_store %arg13[%c0_85, %c0_86], %259 {strides = array<i32>} : memref<8x128xf32, #tpu.memory_space<vmem>>, vector<8x128xf32>,
    } else {
    }
    %c0 = arith.constant 0 : index
    %c0_1 = arith.constant 0 : index
    %3 = vector.load %arg13[%c0, %c0_1] : memref<8x128xf32, #tpu.memory_space<vmem>>, vector<8x128xf32>
    %4 = arith.truncf %3 : vector<8x128xf32> to vector<8x128xbf16>
    %c0_2 = arith.constant 0 : index
    %c0_3 = arith.constant 0 : index
    %c0_4 = arith.constant 0 : index
    %5 = vector.load %arg6[%c0_2, %c0_3, %c0_4] : memref<1x128x128xbf16, #tpu.memory_space<vmem>>, vector<1x128x128xbf16>
    %6 = vector.shape_cast %5 : vector<1x128x128xbf16> to vector<128x128xbf16>
    %cst = arith.constant dense<0.000000e+00> : vector<8x128xf32>
    %7 = tpu.matmul %4, %6, %cst {dimension_numbers = #tpu.dot_dimension_numbers<[1], [0], [0], [1], [0, 0, 1, 1], [], []>} : vector<8x128xbf16>, vector<128x128xbf16>, vector<8x128xf32> -> vector<8x128xf32>
    %c0_5 = arith.constant 0 : index
    %c0_6 = arith.constant 0 : index
    %c0_7 = arith.constant 0 : index
    %8 = vector.load %arg7[%c0_5, %c0_6, %c0_7] : memref<1x1x128xf32, #tpu.memory_space<vmem>>, vector<1x1x128xf32>
    %9 = vector.shape_cast %8 : vector<1x1x128xf32> to vector<1x128xf32>
    %10 = vector.broadcast %9 : vector<1x128xf32> to vector<8x128xf32>
    %11 = arith.addf %7, %10 : vector<8x128xf32>
    %c0_8 = arith.constant 0 : index
    %c0_9 = arith.constant 0 : index
    %c0_10 = arith.constant 0 : index
    %12 = vector.load %arg3[%c0_8, %c0_9, %c0_10] : memref<1x8x128xf32, #tpu.memory_space<vmem>>, vector<1x8x128xf32>
    %13 = vector.shape_cast %12 : vector<1x8x128xf32> to vector<8x128xf32>
    %14 = arith.truncf %13 : vector<8x128xf32> to vector<8x128xbf16>
    %c0_11 = arith.constant 0 : index
    %c0_12 = arith.constant 0 : index
    %c0_13 = arith.constant 0 : index
    %15 = vector.load %arg8[%c0_11, %c0_12, %c0_13] : memref<1x128x256xbf16, #tpu.memory_space<vmem>>, vector<1x128x256xbf16>
    %16 = vector.shape_cast %15 : vector<1x128x256xbf16> to vector<128x256xbf16>
    %cst_14 = arith.constant dense<0.000000e+00> : vector<8x256xf32>
    %17 = tpu.matmul %14, %16, %cst_14 {dimension_numbers = #tpu.dot_dimension_numbers<[1], [0], [0], [1], [0, 0, 1, 1], [], []>} : vector<8x128xbf16>, vector<128x256xbf16>, vector<8x256xf32> -> vector<8x256xf32>
    %c0_15 = arith.constant 0 : index
    %c0_16 = arith.constant 0 : index
    %c0_17 = arith.constant 0 : index
    %18 = vector.load %arg9[%c0_15, %c0_16, %c0_17] : memref<1x1x256xf32, #tpu.memory_space<vmem>>, vector<1x1x256xf32>
    %19 = vector.shape_cast %18 : vector<1x1x256xf32> to vector<1x256xf32>
    %20 = vector.broadcast %19 : vector<1x256xf32> to vector<8x256xf32>
    %21 = arith.addf %17, %20 : vector<8x256xf32>
    %22 = vector.extract_strided_slice %21 {offsets = [0, 0], sizes = [8, 128], strides = [1, 1]} : vector<8x256xf32> to vector<8x128xf32>
    %23 = vector.extract_strided_slice %21 {offsets = [0, 128], sizes = [8, 128], strides = [1, 1]} : vector<8x256xf32> to vector<8x128xf32>
    %c0_18 = arith.constant 0 : index
    %c0_19 = arith.constant 0 : index
    %c0_20 = arith.constant 0 : index
    %24 = vector.load %arg5[%c0_18, %c0_19, %c0_20] : memref<1x1x8xf32, #tpu.memory_space<vmem>>, vector<1x1x8xf32>
    %25 = vector.shape_cast %24 : vector<1x1x8xf32> to vector<1x8xf32>
    %c0_21 = arith.constant 0 : index
    %c0_22 = arith.constant 0 : index
    %c0_23 = arith.constant 0 : index
    %26 = vector.load %arg10[%c0_21, %c0_22, %c0_23] : memref<1x128x128xbf16, #tpu.memory_space<vmem>>, vector<1x128x128xbf16>
    %27 = vector.shape_cast %26 : vector<1x128x128xbf16> to vector<128x128xbf16>
    %cst_24 = arith.constant 0.000000e+00 : f32
    %28 = vector.broadcast %cst_24 : f32 to vector<8x128xf32>
    %29 = vector.extract_strided_slice %11 {offsets = [0, 0], sizes = [8, 16], strides = [1, 1]} : vector<8x128xf32> to vector<8x16xf32>
    %30 = arith.truncf %29 : vector<8x16xf32> to vector<8x16xbf16>
    %31 = vector.extract_strided_slice %22 {offsets = [0, 0], sizes = [8, 16], strides = [1, 1]} : vector<8x128xf32> to vector<8x16xf32>
    %32 = arith.truncf %31 : vector<8x16xf32> to vector<8x16xbf16>
    %33 = vector.extract_strided_slice %23 {offsets = [0, 0], sizes = [8, 16], strides = [1, 1]} : vector<8x128xf32> to vector<8x16xf32>
    %34 = arith.truncf %33 : vector<8x16xf32> to vector<8x16xbf16>
    %cst_25 = arith.constant dense<0.000000e+00> : vector<8x8xf32>
    %35 = tpu.matmul %30, %32, %cst_25 {dimension_numbers = #tpu.dot_dimension_numbers<[1], [1], [0], [0], [0, 0, 1, 0], [], []>} : vector<8x16xbf16>, vector<8x16xbf16>, vector<8x8xf32> -> vector<8x8xf32>
    %cst_26 = arith.constant 2.500000e-01 : f32
    %36 = vector.broadcast %cst_26 : f32 to vector<8x8xf32>
    %37 = arith.mulf %35, %36 : vector<8x8xf32>
    %38 = vector.broadcast %25 : vector<1x8xf32> to vector<8x8xf32>
    %39 = arith.addf %37, %38 : vector<8x8xf32>
    %cst_27 = arith.constant dense<0xFF800000> : vector<8xf32>
    %40 = vector.multi_reduction <maximumf>, %39, %cst_27 [1] : vector<8x8xf32> to vector<8xf32>
    %41 = vector.shape_cast %40 : vector<8xf32> to vector<8x1xf32>
    %42 = vector.broadcast %41 : vector<8x1xf32> to vector<8x8xf32>
    %43 = arith.subf %39, %42 : vector<8x8xf32>
    %44 = math.exp %43 : vector<8x8xf32>
    %cst_28 = arith.constant dense<0.000000e+00> : vector<8xf32>
    %45 = vector.multi_reduction <add>, %44, %cst_28 [1] : vector<8x8xf32> to vector<8xf32>
    %46 = vector.shape_cast %45 : vector<8xf32> to vector<8x1xf32>
    %47 = tpu.reciprocal %46 {approx = true} : vector<8x1xf32> -> vector<8x1xf32>
    %48 = vector.broadcast %47 : vector<8x1xf32> to vector<8x8xf32>
    %49 = arith.mulf %44, %48 : vector<8x8xf32>
    %50 = arith.truncf %49 : vector<8x8xf32> to vector<8x8xbf16>
    %cst_29 = arith.constant dense<0.000000e+00> : vector<8x16xf32>
    %51 = tpu.matmul %50, %34, %cst_29 {dimension_numbers = #tpu.dot_dimension_numbers<[1], [0], [0], [1], [0, 0, 1, 1], [], []>} : vector<8x8xbf16>, vector<8x16xbf16>, vector<8x16xf32> -> vector<8x16xf32>
    %52 = arith.truncf %51 : vector<8x16xf32> to vector<8x16xbf16>
    %53 = vector.extract_strided_slice %27 {offsets = [0, 0], sizes = [16, 128], strides = [1, 1]} : vector<128x128xbf16> to vector<16x128xbf16>
    %cst_30 = arith.constant dense<0.000000e+00> : vector<8x128xf32>
    %54 = tpu.matmul %52, %53, %cst_30 {dimension_numbers = #tpu.dot_dimension_numbers<[1], [0], [0], [1], [0, 0, 1, 1], [], []>} : vector<8x16xbf16>, vector<16x128xbf16>, vector<8x128xf32> -> vector<8x128xf32>
    %55 = arith.addf %28, %54 : vector<8x128xf32>
    %56 = vector.extract_strided_slice %11 {offsets = [0, 16], sizes = [8, 16], strides = [1, 1]} : vector<8x128xf32> to vector<8x16xf32>
    %57 = arith.truncf %56 : vector<8x16xf32> to vector<8x16xbf16>
    %58 = vector.extract_strided_slice %22 {offsets = [0, 16], sizes = [8, 16], strides = [1, 1]} : vector<8x128xf32> to vector<8x16xf32>
    %59 = arith.truncf %58 : vector<8x16xf32> to vector<8x16xbf16>
    %60 = vector.extract_strided_slice %23 {offsets = [0, 16], sizes = [8, 16], strides = [1, 1]} : vector<8x128xf32> to vector<8x16xf32>
    %61 = arith.truncf %60 : vector<8x16xf32> to vector<8x16xbf16>
    %cst_31 = arith.constant dense<0.000000e+00> : vector<8x8xf32>
    %62 = tpu.matmul %57, %59, %cst_31 {dimension_numbers = #tpu.dot_dimension_numbers<[1], [1], [0], [0], [0, 0, 1, 0], [], []>} : vector<8x16xbf16>, vector<8x16xbf16>, vector<8x8xf32> -> vector<8x8xf32>
    %cst_32 = arith.constant 2.500000e-01 : f32
    %63 = vector.broadcast %cst_32 : f32 to vector<8x8xf32>
    %64 = arith.mulf %62, %63 : vector<8x8xf32>
    %65 = vector.broadcast %25 : vector<1x8xf32> to vector<8x8xf32>
    %66 = arith.addf %64, %65 : vector<8x8xf32>
    %cst_33 = arith.constant dense<0xFF800000> : vector<8xf32>
    %67 = vector.multi_reduction <maximumf>, %66, %cst_33 [1] : vector<8x8xf32> to vector<8xf32>
    %68 = vector.shape_cast %67 : vector<8xf32> to vector<8x1xf32>
    %69 = vector.broadcast %68 : vector<8x1xf32> to vector<8x8xf32>
    %70 = arith.subf %66, %69 : vector<8x8xf32>
    %71 = math.exp %70 : vector<8x8xf32>
    %cst_34 = arith.constant dense<0.000000e+00> : vector<8xf32>
    %72 = vector.multi_reduction <add>, %71, %cst_34 [1] : vector<8x8xf32> to vector<8xf32>
    %73 = vector.shape_cast %72 : vector<8xf32> to vector<8x1xf32>
    %74 = tpu.reciprocal %73 {approx = true} : vector<8x1xf32> -> vector<8x1xf32>
    %75 = vector.broadcast %74 : vector<8x1xf32> to vector<8x8xf32>
    %76 = arith.mulf %71, %75 : vector<8x8xf32>
    %77 = arith.truncf %76 : vector<8x8xf32> to vector<8x8xbf16>
    %cst_35 = arith.constant dense<0.000000e+00> : vector<8x16xf32>
    %78 = tpu.matmul %77, %61, %cst_35 {dimension_numbers = #tpu.dot_dimension_numbers<[1], [0], [0], [1], [0, 0, 1, 1], [], []>} : vector<8x8xbf16>, vector<8x16xbf16>, vector<8x16xf32> -> vector<8x16xf32>
    %79 = arith.truncf %78 : vector<8x16xf32> to vector<8x16xbf16>
    %80 = vector.extract_strided_slice %27 {offsets = [16, 0], sizes = [16, 128], strides = [1, 1]} : vector<128x128xbf16> to vector<16x128xbf16>
    %cst_36 = arith.constant dense<0.000000e+00> : vector<8x128xf32>
    %81 = tpu.matmul %79, %80, %cst_36 {dimension_numbers = #tpu.dot_dimension_numbers<[1], [0], [0], [1], [0, 0, 1, 1], [], []>} : vector<8x16xbf16>, vector<16x128xbf16>, vector<8x128xf32> -> vector<8x128xf32>
    %82 = arith.addf %55, %81 : vector<8x128xf32>
    %83 = vector.extract_strided_slice %11 {offsets = [0, 32], sizes = [8, 16], strides = [1, 1]} : vector<8x128xf32> to vector<8x16xf32>
    %84 = arith.truncf %83 : vector<8x16xf32> to vector<8x16xbf16>
    %85 = vector.extract_strided_slice %22 {offsets = [0, 32], sizes = [8, 16], strides = [1, 1]} : vector<8x128xf32> to vector<8x16xf32>
    %86 = arith.truncf %85 : vector<8x16xf32> to vector<8x16xbf16>
    %87 = vector.extract_strided_slice %23 {offsets = [0, 32], sizes = [8, 16], strides = [1, 1]} : vector<8x128xf32> to vector<8x16xf32>
    %88 = arith.truncf %87 : vector<8x16xf32> to vector<8x16xbf16>
    %cst_37 = arith.constant dense<0.000000e+00> : vector<8x8xf32>
    %89 = tpu.matmul %84, %86, %cst_37 {dimension_numbers = #tpu.dot_dimension_numbers<[1], [1], [0], [0], [0, 0, 1, 0], [], []>} : vector<8x16xbf16>, vector<8x16xbf16>, vector<8x8xf32> -> vector<8x8xf32>
    %cst_38 = arith.constant 2.500000e-01 : f32
    %90 = vector.broadcast %cst_38 : f32 to vector<8x8xf32>
    %91 = arith.mulf %89, %90 : vector<8x8xf32>
    %92 = vector.broadcast %25 : vector<1x8xf32> to vector<8x8xf32>
    %93 = arith.addf %91, %92 : vector<8x8xf32>
    %cst_39 = arith.constant dense<0xFF800000> : vector<8xf32>
    %94 = vector.multi_reduction <maximumf>, %93, %cst_39 [1] : vector<8x8xf32> to vector<8xf32>
    %95 = vector.shape_cast %94 : vector<8xf32> to vector<8x1xf32>
    %96 = vector.broadcast %95 : vector<8x1xf32> to vector<8x8xf32>
    %97 = arith.subf %93, %96 : vector<8x8xf32>
    %98 = math.exp %97 : vector<8x8xf32>
    %cst_40 = arith.constant dense<0.000000e+00> : vector<8xf32>
    %99 = vector.multi_reduction <add>, %98, %cst_40 [1] : vector<8x8xf32> to vector<8xf32>
    %100 = vector.shape_cast %99 : vector<8xf32> to vector<8x1xf32>
    %101 = tpu.reciprocal %100 {approx = true} : vector<8x1xf32> -> vector<8x1xf32>
    %102 = vector.broadcast %101 : vector<8x1xf32> to vector<8x8xf32>
    %103 = arith.mulf %98, %102 : vector<8x8xf32>
    %104 = arith.truncf %103 : vector<8x8xf32> to vector<8x8xbf16>
    %cst_41 = arith.constant dense<0.000000e+00> : vector<8x16xf32>
    %105 = tpu.matmul %104, %88, %cst_41 {dimension_numbers = #tpu.dot_dimension_numbers<[1], [0], [0], [1], [0, 0, 1, 1], [], []>} : vector<8x8xbf16>, vector<8x16xbf16>, vector<8x16xf32> -> vector<8x16xf32>
    %106 = arith.truncf %105 : vector<8x16xf32> to vector<8x16xbf16>
    %107 = vector.extract_strided_slice %27 {offsets = [32, 0], sizes = [16, 128], strides = [1, 1]} : vector<128x128xbf16> to vector<16x128xbf16>
    %cst_42 = arith.constant dense<0.000000e+00> : vector<8x128xf32>
    %108 = tpu.matmul %106, %107, %cst_42 {dimension_numbers = #tpu.dot_dimension_numbers<[1], [0], [0], [1], [0, 0, 1, 1], [], []>} : vector<8x16xbf16>, vector<16x128xbf16>, vector<8x128xf32> -> vector<8x128xf32>
    %109 = arith.addf %82, %108 : vector<8x128xf32>
    %110 = vector.extract_strided_slice %11 {offsets = [0, 48], sizes = [8, 16], strides = [1, 1]} : vector<8x128xf32> to vector<8x16xf32>
    %111 = arith.truncf %110 : vector<8x16xf32> to vector<8x16xbf16>
    %112 = vector.extract_strided_slice %22 {offsets = [0, 48], sizes = [8, 16], strides = [1, 1]} : vector<8x128xf32> to vector<8x16xf32>
    %113 = arith.truncf %112 : vector<8x16xf32> to vector<8x16xbf16>
    %114 = vector.extract_strided_slice %23 {offsets = [0, 48], sizes = [8, 16], strides = [1, 1]} : vector<8x128xf32> to vector<8x16xf32>
    %115 = arith.truncf %114 : vector<8x16xf32> to vector<8x16xbf16>
    %cst_43 = arith.constant dense<0.000000e+00> : vector<8x8xf32>
    %116 = tpu.matmul %111, %113, %cst_43 {dimension_numbers = #tpu.dot_dimension_numbers<[1], [1], [0], [0], [0, 0, 1, 0], [], []>} : vector<8x16xbf16>, vector<8x16xbf16>, vector<8x8xf32> -> vector<8x8xf32>
    %cst_44 = arith.constant 2.500000e-01 : f32
    %117 = vector.broadcast %cst_44 : f32 to vector<8x8xf32>
    %118 = arith.mulf %116, %117 : vector<8x8xf32>
    %119 = vector.broadcast %25 : vector<1x8xf32> to vector<8x8xf32>
    %120 = arith.addf %118, %119 : vector<8x8xf32>
    %cst_45 = arith.constant dense<0xFF800000> : vector<8xf32>
    %121 = vector.multi_reduction <maximumf>, %120, %cst_45 [1] : vector<8x8xf32> to vector<8xf32>
    %122 = vector.shape_cast %121 : vector<8xf32> to vector<8x1xf32>
    %123 = vector.broadcast %122 : vector<8x1xf32> to vector<8x8xf32>
    %124 = arith.subf %120, %123 : vector<8x8xf32>
    %125 = math.exp %124 : vector<8x8xf32>
    %cst_46 = arith.constant dense<0.000000e+00> : vector<8xf32>
    %126 = vector.multi_reduction <add>, %125, %cst_46 [1] : vector<8x8xf32> to vector<8xf32>
    %127 = vector.shape_cast %126 : vector<8xf32> to vector<8x1xf32>
    %128 = tpu.reciprocal %127 {approx = true} : vector<8x1xf32> -> vector<8x1xf32>
    %129 = vector.broadcast %128 : vector<8x1xf32> to vector<8x8xf32>
    %130 = arith.mulf %125, %129 : vector<8x8xf32>
    %131 = arith.truncf %130 : vector<8x8xf32> to vector<8x8xbf16>
    %cst_47 = arith.constant dense<0.000000e+00> : vector<8x16xf32>
    %132 = tpu.matmul %131, %115, %cst_47 {dimension_numbers = #tpu.dot_dimension_numbers<[1], [0], [0], [1], [0, 0, 1, 1], [], []>} : vector<8x8xbf16>, vector<8x16xbf16>, vector<8x16xf32> -> vector<8x16xf32>
    %133 = arith.truncf %132 : vector<8x16xf32> to vector<8x16xbf16>
    %134 = vector.extract_strided_slice %27 {offsets = [48, 0], sizes = [16, 128], strides = [1, 1]} : vector<128x128xbf16> to vector<16x128xbf16>
    %cst_48 = arith.constant dense<0.000000e+00> : vector<8x128xf32>
    %135 = tpu.matmul %133, %134, %cst_48 {dimension_numbers = #tpu.dot_dimension_numbers<[1], [0], [0], [1], [0, 0, 1, 1], [], []>} : vector<8x16xbf16>, vector<16x128xbf16>, vector<8x128xf32> -> vector<8x128xf32>
    %136 = arith.addf %109, %135 : vector<8x128xf32>
    %137 = vector.extract_strided_slice %11 {offsets = [0, 64], sizes = [8, 16], strides = [1, 1]} : vector<8x128xf32> to vector<8x16xf32>
    %138 = arith.truncf %137 : vector<8x16xf32> to vector<8x16xbf16>
    %139 = vector.extract_strided_slice %22 {offsets = [0, 64], sizes = [8, 16], strides = [1, 1]} : vector<8x128xf32> to vector<8x16xf32>
    %140 = arith.truncf %139 : vector<8x16xf32> to vector<8x16xbf16>
    %141 = vector.extract_strided_slice %23 {offsets = [0, 64], sizes = [8, 16], strides = [1, 1]} : vector<8x128xf32> to vector<8x16xf32>
    %142 = arith.truncf %141 : vector<8x16xf32> to vector<8x16xbf16>
    %cst_49 = arith.constant dense<0.000000e+00> : vector<8x8xf32>
    %143 = tpu.matmul %138, %140, %cst_49 {dimension_numbers = #tpu.dot_dimension_numbers<[1], [1], [0], [0], [0, 0, 1, 0], [], []>} : vector<8x16xbf16>, vector<8x16xbf16>, vector<8x8xf32> -> vector<8x8xf32>
    %cst_50 = arith.constant 2.500000e-01 : f32
    %144 = vector.broadcast %cst_50 : f32 to vector<8x8xf32>
    %145 = arith.mulf %143, %144 : vector<8x8xf32>
    %146 = vector.broadcast %25 : vector<1x8xf32> to vector<8x8xf32>
    %147 = arith.addf %145, %146 : vector<8x8xf32>
    %cst_51 = arith.constant dense<0xFF800000> : vector<8xf32>
    %148 = vector.multi_reduction <maximumf>, %147, %cst_51 [1] : vector<8x8xf32> to vector<8xf32>
    %149 = vector.shape_cast %148 : vector<8xf32> to vector<8x1xf32>
    %150 = vector.broadcast %149 : vector<8x1xf32> to vector<8x8xf32>
    %151 = arith.subf %147, %150 : vector<8x8xf32>
    %152 = math.exp %151 : vector<8x8xf32>
    %cst_52 = arith.constant dense<0.000000e+00> : vector<8xf32>
    %153 = vector.multi_reduction <add>, %152, %cst_52 [1] : vector<8x8xf32> to vector<8xf32>
    %154 = vector.shape_cast %153 : vector<8xf32> to vector<8x1xf32>
    %155 = tpu.reciprocal %154 {approx = true} : vector<8x1xf32> -> vector<8x1xf32>
    %156 = vector.broadcast %155 : vector<8x1xf32> to vector<8x8xf32>
    %157 = arith.mulf %152, %156 : vector<8x8xf32>
    %158 = arith.truncf %157 : vector<8x8xf32> to vector<8x8xbf16>
    %cst_53 = arith.constant dense<0.000000e+00> : vector<8x16xf32>
    %159 = tpu.matmul %158, %142, %cst_53 {dimension_numbers = #tpu.dot_dimension_numbers<[1], [0], [0], [1], [0, 0, 1, 1], [], []>} : vector<8x8xbf16>, vector<8x16xbf16>, vector<8x16xf32> -> vector<8x16xf32>
    %160 = arith.truncf %159 : vector<8x16xf32> to vector<8x16xbf16>
    %161 = vector.extract_strided_slice %27 {offsets = [64, 0], sizes = [16, 128], strides = [1, 1]} : vector<128x128xbf16> to vector<16x128xbf16>
    %cst_54 = arith.constant dense<0.000000e+00> : vector<8x128xf32>
    %162 = tpu.matmul %160, %161, %cst_54 {dimension_numbers = #tpu.dot_dimension_numbers<[1], [0], [0], [1], [0, 0, 1, 1], [], []>} : vector<8x16xbf16>, vector<16x128xbf16>, vector<8x128xf32> -> vector<8x128xf32>
    %163 = arith.addf %136, %162 : vector<8x128xf32>
    %164 = vector.extract_strided_slice %11 {offsets = [0, 80], sizes = [8, 16], strides = [1, 1]} : vector<8x128xf32> to vector<8x16xf32>
    %165 = arith.truncf %164 : vector<8x16xf32> to vector<8x16xbf16>
    %166 = vector.extract_strided_slice %22 {offsets = [0, 80], sizes = [8, 16], strides = [1, 1]} : vector<8x128xf32> to vector<8x16xf32>
    %167 = arith.truncf %166 : vector<8x16xf32> to vector<8x16xbf16>
    %168 = vector.extract_strided_slice %23 {offsets = [0, 80], sizes = [8, 16], strides = [1, 1]} : vector<8x128xf32> to vector<8x16xf32>
    %169 = arith.truncf %168 : vector<8x16xf32> to vector<8x16xbf16>
    %cst_55 = arith.constant dense<0.000000e+00> : vector<8x8xf32>
    %170 = tpu.matmul %165, %167, %cst_55 {dimension_numbers = #tpu.dot_dimension_numbers<[1], [1], [0], [0], [0, 0, 1, 0], [], []>} : vector<8x16xbf16>, vector<8x16xbf16>, vector<8x8xf32> -> vector<8x8xf32>
    %cst_56 = arith.constant 2.500000e-01 : f32
    %171 = vector.broadcast %cst_56 : f32 to vector<8x8xf32>
    %172 = arith.mulf %170, %171 : vector<8x8xf32>
    %173 = vector.broadcast %25 : vector<1x8xf32> to vector<8x8xf32>
    %174 = arith.addf %172, %173 : vector<8x8xf32>
    %cst_57 = arith.constant dense<0xFF800000> : vector<8xf32>
    %175 = vector.multi_reduction <maximumf>, %174, %cst_57 [1] : vector<8x8xf32> to vector<8xf32>
    %176 = vector.shape_cast %175 : vector<8xf32> to vector<8x1xf32>
    %177 = vector.broadcast %176 : vector<8x1xf32> to vector<8x8xf32>
    %178 = arith.subf %174, %177 : vector<8x8xf32>
    %179 = math.exp %178 : vector<8x8xf32>
    %cst_58 = arith.constant dense<0.000000e+00> : vector<8xf32>
    %180 = vector.multi_reduction <add>, %179, %cst_58 [1] : vector<8x8xf32> to vector<8xf32>
    %181 = vector.shape_cast %180 : vector<8xf32> to vector<8x1xf32>
    %182 = tpu.reciprocal %181 {approx = true} : vector<8x1xf32> -> vector<8x1xf32>
    %183 = vector.broadcast %182 : vector<8x1xf32> to vector<8x8xf32>
    %184 = arith.mulf %179, %183 : vector<8x8xf32>
    %185 = arith.truncf %184 : vector<8x8xf32> to vector<8x8xbf16>
    %cst_59 = arith.constant dense<0.000000e+00> : vector<8x16xf32>
    %186 = tpu.matmul %185, %169, %cst_59 {dimension_numbers = #tpu.dot_dimension_numbers<[1], [0], [0], [1], [0, 0, 1, 1], [], []>} : vector<8x8xbf16>, vector<8x16xbf16>, vector<8x16xf32> -> vector<8x16xf32>
    %187 = arith.truncf %186 : vector<8x16xf32> to vector<8x16xbf16>
    %188 = vector.extract_strided_slice %27 {offsets = [80, 0], sizes = [16, 128], strides = [1, 1]} : vector<128x128xbf16> to vector<16x128xbf16>
    %cst_60 = arith.constant dense<0.000000e+00> : vector<8x128xf32>
    %189 = tpu.matmul %187, %188, %cst_60 {dimension_numbers = #tpu.dot_dimension_numbers<[1], [0], [0], [1], [0, 0, 1, 1], [], []>} : vector<8x16xbf16>, vector<16x128xbf16>, vector<8x128xf32> -> vector<8x128xf32>
    %190 = arith.addf %163, %189 : vector<8x128xf32>
    %191 = vector.extract_strided_slice %11 {offsets = [0, 96], sizes = [8, 16], strides = [1, 1]} : vector<8x128xf32> to vector<8x16xf32>
    %192 = arith.truncf %191 : vector<8x16xf32> to vector<8x16xbf16>
    %193 = vector.extract_strided_slice %22 {offsets = [0, 96], sizes = [8, 16], strides = [1, 1]} : vector<8x128xf32> to vector<8x16xf32>
    %194 = arith.truncf %193 : vector<8x16xf32> to vector<8x16xbf16>
    %195 = vector.extract_strided_slice %23 {offsets = [0, 96], sizes = [8, 16], strides = [1, 1]} : vector<8x128xf32> to vector<8x16xf32>
    %196 = arith.truncf %195 : vector<8x16xf32> to vector<8x16xbf16>
    %cst_61 = arith.constant dense<0.000000e+00> : vector<8x8xf32>
    %197 = tpu.matmul %192, %194, %cst_61 {dimension_numbers = #tpu.dot_dimension_numbers<[1], [1], [0], [0], [0, 0, 1, 0], [], []>} : vector<8x16xbf16>, vector<8x16xbf16>, vector<8x8xf32> -> vector<8x8xf32>
    %cst_62 = arith.constant 2.500000e-01 : f32
    %198 = vector.broadcast %cst_62 : f32 to vector<8x8xf32>
    %199 = arith.mulf %197, %198 : vector<8x8xf32>
    %200 = vector.broadcast %25 : vector<1x8xf32> to vector<8x8xf32>
    %201 = arith.addf %199, %200 : vector<8x8xf32>
    %cst_63 = arith.constant dense<0xFF800000> : vector<8xf32>
    %202 = vector.multi_reduction <maximumf>, %201, %cst_63 [1] : vector<8x8xf32> to vector<8xf32>
    %203 = vector.shape_cast %202 : vector<8xf32> to vector<8x1xf32>
    %204 = vector.broadcast %203 : vector<8x1xf32> to vector<8x8xf32>
    %205 = arith.subf %201, %204 : vector<8x8xf32>
    %206 = math.exp %205 : vector<8x8xf32>
    %cst_64 = arith.constant dense<0.000000e+00> : vector<8xf32>
    %207 = vector.multi_reduction <add>, %206, %cst_64 [1] : vector<8x8xf32> to vector<8xf32>
    %208 = vector.shape_cast %207 : vector<8xf32> to vector<8x1xf32>
    %209 = tpu.reciprocal %208 {approx = true} : vector<8x1xf32> -> vector<8x1xf32>
    %210 = vector.broadcast %209 : vector<8x1xf32> to vector<8x8xf32>
    %211 = arith.mulf %206, %210 : vector<8x8xf32>
    %212 = arith.truncf %211 : vector<8x8xf32> to vector<8x8xbf16>
    %cst_65 = arith.constant dense<0.000000e+00> : vector<8x16xf32>
    %213 = tpu.matmul %212, %196, %cst_65 {dimension_numbers = #tpu.dot_dimension_numbers<[1], [0], [0], [1], [0, 0, 1, 1], [], []>} : vector<8x8xbf16>, vector<8x16xbf16>, vector<8x16xf32> -> vector<8x16xf32>
    %214 = arith.truncf %213 : vector<8x16xf32> to vector<8x16xbf16>
    %215 = vector.extract_strided_slice %27 {offsets = [96, 0], sizes = [16, 128], strides = [1, 1]} : vector<128x128xbf16> to vector<16x128xbf16>
    %cst_66 = arith.constant dense<0.000000e+00> : vector<8x128xf32>
    %216 = tpu.matmul %214, %215, %cst_66 {dimension_numbers = #tpu.dot_dimension_numbers<[1], [0], [0], [1], [0, 0, 1, 1], [], []>} : vector<8x16xbf16>, vector<16x128xbf16>, vector<8x128xf32> -> vector<8x128xf32>
    %217 = arith.addf %190, %216 : vector<8x128xf32>
    %218 = vector.extract_strided_slice %11 {offsets = [0, 112], sizes = [8, 16], strides = [1, 1]} : vector<8x128xf32> to vector<8x16xf32>
    %219 = arith.truncf %218 : vector<8x16xf32> to vector<8x16xbf16>
    %220 = vector.extract_strided_slice %22 {offsets = [0, 112], sizes = [8, 16], strides = [1, 1]} : vector<8x128xf32> to vector<8x16xf32>
    %221 = arith.truncf %220 : vector<8x16xf32> to vector<8x16xbf16>
    %222 = vector.extract_strided_slice %23 {offsets = [0, 112], sizes = [8, 16], strides = [1, 1]} : vector<8x128xf32> to vector<8x16xf32>
    %223 = arith.truncf %222 : vector<8x16xf32> to vector<8x16xbf16>
    %cst_67 = arith.constant dense<0.000000e+00> : vector<8x8xf32>
    %224 = tpu.matmul %219, %221, %cst_67 {dimension_numbers = #tpu.dot_dimension_numbers<[1], [1], [0], [0], [0, 0, 1, 0], [], []>} : vector<8x16xbf16>, vector<8x16xbf16>, vector<8x8xf32> -> vector<8x8xf32>
    %cst_68 = arith.constant 2.500000e-01 : f32
    %225 = vector.broadcast %cst_68 : f32 to vector<8x8xf32>
    %226 = arith.mulf %224, %225 : vector<8x8xf32>
    %227 = vector.broadcast %25 : vector<1x8xf32> to vector<8x8xf32>
    %228 = arith.addf %226, %227 : vector<8x8xf32>
    %cst_69 = arith.constant dense<0xFF800000> : vector<8xf32>
    %229 = vector.multi_reduction <maximumf>, %228, %cst_69 [1] : vector<8x8xf32> to vector<8xf32>
    %230 = vector.shape_cast %229 : vector<8xf32> to vector<8x1xf32>
    %231 = vector.broadcast %230 : vector<8x1xf32> to vector<8x8xf32>
    %232 = arith.subf %228, %231 : vector<8x8xf32>
    %233 = math.exp %232 : vector<8x8xf32>
    %cst_70 = arith.constant dense<0.000000e+00> : vector<8xf32>
    %234 = vector.multi_reduction <add>, %233, %cst_70 [1] : vector<8x8xf32> to vector<8xf32>
    %235 = vector.shape_cast %234 : vector<8xf32> to vector<8x1xf32>
    %236 = tpu.reciprocal %235 {approx = true} : vector<8x1xf32> -> vector<8x1xf32>
    %237 = vector.broadcast %236 : vector<8x1xf32> to vector<8x8xf32>
    %238 = arith.mulf %233, %237 : vector<8x8xf32>
    %239 = arith.truncf %238 : vector<8x8xf32> to vector<8x8xbf16>
    %cst_71 = arith.constant dense<0.000000e+00> : vector<8x16xf32>
    %240 = tpu.matmul %239, %223, %cst_71 {dimension_numbers = #tpu.dot_dimension_numbers<[1], [0], [0], [1], [0, 0, 1, 1], [], []>} : vector<8x8xbf16>, vector<8x16xbf16>, vector<8x16xf32> -> vector<8x16xf32>
    %241 = arith.truncf %240 : vector<8x16xf32> to vector<8x16xbf16>
    %242 = vector.extract_strided_slice %27 {offsets = [112, 0], sizes = [16, 128], strides = [1, 1]} : vector<128x128xbf16> to vector<16x128xbf16>
    %cst_72 = arith.constant dense<0.000000e+00> : vector<8x128xf32>
    %243 = tpu.matmul %241, %242, %cst_72 {dimension_numbers = #tpu.dot_dimension_numbers<[1], [0], [0], [1], [0, 0, 1, 1], [], []>} : vector<8x16xbf16>, vector<16x128xbf16>, vector<8x128xf32> -> vector<8x128xf32>
    %244 = arith.addf %217, %243 : vector<8x128xf32>
    %245 = arith.addf %3, %244 : vector<8x128xf32>
    %c0_73 = arith.constant 0 : index
    %c0_74 = arith.constant 0 : index
    %c0_75 = arith.constant 0 : index
    %246 = vector.load %arg11[%c0_73, %c0_74, %c0_75] : memref<1x1x128xf32, #tpu.memory_space<vmem>>, vector<1x1x128xf32>
    %247 = vector.shape_cast %246 : vector<1x1x128xf32> to vector<1x128xf32>
    %248 = vector.broadcast %247 : vector<1x128xf32> to vector<8x128xf32>
    %249 = arith.addf %245, %248 : vector<8x128xf32>
    %c0_76 = arith.constant 0 : index
    %c0_77 = arith.constant 0 : index
    %c0_78 = arith.constant 0 : index
    %250 = vector.load %arg4[%c0_76, %c0_77, %c0_78] : memref<1x8x1xf32, #tpu.memory_space<vmem>>, vector<1x8x1xf32>
    %251 = vector.shape_cast %250 : vector<1x8x1xf32> to vector<8x1xf32>
    %252 = vector.broadcast %251 : vector<8x1xf32> to vector<8x128xf32>
    %253 = arith.mulf %249, %252 : vector<8x128xf32>
    %c0_79 = arith.constant 0 : index
    %c0_80 = arith.constant 0 : index
    %254 = vector.load %arg13[%c0_79, %c0_80] : memref<8x128xf32, #tpu.memory_space<vmem>>, vector<8x128xf32>
    tpu.vector_store %arg13[%c0_79, %c0_80], %253 {strides = array<i32>} : memref<8x128xf32, #tpu.memory_space<vmem>>, vector<8x128xf32>,
    %c1_i32 = arith.constant 1 : i32
    %255 = arith.cmpi eq, %arg1, %c1_i32 : i32
    %256 = arith.extui %255 : i1 to i32
    %c0_i32_81 = arith.constant 0 : i32
    %257 = arith.cmpi ne, %256, %c0_i32_81 : i32
    scf.if %257 {
      %258 = vector.shape_cast %253 : vector<8x128xf32> to vector<1x8x128xf32>
      %c0_82 = arith.constant 0 : index
      %c0_83 = arith.constant 0 : index
      %c0_84 = arith.constant 0 : index
      %259 = vector.load %arg12[%c0_82, %c0_83, %c0_84] : memref<1x8x128xf32, #tpu.memory_space<vmem>>, vector<1x8x128xf32>
      tpu.vector_store %arg12[%c0_82, %c0_83, %c0_84], %258 {strides = array<i32>} : memref<1x8x128xf32, #tpu.memory_space<vmem>>, vector<1x8x128xf32>,
    } else {
    }
    return
  }
  func.func @transform_0(%arg0: i32, %arg1: i32) -> (i32, i32, i32) {
    %c0_i32 = arith.constant 0 : i32
    %c0_i32_0 = arith.constant 0 : i32
    %c0_i32_1 = arith.constant 0 : i32
    return %arg0, %c0_i32, %c0_i32_0 : i32, i32, i32
  }
  func.func @transform_1(%arg0: i32, %arg1: i32) -> (i32, i32, i32) {
    %c0_i32 = arith.constant 0 : i32
    %c0_i32_0 = arith.constant 0 : i32
    %c0_i32_1 = arith.constant 0 : i32
    return %arg0, %c0_i32, %c0_i32_0 : i32, i32, i32
  }
  func.func @transform_2(%arg0: i32, %arg1: i32) -> (i32, i32, i32) {
    %c0_i32 = arith.constant 0 : i32
    %c0_i32_0 = arith.constant 0 : i32
    %c0_i32_1 = arith.constant 0 : i32
    return %arg0, %c0_i32, %c0_i32_0 : i32, i32, i32
  }
  func.func @transform_3(%arg0: i32, %arg1: i32) -> (i32, i32, i32) {
    %c0_i32 = arith.constant 0 : i32
    %c0_i32_0 = arith.constant 0 : i32
    %c0_i32_1 = arith.constant 0 : i32
    return %arg0, %c0_i32, %c0_i32_0 : i32, i32, i32
  }
  func.func @transform_4(%arg0: i32, %arg1: i32) -> (i32, i32, i32) {
    %c0_i32 = arith.constant 0 : i32
    %c0_i32_0 = arith.constant 0 : i32
    %c0_i32_1 = arith.constant 0 : i32
    return %arg1, %c0_i32, %c0_i32_0 : i32, i32, i32
  }
  func.func @transform_5(%arg0: i32, %arg1: i32) -> (i32, i32, i32) {
    %c0_i32 = arith.constant 0 : i32
    %c0_i32_0 = arith.constant 0 : i32
    %c0_i32_1 = arith.constant 0 : i32
    return %arg1, %c0_i32, %c0_i32_0 : i32, i32, i32
  }
  func.func @transform_6(%arg0: i32, %arg1: i32) -> (i32, i32, i32) {
    %c0_i32 = arith.constant 0 : i32
    %c0_i32_0 = arith.constant 0 : i32
    %c0_i32_1 = arith.constant 0 : i32
    return %arg1, %c0_i32, %c0_i32_0 : i32, i32, i32
  }
  func.func @transform_7(%arg0: i32, %arg1: i32) -> (i32, i32, i32) {
    %c0_i32 = arith.constant 0 : i32
    %c0_i32_0 = arith.constant 0 : i32
    %c0_i32_1 = arith.constant 0 : i32
    return %arg1, %c0_i32, %c0_i32_0 : i32, i32, i32
  }
  func.func @transform_8(%arg0: i32, %arg1: i32) -> (i32, i32, i32) {
    %c0_i32 = arith.constant 0 : i32
    %c0_i32_0 = arith.constant 0 : i32
    %c0_i32_1 = arith.constant 0 : i32
    return %arg1, %c0_i32, %c0_i32_0 : i32, i32, i32
  }
  func.func @transform_9(%arg0: i32, %arg1: i32) -> (i32, i32, i32) {
    %c0_i32 = arith.constant 0 : i32
    %c0_i32_0 = arith.constant 0 : i32
    %c0_i32_1 = arith.constant 0 : i32
    return %arg1, %c0_i32, %c0_i32_0 : i32, i32, i32
  }
  func.func @transform_10(%arg0: i32, %arg1: i32) -> (i32, i32, i32) {
    %c0_i32 = arith.constant 0 : i32
    %c0_i32_0 = arith.constant 0 : i32
    %c0_i32_1 = arith.constant 0 : i32
    return %arg0, %c0_i32, %c0_i32_0 : i32, i32, i32
  }
}

</mosaic_0001>

<llo_original>
// kernel: net_forward.5
$region0: #{net_forward.5}
  #allocation0 [shape = 'u32[]', space=smem, size = 0x4, offset = 0x4, fixed_abs, tag = 'smem constant byte address 0x4 - core index']
  #allocation1 [shape = 'u32[72,128]{1,0:T(1,128)}', space=vmem, size = 0x9000, scoped, tag = 'internal scratch']
  #allocation2 [shape = 'f32[8,128]{1,0:T(8,128)}', space=vmem, size = 0x1000, scoped, tag = 'scratch operand']
  %s0 = inlined_call_operand.vmem [shape: f32[2,8,128], index: 0, kind: input, shape index: {}]
  %s1 = inlined_call_operand.vmem [shape: f32[2,8,128], index: 1, kind: input, shape index: {}]
  %s2 = inlined_call_operand.vmem [shape: f32[2,8,1], index: 2, kind: input, shape index: {}]
  %s3 = inlined_call_operand.vmem [shape: f32[2,1,8], index: 3, kind: input, shape index: {}]
  %s4 = inlined_call_operand.hbm [shape: bf16[2,128,128], index: 4, kind: input, shape index: {}]
  %s5 = inlined_call_operand.vmem [shape: f32[2,1,128], index: 5, kind: input, shape index: {}]
  %s6 = inlined_call_operand.hbm [shape: bf16[2,128,256], index: 6, kind: input, shape index: {}]
  %s7 = inlined_call_operand.vmem [shape: f32[2,1,256], index: 7, kind: input, shape index: {}]
  %s8 = inlined_call_operand.hbm [shape: bf16[2,128,128], index: 8, kind: input, shape index: {}]
  %s9 = inlined_call_operand.hbm [shape: f32[2,1,128], index: 9, kind: input, shape index: {}]
  %s10 = inlined_call_operand.hbm [shape: f32[2,8,128], index: 10, kind: output, shape index: {}]
  %s11 = sld [smem:[#allocation0]]
  $region97: #{net_forward.5} parent=0
    _
  %s13 = ssub.s32 1, %s11
  %s14 = scalar_select 0, %s13, %s11
  $region1: #{net_forward.5} parent=0
    #allocation3 [shape = 'u8[65536]{0}', space=vmem, size = 0x10000, scoped, tag = 'input window, operand 4']
    #allocation4 [shape = 's32[2]{0}', space=sflag, size = 0x8, scoped, tag = 'scoped memory for net_forward.5']
    #allocation5 [shape = 's32[2]{0}', space=sflag, size = 0x8, scoped, tag = 'scoped memory for net_forward.5']
    #allocation6 [shape = 'u8[131072]{0}', space=vmem, size = 0x20000, scoped, tag = 'input window, operand 6']
    #allocation7 [shape = 's32[2]{0}', space=sflag, size = 0x8, scoped, tag = 'scoped memory for net_forward.5']
    #allocation8 [shape = 'u8[65536]{0}', space=vmem, size = 0x10000, scoped, tag = 'input window, operand 8']
    #allocation9 [shape = 'u8[1024]{0}', space=vmem, size = 0x400, scoped, tag = 'input window, operand 9']
    #allocation10 [shape = 's32[2]{0}', space=sflag, size = 0x8, scoped, tag = 'scoped memory for net_forward.5']
    #allocation11 [shape = 'u8[8192]{0}', space=vmem, size = 0x2000, scoped, tag = 'output window, operand 0']
    %15 = vsyncpa [#allocation4], 0
    %s16 = scalar_lea.sflag [#allocation4], 1
    %17 = vsyncpa %s16, 0
    %18 = vsyncpa [#allocation7], 0
    %s19 = scalar_lea.sflag [#allocation7], 1
    %20 = vsyncpa %s19, 0
    %21 = vsyncpa [#allocation10], 0
    %s22 = scalar_lea.sflag [#allocation10], 1
    %23 = vsyncpa %s22, 0
    %24 = vsyncpa [#allocation5], 0
    %s25 = scalar_lea.sflag [#allocation5], 1
    %26 = vsyncpa %s25, 0
    loop: start=0, step=1, limit=6
    $region2: #{net_forward.5} parent=1 // loop_pre_header
      _
    $region3: #{net_forward.5} parent=1 // loop_header
      %s28 = sphi 0, %s32
      %p29 = scmp.ge.s32.totalorder %s28, 6
      %s35 = sphi 0, %s47
      %s36 = sphi 0, %s43
      %s37 = sphi 0, %s35
      %s38 = sphi 0, %s36
      %s39 = sphi 0, %s37
      %s40 = sphi 0, %s38
      %s50 = sphi 0, %s52
      %s53 = sphi 0, %s50
      %s54 = sphi 0, %s53
      %s70 = sphi 0, %s54
      %s76 = sphi 0, %s78
      %s79 = sphi 0, %s76
      %s80 = sphi 0, %s79
      %s96 = sphi 0, %s80
      %s102 = sphi 0, %s104
      %s105 = sphi 0, %s102
      %s106 = sphi 0, %s105
      %s122 = sphi 0, %s106
      %s128 = sphi 0, %s130
      %s131 = sphi 0, %s128
      %s132 = sphi 0, %s131
      %s148 = sphi 0, %s132
      %s154 = sphi 0, %s156
      %s157 = sphi 0, %s154
      %s158 = sphi 0, %s157
      %s174 = sphi 0, %s158
      %s180 = sphi 0, %s182
      %s183 = sphi 0, %s180
      %s184 = sphi 0, %s183
      %s200 = sphi 0, %s184
      %s206 = sphi 0, %s208
      %s209 = sphi 0, %s206
      %s210 = sphi 0, %s209
      %s226 = sphi 0, %s210
      %s232 = sphi 0, %s234
      %s235 = sphi 0, %s232
      %s236 = sphi 0, %s235
      %s252 = sphi 0, %s236
      %s258 = sphi 0, %s260
      %s261 = sphi 0, %s258
      %s262 = sphi 0, %s261
      %s278 = sphi 0, %s262
      %s284 = sphi 0, %s286
      %s287 = sphi 0, %s284
      %s288 = sphi 0, %s287
      %s304 = sphi 0, %s288
      %s310 = sphi 0, %s312
      %s313 = sphi 0, %s310
      %s314 = sphi 0, %s313
      %s330 = sphi 0, %s314
    $region4: #{net_forward.5} parent=1 // loop_header_branch
      %31 = sbr.rel (%p29) target = $region8
    $region5: #{net_forward.5} parent=1 // loop_body
      %s33 = ssub.s32 %s28, 1
      %s34 = ssub.s32 %s28, 2
      %s41 = sadd.s32 1, %s36
      %p42 = scmp.ge.s32.totalorder %s41, 2
      %s43 = scalar_select %p42, 0, %s41
      %s44 = sadd.s32 1, %s35
      %s45 = scalar_select %p42, %s44, %s35
      %p46 = scmp.ge.s32.totalorder %s45, 2
      %s47 = scalar_select %p46, 0, %s45
      %s48 = ssub.s32 %s35, %s47
      %p49 = scmp.eq.s32.totalorder %s48, 0
      %s51 = sadd.s32 %s50, 1
      %s52 = scalar_select %p49, %s50, %s51
      %p55 = pneg %p49
      %p56 = scmp.eq.s32.totalorder %s28, 3
      %p57 = por %p55, %p56
      %p58 = scmp.ne.s32.totalorder %s50, %s53
      %p59 = scmp.eq.s32.totalorder %s28, 0
      %p60 = por %p58, %p59
      %p61 = scmp.ne.s32.totalorder %s50, %s53
      %p62 = scmp.eq.s32.totalorder %s33, 3
      %p63 = por %p61, %p62
      %p64 = scmp.ne.s32.totalorder %s53, %s54
      %p65 = scmp.eq.s32.totalorder %s33, 0
      %p66 = por %p64, %p65
      %p67 = scmp.ne.s32.totalorder %s53, %s54
      %p68 = scmp.eq.s32.totalorder %s34, 3
      %p69 = por %p67, %p68
      %p71 = scmp.ne.s32.totalorder %s54, %s70
      %p72 = scmp.eq.s32.totalorder %s34, 0
      %p73 = por %p71, %p72
      %s74 = ssub.s32 %s35, %s47
      %p75 = scmp.eq.s32.totalorder %s74, 0
      %s77 = sadd.s32 %s76, 1
      %s78 = scalar_select %p75, %s76, %s77
      %p81 = pneg %p75
      %p82 = scmp.eq.s32.totalorder %s28, 3
      %p83 = por %p81, %p82
      %p84 = scmp.ne.s32.totalorder %s76, %s79
      %p85 = scmp.eq.s32.totalorder %s28, 0
      %p86 = por %p84, %p85
      %p87 = scmp.ne.s32.totalorder %s76, %s79
      %p88 = scmp.eq.s32.totalorder %s33, 3
      %p89 = por %p87, %p88
      %p90 = scmp.ne.s32.totalorder %s79, %s80
      %p91 = scmp.eq.s32.totalorder %s33, 0
      %p92 = por %p90, %p91
      %p93 = scmp.ne.s32.totalorder %s79, %s80
      %p94 = scmp.eq.s32.totalorder %s34, 3
      %p95 = por %p93, %p94
      %p97 = scmp.ne.s32.totalorder %s80, %s96
      %p98 = scmp.eq.s32.totalorder %s34, 0
      %p99 = por %p97, %p98
      %s100 = ssub.s32 %s35, %s47
      %p101 = scmp.eq.s32.totalorder %s100, 0
      %s103 = sadd.s32 %s102, 1
      %s104 = scalar_select %p101, %s102, %s103
      %p107 = pneg %p101
      %p108 = scmp.eq.s32.totalorder %s28, 3
      %p109 = por %p107, %p108
      %p110 = scmp.ne.s32.totalorder %s102, %s105
      %p111 = scmp.eq.s32.totalorder %s28, 0
      %p112 = por %p110, %p111
      %p113 = scmp.ne.s32.totalorder %s102, %s105
      %p114 = scmp.eq.s32.totalorder %s33, 3
      %p115 = por %p113, %p114
      %p116 = scmp.ne.s32.totalorder %s105, %s106
      %p117 = scmp.eq.s32.totalorder %s33, 0
      %p118 = por %p116, %p117
      %p119 = scmp.ne.s32.totalorder %s105, %s106
      %p120 = scmp.eq.s32.totalorder %s34, 3
      %p121 = por %p119, %p120
      %p123 = scmp.ne.s32.totalorder %s106, %s122
      %p124 = scmp.eq.s32.totalorder %s34, 0
      %p125 = por %p123, %p124
      %s126 = ssub.s32 %s35, %s47
      %p127 = scmp.eq.s32.totalorder %s126, 0
      %s129 = sadd.s32 %s128, 1
      %s130 = scalar_select %p127, %s128, %s129
      %p133 = pneg %p127
      %p134 = scmp.eq.s32.totalorder %s28, 3
      %p135 = por %p133, %p134
      %p136 = scmp.ne.s32.totalorder %s128, %s131
      %p137 = scmp.eq.s32.totalorder %s28, 0
      %p138 = por %p136, %p137
      %p139 = scmp.ne.s32.totalorder %s128, %s131
      %p140 = scmp.eq.s32.totalorder %s33, 3
      %p141 = por %p139, %p140
      %p142 = scmp.ne.s32.totalorder %s131, %s132
      %p143 = scmp.eq.s32.totalorder %s33, 0
      %p144 = por %p142, %p143
      %p145 = scmp.ne.s32.totalorder %s131, %s132
      %p146 = scmp.eq.s32.totalorder %s34, 3
      %p147 = por %p145, %p146
      %p149 = scmp.ne.s32.totalorder %s132, %s148
      %p150 = scmp.eq.s32.totalorder %s34, 0
      %p151 = por %p149, %p150
      %s152 = ssub.s32 %s36, %s43
      %p153 = scmp.eq.s32.totalorder %s152, 0
      %s155 = sadd.s32 %s154, 1
      %s156 = scalar_select %p153, %s154, %s155
      %p159 = pneg %p153
      %p160 = scmp.eq.s32.totalorder %s28, 3
      %p161 = por %p159, %p160
      %p162 = scmp.ne.s32.totalorder %s154, %s157
      %p163 = scmp.eq.s32.totalorder %s28, 0
      %p164 = por %p162, %p163
      %p165 = scmp.ne.s32.totalorder %s154, %s157
      %p166 = scmp.eq.s32.totalorder %s33, 3
      %p167 = por %p165, %p166
      %p168 = scmp.ne.s32.totalorder %s157, %s158
      %p169 = scmp.eq.s32.totalorder %s33, 0
      %p170 = por %p168, %p169
      %p171 = scmp.ne.s32.totalorder %s157, %s158
      %p172 = scmp.eq.s32.totalorder %s34, 3
      %p173 = por %p171, %p172
      %p175 = scmp.ne.s32.totalorder %s158, %s174
      %p176 = scmp.eq.s32.totalorder %s34, 0
      %p177 = por %p175, %p176
      %s178 = ssub.s32 %s36, %s43
      %p179 = scmp.eq.s32.totalorder %s178, 0
      %s181 = sadd.s32 %s180, 1
      %s182 = scalar_select %p179, %s180, %s181
      %p185 = pneg %p179
      %p186 = scmp.eq.s32.totalorder %s28, 3
      %p187 = por %p185, %p186
      %p188 = scmp.ne.s32.totalorder %s180, %s183
      %p189 = scmp.eq.s32.totalorder %s28, 0
      %p190 = por %p188, %p189
      %p191 = scmp.ne.s32.totalorder %s180, %s183
      %p192 = scmp.eq.s32.totalorder %s33, 3
      %p193 = por %p191, %p192
      %p194 = scmp.ne.s32.totalorder %s183, %s184
      %p195 = scmp.eq.s32.totalorder %s33, 0
      %p196 = por %p194, %p195
      %p197 = scmp.ne.s32.totalorder %s183, %s184
      %p198 = scmp.eq.s32.totalorder %s34, 3
      %p199 = por %p197, %p198
      %p201 = scmp.ne.s32.totalorder %s184, %s200
      %p202 = scmp.eq.s32.totalorder %s34, 0
      %p203 = por %p201, %p202
      %s204 = ssub.s32 %s36, %s43
      %p205 = scmp.eq.s32.totalorder %s204, 0
      %s207 = sadd.s32 %s206, 1
      %s208 = scalar_select %p205, %s206, %s207
      %p211 = pneg %p205
      %p212 = scmp.eq.s32.totalorder %s28, 3
      %p213 = por %p211, %p212
      %p214 = scmp.ne.s32.totalorder %s206, %s209
      %p215 = scmp.eq.s32.totalorder %s28, 0
      %p216 = por %p214, %p215
      %p217 = scmp.ne.s32.totalorder %s206, %s209
      %p218 = scmp.eq.s32.totalorder %s33, 3
      %p219 = por %p217, %p218
      %p220 = scmp.ne.s32.totalorder %s209, %s210
      %p221 = scmp.eq.s32.totalorder %s33, 0
      %p222 = por %p220, %p221
      %p223 = scmp.ne.s32.totalorder %s209, %s210
      %p224 = scmp.eq.s32.totalorder %s34, 3
      %p225 = por %p223, %p224
      %p227 = scmp.ne.s32.totalorder %s210, %s226
      %p228 = scmp.eq.s32.totalorder %s34, 0
      %p229 = por %p227, %p228
      %s230 = ssub.s32 %s36, %s43
      %p231 = scmp.eq.s32.totalorder %s230, 0
      %s233 = sadd.s32 %s232, 1
      %s234 = scalar_select %p231, %s232, %s233
      %p237 = pneg %p231
      %p238 = scmp.eq.s32.totalorder %s28, 3
      %p239 = por %p237, %p238
      %p240 = scmp.ne.s32.totalorder %s232, %s235
      %p241 = scmp.eq.s32.totalorder %s28, 0
      %p242 = por %p240, %p241
      %p243 = scmp.ne.s32.totalorder %s232, %s235
      %p244 = scmp.eq.s32.totalorder %s33, 3
      %p245 = por %p243, %p244
      %p246 = scmp.ne.s32.totalorder %s235, %s236
      %p247 = scmp.eq.s32.totalorder %s33, 0
      %p248 = por %p246, %p247
      %p249 = scmp.ne.s32.totalorder %s235, %s236
      %p250 = scmp.eq.s32.totalorder %s34, 3
      %p251 = por %p249, %p250
      %p253 = scmp.ne.s32.totalorder %s236, %s252
      %p254 = scmp.eq.s32.totalorder %s34, 0
      %p255 = por %p253, %p254
      %s256 = ssub.s32 %s36, %s43
      %p257 = scmp.eq.s32.totalorder %s256, 0
      %s259 = sadd.s32 %s258, 1
      %s260 = scalar_select %p257, %s258, %s259
      %p263 = pneg %p257
      %p264 = scmp.eq.s32.totalorder %s28, 3
      %p265 = por %p263, %p264
      %p266 = scmp.ne.s32.totalorder %s258, %s261
      %p267 = scmp.eq.s32.totalorder %s28, 0
      %p268 = por %p266, %p267
      %p269 = scmp.ne.s32.totalorder %s258, %s261
      %p270 = scmp.eq.s32.totalorder %s33, 3
      %p271 = por %p269, %p270
      %p272 = scmp.ne.s32.totalorder %s261, %s262
      %p273 = scmp.eq.s32.totalorder %s33, 0
      %p274 = por %p272, %p273
      %p275 = scmp.ne.s32.totalorder %s261, %s262
      %p276 = scmp.eq.s32.totalorder %s34, 3
      %p277 = por %p275, %p276
      %p279 = scmp.ne.s32.totalorder %s262, %s278
      %p280 = scmp.eq.s32.totalorder %s34, 0
      %p281 = por %p279, %p280
      %s282 = ssub.s32 %s36, %s43
      %p283 = scmp.eq.s32.totalorder %s282, 0
      %s285 = sadd.s32 %s284, 1
      %s286 = scalar_select %p283, %s284, %s285
      %p289 = pneg %p283
      %p290 = scmp.eq.s32.totalorder %s28, 3
      %p291 = por %p289, %p290
      %p292 = scmp.ne.s32.totalorder %s284, %s287
      %p293 = scmp.eq.s32.totalorder %s28, 0
      %p294 = por %p292, %p293
      %p295 = scmp.ne.s32.totalorder %s284, %s287
      %p296 = scmp.eq.s32.totalorder %s33, 3
      %p297 = por %p295, %p296
      %p298 = scmp.ne.s32.totalorder %s287, %s288
      %p299 = scmp.eq.s32.totalorder %s33, 0
      %p300 = por %p298, %p299
      %p301 = scmp.ne.s32.totalorder %s287, %s288
      %p302 = scmp.eq.s32.totalorder %s34, 3
      %p303 = por %p301, %p302
      %p305 = scmp.ne.s32.totalorder %s288, %s304
      %p306 = scmp.eq.s32.totalorder %s34, 0
      %p307 = por %p305, %p306
      %s308 = ssub.s32 %s35, %s47
      %p309 = scmp.eq.s32.totalorder %s308, 0
      %s311 = sadd.s32 %s310, 1
      %s312 = scalar_select %p309, %s310, %s311
      %p315 = pneg %p309
      %p316 = scmp.eq.s32.totalorder %s28, 3
      %p317 = por %p315, %p316
      %p318 = scmp.ne.s32.totalorder %s310, %s313
      %p319 = scmp.eq.s32.totalorder %s28, 0
      %p320 = por %p318, %p319
      %p321 = scmp.ne.s32.totalorder %s310, %s313
      %p322 = scmp.eq.s32.totalorder %s33, 3
      %p323 = por %p321, %p322
      %p324 = scmp.ne.s32.totalorder %s313, %s314
      %p325 = scmp.eq.s32.totalorder %s33, 0
      %p326 = por %p324, %p325
      %p327 = scmp.ne.s32.totalorder %s313, %s314
      %p328 = scmp.eq.s32.totalorder %s34, 3
      %p329 = por %p327, %p328
      %p331 = scmp.ne.s32.totalorder %s314, %s330
      %p332 = scmp.eq.s32.totalorder %s34, 0
      %p333 = por %p331, %p332
      %p334 = scmp.le.s32.totalorder 1, %s28
      %p335 = scmp.lt.s32.totalorder %s28, 5
      %p336 = pnand %p334, %p335
      %p337 = pneg %p336
      // Predicated region
      $region9: #{net_forward.5} parent=5 // pred_check
        _
      $region10: #{net_forward.5} parent=5 // pred_check_branch
        %339 = sbr.rel (%p336) target = $region12
      $region11: #{net_forward.5} parent=5 // pred_region
        %s340 = ssub.s32 %s28, 1
      $region12: #{net_forward.5} parent=5 // pred_fallthru
        _
      %p341 = scmp.lt.s32.totalorder %s28, 4
      // Predicated region
      $region13: #{net_forward.5} parent=5 // pred_check
        %p342 = pneg %p341
      $region14: #{net_forward.5} parent=5 // pred_check_branch
        %344 = sbr.rel (%p342) target = $region16
      $region15: #{net_forward.5} parent=5 // pred_region
        // Predicated region
        $region17: #{net_forward.5} parent=15 // pred_check
          %p345 = pneg %p60
        $region18: #{net_forward.5} parent=15 // pred_check_branch
          %347 = sbr.rel (%p345) target = $region20
        $region19: #{net_forward.5} parent=15 // pred_region
          %p348 = scmp.lt.s32.totalorder %s35, 1
          %s349 = scalar_select %p348, %s35, 1
          %s350 = smul.addr %s349, 8
          %s351 = scalar_lea.vmem %s0, %s350
        $region20: #{net_forward.5} parent=15 // pred_fallthru
          _
        // Predicated region
        $region21: #{net_forward.5} parent=15 // pred_check
          %p352 = pneg %p86
        $region22: #{net_forward.5} parent=15 // pred_check_branch
          %354 = sbr.rel (%p352) target = $region24
        $region23: #{net_forward.5} parent=15 // pred_region
          %p355 = scmp.lt.s32.totalorder %s35, 1
          %s356 = scalar_select %p355, %s35, 1
          %s357 = smul.addr %s356, 8
          %s358 = scalar_lea.vmem %s1, %s357
        $region24: #{net_forward.5} parent=15 // pred_fallthru
          _
        // Predicated region
        $region25: #{net_forward.5} parent=15 // pred_check
          %p359 = pneg %p112
        $region26: #{net_forward.5} parent=15 // pred_check_branch
          %361 = sbr.rel (%p359) target = $region28
        $region27: #{net_forward.5} parent=15 // pred_region
          %p362 = scmp.lt.s32.totalorder %s35, 1
          %s363 = scalar_select %p362, %s35, 1
          %s364 = smul.addr %s363, 8
          %s365 = scalar_lea.vmem %s2, %s364
        $region28: #{net_forward.5} parent=15 // pred_fallthru
          _
        // Predicated region
        $region29: #{net_forward.5} parent=15 // pred_check
          %p366 = pneg %p138
        $region30: #{net_forward.5} parent=15 // pred_check_branch
          %368 = sbr.rel (%p366) target = $region32
        $region31: #{net_forward.5} parent=15 // pred_region
          %p369 = scmp.lt.s32.totalorder %s35, 1
          %s370 = scalar_select %p369, %s35, 1
          %s371 = scalar_lea.vmem %s3, %s370
        $region32: #{net_forward.5} parent=15 // pred_fallthru
          _
        // Predicated region
        $region33: #{net_forward.5} parent=15 // pred_check
          %p372 = pneg %p164
        $region34: #{net_forward.5} parent=15 // pred_check_branch
          %374 = sbr.rel (%p372) target = $region36
        $region35: #{net_forward.5} parent=15 // pred_region
          %s375 = sand.u32 %s154, 1
          %s376 = scalar_lea.sflag [#allocation4], %s375
          %s377 = sand.u32 %s154, 1
          %s378 = smul.addr %s377, 64
          %s379 = scalar_lea.vmem [#allocation3], %s378
          %381 = vsyncadd %s376, 0
          %s382 = smul.addr %s36, 16
          %s383 = smul.addr %s382, 4
          %s384 = scalar_lea.hbm %s4, %s383
          %s385 = sshll.u32 %s384, 4
          %s386 = int_to_ptr.hbm [resolvable:$true] %s385
          %s387 = sshll.u32 %s379, 4
          %s388 = int_to_ptr.vmem [resolvable:$true] %s387
          %393 = dma.hbm_to_vmem [thread:$0]  %s386, 1024, %s388, %s376, 64, 64, 4
        $region36: #{net_forward.5} parent=15 // pred_fallthru
          _
        // Predicated region
        $region37: #{net_forward.5} parent=15 // pred_check
          %p394 = pneg %p190
        $region38: #{net_forward.5} parent=15 // pred_check_branch
          %396 = sbr.rel (%p394) target = $region40
        $region39: #{net_forward.5} parent=15 // pred_region
          %p397 = scmp.lt.s32.totalorder %s36, 1
          %s398 = scalar_select %p397, %s36, 1
          %s399 = scalar_lea.vmem %s5, %s398
        $region40: #{net_forward.5} parent=15 // pred_fallthru
          _
        // Predicated region
        $region41: #{net_forward.5} parent=15 // pred_check
          %p400 = pneg %p216
        $region42: #{net_forward.5} parent=15 // pred_check_branch
          %402 = sbr.rel (%p400) target = $region44
        $region43: #{net_forward.5} parent=15 // pred_region
          %s403 = sand.u32 %s28, 1
          %s404 = scalar_lea.sflag [#allocation7], %s403
          %s405 = sand.u32 %s206, 1
          %s406 = smul.addr %s405, 128
          %s407 = scalar_lea.vmem [#allocation6], %s406
          %409 = vsyncadd %s404, 0
          %s410 = smul.addr %s36, 32
          %s411 = smul.addr %s410, 4
          %s412 = scalar_lea.hbm %s6, %s411
          %s413 = sshll.u32 %s412, 4
          %s414 = int_to_ptr.hbm [resolvable:$true] %s413
          %s415 = sshll.u32 %s407, 4
          %s416 = int_to_ptr.vmem [resolvable:$true] %s415
          %421 = dma.hbm_to_vmem [thread:$0]  %s414, 2048, %s416, %s404, 128, 128, 8
        $region44: #{net_forward.5} parent=15 // pred_fallthru
          _
        // Predicated region
        $region45: #{net_forward.5} parent=15 // pred_check
          %p422 = pneg %p242
        $region46: #{net_forward.5} parent=15 // pred_check_branch
          %424 = sbr.rel (%p422) target = $region48
        $region47: #{net_forward.5} parent=15 // pred_region
          %p425 = scmp.lt.s32.totalorder %s36, 1
          %s426 = scalar_select %p425, %s36, 1
          %s427 = smul.addr %s426, 2
          %s428 = scalar_lea.vmem %s7, %s427
        $region48: #{net_forward.5} parent=15 // pred_fallthru
          _
        // Predicated region
        $region49: #{net_forward.5} parent=15 // pred_check
          %p429 = pneg %p268
        $region50: #{net_forward.5} parent=15 // pred_check_branch
          %431 = sbr.rel (%p429) target = $region52
        $region51: #{net_forward.5} parent=15 // pred_region
          %s432 = sand.u32 %s28, 1
          %s433 = scalar_lea.sflag [#allocation7], %s432
          %s434 = sand.u32 %s258, 1
          %s435 = smul.addr %s434, 64
          %s436 = scalar_lea.vmem [#allocation8], %s435
          %438 = vsyncadd %s433, 0
          %s439 = smul.addr %s36, 16
          %s440 = smul.addr %s439, 4
          %s441 = scalar_lea.hbm %s8, %s440
          %s442 = sshll.u32 %s441, 4
          %s443 = int_to_ptr.hbm [resolvable:$true] %s442
          %s444 = sshll.u32 %s436, 4
          %s445 = int_to_ptr.vmem [resolvable:$true] %s444
          %450 = dma.hbm_to_vmem [thread:$0]  %s443, 1024, %s445, %s433, 64, 64, 4
        $region52: #{net_forward.5} parent=15 // pred_fallthru
          _
        // Predicated region
        $region53: #{net_forward.5} parent=15 // pred_check
          %p451 = pneg %p294
        $region54: #{net_forward.5} parent=15 // pred_check_branch
          %453 = sbr.rel (%p451) target = $region56
        $region55: #{net_forward.5} parent=15 // pred_region
          %s454 = sand.u32 %s284, 1
          %s455 = scalar_lea.sflag [#allocation10], %s454
          %s456 = sand.u32 %s284, 1
          %s457 = scalar_lea.vmem [#allocation9], %s456
          %459 = vsyncadd %s455, 0
          %s460 = scalar_lea.hbm %s9, %s36
          %s462 = sshll.u32 %s460, 4
          %s463 = int_to_ptr.hbm [resolvable:$true] %s462
          %s464 = sshll.u32 %s457, 4
          %s465 = int_to_ptr.vmem [resolvable:$true] %s464
          %467 = dma.hbm_to_vmem [thread:$0]  %s463, 16, %s465, %s455
        $region56: #{net_forward.5} parent=15 // pred_fallthru
          _
      $region16: #{net_forward.5} parent=5 // pred_fallthru
        _
      %p468 = scmp.le.s32.totalorder 1, %s28
      %p469 = scmp.lt.s32.totalorder %s28, 5
      %p470 = pnand %p468, %p469
      %p471 = pneg %p470
      // Predicated region
      $region57: #{net_forward.5} parent=5 // pred_check
        _
      $region58: #{net_forward.5} parent=5 // pred_check_branch
        %473 = sbr.rel (%p470) target = $region60
      $region59: #{net_forward.5} parent=5 // pred_region
        %s474 = ssub.s32 %s28, 1
        %s475 = sand.u32 %s157, 1
        %s476 = scalar_lea.sflag [#allocation4], %s475
        %s477 = sand.u32 %s157, 1
        %s478 = smul.addr %s477, 64
        %s479 = scalar_lea.vmem [#allocation3], %s478
        // Predicated region
        $region61: #{net_forward.5} parent=59 // pred_check
          %p480 = pneg %p170
        $region62: #{net_forward.5} parent=59 // pred_check_branch
          %482 = sbr.rel (%p480) target = $region64
        $region63: #{net_forward.5} parent=59 // pred_region
          %484 = dma.done %s476, 1024
        $region64: #{net_forward.5} parent=59 // pred_fallthru
          _
        %s485 = sand.u32 %s33, 1
        %s486 = scalar_lea.sflag [#allocation7], %s485
        %s487 = sand.u32 %s209, 1
        %s488 = smul.addr %s487, 128
        %s489 = scalar_lea.vmem [#allocation6], %s488
        // Predicated region
        $region65: #{net_forward.5} parent=59 // pred_check
          %p490 = pneg %p222
        $region66: #{net_forward.5} parent=59 // pred_check_branch
          %492 = sbr.rel (%p490) target = $region68
        $region67: #{net_forward.5} parent=59 // pred_region
          %494 = dma.done %s486, 2048
        $region68: #{net_forward.5} parent=59 // pred_fallthru
          _
        %s495 = sand.u32 %s33, 1
        %s496 = scalar_lea.sflag [#allocation7], %s495
        %s497 = sand.u32 %s261, 1
        %s498 = smul.addr %s497, 64
        %s499 = scalar_lea.vmem [#allocation8], %s498
        // Predicated region
        $region69: #{net_forward.5} parent=59 // pred_check
          %p500 = pneg %p274
        $region70: #{net_forward.5} parent=59 // pred_check_branch
          %502 = sbr.rel (%p500) target = $region72
        $region71: #{net_forward.5} parent=59 // pred_region
          %504 = dma.done %s496, 1024
        $region72: #{net_forward.5} parent=59 // pred_fallthru
          _
        %s505 = sand.u32 %s287, 1
        %s506 = scalar_lea.sflag [#allocation10], %s505
        %s507 = sand.u32 %s287, 1
        %s508 = scalar_lea.vmem [#allocation9], %s507
        // Predicated region
        $region73: #{net_forward.5} parent=59 // pred_check
          %p509 = pneg %p300
        $region74: #{net_forward.5} parent=59 // pred_check_branch
          %511 = sbr.rel (%p509) target = $region76
        $region75: #{net_forward.5} parent=59 // pred_region
          %513 = dma.done %s506, 16
        $region76: #{net_forward.5} parent=59 // pred_fallthru
          _
        %p514 = scmp.lt.s32.totalorder %s37, 1
        %s515 = scalar_select %p514, %s37, 1
        %s516 = smul.addr %s515, 8
        %s517 = scalar_lea.vmem %s0, %s516
        %p518 = pneg %p66
        %p519 = pneg %p63
        %p520 = scmp.lt.s32.totalorder %s37, 1
        %s521 = scalar_select %p520, %s37, 1
        %s522 = smul.addr %s521, 8
        %s523 = scalar_lea.vmem %s1, %s522
        %p524 = pneg %p92
        %p525 = pneg %p89
        %p526 = scmp.lt.s32.totalorder %s37, 1
        %s527 = scalar_select %p526, %s37, 1
        %s528 = smul.addr %s527, 8
        %s529 = scalar_lea.vmem %s2, %s528
        %p530 = pneg %p118
        %p531 = pneg %p115
        %p532 = scmp.lt.s32.totalorder %s37, 1
        %s533 = scalar_select %p532, %s37, 1
        %s534 = scalar_lea.vmem %s3, %s533
        %p535 = pneg %p144
        %p536 = pneg %p141
        %s537 = sand.u32 %s157, 1
        %s538 = scalar_lea.sflag [#allocation4], %s537
        %s539 = sand.u32 %s157, 1
        %s540 = smul.addr %s539, 64
        %s541 = scalar_lea.vmem [#allocation3], %s540
        %p542 = pneg %p170
        %p543 = pneg %p167
        %p544 = scmp.lt.s32.totalorder %s38, 1
        %s545 = scalar_select %p544, %s38, 1
        %s546 = scalar_lea.vmem %s5, %s545
        %p547 = pneg %p196
        %p548 = pneg %p193
        %s549 = sand.u32 %s33, 1
        %s550 = scalar_lea.sflag [#allocation7], %s549
        %s551 = sand.u32 %s209, 1
        %s552 = smul.addr %s551, 128
        %s553 = scalar_lea.vmem [#allocation6], %s552
        %p554 = pneg %p222
        %p555 = pneg %p219
        %p556 = scmp.lt.s32.totalorder %s38, 1
        %s557 = scalar_select %p556, %s38, 1
        %s558 = smul.addr %s557, 2
        %s559 = scalar_lea.vmem %s7, %s558
        %p560 = pneg %p248
        %p561 = pneg %p245
        %s562 = sand.u32 %s33, 1
        %s563 = scalar_lea.sflag [#allocation7], %s562
        %s564 = sand.u32 %s261, 1
        %s565 = smul.addr %s564, 64
        %s566 = scalar_lea.vmem [#allocation8], %s565
        %p567 = pneg %p274
        %p568 = pneg %p271
        %s569 = sand.u32 %s287, 1
        %s570 = scalar_lea.sflag [#allocation10], %s569
        %s571 = sand.u32 %s287, 1
        %s572 = scalar_lea.vmem [#allocation9], %s571
        %p573 = pneg %p300
        %p574 = pneg %p297
        %p575 = pneg %p326
        %p576 = pneg %p323
        %s577 = sand.u32 %s313, 1
        %s578 = scalar_lea.sflag [#allocation5], %s577
        %s579 = sand.u32 %s313, 1
        %s580 = smul.addr %s579, 8
        %s581 = scalar_lea.vmem [#allocation11], %s580
        %p582 = scmp.lt.s32.totalorder %s37, 1
        %s583 = scalar_select %p582, %s37, 1
        %s584 = smul.addr %s583, 8
        %s585 = scalar_lea.vmem %s0, %s584
        %p586 = scmp.lt.s32.totalorder %s37, 1
        %s587 = scalar_select %p586, %s37, 1
        %s588 = smul.addr %s587, 8
        %s589 = scalar_lea.vmem %s1, %s588
        %p590 = scmp.lt.s32.totalorder %s37, 1
        %s591 = scalar_select %p590, %s37, 1
        %s592 = smul.addr %s591, 8
        %s593 = scalar_lea.vmem %s2, %s592
        %p594 = scmp.lt.s32.totalorder %s37, 1
        %s595 = scalar_select %p594, %s37, 1
        %s596 = scalar_lea.vmem %s3, %s595
        %p597 = scmp.lt.s32.totalorder %s38, 1
        %s598 = scalar_select %p597, %s38, 1
        %s599 = scalar_lea.vmem %s5, %s598
        %p600 = scmp.lt.s32.totalorder %s38, 1
        %s601 = scalar_select %p600, %s38, 1
        %s602 = smul.addr %s601, 2
        %s603 = scalar_lea.vmem %s7, %s602
        %p605 = scmp.eq.s32.totalorder %s38, 0
        // Predicated region
        $region77: #{net_forward.5} parent=59 // pred_check
          %p606 = pneg %p605
        $region78: #{net_forward.5} parent=59 // pred_check_branch
          %608 = sbr.rel (%p606) target = $region80
        $region79: #{net_forward.5} parent=59 // pred_region
          %v609 = vld [vmem:[%s585] sm:$0xff]
          %610 = vst [vmem:[#allocation2] sm:$0xff] %v609
        $region80: #{net_forward.5} parent=59 // pred_fallthru
          _
        %v611 = vld [vmem:[#allocation2] sm:$0xff]
        %v612 = vpack.c.bf16 %v611, %v611
        %v613 = vld [vmem:[%s479] sm:$0xf]
        %v614 = vld [vmem:[%s479 + $0x4] sm:$0xf]
        %v615 = vld [vmem:[%s479 + $0x8] sm:$0xf]
        %v616 = vld [vmem:[%s479 + $0xc] sm:$0xf]
        %v617 = vld [vmem:[%s479 + $0x10] sm:$0xf]
        %v618 = vld [vmem:[%s479 + $0x14] sm:$0xf]
        %v619 = vld [vmem:[%s479 + $0x18] sm:$0xf]
        %v620 = vld [vmem:[%s479 + $0x1c] sm:$0xf]
        %v621 = vld [vmem:[%s479 + $0x20] sm:$0xf]
        %v622 = vld [vmem:[%s479 + $0x24] sm:$0xf]
        %v623 = vld [vmem:[%s479 + $0x28] sm:$0xf]
        %v624 = vld [vmem:[%s479 + $0x2c] sm:$0xf]
        %v625 = vld [vmem:[%s479 + $0x30] sm:$0xf]
        %v626 = vld [vmem:[%s479 + $0x34] sm:$0xf]
        %v627 = vld [vmem:[%s479 + $0x38] sm:$0xf]
        %v628 = vld [vmem:[%s479 + $0x3c] sm:$0xf]
        %v629 = vld [vmem:[%s599] sm:$0x1]
        %v631 = vperm.slane %v629, 0
        %v649 = vunpack.c.l.b16 %v613
        %v650 = vunpack.c.l.b16 %v614
        %v651 = vunpack.c.l.b16 %v615
        %v652 = vunpack.c.l.b16 %v616
        %v653 = vunpack.c.l.b16 %v617
        %v654 = vunpack.c.l.b16 %v618
        %v655 = vunpack.c.l.b16 %v619
        %v656 = vunpack.c.l.b16 %v620
        %v657 = vunpack.c.l.b16 %v621
        %v658 = vunpack.c.l.b16 %v622
        %v659 = vunpack.c.l.b16 %v623
        %v660 = vunpack.c.l.b16 %v624
        %v661 = vunpack.c.l.b16 %v625
        %v662 = vunpack.c.l.b16 %v626
        %v663 = vunpack.c.l.b16 %v627
        %v664 = vunpack.c.l.b16 %v628
        %v665 = vpack.c.b16 %v650, %v649
        %v666 = vpack.c.b16 %v652, %v651
        %v667 = vpack.c.b16 %v654, %v653
        %v668 = vpack.c.b16 %v656, %v655
        %v669 = vpack.c.b16 %v658, %v657
        %v670 = vpack.c.b16 %v660, %v659
        %v671 = vpack.c.b16 %v662, %v661
        %v672 = vpack.c.b16 %v664, %v663
        %681 = vmatpush.bf16.msra.mxu0 %v672
        %682 = vmatpush.bf16.msra.mxu0 %v671
        %683 = vmatpush.bf16.msra.mxu0 %v670
        %684 = vmatpush.bf16.msra.mxu0 %v669
        %685 = vmatpush.bf16.msra.mxu0 %v668
        %686 = vmatpush.bf16.msra.mxu0 %v667
        %687 = vmatpush.bf16.msra.mxu0 %v666
        %688 = vmatpush.bf16.msra.mxu0 %v665
        %689 = vmatmul.bf16.gmra.mxu0 %v612
        %v690 = vpop.f32.mrf.mxu0
        %v691 = vadd.f32 %v631, %v690
        %v692 = vpop.f32.mrf.mxu0
        %693 = vdwg.mxu0
        %v694 = vld [vmem:[%s589] sm:$0xff]
        %v695 = vpack.c.bf16 %v694, %v694
        %v696 = vld [vmem:[%s489] sm:$0xff]
        %v697 = vld [vmem:[%s489 + $0x8] sm:$0xff]
        %v698 = vld [vmem:[%s489 + $0x10] sm:$0xff]
        %v699 = vld [vmem:[%s489 + $0x18] sm:$0xff]
        %v700 = vld [vmem:[%s489 + $0x20] sm:$0xff]
        %v701 = vld [vmem:[%s489 + $0x28] sm:$0xff]
        %v702 = vld [vmem:[%s489 + $0x30] sm:$0xff]
        %v703 = vld [vmem:[%s489 + $0x38] sm:$0xff]
        %v704 = vld [vmem:[%s489 + $0x40] sm:$0xff]
        %v705 = vld [vmem:[%s489 + $0x48] sm:$0xff]
        %v706 = vld [vmem:[%s489 + $0x50] sm:$0xff]
        %v707 = vld [vmem:[%s489 + $0x58] sm:$0xff]
        %v708 = vld [vmem:[%s489 + $0x60] sm:$0xff]
        %v709 = vld [vmem:[%s489 + $0x68] sm:$0xff]
        %v710 = vld [vmem:[%s489 + $0x70] sm:$0xff]
        %v711 = vld [vmem:[%s489 + $0x78] sm:$0xff]
        %v712 = vld [vmem:[%s603] sm:$0x3]
        %v714 = vperm.slane %v712, 0
        %v715 = vperm.slane %v712, 1
        %v734 = vunpack.c.l.b16 %v696
        %v735 = vunpack.c.h.b16 %v696
        %v736 = vunpack.c.l.b16 %v697
        %v737 = vunpack.c.h.b16 %v697
        %v738 = vunpack.c.l.b16 %v698
        %v739 = vunpack.c.h.b16 %v698
        %v740 = vunpack.c.l.b16 %v699
        %v741 = vunpack.c.h.b16 %v699
        %v742 = vunpack.c.l.b16 %v700
        %v743 = vunpack.c.h.b16 %v700
        %v744 = vunpack.c.l.b16 %v701
        %v745 = vunpack.c.h.b16 %v701
        %v746 = vunpack.c.l.b16 %v702
        %v747 = vunpack.c.h.b16 %v702
        %v748 = vunpack.c.l.b16 %v703
        %v749 = vunpack.c.h.b16 %v703
        %v750 = vunpack.c.l.b16 %v704
        %v751 = vunpack.c.h.b16 %v704
        %v752 = vunpack.c.l.b16 %v705
        %v753 = vunpack.c.h.b16 %v705
        %v754 = vunpack.c.l.b16 %v706
        %v755 = vunpack.c.h.b16 %v706
        %v756 = vunpack.c.l.b16 %v707
        %v757 = vunpack.c.h.b16 %v707
        %v758 = vunpack.c.l.b16 %v708
        %v759 = vunpack.c.h.b16 %v708
        %v760 = vunpack.c.l.b16 %v709
        %v761 = vunpack.c.h.b16 %v709
        %v762 = vunpack.c.l.b16 %v710
        %v763 = vunpack.c.h.b16 %v710
        %v764 = vunpack.c.l.b16 %v711
        %v765 = vunpack.c.h.b16 %v711
        %v766 = vpack.c.b16 %v736, %v734
        %v767 = vpack.c.b16 %v737, %v735
        %v768 = vpack.c.b16 %v740, %v738
        %v769 = vpack.c.b16 %v741, %v739
        %v770 = vpack.c.b16 %v744, %v742
        %v771 = vpack.c.b16 %v745, %v743
        %v772 = vpack.c.b16 %v748, %v746
        %v773 = vpack.c.b16 %v749, %v747
        %v774 = vpack.c.b16 %v752, %v750
        %v775 = vpack.c.b16 %v753, %v751
        %v776 = vpack.c.b16 %v756, %v754
        %v777 = vpack.c.b16 %v757, %v755
        %v778 = vpack.c.b16 %v760, %v758
        %v779 = vpack.c.b16 %v761, %v759
        %v780 = vpack.c.b16 %v764, %v762
        %v781 = vpack.c.b16 %v765, %v763
        %798 = vmatpush.bf16.msra.mxu0 %v780
        %799 = vmatpush.bf16.msra.mxu0 %v778
        %800 = vmatpush.bf16.msra.mxu0 %v776
        %801 = vmatpush.bf16.msra.mxu0 %v774
        %802 = vmatpush.bf16.msra.mxu0 %v772
        %803 = vmatpush.bf16.msra.mxu0 %v770
        %804 = vmatpush.bf16.msra.mxu0 %v768
        %805 = vmatpush.bf16.msra.mxu0 %v766
        %806 = vmatmul.bf16.gmra.mxu0 %v695
        %v807 = vpop.f32.mrf.mxu0
        %v808 = vadd.f32 %v714, %v807
        %v809 = vpop.f32.mrf.mxu0
        %810 = vdwg.mxu0
        %811 = vmatpush.bf16.msra.mxu0 %v781
        %812 = vmatpush.bf16.msra.mxu0 %v779
        %813 = vmatpush.bf16.msra.mxu0 %v777
        %814 = vmatpush.bf16.msra.mxu0 %v775
        %815 = vmatpush.bf16.msra.mxu0 %v773
        %816 = vmatpush.bf16.msra.mxu0 %v771
        %817 = vmatpush.bf16.msra.mxu0 %v769
        %818 = vmatpush.bf16.msra.mxu0 %v767
        %819 = vmatmul.bf16.gmra.mxu0 %v695
        %v820 = vpop.f32.mrf.mxu0
        %v821 = vadd.f32 %v715, %v820
        %v822 = vpop.f32.mrf.mxu0
        %823 = vdwg.mxu0
        %v824 = vld [vmem:[%s596] sm:$0x1]
        %v825 = vld [vmem:[%s499] sm:$0xf]
        %v826 = vld [vmem:[%s499 + $0x4] sm:$0xf]
        %v827 = vld [vmem:[%s499 + $0x8] sm:$0xf]
        %v828 = vld [vmem:[%s499 + $0xc] sm:$0xf]
        %v829 = vld [vmem:[%s499 + $0x10] sm:$0xf]
        %v830 = vld [vmem:[%s499 + $0x14] sm:$0xf]
        %v831 = vld [vmem:[%s499 + $0x18] sm:$0xf]
        %v832 = vld [vmem:[%s499 + $0x1c] sm:$0xf]
        %v833 = vld [vmem:[%s499 + $0x20] sm:$0xf]
        %v834 = vld [vmem:[%s499 + $0x24] sm:$0xf]
        %v835 = vld [vmem:[%s499 + $0x28] sm:$0xf]
        %v836 = vld [vmem:[%s499 + $0x2c] sm:$0xf]
        %v837 = vld [vmem:[%s499 + $0x30] sm:$0xf]
        %v838 = vld [vmem:[%s499 + $0x34] sm:$0xf]
        %v839 = vld [vmem:[%s499 + $0x38] sm:$0xf]
        %v840 = vld [vmem:[%s499 + $0x3c] sm:$0xf]
        %v841 = vpack.c.bf16 %v691, %v691
        %v842 = vpack.c.bf16 %v808, %v808
        %v843 = vpack.c.bf16 %v821, %v821
        %vm844 = vcmask 130048
        %v846 = vsel %vm844, %v841, 0
        %v849 = vsel %vm844, %v842, 0
        %851 = vmatpush.bf16.xpose.msra.mxu0 0
        %852 = vmatpush.bf16.xpose.msra.mxu0 0
        %853 = vmatpush.bf16.xpose.msra.mxu0 0
        %854 = vmatpush.bf16.xpose.msra.mxu0 0
        %855 = vmatpush.bf16.xpose.msra.mxu0 0
        %856 = vmatpush.bf16.xpose.msra.mxu0 0
        %857 = vmatpush.bf16.xpose.msra.mxu0 0
        %858 = vmatpush.bf16.xpose.msra.mxu0 %v849
        %859 = vmatmul.bf16.gmra.mxu0 %v846
        %v860 = vpop.f32.mrf.mxu0
        %v861 = vadd.f32 0.0, %v860
        %v862 = vpop.f32.mrf.mxu0
        %863 = vdwg.mxu0
        %v864 = vmul.f32 %v861, 0.25
        %v866 = vperm.slane %v824, 0
        %v868 = vadd.f32 %v864, %v866
        %vm869 = vcmask 64512
        %v870 = vsel %vm869, %v868, -inf
        %871 = vmax.xlane.f32.xlu0 %v870
        %v872 = vpop.xlane.xlu0 %871
        %v873 = vsub.f32 %v868, %v872
        %v874 = vmul.f32 %v873, 1.442695
        %v875 = vpow.pop %v874
        %v876 = vsel %vm869, %v875, 0.0
        %877 = vadd.xlane.f32.xlu0 %v876
        %v878 = vpop.xlane.xlu0 %877
        %v879 = vrcp.pop %v878
        %v880 = vmul.f32 %v875, %v879
        %v881 = vpack.c.bf16 %v880, %v880
        %v883 = vsel %vm869, %v881, 0
        %vm885 = vcmask 1043456
        %v887 = vsel %vm885, %v843, 0
        %889 = vmatpush.bf16.msra.mxu0 0
        %890 = vmatpush.bf16.msra.mxu0 0
        %891 = vmatpush.bf16.msra.mxu0 0
        %892 = vmatpush.bf16.msra.mxu0 0
        %893 = vmatpush.bf16.msra.mxu0 0
        %894 = vmatpush.bf16.msra.mxu0 0
        %895 = vmatpush.bf16.msra.mxu0 0
        %896 = vmatpush.bf16.msra.mxu0 %v887
        %897 = vmatmul.bf16.gmra.mxu0 %v883
        %v898 = vpop.f32.mrf.mxu0
        %v899 = vadd.f32 0.0, %v898
        %v900 = vpop.f32.mrf.mxu0
        %901 = vdwg.mxu0
        %v902 = vpack.c.bf16 %v899, %v899
        %904 = vrot.lane.b32.xlu0 %v841, 112
        %v905 = vpop.permute.xlu0 %904
        %907 = vrot.lane.b32.xlu0 %v842, 112
        %v908 = vpop.permute.xlu0 %907
        %v910 = vsel %vm844, %v905, 0
        %v913 = vsel %vm844, %v908, 0
        %915 = vmatpush.bf16.xpose.msra.mxu0 0
        %916 = vmatpush.bf16.xpose.msra.mxu0 0
        %917 = vmatpush.bf16.xpose.msra.mxu0 0
        %918 = vmatpush.bf16.xpose.msra.mxu0 0
        %919 = vmatpush.bf16.xpose.msra.mxu0 0
        %920 = vmatpush.bf16.xpose.msra.mxu0 0
        %921 = vmatpush.bf16.xpose.msra.mxu0 0
        %922 = vmatpush.bf16.xpose.msra.mxu0 %v913
        %923 = vmatmul.bf16.gmra.mxu0 %v910
        %v924 = vpop.f32.mrf.mxu0
        %v925 = vadd.f32 0.0, %v924
        %v926 = vpop.f32.mrf.mxu0
        %927 = vdwg.mxu0
        %v928 = vmul.f32 %v925, 0.25
        %v929 = vadd.f32 %v928, %v866
        %v930 = vsel %vm869, %v929, -inf
        %931 = vmax.xlane.f32.xlu0 %v930
        %v932 = vpop.xlane.xlu0 %931
        %v933 = vsub.f32 %v929, %v932
        %v934 = vmul.f32 %v933, 1.442695
        %v935 = vpow.pop %v934
        %v936 = vsel %vm869, %v935, 0.0
        %937 = vadd.xlane.f32.xlu0 %v936
        %v938 = vpop.xlane.xlu0 %937
        %v939 = vrcp.pop %v938
        %v940 = vmul.f32 %v935, %v939
        %v941 = vpack.c.bf16 %v940, %v940
        %943 = vrot.lane.b32.xlu0 %v843, 112
        %v944 = vpop.permute.xlu0 %943
        %v946 = vsel %vm869, %v941, 0
        %v949 = vsel %vm885, %v944, 0
        %951 = vmatpush.bf16.msra.mxu0 0
        %952 = vmatpush.bf16.msra.mxu0 0
        %953 = vmatpush.bf16.msra.mxu0 0
        %954 = vmatpush.bf16.msra.mxu0 0
        %955 = vmatpush.bf16.msra.mxu0 0
        %956 = vmatpush.bf16.msra.mxu0 0
        %957 = vmatpush.bf16.msra.mxu0 0
        %958 = vmatpush.bf16.msra.mxu0 %v949
        %959 = vmatmul.bf16.gmra.mxu0 %v946
        %v960 = vpop.f32.mrf.mxu0
        %v961 = vadd.f32 0.0, %v960
        %v962 = vpop.f32.mrf.mxu0
        %963 = vdwg.mxu0
        %v964 = vpack.c.bf16 %v961, %v961
        %v967 = vunpack.c.l.b16 %v827
        %v968 = vunpack.c.l.b16 %v828
        %v969 = vpack.c.b16 %v968, %v967
        %v972 = vsel %vm844, %v964, 0
        %974 = vmatpush.bf16.msra.mxu0 0
        %975 = vmatpush.bf16.msra.mxu0 0
        %976 = vmatpush.bf16.msra.mxu0 0
        %977 = vmatpush.bf16.msra.mxu0 0
        %978 = vmatpush.bf16.msra.mxu0 0
        %979 = vmatpush.bf16.msra.mxu0 0
        %980 = vmatpush.bf16.msra.mxu0 0
        %981 = vmatpush.bf16.msra.mxu0 %v969
        %982 = vmatmul.bf16.gmra.mxu0 %v972
        %v983 = vpop.f32.mrf.mxu0
        %v984 = vadd.f32 0.0, %v983
        %v985 = vpop.f32.mrf.mxu0
        %986 = vdwg.mxu0
        %v989 = vunpack.c.l.b16 %v825
        %v990 = vunpack.c.l.b16 %v826
        %v991 = vpack.c.b16 %v990, %v989
        %v994 = vsel %vm844, %v902, 0
        %996 = vmatpush.bf16.msra.mxu0 0
        %997 = vmatpush.bf16.msra.mxu0 0
        %998 = vmatpush.bf16.msra.mxu0 0
        %999 = vmatpush.bf16.msra.mxu0 0
        %1000 = vmatpush.bf16.msra.mxu0 0
        %1001 = vmatpush.bf16.msra.mxu0 0
        %1002 = vmatpush.bf16.msra.mxu0 0
        %1003 = vmatpush.bf16.msra.mxu0 %v991
        %1004 = vmatmul.bf16.gmra.mxu0 %v994
        %v1005 = vpop.f32.mrf.mxu0
        %v1006 = vadd.f32 %v984, %v1005
        %v1007 = vpop.f32.mrf.mxu0
        %1008 = vdwg.mxu0
        %1009 = vrot.lane.b32.xlu0 %v841, 96
        %v1010 = vpop.permute.xlu0 %1009
        %1011 = vrot.lane.b32.xlu0 %v842, 96
        %v1012 = vpop.permute.xlu0 %1011
        %v1014 = vsel %vm844, %v1010, 0
        %v1017 = vsel %vm844, %v1012, 0
        %1019 = vmatpush.bf16.xpose.msra.mxu0 0
        %1020 = vmatpush.bf16.xpose.msra.mxu0 0
        %1021 = vmatpush.bf16.xpose.msra.mxu0 0
        %1022 = vmatpush.bf16.xpose.msra.mxu0 0
        %1023 = vmatpush.bf16.xpose.msra.mxu0 0
        %1024 = vmatpush.bf16.xpose.msra.mxu0 0
        %1025 = vmatpush.bf16.xpose.msra.mxu0 0
        %1026 = vmatpush.bf16.xpose.msra.mxu0 %v1017
        %1027 = vmatmul.bf16.gmra.mxu0 %v1014
        %v1028 = vpop.f32.mrf.mxu0
        %v1029 = vadd.f32 0.0, %v1028
        %v1030 = vpop.f32.mrf.mxu0
        %1031 = vdwg.mxu0
        %v1032 = vmul.f32 %v1029, 0.25
        %v1033 = vadd.f32 %v1032, %v866
        %v1034 = vsel %vm869, %v1033, -inf
        %1035 = vmax.xlane.f32.xlu0 %v1034
        %v1036 = vpop.xlane.xlu0 %1035
        %v1037 = vsub.f32 %v1033, %v1036
        %v1038 = vmul.f32 %v1037, 1.442695
        %v1039 = vpow.pop %v1038
        %v1040 = vsel %vm869, %v1039, 0.0
        %1041 = vadd.xlane.f32.xlu0 %v1040
        %v1042 = vpop.xlane.xlu0 %1041
        %v1043 = vrcp.pop %v1042
        %v1044 = vmul.f32 %v1039, %v1043
        %v1045 = vpack.c.bf16 %v1044, %v1044
        %1046 = vrot.lane.b32.xlu0 %v843, 96
        %v1047 = vpop.permute.xlu0 %1046
        %v1049 = vsel %vm869, %v1045, 0
        %v1052 = vsel %vm885, %v1047, 0
        %1054 = vmatpush.bf16.msra.mxu0 0
        %1055 = vmatpush.bf16.msra.mxu0 0
        %1056 = vmatpush.bf16.msra.mxu0 0
        %1057 = vmatpush.bf16.msra.mxu0 0
        %1058 = vmatpush.bf16.msra.mxu0 0
        %1059 = vmatpush.bf16.msra.mxu0 0
        %1060 = vmatpush.bf16.msra.mxu0 0
        %1061 = vmatpush.bf16.msra.mxu0 %v1052
        %1062 = vmatmul.bf16.gmra.mxu0 %v1049
        %v1063 = vpop.f32.mrf.mxu0
        %v1064 = vadd.f32 0.0, %v1063
        %v1065 = vpop.f32.mrf.mxu0
        %1066 = vdwg.mxu0
        %v1067 = vpack.c.bf16 %v1064, %v1064
        %v1070 = vunpack.c.l.b16 %v829
        %v1071 = vunpack.c.l.b16 %v830
        %v1072 = vpack.c.b16 %v1071, %v1070
        %v1075 = vsel %vm844, %v1067, 0
        %1077 = vmatpush.bf16.msra.mxu0 0
        %1078 = vmatpush.bf16.msra.mxu0 0
        %1079 = vmatpush.bf16.msra.mxu0 0
        %1080 = vmatpush.bf16.msra.mxu0 0
        %1081 = vmatpush.bf16.msra.mxu0 0
        %1082 = vmatpush.bf16.msra.mxu0 0
        %1083 = vmatpush.bf16.msra.mxu0 0
        %1084 = vmatpush.bf16.msra.mxu0 %v1072
        %1085 = vmatmul.bf16.gmra.mxu0 %v1075
        %v1086 = vpop.f32.mrf.mxu0
        %v1087 = vadd.f32 0.0, %v1086
        %v1088 = vpop.f32.mrf.mxu0
        %1089 = vdwg.mxu0
        %v1090 = vadd.f32 %v1006, %v1087
        %1091 = vrot.lane.b32.xlu0 %v841, 80
        %v1092 = vpop.permute.xlu0 %1091
        %1093 = vrot.lane.b32.xlu0 %v842, 80
        %v1094 = vpop.permute.xlu0 %1093
        %v1096 = vsel %vm844, %v1092, 0
        %v1099 = vsel %vm844, %v1094, 0
        %1101 = vmatpush.bf16.xpose.msra.mxu0 0
        %1102 = vmatpush.bf16.xpose.msra.mxu0 0
        %1103 = vmatpush.bf16.xpose.msra.mxu0 0
        %1104 = vmatpush.bf16.xpose.msra.mxu0 0
        %1105 = vmatpush.bf16.xpose.msra.mxu0 0
        %1106 = vmatpush.bf16.xpose.msra.mxu0 0
        %1107 = vmatpush.bf16.xpose.msra.mxu0 0
        %1108 = vmatpush.bf16.xpose.msra.mxu0 %v1099
        %1109 = vmatmul.bf16.gmra.mxu0 %v1096
        %v1110 = vpop.f32.mrf.mxu0
        %v1111 = vadd.f32 0.0, %v1110
        %v1112 = vpop.f32.mrf.mxu0
        %1113 = vdwg.mxu0
        %v1114 = vmul.f32 %v1111, 0.25
        %v1115 = vadd.f32 %v1114, %v866
        %v1116 = vsel %vm869, %v1115, -inf
        %1117 = vmax.xlane.f32.xlu0 %v1116
        %v1118 = vpop.xlane.xlu0 %1117
        %v1119 = vsub.f32 %v1115, %v1118
        %v1120 = vmul.f32 %v1119, 1.442695
        %v1121 = vpow.pop %v1120
        %v1122 = vsel %vm869, %v1121, 0.0
        %1123 = vadd.xlane.f32.xlu0 %v1122
        %v1124 = vpop.xlane.xlu0 %1123
        %v1125 = vrcp.pop %v1124
        %v1126 = vmul.f32 %v1121, %v1125
        %v1127 = vpack.c.bf16 %v1126, %v1126
        %1128 = vrot.lane.b32.xlu0 %v843, 80
        %v1129 = vpop.permute.xlu0 %1128
        %v1131 = vsel %vm869, %v1127, 0
        %v1134 = vsel %vm885, %v1129, 0
        %1136 = vmatpush.bf16.msra.mxu0 0
        %1137 = vmatpush.bf16.msra.mxu0 0
        %1138 = vmatpush.bf16.msra.mxu0 0
        %1139 = vmatpush.bf16.msra.mxu0 0
        %1140 = vmatpush.bf16.msra.mxu0 0
        %1141 = vmatpush.bf16.msra.mxu0 0
        %1142 = vmatpush.bf16.msra.mxu0 0
        %1143 = vmatpush.bf16.msra.mxu0 %v1134
        %1144 = vmatmul.bf16.gmra.mxu0 %v1131
        %v1145 = vpop.f32.mrf.mxu0
        %v1146 = vadd.f32 0.0, %v1145
        %v1147 = vpop.f32.mrf.mxu0
        %1148 = vdwg.mxu0
        %v1149 = vpack.c.bf16 %v1146, %v1146
        %v1152 = vunpack.c.l.b16 %v831
        %v1153 = vunpack.c.l.b16 %v832
        %v1154 = vpack.c.b16 %v1153, %v1152
        %v1157 = vsel %vm844, %v1149, 0
        %1159 = vmatpush.bf16.msra.mxu0 0
        %1160 = vmatpush.bf16.msra.mxu0 0
        %1161 = vmatpush.bf16.msra.mxu0 0
        %1162 = vmatpush.bf16.msra.mxu0 0
        %1163 = vmatpush.bf16.msra.mxu0 0
        %1164 = vmatpush.bf16.msra.mxu0 0
        %1165 = vmatpush.bf16.msra.mxu0 0
        %1166 = vmatpush.bf16.msra.mxu0 %v1154
        %1167 = vmatmul.bf16.gmra.mxu0 %v1157
        %v1168 = vpop.f32.mrf.mxu0
        %v1169 = vadd.f32 0.0, %v1168
        %v1170 = vpop.f32.mrf.mxu0
        %1171 = vdwg.mxu0
        %v1172 = vadd.f32 %v1090, %v1169
        %1173 = vrot.lane.b32.xlu0 %v841, 64
        %v1174 = vpop.permute.xlu0 %1173
        %1175 = vrot.lane.b32.xlu0 %v842, 64
        %v1176 = vpop.permute.xlu0 %1175
        %v1178 = vsel %vm844, %v1174, 0
        %v1181 = vsel %vm844, %v1176, 0
        %1183 = vmatpush.bf16.xpose.msra.mxu0 0
        %1184 = vmatpush.bf16.xpose.msra.mxu0 0
        %1185 = vmatpush.bf16.xpose.msra.mxu0 0
        %1186 = vmatpush.bf16.xpose.msra.mxu0 0
        %1187 = vmatpush.bf16.xpose.msra.mxu0 0
        %1188 = vmatpush.bf16.xpose.msra.mxu0 0
        %1189 = vmatpush.bf16.xpose.msra.mxu0 0
        %1190 = vmatpush.bf16.xpose.msra.mxu0 %v1181
        %1191 = vmatmul.bf16.gmra.mxu0 %v1178
        %v1192 = vpop.f32.mrf.mxu0
        %v1193 = vadd.f32 0.0, %v1192
        %v1194 = vpop.f32.mrf.mxu0
        %1195 = vdwg.mxu0
        %v1196 = vmul.f32 %v1193, 0.25
        %v1197 = vadd.f32 %v1196, %v866
        %v1198 = vsel %vm869, %v1197, -inf
        %1199 = vmax.xlane.f32.xlu0 %v1198
        %v1200 = vpop.xlane.xlu0 %1199
        %v1201 = vsub.f32 %v1197, %v1200
        %v1202 = vmul.f32 %v1201, 1.442695
        %v1203 = vpow.pop %v1202
        %v1204 = vsel %vm869, %v1203, 0.0
        %1205 = vadd.xlane.f32.xlu0 %v1204
        %v1206 = vpop.xlane.xlu0 %1205
        %v1207 = vrcp.pop %v1206
        %v1208 = vmul.f32 %v1203, %v1207
        %v1209 = vpack.c.bf16 %v1208, %v1208
        %1210 = vrot.lane.b32.xlu0 %v843, 64
        %v1211 = vpop.permute.xlu0 %1210
        %v1213 = vsel %vm869, %v1209, 0
        %v1216 = vsel %vm885, %v1211, 0
        %1218 = vmatpush.bf16.msra.mxu0 0
        %1219 = vmatpush.bf16.msra.mxu0 0
        %1220 = vmatpush.bf16.msra.mxu0 0
        %1221 = vmatpush.bf16.msra.mxu0 0
        %1222 = vmatpush.bf16.msra.mxu0 0
        %1223 = vmatpush.bf16.msra.mxu0 0
        %1224 = vmatpush.bf16.msra.mxu0 0
        %1225 = vmatpush.bf16.msra.mxu0 %v1216
        %1226 = vmatmul.bf16.gmra.mxu0 %v1213
        %v1227 = vpop.f32.mrf.mxu0
        %v1228 = vadd.f32 0.0, %v1227
        %v1229 = vpop.f32.mrf.mxu0
        %1230 = vdwg.mxu0
        %v1231 = vpack.c.bf16 %v1228, %v1228
        %v1234 = vunpack.c.l.b16 %v833
        %v1235 = vunpack.c.l.b16 %v834
        %v1236 = vpack.c.b16 %v1235, %v1234
        %v1239 = vsel %vm844, %v1231, 0
        %1241 = vmatpush.bf16.msra.mxu0 0
        %1242 = vmatpush.bf16.msra.mxu0 0
        %1243 = vmatpush.bf16.msra.mxu0 0
        %1244 = vmatpush.bf16.msra.mxu0 0
        %1245 = vmatpush.bf16.msra.mxu0 0
        %1246 = vmatpush.bf16.msra.mxu0 0
        %1247 = vmatpush.bf16.msra.mxu0 0
        %1248 = vmatpush.bf16.msra.mxu0 %v1236
        %1249 = vmatmul.bf16.gmra.mxu0 %v1239
        %v1250 = vpop.f32.mrf.mxu0
        %v1251 = vadd.f32 0.0, %v1250
        %v1252 = vpop.f32.mrf.mxu0
        %1253 = vdwg.mxu0
        %v1254 = vadd.f32 %v1172, %v1251
        %1255 = vrot.lane.b32.xlu0 %v841, 48
        %v1256 = vpop.permute.xlu0 %1255
        %1257 = vrot.lane.b32.xlu0 %v842, 48
        %v1258 = vpop.permute.xlu0 %1257
        %v1260 = vsel %vm844, %v1256, 0
        %v1263 = vsel %vm844, %v1258, 0
        %1265 = vmatpush.bf16.xpose.msra.mxu0 0
        %1266 = vmatpush.bf16.xpose.msra.mxu0 0
        %1267 = vmatpush.bf16.xpose.msra.mxu0 0
        %1268 = vmatpush.bf16.xpose.msra.mxu0 0
        %1269 = vmatpush.bf16.xpose.msra.mxu0 0
        %1270 = vmatpush.bf16.xpose.msra.mxu0 0
        %1271 = vmatpush.bf16.xpose.msra.mxu0 0
        %1272 = vmatpush.bf16.xpose.msra.mxu0 %v1263
        %1273 = vmatmul.bf16.gmra.mxu0 %v1260
        %v1274 = vpop.f32.mrf.mxu0
        %v1275 = vadd.f32 0.0, %v1274
        %v1276 = vpop.f32.mrf.mxu0
        %1277 = vdwg.mxu0
        %v1278 = vmul.f32 %v1275, 0.25
        %v1279 = vadd.f32 %v1278, %v866
        %v1280 = vsel %vm869, %v1279, -inf
        %1281 = vmax.xlane.f32.xlu0 %v1280
        %v1282 = vpop.xlane.xlu0 %1281
        %v1283 = vsub.f32 %v1279, %v1282
        %v1284 = vmul.f32 %v1283, 1.442695
        %v1285 = vpow.pop %v1284
        %v1286 = vsel %vm869, %v1285, 0.0
        %1287 = vadd.xlane.f32.xlu0 %v1286
        %v1288 = vpop.xlane.xlu0 %1287
        %v1289 = vrcp.pop %v1288
        %v1290 = vmul.f32 %v1285, %v1289
        %v1291 = vpack.c.bf16 %v1290, %v1290
        %1292 = vrot.lane.b32.xlu0 %v843, 48
        %v1293 = vpop.permute.xlu0 %1292
        %v1295 = vsel %vm869, %v1291, 0
        %v1298 = vsel %vm885, %v1293, 0
        %1300 = vmatpush.bf16.msra.mxu0 0
        %1301 = vmatpush.bf16.msra.mxu0 0
        %1302 = vmatpush.bf16.msra.mxu0 0
        %1303 = vmatpush.bf16.msra.mxu0 0
        %1304 = vmatpush.bf16.msra.mxu0 0
        %1305 = vmatpush.bf16.msra.mxu0 0
        %1306 = vmatpush.bf16.msra.mxu0 0
        %1307 = vmatpush.bf16.msra.mxu0 %v1298
        %1308 = vmatmul.bf16.gmra.mxu0 %v1295
        %v1309 = vpop.f32.mrf.mxu0
        %v1310 = vadd.f32 0.0, %v1309
        %v1311 = vpop.f32.mrf.mxu0
        %1312 = vdwg.mxu0
        %v1313 = vpack.c.bf16 %v1310, %v1310
        %v1316 = vunpack.c.l.b16 %v835
        %v1317 = vunpack.c.l.b16 %v836
        %v1318 = vpack.c.b16 %v1317, %v1316
        %v1321 = vsel %vm844, %v1313, 0
        %1323 = vmatpush.bf16.msra.mxu0 0
        %1324 = vmatpush.bf16.msra.mxu0 0
        %1325 = vmatpush.bf16.msra.mxu0 0
        %1326 = vmatpush.bf16.msra.mxu0 0
        %1327 = vmatpush.bf16.msra.mxu0 0
        %1328 = vmatpush.bf16.msra.mxu0 0
        %1329 = vmatpush.bf16.msra.mxu0 0
        %1330 = vmatpush.bf16.msra.mxu0 %v1318
        %1331 = vmatmul.bf16.gmra.mxu0 %v1321
        %v1332 = vpop.f32.mrf.mxu0
        %v1333 = vadd.f32 0.0, %v1332
        %v1334 = vpop.f32.mrf.mxu0
        %1335 = vdwg.mxu0
        %v1336 = vadd.f32 %v1254, %v1333
        %1337 = vrot.lane.b32.xlu0 %v841, 32
        %v1338 = vpop.permute.xlu0 %1337
        %1339 = vrot.lane.b32.xlu0 %v842, 32
        %v1340 = vpop.permute.xlu0 %1339
        %v1342 = vsel %vm844, %v1338, 0
        %v1345 = vsel %vm844, %v1340, 0
        %1347 = vmatpush.bf16.xpose.msra.mxu0 0
        %1348 = vmatpush.bf16.xpose.msra.mxu0 0
        %1349 = vmatpush.bf16.xpose.msra.mxu0 0
        %1350 = vmatpush.bf16.xpose.msra.mxu0 0
        %1351 = vmatpush.bf16.xpose.msra.mxu0 0
        %1352 = vmatpush.bf16.xpose.msra.mxu0 0
        %1353 = vmatpush.bf16.xpose.msra.mxu0 0
        %1354 = vmatpush.bf16.xpose.msra.mxu0 %v1345
        %1355 = vmatmul.bf16.gmra.mxu0 %v1342
        %v1356 = vpop.f32.mrf.mxu0
        %v1357 = vadd.f32 0.0, %v1356
        %v1358 = vpop.f32.mrf.mxu0
        %1359 = vdwg.mxu0
        %v1360 = vmul.f32 %v1357, 0.25
        %v1361 = vadd.f32 %v1360, %v866
        %v1362 = vsel %vm869, %v1361, -inf
        %1363 = vmax.xlane.f32.xlu0 %v1362
        %v1364 = vpop.xlane.xlu0 %1363
        %v1365 = vsub.f32 %v1361, %v1364
        %v1366 = vmul.f32 %v1365, 1.442695
        %v1367 = vpow.pop %v1366
        %v1368 = vsel %vm869, %v1367, 0.0
        %1369 = vadd.xlane.f32.xlu0 %v1368
        %v1370 = vpop.xlane.xlu0 %1369
        %v1371 = vrcp.pop %v1370
        %v1372 = vmul.f32 %v1367, %v1371
        %v1373 = vpack.c.bf16 %v1372, %v1372
        %1374 = vrot.lane.b32.xlu0 %v843, 32
        %v1375 = vpop.permute.xlu0 %1374
        %v1377 = vsel %vm869, %v1373, 0
        %v1380 = vsel %vm885, %v1375, 0
        %1382 = vmatpush.bf16.msra.mxu0 0
        %1383 = vmatpush.bf16.msra.mxu0 0
        %1384 = vmatpush.bf16.msra.mxu0 0
        %1385 = vmatpush.bf16.msra.mxu0 0
        %1386 = vmatpush.bf16.msra.mxu0 0
        %1387 = vmatpush.bf16.msra.mxu0 0
        %1388 = vmatpush.bf16.msra.mxu0 0
        %1389 = vmatpush.bf16.msra.mxu0 %v1380
        %1390 = vmatmul.bf16.gmra.mxu0 %v1377
        %v1391 = vpop.f32.mrf.mxu0
        %v1392 = vadd.f32 0.0, %v1391
        %v1393 = vpop.f32.mrf.mxu0
        %1394 = vdwg.mxu0
        %v1395 = vpack.c.bf16 %v1392, %v1392
        %v1398 = vunpack.c.l.b16 %v837
        %v1399 = vunpack.c.l.b16 %v838
        %v1400 = vpack.c.b16 %v1399, %v1398
        %v1403 = vsel %vm844, %v1395, 0
        %1405 = vmatpush.bf16.msra.mxu0 0
        %1406 = vmatpush.bf16.msra.mxu0 0
        %1407 = vmatpush.bf16.msra.mxu0 0
        %1408 = vmatpush.bf16.msra.mxu0 0
        %1409 = vmatpush.bf16.msra.mxu0 0
        %1410 = vmatpush.bf16.msra.mxu0 0
        %1411 = vmatpush.bf16.msra.mxu0 0
        %1412 = vmatpush.bf16.msra.mxu0 %v1400
        %1413 = vmatmul.bf16.gmra.mxu0 %v1403
        %v1414 = vpop.f32.mrf.mxu0
        %v1415 = vadd.f32 0.0, %v1414
        %v1416 = vpop.f32.mrf.mxu0
        %1417 = vdwg.mxu0
        %v1418 = vadd.f32 %v1336, %v1415
        %1419 = vrot.lane.b32.xlu0 %v841, 16
        %v1420 = vpop.permute.xlu0 %1419
        %1421 = vrot.lane.b32.xlu0 %v842, 16
        %v1422 = vpop.permute.xlu0 %1421
        %v1424 = vsel %vm844, %v1420, 0
        %v1427 = vsel %vm844, %v1422, 0
        %1429 = vmatpush.bf16.xpose.msra.mxu0 0
        %1430 = vmatpush.bf16.xpose.msra.mxu0 0
        %1431 = vmatpush.bf16.xpose.msra.mxu0 0
        %1432 = vmatpush.bf16.xpose.msra.mxu0 0
        %1433 = vmatpush.bf16.xpose.msra.mxu0 0
        %1434 = vmatpush.bf16.xpose.msra.mxu0 0
        %1435 = vmatpush.bf16.xpose.msra.mxu0 0
        %1436 = vmatpush.bf16.xpose.msra.mxu0 %v1427
        %1437 = vmatmul.bf16.gmra.mxu0 %v1424
        %v1438 = vpop.f32.mrf.mxu0
        %v1439 = vadd.f32 0.0, %v1438
        %v1440 = vpop.f32.mrf.mxu0
        %1441 = vdwg.mxu0
        %v1442 = vmul.f32 %v1439, 0.25
        %v1443 = vadd.f32 %v1442, %v866
        %v1444 = vsel %vm869, %v1443, -inf
        %1445 = vmax.xlane.f32.xlu0 %v1444
        %v1446 = vpop.xlane.xlu0 %1445
        %v1447 = vsub.f32 %v1443, %v1446
        %v1448 = vmul.f32 %v1447, 1.442695
        %v1449 = vpow.pop %v1448
        %v1450 = vsel %vm869, %v1449, 0.0
        %1451 = vadd.xlane.f32.xlu0 %v1450
        %v1452 = vpop.xlane.xlu0 %1451
        %v1453 = vrcp.pop %v1452
        %v1454 = vmul.f32 %v1449, %v1453
        %v1455 = vpack.c.bf16 %v1454, %v1454
        %1456 = vrot.lane.b32.xlu0 %v843, 16
        %v1457 = vpop.permute.xlu0 %1456
        %v1459 = vsel %vm869, %v1455, 0
        %v1462 = vsel %vm885, %v1457, 0
        %1464 = vmatpush.bf16.msra.mxu0 0
        %1465 = vmatpush.bf16.msra.mxu0 0
        %1466 = vmatpush.bf16.msra.mxu0 0
        %1467 = vmatpush.bf16.msra.mxu0 0
        %1468 = vmatpush.bf16.msra.mxu0 0
        %1469 = vmatpush.bf16.msra.mxu0 0
        %1470 = vmatpush.bf16.msra.mxu0 0
        %1471 = vmatpush.bf16.msra.mxu0 %v1462
        %1472 = vmatmul.bf16.gmra.mxu0 %v1459
        %v1473 = vpop.f32.mrf.mxu0
        %v1474 = vadd.f32 0.0, %v1473
        %v1475 = vpop.f32.mrf.mxu0
        %1476 = vdwg.mxu0
        %v1477 = vpack.c.bf16 %v1474, %v1474
        %v1480 = vunpack.c.l.b16 %v839
        %v1481 = vunpack.c.l.b16 %v840
        %v1482 = vpack.c.b16 %v1481, %v1480
        %v1485 = vsel %vm844, %v1477, 0
        %1487 = vmatpush.bf16.msra.mxu0 0
        %1488 = vmatpush.bf16.msra.mxu0 0
        %1489 = vmatpush.bf16.msra.mxu0 0
        %1490 = vmatpush.bf16.msra.mxu0 0
        %1491 = vmatpush.bf16.msra.mxu0 0
        %1492 = vmatpush.bf16.msra.mxu0 0
        %1493 = vmatpush.bf16.msra.mxu0 0
        %1494 = vmatpush.bf16.msra.mxu0 %v1482
        %1495 = vmatmul.bf16.gmra.mxu0 %v1485
        %v1496 = vpop.f32.mrf.mxu0
        %v1497 = vadd.f32 0.0, %v1496
        %v1498 = vpop.f32.mrf.mxu0
        %1499 = vdwg.mxu0
        %v1500 = vadd.f32 %v1418, %v1497
        %v1501 = vadd.f32 %v611, %v1500
        %v1502 = vld [vmem:[%s508] sm:$0x1]
        %v1504 = vperm.slane %v1502, 0
        %v1506 = vadd.f32 %v1501, %v1504
        %v1507 = vld [vmem:[%s593] sm:$0xff]
        %1509 = vset.pattern.permute.xlu0 0
        %1510 = vperm.xlu0 %1509, %v1507
        %v1511 = vpop.permute.xlu0 %1510
        %v1513 = vmul.f32 %v1506, %v1511
        %1514 = vst [vmem:[#allocation2] sm:$0xff] %v1513
        %p1515 = scmp.eq.s32.totalorder %s38, 1
        // Predicated region
        $region81: #{net_forward.5} parent=59 // pred_check
          %p1516 = pneg %p1515
        $region82: #{net_forward.5} parent=59 // pred_check_branch
          %1518 = sbr.rel (%p1516) target = $region84
        $region83: #{net_forward.5} parent=59 // pred_region
          %1519 = vst [vmem:[%s581] sm:$0xff] %v1513
        $region84: #{net_forward.5} parent=59 // pred_fallthru
          _
        %s1520 = sand.u32 %s313, 1
        %s1521 = scalar_lea.sflag [#allocation5], %s1520
        %s1522 = sand.u32 %s313, 1
        %s1523 = smul.addr %s1522, 8
        %s1524 = scalar_lea.vmem [#allocation11], %s1523
        // Predicated region
        $region85: #{net_forward.5} parent=59 // pred_check
          %p1525 = pneg %p323
        $region86: #{net_forward.5} parent=59 // pred_check_branch
          %1527 = sbr.rel (%p1525) target = $region88
        $region87: #{net_forward.5} parent=59 // pred_region
          %1529 = vsyncadd %s1521, 0
          %s1530 = smul.addr %s37, 8
          %s1531 = scalar_lea.hbm %s10, %s1530
          %s1533 = sshll.u32 %s1524, 4
          %s1534 = int_to_ptr.vmem [resolvable:$true] %s1533
          %s1535 = sshll.u32 %s1531, 4
          %s1536 = int_to_ptr.hbm [resolvable:$true] %s1535
          %1538 = dma.vmem_to_hbm [thread:$0]  %s1534, 128, %s1536, %s1521
        $region88: #{net_forward.5} parent=59 // pred_fallthru
          _
      $region60: #{net_forward.5} parent=5 // pred_fallthru
        _
      %p1539 = scmp.le.s32.totalorder 2, %s28
      // Predicated region
      $region89: #{net_forward.5} parent=5 // pred_check
        %p1540 = pneg %p1539
      $region90: #{net_forward.5} parent=5 // pred_check_branch
        %1542 = sbr.rel (%p1540) target = $region92
      $region91: #{net_forward.5} parent=5 // pred_region
        %s1543 = ssub.s32 %s28, 2
        // Predicated region
        $region93: #{net_forward.5} parent=91 // pred_check
          %p1544 = pneg %p329
        $region94: #{net_forward.5} parent=91 // pred_check_branch
          %1546 = sbr.rel (%p1544) target = $region96
        $region95: #{net_forward.5} parent=91 // pred_region
          %s1547 = sand.u32 %s314, 1
          %s1548 = scalar_lea.sflag [#allocation5], %s1547
          %s1549 = sand.u32 %s314, 1
          %s1550 = smul.addr %s1549, 8
          %s1551 = scalar_lea.vmem [#allocation11], %s1550
          %1553 = dma.done %s1548, 128
        $region96: #{net_forward.5} parent=91 // pred_fallthru
          _
      $region92: #{net_forward.5} parent=5 // pred_fallthru
        _
    $region6: #{net_forward.5} parent=1 // loop_footer
      %s32 = sadd.s32 1, %s28
    $region7: #{net_forward.5} parent=1 // loop_footer_branch
      %27 = sbr.rel target = $region3
    $region8: #{net_forward.5} parent=1 // loop_exit
      _
    %1554 = vsyncpa [#allocation4], 1
    %s1555 = scalar_lea.sflag [#allocation4], 1
    %1556 = vsyncpa %s1555, 1
    %1557 = vsyncpa [#allocation7], 1
    %s1558 = scalar_lea.sflag [#allocation7], 1
    %1559 = vsyncpa %s1558, 1
    %1560 = vsyncpa [#allocation10], 1
    %s1561 = scalar_lea.sflag [#allocation10], 1
    %1562 = vsyncpa %s1561, 1
    %1563 = vsyncpa [#allocation5], 1
    %s1564 = scalar_lea.sflag [#allocation5], 1
    %1565 = vsyncpa %s1564, 1

// kernel: net_forward.3
$region0: #{net_forward.3}
  #allocation0 [shape = 'u32[]', space=smem, size = 0x4, offset = 0x4, fixed_abs, tag = 'smem constant byte address 0x4 - core index']
  #allocation1 [shape = 'u32[72,128]{1,0:T(1,128)}', space=vmem, size = 0x9000, scoped, tag = 'internal scratch']
  #allocation2 [shape = 'f32[8,128]{1,0:T(8,128)}', space=vmem, size = 0x1000, scoped, tag = 'scratch operand']
  %s0 = inlined_call_operand.vmem [shape: f32[2,8,20], index: 0, kind: input, shape index: {}]
  %s1 = inlined_call_operand.vmem [shape: f32[2,8,1], index: 1, kind: input, shape index: {}]
  %s2 = inlined_call_operand.vmem [shape: f32[2,1,8], index: 2, kind: input, shape index: {}]
  %s3 = inlined_call_operand.hbm [shape: bf16[20,128], index: 3, kind: input, shape index: {}]
  %s4 = inlined_call_operand.vmem [shape: f32[1,128], index: 4, kind: input, shape index: {}]
  %s5 = inlined_call_operand.hbm [shape: bf16[4,3,128,128], index: 5, kind: input, shape index: {}]
  %s6 = inlined_call_operand.hbm [shape: f32[4,1,128], index: 6, kind: input, shape index: {}]
  %s7 = inlined_call_operand.hbm [shape: bf16[4,128,384], index: 7, kind: input, shape index: {}]
  %s8 = inlined_call_operand.hbm [shape: f32[4,1,384], index: 8, kind: input, shape index: {}]
  %s9 = inlined_call_operand.hbm [shape: bf16[4,128,128], index: 9, kind: input, shape index: {}]
  %s10 = inlined_call_operand.hbm [shape: f32[4,1,128], index: 10, kind: input, shape index: {}]
  %s11 = inlined_call_operand.vmem [shape: f32[2,8,128], index: 11, kind: output, shape index: {}]
  %s12 = sld [smem:[#allocation0]]
  $region113: #{net_forward.3} parent=0
    _
  %s14 = ssub.s32 1, %s12
  %s15 = scalar_select 0, %s14, %s12
  $region1: #{net_forward.3} parent=0
    #allocation3 [shape = 'u8[6144]{0}', space=vmem, size = 0x1800, scoped, tag = 'input window, operand 3, single buffered']
    #allocation4 [shape = 's32[2]{0}', space=sflag, size = 0x8, scoped, tag = 'scoped memory for net_forward.3']
    #allocation5 [shape = 'u8[196608]{0}', space=vmem, size = 0x30000, scoped, tag = 'input window, operand 5']
    #allocation6 [shape = 's32[2]{0}', space=sflag, size = 0x8, scoped, tag = 'scoped memory for net_forward.3']
    #allocation7 [shape = 'u8[1024]{0}', space=vmem, size = 0x400, scoped, tag = 'input window, operand 6']
    #allocation8 [shape = 'u8[196608]{0}', space=vmem, size = 0x30000, scoped, tag = 'input window, operand 7']
    #allocation9 [shape = 's32[2]{0}', space=sflag, size = 0x8, scoped, tag = 'scoped memory for net_forward.3']
    #allocation10 [shape = 'u8[3072]{0}', space=vmem, size = 0xc00, scoped, tag = 'input window, operand 8']
    #allocation11 [shape = 'u8[65536]{0}', space=vmem, size = 0x10000, scoped, tag = 'input window, operand 9']
    #allocation12 [shape = 's32[2]{0}', space=sflag, size = 0x8, scoped, tag = 'scoped memory for net_forward.3']
    #allocation13 [shape = 'u8[1024]{0}', space=vmem, size = 0x400, scoped, tag = 'input window, operand 10']
    %16 = vsyncpa [#allocation4], 0
    %17 = vsyncpa [#allocation6], 0
    %s18 = scalar_lea.sflag [#allocation6], 1
    %19 = vsyncpa %s18, 0
    %20 = vsyncpa [#allocation9], 0
    %s21 = scalar_lea.sflag [#allocation9], 1
    %22 = vsyncpa %s21, 0
    %23 = vsyncpa [#allocation12], 0
    %s24 = scalar_lea.sflag [#allocation12], 1
    %25 = vsyncpa %s24, 0
    loop: start=0, step=1, limit=10
    $region2: #{net_forward.3} parent=1 // loop_pre_header
      _
    $region3: #{net_forward.3} parent=1 // loop_header
      %s27 = sphi 0, %s31
      %p28 = scmp.ge.s32.totalorder %s27, 10
      %s34 = sphi 0, %s46
      %s35 = sphi 0, %s42
      %s36 = sphi 0, %s34
      %s37 = sphi 0, %s35
      %s38 = sphi 0, %s36
      %s39 = sphi 0, %s37
      %s49 = sphi 0, %s51
      %s52 = sphi 0, %s49
      %s53 = sphi 0, %s52
      %s69 = sphi 0, %s53
      %s75 = sphi 0, %s77
      %s78 = sphi 0, %s75
      %s79 = sphi 0, %s78
      %s95 = sphi 0, %s79
      %s101 = sphi 0, %s103
      %s104 = sphi 0, %s101
      %s105 = sphi 0, %s104
      %s121 = sphi 0, %s105
      %s125 = sphi 0, %s125
      %s127 = sphi 0, %s125
      %s128 = sphi 0, %s127
      %s142 = sphi 0, %s128
      %s146 = sphi 0, %s146
      %s148 = sphi 0, %s146
      %s149 = sphi 0, %s148
      %s163 = sphi 0, %s149
      %s169 = sphi 0, %s171
      %s172 = sphi 0, %s169
      %s173 = sphi 0, %s172
      %s189 = sphi 0, %s173
      %s195 = sphi 0, %s197
      %s198 = sphi 0, %s195
      %s199 = sphi 0, %s198
      %s215 = sphi 0, %s199
      %s221 = sphi 0, %s223
      %s224 = sphi 0, %s221
      %s225 = sphi 0, %s224
      %s241 = sphi 0, %s225
      %s247 = sphi 0, %s249
      %s250 = sphi 0, %s247
      %s251 = sphi 0, %s250
      %s267 = sphi 0, %s251
      %s273 = sphi 0, %s275
      %s276 = sphi 0, %s273
      %s277 = sphi 0, %s276
      %s293 = sphi 0, %s277
      %s299 = sphi 0, %s301
      %s302 = sphi 0, %s299
      %s303 = sphi 0, %s302
      %s319 = sphi 0, %s303
      %s325 = sphi 0, %s327
      %s328 = sphi 0, %s325
      %s329 = sphi 0, %s328
      %s345 = sphi 0, %s329
    $region4: #{net_forward.3} parent=1 // loop_header_branch
      %30 = sbr.rel (%p28) target = $region8
    $region5: #{net_forward.3} parent=1 // loop_body
      %s32 = ssub.s32 %s27, 1
      %s33 = ssub.s32 %s27, 2
      %s40 = sadd.s32 1, %s35
      %p41 = scmp.ge.s32.totalorder %s40, 4
      %s42 = scalar_select %p41, 0, %s40
      %s43 = sadd.s32 1, %s34
      %s44 = scalar_select %p41, %s43, %s34
      %p45 = scmp.ge.s32.totalorder %s44, 2
      %s46 = scalar_select %p45, 0, %s44
      %s47 = ssub.s32 %s34, %s46
      %p48 = scmp.eq.s32.totalorder %s47, 0
      %s50 = sadd.s32 %s49, 1
      %s51 = scalar_select %p48, %s49, %s50
      %p54 = pneg %p48
      %p55 = scmp.eq.s32.totalorder %s27, 7
      %p56 = por %p54, %p55
      %p57 = scmp.ne.s32.totalorder %s49, %s52
      %p58 = scmp.eq.s32.totalorder %s27, 0
      %p59 = por %p57, %p58
      %p60 = scmp.ne.s32.totalorder %s49, %s52
      %p61 = scmp.eq.s32.totalorder %s32, 7
      %p62 = por %p60, %p61
      %p63 = scmp.ne.s32.totalorder %s52, %s53
      %p64 = scmp.eq.s32.totalorder %s32, 0
      %p65 = por %p63, %p64
      %p66 = scmp.ne.s32.totalorder %s52, %s53
      %p67 = scmp.eq.s32.totalorder %s33, 7
      %p68 = por %p66, %p67
      %p70 = scmp.ne.s32.totalorder %s53, %s69
      %p71 = scmp.eq.s32.totalorder %s33, 0
      %p72 = por %p70, %p71
      %s73 = ssub.s32 %s34, %s46
      %p74 = scmp.eq.s32.totalorder %s73, 0
      %s76 = sadd.s32 %s75, 1
      %s77 = scalar_select %p74, %s75, %s76
      %p80 = pneg %p74
      %p81 = scmp.eq.s32.totalorder %s27, 7
      %p82 = por %p80, %p81
      %p83 = scmp.ne.s32.totalorder %s75, %s78
      %p84 = scmp.eq.s32.totalorder %s27, 0
      %p85 = por %p83, %p84
      %p86 = scmp.ne.s32.totalorder %s75, %s78
      %p87 = scmp.eq.s32.totalorder %s32, 7
      %p88 = por %p86, %p87
      %p89 = scmp.ne.s32.totalorder %s78, %s79
      %p90 = scmp.eq.s32.totalorder %s32, 0
      %p91 = por %p89, %p90
      %p92 = scmp.ne.s32.totalorder %s78, %s79
      %p93 = scmp.eq.s32.totalorder %s33, 7
      %p94 = por %p92, %p93
      %p96 = scmp.ne.s32.totalorder %s79, %s95
      %p97 = scmp.eq.s32.totalorder %s33, 0
      %p98 = por %p96, %p97
      %s99 = ssub.s32 %s34, %s46
      %p100 = scmp.eq.s32.totalorder %s99, 0
      %s102 = sadd.s32 %s101, 1
      %s103 = scalar_select %p100, %s101, %s102
      %p106 = pneg %p100
      %p107 = scmp.eq.s32.totalorder %s27, 7
      %p108 = por %p106, %p107
      %p109 = scmp.ne.s32.totalorder %s101, %s104
      %p110 = scmp.eq.s32.totalorder %s27, 0
      %p111 = por %p109, %p110
      %p112 = scmp.ne.s32.totalorder %s101, %s104
      %p113 = scmp.eq.s32.totalorder %s32, 7
      %p114 = por %p112, %p113
      %p115 = scmp.ne.s32.totalorder %s104, %s105
      %p116 = scmp.eq.s32.totalorder %s32, 0
      %p117 = por %p115, %p116
      %p118 = scmp.ne.s32.totalorder %s104, %s105
      %p119 = scmp.eq.s32.totalorder %s33, 7
      %p120 = por %p118, %p119
      %p122 = scmp.ne.s32.totalorder %s105, %s121
      %p123 = scmp.eq.s32.totalorder %s33, 0
      %p124 = por %p122, %p123
      %s126 = sadd.s32 %s125, 1
      %p129 = scmp.eq.s32.totalorder %s27, 7
      %p130 = scmp.ne.s32.totalorder %s125, %s127
      %p131 = scmp.eq.s32.totalorder %s27, 0
      %p132 = por %p130, %p131
      %p133 = scmp.ne.s32.totalorder %s125, %s127
      %p134 = scmp.eq.s32.totalorder %s32, 7
      %p135 = por %p133, %p134
      %p136 = scmp.ne.s32.totalorder %s127, %s128
      %p137 = scmp.eq.s32.totalorder %s32, 0
      %p138 = por %p136, %p137
      %p139 = scmp.ne.s32.totalorder %s127, %s128
      %p140 = scmp.eq.s32.totalorder %s33, 7
      %p141 = por %p139, %p140
      %p143 = scmp.ne.s32.totalorder %s128, %s142
      %p144 = scmp.eq.s32.totalorder %s33, 0
      %p145 = por %p143, %p144
      %s147 = sadd.s32 %s146, 1
      %p150 = scmp.eq.s32.totalorder %s27, 7
      %p151 = scmp.ne.s32.totalorder %s146, %s148
      %p152 = scmp.eq.s32.totalorder %s27, 0
      %p153 = por %p151, %p152
      %p154 = scmp.ne.s32.totalorder %s146, %s148
      %p155 = scmp.eq.s32.totalorder %s32, 7
      %p156 = por %p154, %p155
      %p157 = scmp.ne.s32.totalorder %s148, %s149
      %p158 = scmp.eq.s32.totalorder %s32, 0
      %p159 = por %p157, %p158
      %p160 = scmp.ne.s32.totalorder %s148, %s149
      %p161 = scmp.eq.s32.totalorder %s33, 7
      %p162 = por %p160, %p161
      %p164 = scmp.ne.s32.totalorder %s149, %s163
      %p165 = scmp.eq.s32.totalorder %s33, 0
      %p166 = por %p164, %p165
      %s167 = ssub.s32 %s35, %s42
      %p168 = scmp.eq.s32.totalorder %s167, 0
      %s170 = sadd.s32 %s169, 1
      %s171 = scalar_select %p168, %s169, %s170
      %p174 = pneg %p168
      %p175 = scmp.eq.s32.totalorder %s27, 7
      %p176 = por %p174, %p175
      %p177 = scmp.ne.s32.totalorder %s169, %s172
      %p178 = scmp.eq.s32.totalorder %s27, 0
      %p179 = por %p177, %p178
      %p180 = scmp.ne.s32.totalorder %s169, %s172
      %p181 = scmp.eq.s32.totalorder %s32, 7
      %p182 = por %p180, %p181
      %p183 = scmp.ne.s32.totalorder %s172, %s173
      %p184 = scmp.eq.s32.totalorder %s32, 0
      %p185 = por %p183, %p184
      %p186 = scmp.ne.s32.totalorder %s172, %s173
      %p187 = scmp.eq.s32.totalorder %s33, 7
      %p188 = por %p186, %p187
      %p190 = scmp.ne.s32.totalorder %s173, %s189
      %p191 = scmp.eq.s32.totalorder %s33, 0
      %p192 = por %p190, %p191
      %s193 = ssub.s32 %s35, %s42
      %p194 = scmp.eq.s32.totalorder %s193, 0
      %s196 = sadd.s32 %s195, 1
      %s197 = scalar_select %p194, %s195, %s196
      %p200 = pneg %p194
      %p201 = scmp.eq.s32.totalorder %s27, 7
      %p202 = por %p200, %p201
      %p203 = scmp.ne.s32.totalorder %s195, %s198
      %p204 = scmp.eq.s32.totalorder %s27, 0
      %p205 = por %p203, %p204
      %p206 = scmp.ne.s32.totalorder %s195, %s198
      %p207 = scmp.eq.s32.totalorder %s32, 7
      %p208 = por %p206, %p207
      %p209 = scmp.ne.s32.totalorder %s198, %s199
      %p210 = scmp.eq.s32.totalorder %s32, 0
      %p211 = por %p209, %p210
      %p212 = scmp.ne.s32.totalorder %s198, %s199
      %p213 = scmp.eq.s32.totalorder %s33, 7
      %p214 = por %p212, %p213
      %p216 = scmp.ne.s32.totalorder %s199, %s215
      %p217 = scmp.eq.s32.totalorder %s33, 0
      %p218 = por %p216, %p217
      %s219 = ssub.s32 %s35, %s42
      %p220 = scmp.eq.s32.totalorder %s219, 0
      %s222 = sadd.s32 %s221, 1
      %s223 = scalar_select %p220, %s221, %s222
      %p226 = pneg %p220
      %p227 = scmp.eq.s32.totalorder %s27, 7
      %p228 = por %p226, %p227
      %p229 = scmp.ne.s32.totalorder %s221, %s224
      %p230 = scmp.eq.s32.totalorder %s27, 0
      %p231 = por %p229, %p230
      %p232 = scmp.ne.s32.totalorder %s221, %s224
      %p233 = scmp.eq.s32.totalorder %s32, 7
      %p234 = por %p232, %p233
      %p235 = scmp.ne.s32.totalorder %s224, %s225
      %p236 = scmp.eq.s32.totalorder %s32, 0
      %p237 = por %p235, %p236
      %p238 = scmp.ne.s32.totalorder %s224, %s225
      %p239 = scmp.eq.s32.totalorder %s33, 7
      %p240 = por %p238, %p239
      %p242 = scmp.ne.s32.totalorder %s225, %s241
      %p243 = scmp.eq.s32.totalorder %s33, 0
      %p244 = por %p242, %p243
      %s245 = ssub.s32 %s35, %s42
      %p246 = scmp.eq.s32.totalorder %s245, 0
      %s248 = sadd.s32 %s247, 1
      %s249 = scalar_select %p246, %s247, %s248
      %p252 = pneg %p246
      %p253 = scmp.eq.s32.totalorder %s27, 7
      %p254 = por %p252, %p253
      %p255 = scmp.ne.s32.totalorder %s247, %s250
      %p256 = scmp.eq.s32.totalorder %s27, 0
      %p257 = por %p255, %p256
      %p258 = scmp.ne.s32.totalorder %s247, %s250
      %p259 = scmp.eq.s32.totalorder %s32, 7
      %p260 = por %p258, %p259
      %p261 = scmp.ne.s32.totalorder %s250, %s251
      %p262 = scmp.eq.s32.totalorder %s32, 0
      %p263 = por %p261, %p262
      %p264 = scmp.ne.s32.totalorder %s250, %s251
      %p265 = scmp.eq.s32.totalorder %s33, 7
      %p266 = por %p264, %p265
      %p268 = scmp.ne.s32.totalorder %s251, %s267
      %p269 = scmp.eq.s32.totalorder %s33, 0
      %p270 = por %p268, %p269
      %s271 = ssub.s32 %s35, %s42
      %p272 = scmp.eq.s32.totalorder %s271, 0
      %s274 = sadd.s32 %s273, 1
      %s275 = scalar_select %p272, %s273, %s274
      %p278 = pneg %p272
      %p279 = scmp.eq.s32.totalorder %s27, 7
      %p280 = por %p278, %p279
      %p281 = scmp.ne.s32.totalorder %s273, %s276
      %p282 = scmp.eq.s32.totalorder %s27, 0
      %p283 = por %p281, %p282
      %p284 = scmp.ne.s32.totalorder %s273, %s276
      %p285 = scmp.eq.s32.totalorder %s32, 7
      %p286 = por %p284, %p285
      %p287 = scmp.ne.s32.totalorder %s276, %s277
      %p288 = scmp.eq.s32.totalorder %s32, 0
      %p289 = por %p287, %p288
      %p290 = scmp.ne.s32.totalorder %s276, %s277
      %p291 = scmp.eq.s32.totalorder %s33, 7
      %p292 = por %p290, %p291
      %p294 = scmp.ne.s32.totalorder %s277, %s293
      %p295 = scmp.eq.s32.totalorder %s33, 0
      %p296 = por %p294, %p295
      %s297 = ssub.s32 %s35, %s42
      %p298 = scmp.eq.s32.totalorder %s297, 0
      %s300 = sadd.s32 %s299, 1
      %s301 = scalar_select %p298, %s299, %s300
      %p304 = pneg %p298
      %p305 = scmp.eq.s32.totalorder %s27, 7
      %p306 = por %p304, %p305
      %p307 = scmp.ne.s32.totalorder %s299, %s302
      %p308 = scmp.eq.s32.totalorder %s27, 0
      %p309 = por %p307, %p308
      %p310 = scmp.ne.s32.totalorder %s299, %s302
      %p311 = scmp.eq.s32.totalorder %s32, 7
      %p312 = por %p310, %p311
      %p313 = scmp.ne.s32.totalorder %s302, %s303
      %p314 = scmp.eq.s32.totalorder %s32, 0
      %p315 = por %p313, %p314
      %p316 = scmp.ne.s32.totalorder %s302, %s303
      %p317 = scmp.eq.s32.totalorder %s33, 7
      %p318 = por %p316, %p317
      %p320 = scmp.ne.s32.totalorder %s303, %s319
      %p321 = scmp.eq.s32.totalorder %s33, 0
      %p322 = por %p320, %p321
      %s323 = ssub.s32 %s34, %s46
      %p324 = scmp.eq.s32.totalorder %s323, 0
      %s326 = sadd.s32 %s325, 1
      %s327 = scalar_select %p324, %s325, %s326
      %p330 = pneg %p324
      %p331 = scmp.eq.s32.totalorder %s27, 7
      %p332 = por %p330, %p331
      %p333 = scmp.ne.s32.totalorder %s325, %s328
      %p334 = scmp.eq.s32.totalorder %s27, 0
      %p335 = por %p333, %p334
      %p336 = scmp.ne.s32.totalorder %s325, %s328
      %p337 = scmp.eq.s32.totalorder %s32, 7
      %p338 = por %p336, %p337
      %p339 = scmp.ne.s32.totalorder %s328, %s329
      %p340 = scmp.eq.s32.totalorder %s32, 0
      %p341 = por %p339, %p340
      %p342 = scmp.ne.s32.totalorder %s328, %s329
      %p343 = scmp.eq.s32.totalorder %s33, 7
      %p344 = por %p342, %p343
      %p346 = scmp.ne.s32.totalorder %s329, %s345
      %p347 = scmp.eq.s32.totalorder %s33, 0
      %p348 = por %p346, %p347
      %p349 = scmp.le.s32.totalorder 1, %s27
      %p350 = scmp.lt.s32.totalorder %s27, 9
      %p351 = pnand %p349, %p350
      %p352 = pneg %p351
      // Predicated region
      $region9: #{net_forward.3} parent=5 // pred_check
        _
      $region10: #{net_forward.3} parent=5 // pred_check_branch
        %354 = sbr.rel (%p351) target = $region12
      $region11: #{net_forward.3} parent=5 // pred_region
        %s355 = ssub.s32 %s27, 1
        // Predicated region
        $region13: #{net_forward.3} parent=11 // pred_check
          %p356 = pneg %p138
        $region14: #{net_forward.3} parent=11 // pred_check_branch
          %358 = sbr.rel (%p356) target = $region16
        $region15: #{net_forward.3} parent=11 // pred_region
          %360 = vsyncadd [#allocation4], 0
          %s361 = sshll.u32 %s3, 4
          %s362 = int_to_ptr.hbm [resolvable:$true] %s361
          %s363 = sshll.u32 [#allocation3], 4
          %s364 = int_to_ptr.vmem [resolvable:$true] %s363
          %369 = dma.hbm_to_vmem [thread:$0]  %s362, 192, %s364, [#allocation4], 64, 64, 4
        $region16: #{net_forward.3} parent=11 // pred_fallthru
          _
        // Predicated region
        $region17: #{net_forward.3} parent=11 // pred_check
          %p370 = pneg %p159
        $region18: #{net_forward.3} parent=11 // pred_check_branch
          %372 = sbr.rel (%p370) target = $region20
        $region19: #{net_forward.3} parent=11 // pred_region
          _
        $region20: #{net_forward.3} parent=11 // pred_fallthru
          _
      $region12: #{net_forward.3} parent=5 // pred_fallthru
        _
      %p373 = scmp.lt.s32.totalorder %s27, 8
      // Predicated region
      $region21: #{net_forward.3} parent=5 // pred_check
        %p374 = pneg %p373
      $region22: #{net_forward.3} parent=5 // pred_check_branch
        %376 = sbr.rel (%p374) target = $region24
      $region23: #{net_forward.3} parent=5 // pred_region
        // Predicated region
        $region25: #{net_forward.3} parent=23 // pred_check
          %p377 = pneg %p59
        $region26: #{net_forward.3} parent=23 // pred_check_branch
          %379 = sbr.rel (%p377) target = $region28
        $region27: #{net_forward.3} parent=23 // pred_region
          %p380 = scmp.lt.s32.totalorder %s34, 1
          %s381 = scalar_select %p380, %s34, 1
          %s382 = smul.addr %s381, 8
          %s383 = scalar_lea.vmem %s0, %s382
        $region28: #{net_forward.3} parent=23 // pred_fallthru
          _
        // Predicated region
        $region29: #{net_forward.3} parent=23 // pred_check
          %p384 = pneg %p85
        $region30: #{net_forward.3} parent=23 // pred_check_branch
          %386 = sbr.rel (%p384) target = $region32
        $region31: #{net_forward.3} parent=23 // pred_region
          %p387 = scmp.lt.s32.totalorder %s34, 1
          %s388 = scalar_select %p387, %s34, 1
          %s389 = smul.addr %s388, 8
          %s390 = scalar_lea.vmem %s1, %s389
        $region32: #{net_forward.3} parent=23 // pred_fallthru
          _
        // Predicated region
        $region33: #{net_forward.3} parent=23 // pred_check
          %p391 = pneg %p111
        $region34: #{net_forward.3} parent=23 // pred_check_branch
          %393 = sbr.rel (%p391) target = $region36
        $region35: #{net_forward.3} parent=23 // pred_region
          %p394 = scmp.lt.s32.totalorder %s34, 1
          %s395 = scalar_select %p394, %s34, 1
          %s396 = scalar_lea.vmem %s2, %s395
        $region36: #{net_forward.3} parent=23 // pred_fallthru
          _
        // Predicated region
        $region37: #{net_forward.3} parent=23 // pred_check
          %p397 = pneg %p179
        $region38: #{net_forward.3} parent=23 // pred_check_branch
          %399 = sbr.rel (%p397) target = $region40
        $region39: #{net_forward.3} parent=23 // pred_region
          %s400 = sand.u32 %s27, 1
          %s401 = scalar_lea.sflag [#allocation6], %s400
          %s402 = sand.u32 %s169, 1
          %s403 = smul.addr %s402, 192
          %s404 = scalar_lea.vmem [#allocation5], %s403
          %406 = vsyncadd %s401, 0
          %s407 = smul.addr %s35, 48
          %s408 = smul.addr %s407, 4
          %s409 = scalar_lea.hbm %s5, %s408
          %s410 = sshll.u32 %s409, 4
          %s411 = int_to_ptr.hbm [resolvable:$true] %s410
          %s412 = sshll.u32 %s404, 4
          %s413 = int_to_ptr.vmem [resolvable:$true] %s412
          %418 = dma.hbm_to_vmem [thread:$0]  %s411, 3072, %s413, %s401, 64, 64, 4
        $region40: #{net_forward.3} parent=23 // pred_fallthru
          _
        // Predicated region
        $region41: #{net_forward.3} parent=23 // pred_check
          %p419 = pneg %p205
        $region42: #{net_forward.3} parent=23 // pred_check_branch
          %421 = sbr.rel (%p419) target = $region44
        $region43: #{net_forward.3} parent=23 // pred_region
          %s422 = sand.u32 %s27, 1
          %s423 = scalar_lea.sflag [#allocation6], %s422
          %s424 = sand.u32 %s195, 1
          %s425 = scalar_lea.vmem [#allocation7], %s424
          %427 = vsyncadd %s423, 0
          %s428 = scalar_lea.hbm %s6, %s35
          %s430 = sshll.u32 %s428, 4
          %s431 = int_to_ptr.hbm [resolvable:$true] %s430
          %s432 = sshll.u32 %s425, 4
          %s433 = int_to_ptr.vmem [resolvable:$true] %s432
          %435 = dma.hbm_to_vmem [thread:$0]  %s431, 16, %s433, %s423
        $region44: #{net_forward.3} parent=23 // pred_fallthru
          _
        // Predicated region
        $region45: #{net_forward.3} parent=23 // pred_check
          %p436 = pneg %p231
        $region46: #{net_forward.3} parent=23 // pred_check_branch
          %438 = sbr.rel (%p436) target = $region48
        $region47: #{net_forward.3} parent=23 // pred_region
          %s439 = sand.u32 %s27, 1
          %s440 = scalar_lea.sflag [#allocation9], %s439
          %s441 = sand.u32 %s221, 1
          %s442 = smul.addr %s441, 192
          %s443 = scalar_lea.vmem [#allocation8], %s442
          %445 = vsyncadd %s440, 0
          %s446 = smul.addr %s35, 48
          %s447 = smul.addr %s446, 4
          %s448 = scalar_lea.hbm %s7, %s447
          %s449 = sshll.u32 %s448, 4
          %s450 = int_to_ptr.hbm [resolvable:$true] %s449
          %s451 = sshll.u32 %s443, 4
          %s452 = int_to_ptr.vmem [resolvable:$true] %s451
          %457 = dma.hbm_to_vmem [thread:$0]  %s450, 3072, %s452, %s440, 192, 192, 12
        $region48: #{net_forward.3} parent=23 // pred_fallthru
          _
        // Predicated region
        $region49: #{net_forward.3} parent=23 // pred_check
          %p458 = pneg %p257
        $region50: #{net_forward.3} parent=23 // pred_check_branch
          %460 = sbr.rel (%p458) target = $region52
        $region51: #{net_forward.3} parent=23 // pred_region
          %s461 = sand.u32 %s27, 1
          %s462 = scalar_lea.sflag [#allocation9], %s461
          %s463 = sand.u32 %s247, 1
          %s464 = smul.addr %s463, 3
          %s465 = scalar_lea.vmem [#allocation10], %s464
          %467 = vsyncadd %s462, 0
          %s468 = smul.addr %s35, 3
          %s469 = scalar_lea.hbm %s8, %s468
          %s471 = sshll.u32 %s469, 4
          %s472 = int_to_ptr.hbm [resolvable:$true] %s471
          %s473 = sshll.u32 %s465, 4
          %s474 = int_to_ptr.vmem [resolvable:$true] %s473
          %476 = dma.hbm_to_vmem [thread:$0]  %s472, 48, %s474, %s462
        $region52: #{net_forward.3} parent=23 // pred_fallthru
          _
        // Predicated region
        $region53: #{net_forward.3} parent=23 // pred_check
          %p477 = pneg %p283
        $region54: #{net_forward.3} parent=23 // pred_check_branch
          %479 = sbr.rel (%p477) target = $region56
        $region55: #{net_forward.3} parent=23 // pred_region
          %s480 = sand.u32 %s27, 1
          %s481 = scalar_lea.sflag [#allocation12], %s480
          %s482 = sand.u32 %s273, 1
          %s483 = smul.addr %s482, 64
          %s484 = scalar_lea.vmem [#allocation11], %s483
          %486 = vsyncadd %s481, 0
          %s487 = smul.addr %s35, 16
          %s488 = smul.addr %s487, 4
          %s489 = scalar_lea.hbm %s9, %s488
          %s490 = sshll.u32 %s489, 4
          %s491 = int_to_ptr.hbm [resolvable:$true] %s490
          %s492 = sshll.u32 %s484, 4
          %s493 = int_to_ptr.vmem [resolvable:$true] %s492
          %498 = dma.hbm_to_vmem [thread:$0]  %s491, 1024, %s493, %s481, 64, 64, 4
        $region56: #{net_forward.3} parent=23 // pred_fallthru
          _
        // Predicated region
        $region57: #{net_forward.3} parent=23 // pred_check
          %p499 = pneg %p309
        $region58: #{net_forward.3} parent=23 // pred_check_branch
          %501 = sbr.rel (%p499) target = $region60
        $region59: #{net_forward.3} parent=23 // pred_region
          %s502 = sand.u32 %s27, 1
          %s503 = scalar_lea.sflag [#allocation12], %s502
          %s504 = sand.u32 %s299, 1
          %s505 = scalar_lea.vmem [#allocation13], %s504
          %507 = vsyncadd %s503, 0
          %s508 = scalar_lea.hbm %s10, %s35
          %s510 = sshll.u32 %s508, 4
          %s511 = int_to_ptr.hbm [resolvable:$true] %s510
          %s512 = sshll.u32 %s505, 4
          %s513 = int_to_ptr.vmem [resolvable:$true] %s512
          %515 = dma.hbm_to_vmem [thread:$0]  %s511, 16, %s513, %s503
        $region60: #{net_forward.3} parent=23 // pred_fallthru
          _
      $region24: #{net_forward.3} parent=5 // pred_fallthru
        _
      %p516 = scmp.le.s32.totalorder 1, %s27
      %p517 = scmp.lt.s32.totalorder %s27, 9
      %p518 = pnand %p516, %p517
      %p519 = pneg %p518
      // Predicated region
      $region61: #{net_forward.3} parent=5 // pred_check
        _
      $region62: #{net_forward.3} parent=5 // pred_check_branch
        %521 = sbr.rel (%p518) target = $region64
      $region63: #{net_forward.3} parent=5 // pred_region
        %s522 = ssub.s32 %s27, 1
        // Predicated region
        $region65: #{net_forward.3} parent=63 // pred_check
          %p523 = pneg %p138
        $region66: #{net_forward.3} parent=63 // pred_check_branch
          %525 = sbr.rel (%p523) target = $region68
        $region67: #{net_forward.3} parent=63 // pred_region
          %527 = dma.done [#allocation4], 192
        $region68: #{net_forward.3} parent=63 // pred_fallthru
          _
        %s528 = sand.u32 %s32, 1
        %s529 = scalar_lea.sflag [#allocation6], %s528
        %s530 = sand.u32 %s172, 1
        %s531 = smul.addr %s530, 192
        %s532 = scalar_lea.vmem [#allocation5], %s531
        // Predicated region
        $region69: #{net_forward.3} parent=63 // pred_check
          %p533 = pneg %p185
        $region70: #{net_forward.3} parent=63 // pred_check_branch
          %535 = sbr.rel (%p533) target = $region72
        $region71: #{net_forward.3} parent=63 // pred_region
          %537 = dma.done %s529, 3072
        $region72: #{net_forward.3} parent=63 // pred_fallthru
          _
        %s538 = sand.u32 %s32, 1
        %s539 = scalar_lea.sflag [#allocation6], %s538
        %s540 = sand.u32 %s198, 1
        %s541 = scalar_lea.vmem [#allocation7], %s540
        // Predicated region
        $region73: #{net_forward.3} parent=63 // pred_check
          %p542 = pneg %p211
        $region74: #{net_forward.3} parent=63 // pred_check_branch
          %544 = sbr.rel (%p542) target = $region76
        $region75: #{net_forward.3} parent=63 // pred_region
          %546 = dma.done %s539, 16
        $region76: #{net_forward.3} parent=63 // pred_fallthru
          _
        %s547 = sand.u32 %s32, 1
        %s548 = scalar_lea.sflag [#allocation9], %s547
        %s549 = sand.u32 %s224, 1
        %s550 = smul.addr %s549, 192
        %s551 = scalar_lea.vmem [#allocation8], %s550
        // Predicated region
        $region77: #{net_forward.3} parent=63 // pred_check
          %p552 = pneg %p237
        $region78: #{net_forward.3} parent=63 // pred_check_branch
          %554 = sbr.rel (%p552) target = $region80
        $region79: #{net_forward.3} parent=63 // pred_region
          %556 = dma.done %s548, 3072
        $region80: #{net_forward.3} parent=63 // pred_fallthru
          _
        %s557 = sand.u32 %s32, 1
        %s558 = scalar_lea.sflag [#allocation9], %s557
        %s559 = sand.u32 %s250, 1
        %s560 = smul.addr %s559, 3
        %s561 = scalar_lea.vmem [#allocation10], %s560
        // Predicated region
        $region81: #{net_forward.3} parent=63 // pred_check
          %p562 = pneg %p263
        $region82: #{net_forward.3} parent=63 // pred_check_branch
          %564 = sbr.rel (%p562) target = $region84
        $region83: #{net_forward.3} parent=63 // pred_region
          %566 = dma.done %s558, 48
        $region84: #{net_forward.3} parent=63 // pred_fallthru
          _
        %s567 = sand.u32 %s32, 1
        %s568 = scalar_lea.sflag [#allocation12], %s567
        %s569 = sand.u32 %s276, 1
        %s570 = smul.addr %s569, 64
        %s571 = scalar_lea.vmem [#allocation11], %s570
        // Predicated region
        $region85: #{net_forward.3} parent=63 // pred_check
          %p572 = pneg %p289
        $region86: #{net_forward.3} parent=63 // pred_check_branch
          %574 = sbr.rel (%p572) target = $region88
        $region87: #{net_forward.3} parent=63 // pred_region
          %576 = dma.done %s568, 1024
        $region88: #{net_forward.3} parent=63 // pred_fallthru
          _
        %s577 = sand.u32 %s32, 1
        %s578 = scalar_lea.sflag [#allocation12], %s577
        %s579 = sand.u32 %s302, 1
        %s580 = scalar_lea.vmem [#allocation13], %s579
        // Predicated region
        $region89: #{net_forward.3} parent=63 // pred_check
          %p581 = pneg %p315
        $region90: #{net_forward.3} parent=63 // pred_check_branch
          %583 = sbr.rel (%p581) target = $region92
        $region91: #{net_forward.3} parent=63 // pred_region
          %585 = dma.done %s578, 16
        $region92: #{net_forward.3} parent=63 // pred_fallthru
          _
        %p586 = scmp.lt.s32.totalorder %s36, 1
        %s587 = scalar_select %p586, %s36, 1
        %s588 = smul.addr %s587, 8
        %s589 = scalar_lea.vmem %s0, %s588
        %p590 = pneg %p65
        %p591 = pneg %p62
        %p592 = scmp.lt.s32.totalorder %s36, 1
        %s593 = scalar_select %p592, %s36, 1
        %s594 = smul.addr %s593, 8
        %s595 = scalar_lea.vmem %s1, %s594
        %p596 = pneg %p91
        %p597 = pneg %p88
        %p598 = scmp.lt.s32.totalorder %s36, 1
        %s599 = scalar_select %p598, %s36, 1
        %s600 = scalar_lea.vmem %s2, %s599
        %p601 = pneg %p117
        %p602 = pneg %p114
        %p603 = pneg %p138
        %p604 = pneg %p135
        %p605 = pneg %p159
        %p606 = pneg %p156
        %s607 = sand.u32 %s32, 1
        %s608 = scalar_lea.sflag [#allocation6], %s607
        %s609 = sand.u32 %s172, 1
        %s610 = smul.addr %s609, 192
        %s611 = scalar_lea.vmem [#allocation5], %s610
        %p612 = pneg %p185
        %p613 = pneg %p182
        %s614 = sand.u32 %s32, 1
        %s615 = scalar_lea.sflag [#allocation6], %s614
        %s616 = sand.u32 %s198, 1
        %s617 = scalar_lea.vmem [#allocation7], %s616
        %p618 = pneg %p211
        %p619 = pneg %p208
        %s620 = sand.u32 %s32, 1
        %s621 = scalar_lea.sflag [#allocation9], %s620
        %s622 = sand.u32 %s224, 1
        %s623 = smul.addr %s622, 192
        %s624 = scalar_lea.vmem [#allocation8], %s623
        %p625 = pneg %p237
        %p626 = pneg %p234
        %s627 = sand.u32 %s32, 1
        %s628 = scalar_lea.sflag [#allocation9], %s627
        %s629 = sand.u32 %s250, 1
        %s630 = smul.addr %s629, 3
        %s631 = scalar_lea.vmem [#allocation10], %s630
        %p632 = pneg %p263
        %p633 = pneg %p260
        %s634 = sand.u32 %s32, 1
        %s635 = scalar_lea.sflag [#allocation12], %s634
        %s636 = sand.u32 %s276, 1
        %s637 = smul.addr %s636, 64
        %s638 = scalar_lea.vmem [#allocation11], %s637
        %p639 = pneg %p289
        %p640 = pneg %p286
        %s641 = sand.u32 %s32, 1
        %s642 = scalar_lea.sflag [#allocation12], %s641
        %s643 = sand.u32 %s302, 1
        %s644 = scalar_lea.vmem [#allocation13], %s643
        %p645 = pneg %p315
        %p646 = pneg %p312
        %p647 = pneg %p341
        %p648 = pneg %p338
        %p649 = scmp.lt.s32.totalorder %s36, 1
        %s650 = scalar_select %p649, %s36, 1
        %s651 = smul.addr %s650, 8
        %s652 = scalar_lea.vmem %s11, %s651
        %p653 = scmp.lt.s32.totalorder %s36, 1
        %s654 = scalar_select %p653, %s36, 1
        %s655 = smul.addr %s654, 8
        %s656 = scalar_lea.vmem %s0, %s655
        %p657 = scmp.lt.s32.totalorder %s36, 1
        %s658 = scalar_select %p657, %s36, 1
        %s659 = smul.addr %s658, 8
        %s660 = scalar_lea.vmem %s1, %s659
        %p661 = scmp.lt.s32.totalorder %s36, 1
        %s662 = scalar_select %p661, %s36, 1
        %s663 = scalar_lea.vmem %s2, %s662
        %p664 = scmp.lt.s32.totalorder %s36, 1
        %s665 = scalar_select %p664, %s36, 1
        %s666 = smul.addr %s665, 8
        %s667 = scalar_lea.vmem %s11, %s666
        %p669 = scmp.eq.s32.totalorder %s37, 0
        // Predicated region
        $region93: #{net_forward.3} parent=63 // pred_check
          %p670 = pneg %p669
        $region94: #{net_forward.3} parent=63 // pred_check_branch
          %672 = sbr.rel (%p670) target = $region96
        $region95: #{net_forward.3} parent=63 // pred_region
          %v673 = vld [vmem:[%s656] sm:$0xff]
          %v674 = vpack.c.bf16 %v673, %v673
          %v675 = vld [vmem:[#allocation3] sm:$0xf]
          %v676 = vld [vmem:[#allocation3 + $0x4] sm:$0xf]
          %v677 = vld [vmem:[#allocation3 + $0x8] sm:$0x3]
          %v678 = vld [vmem:[%s4] sm:$0x1]
          %v680 = vperm.slane %v678, 0
          %v685 = vunpack.c.l.b16 %v675
          %v686 = vunpack.c.l.b16 %v676
          %v687 = vunpack.c.l.b16 %v677
          %v688 = vpack.c.b16 %v686, %v685
          %v689 = vpack.c.b16 %v687, %v687
          %vm691 = vcmask 162816
          %v693 = vsel %vm691, %v674, 0
          %vm695 = vcmask 1041408
          %v697 = vsel %vm695, %v689, 0
          %699 = vmatpush.bf16.msra.mxu0 0
          %700 = vmatpush.bf16.msra.mxu0 0
          %701 = vmatpush.bf16.msra.mxu0 0
          %702 = vmatpush.bf16.msra.mxu0 0
          %703 = vmatpush.bf16.msra.mxu0 0
          %704 = vmatpush.bf16.msra.mxu0 0
          %705 = vmatpush.bf16.msra.mxu0 %v697
          %706 = vmatpush.bf16.msra.mxu0 %v688
          %707 = vmatmul.bf16.gmra.mxu0 %v693
          %v708 = vpop.f32.mrf.mxu0
          %v709 = vadd.f32 %v680, %v708
          %v710 = vpop.f32.mrf.mxu0
          %711 = vdwg.mxu0
          %712 = vst [vmem:[#allocation2] sm:$0xff] %v709
        $region96: #{net_forward.3} parent=63 // pred_fallthru
          _
        %v713 = vld [vmem:[#allocation2] sm:$0xff]
        %v714 = vld [vmem:[%s541] sm:$0x1]
        %v715 = vpack.c.bf16 %v713, %v713
        %v716 = vlaneseq
        %v717 = vshrl.u32 %v716, 7
        %v718 = vlaneseq
        %v719 = vand.u32 %v718, 127
        %v720 = vadd.s32 %v717, 4294967295
        %vm721 = vcmp.eq.s32.totalorder %v719, %v720
        %v722 = vsel %vm721, 1.0, 0.0
        %v723 = vpack.c.bf16 %v722, %v722
        %vm724 = vcmask 64512
        %v726 = vsel %vm724, %v723, 0
        %vm728 = vcmask 1043456
        %v730 = vsel %vm728, %v715, 0
        %732 = vmatpush.bf16.msra.mxu0 0
        %733 = vmatpush.bf16.msra.mxu0 0
        %734 = vmatpush.bf16.msra.mxu0 0
        %735 = vmatpush.bf16.msra.mxu0 0
        %736 = vmatpush.bf16.msra.mxu0 0
        %737 = vmatpush.bf16.msra.mxu0 0
        %738 = vmatpush.bf16.msra.mxu0 0
        %739 = vmatpush.bf16.msra.mxu0 %v730
        %740 = vmatmul.bf16.gmra.mxu0 %v726
        %v741 = vpop.f32.mrf.mxu0
        %v742 = vadd.f32 0.0, %v741
        %v743 = vpop.f32.mrf.mxu0
        %744 = vdwg.mxu0
        %v745 = vpack.c.bf16 %v742, %v742
        %v746 = vld [vmem:[%s532] sm:$0xf]
        %v747 = vld [vmem:[%s532 + $0x4] sm:$0xf]
        %v748 = vld [vmem:[%s532 + $0x8] sm:$0xf]
        %v749 = vld [vmem:[%s532 + $0xc] sm:$0xf]
        %v750 = vld [vmem:[%s532 + $0x10] sm:$0xf]
        %v751 = vld [vmem:[%s532 + $0x14] sm:$0xf]
        %v752 = vld [vmem:[%s532 + $0x18] sm:$0xf]
        %v753 = vld [vmem:[%s532 + $0x1c] sm:$0xf]
        %v754 = vld [vmem:[%s532 + $0x20] sm:$0xf]
        %v755 = vld [vmem:[%s532 + $0x24] sm:$0xf]
        %v756 = vld [vmem:[%s532 + $0x28] sm:$0xf]
        %v757 = vld [vmem:[%s532 + $0x2c] sm:$0xf]
        %v758 = vld [vmem:[%s532 + $0x30] sm:$0xf]
        %v759 = vld [vmem:[%s532 + $0x34] sm:$0xf]
        %v760 = vld [vmem:[%s532 + $0x38] sm:$0xf]
        %v761 = vld [vmem:[%s532 + $0x3c] sm:$0xf]
        %s762 = scalar_lea.vmem %s532, 64 [#allocation5]
        %v763 = vld [vmem:[%s762] sm:$0xf]
        %v764 = vld [vmem:[%s762 + $0x4] sm:$0xf]
        %v765 = vld [vmem:[%s762 + $0x8] sm:$0xf]
        %v766 = vld [vmem:[%s762 + $0xc] sm:$0xf]
        %v767 = vld [vmem:[%s762 + $0x10] sm:$0xf]
        %v768 = vld [vmem:[%s762 + $0x14] sm:$0xf]
        %v769 = vld [vmem:[%s762 + $0x18] sm:$0xf]
        %v770 = vld [vmem:[%s762 + $0x1c] sm:$0xf]
        %v771 = vld [vmem:[%s762 + $0x20] sm:$0xf]
        %v772 = vld [vmem:[%s762 + $0x24] sm:$0xf]
        %v773 = vld [vmem:[%s762 + $0x28] sm:$0xf]
        %v774 = vld [vmem:[%s762 + $0x2c] sm:$0xf]
        %v775 = vld [vmem:[%s762 + $0x30] sm:$0xf]
        %v776 = vld [vmem:[%s762 + $0x34] sm:$0xf]
        %v777 = vld [vmem:[%s762 + $0x38] sm:$0xf]
        %v778 = vld [vmem:[%s762 + $0x3c] sm:$0xf]
        %v795 = vunpack.c.l.b16 %v763
        %v796 = vunpack.c.l.b16 %v764
        %v797 = vunpack.c.l.b16 %v765
        %v798 = vunpack.c.l.b16 %v766
        %v799 = vunpack.c.l.b16 %v767
        %v800 = vunpack.c.l.b16 %v768
        %v801 = vunpack.c.l.b16 %v769
        %v802 = vunpack.c.l.b16 %v770
        %v803 = vunpack.c.l.b16 %v771
        %v804 = vunpack.c.l.b16 %v772
        %v805 = vunpack.c.l.b16 %v773
        %v806 = vunpack.c.l.b16 %v774
        %v807 = vunpack.c.l.b16 %v775
        %v808 = vunpack.c.l.b16 %v776
        %v809 = vunpack.c.l.b16 %v777
        %v810 = vunpack.c.l.b16 %v778
        %v811 = vpack.c.b16 %v796, %v795
        %v812 = vpack.c.b16 %v798, %v797
        %v813 = vpack.c.b16 %v800, %v799
        %v814 = vpack.c.b16 %v802, %v801
        %v815 = vpack.c.b16 %v804, %v803
        %v816 = vpack.c.b16 %v806, %v805
        %v817 = vpack.c.b16 %v808, %v807
        %v818 = vpack.c.b16 %v810, %v809
        %827 = vmatpush.bf16.msra.mxu0 %v818
        %828 = vmatpush.bf16.msra.mxu0 %v817
        %829 = vmatpush.bf16.msra.mxu0 %v816
        %830 = vmatpush.bf16.msra.mxu0 %v815
        %831 = vmatpush.bf16.msra.mxu0 %v814
        %832 = vmatpush.bf16.msra.mxu0 %v813
        %833 = vmatpush.bf16.msra.mxu0 %v812
        %834 = vmatpush.bf16.msra.mxu0 %v811
        %835 = vmatmul.bf16.gmra.mxu0 %v715
        %v836 = vpop.f32.mrf.mxu0
        %v837 = vadd.f32 0.0, %v836
        %v838 = vpop.f32.mrf.mxu0
        %839 = vdwg.mxu0
        %v856 = vunpack.c.l.b16 %v746
        %v857 = vunpack.c.l.b16 %v747
        %v858 = vunpack.c.l.b16 %v748
        %v859 = vunpack.c.l.b16 %v749
        %v860 = vunpack.c.l.b16 %v750
        %v861 = vunpack.c.l.b16 %v751
        %v862 = vunpack.c.l.b16 %v752
        %v863 = vunpack.c.l.b16 %v753
        %v864 = vunpack.c.l.b16 %v754
        %v865 = vunpack.c.l.b16 %v755
        %v866 = vunpack.c.l.b16 %v756
        %v867 = vunpack.c.l.b16 %v757
        %v868 = vunpack.c.l.b16 %v758
        %v869 = vunpack.c.l.b16 %v759
        %v870 = vunpack.c.l.b16 %v760
        %v871 = vunpack.c.l.b16 %v761
        %v872 = vpack.c.b16 %v857, %v856
        %v873 = vpack.c.b16 %v859, %v858
        %v874 = vpack.c.b16 %v861, %v860
        %v875 = vpack.c.b16 %v863, %v862
        %v876 = vpack.c.b16 %v865, %v864
        %v877 = vpack.c.b16 %v867, %v866
        %v878 = vpack.c.b16 %v869, %v868
        %v879 = vpack.c.b16 %v871, %v870
        %888 = vmatpush.bf16.msra.mxu0 %v879
        %889 = vmatpush.bf16.msra.mxu0 %v878
        %890 = vmatpush.bf16.msra.mxu0 %v877
        %891 = vmatpush.bf16.msra.mxu0 %v876
        %892 = vmatpush.bf16.msra.mxu0 %v875
        %893 = vmatpush.bf16.msra.mxu0 %v874
        %894 = vmatpush.bf16.msra.mxu0 %v873
        %895 = vmatpush.bf16.msra.mxu0 %v872
        %896 = vmatmul.bf16.gmra.mxu0 %v745
        %v897 = vpop.f32.mrf.mxu0
        %v898 = vadd.f32 %v837, %v897
        %v899 = vpop.f32.mrf.mxu0
        %900 = vdwg.mxu0
        %v901 = vadd.s32 %v717, 1
        %vm902 = vcmp.eq.s32.totalorder %v719, %v901
        %v903 = vsel %vm902, 1.0, 0.0
        %v904 = vpack.c.bf16 %v903, %v903
        %v906 = vsel %vm724, %v904, 0
        %908 = vmatpush.bf16.msra.mxu0 0
        %909 = vmatpush.bf16.msra.mxu0 0
        %910 = vmatpush.bf16.msra.mxu0 0
        %911 = vmatpush.bf16.msra.mxu0 0
        %912 = vmatpush.bf16.msra.mxu0 0
        %913 = vmatpush.bf16.msra.mxu0 0
        %914 = vmatpush.bf16.msra.mxu0 0
        %915 = vmatpush.bf16.msra.mxu0 %v730
        %916 = vmatmul.bf16.gmra.mxu0 %v906
        %v917 = vpop.f32.mrf.mxu0
        %v918 = vadd.f32 0.0, %v917
        %v919 = vpop.f32.mrf.mxu0
        %920 = vdwg.mxu0
        %v921 = vpack.c.bf16 %v918, %v918
        %s922 = scalar_lea.vmem %s532, 128 [#allocation5]
        %v923 = vld [vmem:[%s922] sm:$0xf]
        %v924 = vld [vmem:[%s922 + $0x4] sm:$0xf]
        %v925 = vld [vmem:[%s922 + $0x8] sm:$0xf]
        %v926 = vld [vmem:[%s922 + $0xc] sm:$0xf]
        %v927 = vld [vmem:[%s922 + $0x10] sm:$0xf]
        %v928 = vld [vmem:[%s922 + $0x14] sm:$0xf]
        %v929 = vld [vmem:[%s922 + $0x18] sm:$0xf]
        %v930 = vld [vmem:[%s922 + $0x1c] sm:$0xf]
        %v931 = vld [vmem:[%s922 + $0x20] sm:$0xf]
        %v932 = vld [vmem:[%s922 + $0x24] sm:$0xf]
        %v933 = vld [vmem:[%s922 + $0x28] sm:$0xf]
        %v934 = vld [vmem:[%s922 + $0x2c] sm:$0xf]
        %v935 = vld [vmem:[%s922 + $0x30] sm:$0xf]
        %v936 = vld [vmem:[%s922 + $0x34] sm:$0xf]
        %v937 = vld [vmem:[%s922 + $0x38] sm:$0xf]
        %v938 = vld [vmem:[%s922 + $0x3c] sm:$0xf]
        %v955 = vunpack.c.l.b16 %v923
        %v956 = vunpack.c.l.b16 %v924
        %v957 = vunpack.c.l.b16 %v925
        %v958 = vunpack.c.l.b16 %v926
        %v959 = vunpack.c.l.b16 %v927
        %v960 = vunpack.c.l.b16 %v928
        %v961 = vunpack.c.l.b16 %v929
        %v962 = vunpack.c.l.b16 %v930
        %v963 = vunpack.c.l.b16 %v931
        %v964 = vunpack.c.l.b16 %v932
        %v965 = vunpack.c.l.b16 %v933
        %v966 = vunpack.c.l.b16 %v934
        %v967 = vunpack.c.l.b16 %v935
        %v968 = vunpack.c.l.b16 %v936
        %v969 = vunpack.c.l.b16 %v937
        %v970 = vunpack.c.l.b16 %v938
        %v971 = vpack.c.b16 %v956, %v955
        %v972 = vpack.c.b16 %v958, %v957
        %v973 = vpack.c.b16 %v960, %v959
        %v974 = vpack.c.b16 %v962, %v961
        %v975 = vpack.c.b16 %v964, %v963
        %v976 = vpack.c.b16 %v966, %v965
        %v977 = vpack.c.b16 %v968, %v967
        %v978 = vpack.c.b16 %v970, %v969
        %987 = vmatpush.bf16.msra.mxu0 %v978
        %988 = vmatpush.bf16.msra.mxu0 %v977
        %989 = vmatpush.bf16.msra.mxu0 %v976
        %990 = vmatpush.bf16.msra.mxu0 %v975
        %991 = vmatpush.bf16.msra.mxu0 %v974
        %992 = vmatpush.bf16.msra.mxu0 %v973
        %993 = vmatpush.bf16.msra.mxu0 %v972
        %994 = vmatpush.bf16.msra.mxu0 %v971
        %995 = vmatmul.bf16.gmra.mxu0 %v921
        %v996 = vpop.f32.mrf.mxu0
        %v997 = vadd.f32 0.0, %v996
        %v998 = vpop.f32.mrf.mxu0
        %999 = vdwg.mxu0
        %v1000 = vadd.f32 %v898, %v997
        %v1002 = vperm.slane %v714, 0
        %v1004 = vadd.f32 %v1000, %v1002
        %v1005 = vmax.f32 %v1004, 0.0
        %v1006 = vadd.f32 %v713, %v1005
        %v1007 = vpack.c.bf16 %v1006, %v1006
        %v1008 = vld [vmem:[%s551] sm:$0xff]
        %v1009 = vld [vmem:[%s551 + $0x8] sm:$0xf]
        %v1010 = vld [vmem:[%s551 + $0xc] sm:$0xff]
        %v1011 = vld [vmem:[%s551 + $0x14] sm:$0xf]
        %v1012 = vld [vmem:[%s551 + $0x18] sm:$0xff]
        %v1013 = vld [vmem:[%s551 + $0x20] sm:$0xf]
        %v1014 = vld [vmem:[%s551 + $0x24] sm:$0xff]
        %v1015 = vld [vmem:[%s551 + $0x2c] sm:$0xf]
        %v1016 = vld [vmem:[%s551 + $0x30] sm:$0xff]
        %v1017 = vld [vmem:[%s551 + $0x38] sm:$0xf]
        %v1018 = vld [vmem:[%s551 + $0x3c] sm:$0xff]
        %v1019 = vld [vmem:[%s551 + $0x44] sm:$0xf]
        %v1020 = vld [vmem:[%s551 + $0x48] sm:$0xff]
        %v1021 = vld [vmem:[%s551 + $0x50] sm:$0xf]
        %v1022 = vld [vmem:[%s551 + $0x54] sm:$0xff]
        %v1023 = vld [vmem:[%s551 + $0x5c] sm:$0xf]
        %v1024 = vld [vmem:[%s551 + $0x60] sm:$0xff]
        %v1025 = vld [vmem:[%s551 + $0x68] sm:$0xf]
        %v1026 = vld [vmem:[%s551 + $0x6c] sm:$0xff]
        %v1027 = vld [vmem:[%s551 + $0x74] sm:$0xf]
        %v1028 = vld [vmem:[%s551 + $0x78] sm:$0xff]
        %v1029 = vld [vmem:[%s551 + $0x80] sm:$0xf]
        %v1030 = vld [vmem:[%s551 + $0x84] sm:$0xff]
        %v1031 = vld [vmem:[%s551 + $0x8c] sm:$0xf]
        %v1032 = vld [vmem:[%s551 + $0x90] sm:$0xff]
        %v1033 = vld [vmem:[%s551 + $0x98] sm:$0xf]
        %v1034 = vld [vmem:[%s551 + $0x9c] sm:$0xff]
        %v1035 = vld [vmem:[%s551 + $0xa4] sm:$0xf]
        %v1036 = vld [vmem:[%s551 + $0xa8] sm:$0xff]
        %v1037 = vld [vmem:[%s551 + $0xb0] sm:$0xf]
        %v1038 = vld [vmem:[%s551 + $0xb4] sm:$0xff]
        %v1039 = vld [vmem:[%s551 + $0xbc] sm:$0xf]
        %v1040 = vld [vmem:[%s561] sm:$0x7]
        %v1042 = vperm.slane %v1040, 0
        %v1043 = vperm.slane %v1040, 1
        %v1044 = vperm.slane %v1040, 2
        %v1080 = vunpack.c.l.b16 %v1008
        %v1081 = vunpack.c.h.b16 %v1008
        %v1082 = vunpack.c.l.b16 %v1009
        %v1083 = vunpack.c.l.b16 %v1010
        %v1084 = vunpack.c.h.b16 %v1010
        %v1085 = vunpack.c.l.b16 %v1011
        %v1086 = vunpack.c.l.b16 %v1012
        %v1087 = vunpack.c.h.b16 %v1012
        %v1088 = vunpack.c.l.b16 %v1013
        %v1089 = vunpack.c.l.b16 %v1014
        %v1090 = vunpack.c.h.b16 %v1014
        %v1091 = vunpack.c.l.b16 %v1015
        %v1092 = vunpack.c.l.b16 %v1016
        %v1093 = vunpack.c.h.b16 %v1016
        %v1094 = vunpack.c.l.b16 %v1017
        %v1095 = vunpack.c.l.b16 %v1018
        %v1096 = vunpack.c.h.b16 %v1018
        %v1097 = vunpack.c.l.b16 %v1019
        %v1098 = vunpack.c.l.b16 %v1020
        %v1099 = vunpack.c.h.b16 %v1020
        %v1100 = vunpack.c.l.b16 %v1021
        %v1101 = vunpack.c.l.b16 %v1022
        %v1102 = vunpack.c.h.b16 %v1022
        %v1103 = vunpack.c.l.b16 %v1023
        %v1104 = vunpack.c.l.b16 %v1024
        %v1105 = vunpack.c.h.b16 %v1024
        %v1106 = vunpack.c.l.b16 %v1025
        %v1107 = vunpack.c.l.b16 %v1026
        %v1108 = vunpack.c.h.b16 %v1026
        %v1109 = vunpack.c.l.b16 %v1027
        %v1110 = vunpack.c.l.b16 %v1028
        %v1111 = vunpack.c.h.b16 %v1028
        %v1112 = vunpack.c.l.b16 %v1029
        %v1113 = vunpack.c.l.b16 %v1030
        %v1114 = vunpack.c.h.b16 %v1030
        %v1115 = vunpack.c.l.b16 %v1031
        %v1116 = vunpack.c.l.b16 %v1032
        %v1117 = vunpack.c.h.b16 %v1032
        %v1118 = vunpack.c.l.b16 %v1033
        %v1119 = vunpack.c.l.b16 %v1034
        %v1120 = vunpack.c.h.b16 %v1034
        %v1121 = vunpack.c.l.b16 %v1035
        %v1122 = vunpack.c.l.b16 %v1036
        %v1123 = vunpack.c.h.b16 %v1036
        %v1124 = vunpack.c.l.b16 %v1037
        %v1125 = vunpack.c.l.b16 %v1038
        %v1126 = vunpack.c.h.b16 %v1038
        %v1127 = vunpack.c.l.b16 %v1039
        %v1128 = vpack.c.b16 %v1083, %v1080
        %v1129 = vpack.c.b16 %v1084, %v1081
        %v1130 = vpack.c.b16 %v1085, %v1082
        %v1131 = vpack.c.b16 %v1089, %v1086
        %v1132 = vpack.c.b16 %v1090, %v1087
        %v1133 = vpack.c.b16 %v1091, %v1088
        %v1134 = vpack.c.b16 %v1095, %v1092
        %v1135 = vpack.c.b16 %v1096, %v1093
        %v1136 = vpack.c.b16 %v1097, %v1094
        %v1137 = vpack.c.b16 %v1101, %v1098
        %v1138 = vpack.c.b16 %v1102, %v1099
        %v1139 = vpack.c.b16 %v1103, %v1100
        %v1140 = vpack.c.b16 %v1107, %v1104
        %v1141 = vpack.c.b16 %v1108, %v1105
        %v1142 = vpack.c.b16 %v1109, %v1106
        %v1143 = vpack.c.b16 %v1113, %v1110
        %v1144 = vpack.c.b16 %v1114, %v1111
        %v1145 = vpack.c.b16 %v1115, %v1112
        %v1146 = vpack.c.b16 %v1119, %v1116
        %v1147 = vpack.c.b16 %v1120, %v1117
        %v1148 = vpack.c.b16 %v1121, %v1118
        %v1149 = vpack.c.b16 %v1125, %v1122
        %v1150 = vpack.c.b16 %v1126, %v1123
        %v1151 = vpack.c.b16 %v1127, %v1124
        %1176 = vmatpush.bf16.msra.mxu0 %v1149
        %1177 = vmatpush.bf16.msra.mxu0 %v1146
        %1178 = vmatpush.bf16.msra.mxu0 %v1143
        %1179 = vmatpush.bf16.msra.mxu0 %v1140
        %1180 = vmatpush.bf16.msra.mxu0 %v1137
        %1181 = vmatpush.bf16.msra.mxu0 %v1134
        %1182 = vmatpush.bf16.msra.mxu0 %v1131
        %1183 = vmatpush.bf16.msra.mxu0 %v1128
        %1184 = vmatmul.bf16.gmra.mxu0 %v1007
        %v1185 = vpop.f32.mrf.mxu0
        %v1186 = vadd.f32 %v1042, %v1185
        %v1187 = vpop.f32.mrf.mxu0
        %1188 = vdwg.mxu0
        %1189 = vmatpush.bf16.msra.mxu0 %v1150
        %1190 = vmatpush.bf16.msra.mxu0 %v1147
        %1191 = vmatpush.bf16.msra.mxu0 %v1144
        %1192 = vmatpush.bf16.msra.mxu0 %v1141
        %1193 = vmatpush.bf16.msra.mxu0 %v1138
        %1194 = vmatpush.bf16.msra.mxu0 %v1135
        %1195 = vmatpush.bf16.msra.mxu0 %v1132
        %1196 = vmatpush.bf16.msra.mxu0 %v1129
        %1197 = vmatmul.bf16.gmra.mxu0 %v1007
        %v1198 = vpop.f32.mrf.mxu0
        %v1199 = vadd.f32 %v1043, %v1198
        %v1200 = vpop.f32.mrf.mxu0
        %1201 = vdwg.mxu0
        %1202 = vmatpush.bf16.msra.mxu0 %v1151
        %1203 = vmatpush.bf16.msra.mxu0 %v1148
        %1204 = vmatpush.bf16.msra.mxu0 %v1145
        %1205 = vmatpush.bf16.msra.mxu0 %v1142
        %1206 = vmatpush.bf16.msra.mxu0 %v1139
        %1207 = vmatpush.bf16.msra.mxu0 %v1136
        %1208 = vmatpush.bf16.msra.mxu0 %v1133
        %1209 = vmatpush.bf16.msra.mxu0 %v1130
        %1210 = vmatmul.bf16.gmra.mxu0 %v1007
        %v1211 = vpop.f32.mrf.mxu0
        %v1212 = vadd.f32 %v1044, %v1211
        %v1213 = vpop.f32.mrf.mxu0
        %1214 = vdwg.mxu0
        %v1215 = vld [vmem:[%s663] sm:$0x1]
        %v1216 = vld [vmem:[%s571] sm:$0xf]
        %v1217 = vld [vmem:[%s571 + $0x4] sm:$0xf]
        %v1218 = vld [vmem:[%s571 + $0x8] sm:$0xf]
        %v1219 = vld [vmem:[%s571 + $0xc] sm:$0xf]
        %v1220 = vld [vmem:[%s571 + $0x10] sm:$0xf]
        %v1221 = vld [vmem:[%s571 + $0x14] sm:$0xf]
        %v1222 = vld [vmem:[%s571 + $0x18] sm:$0xf]
        %v1223 = vld [vmem:[%s571 + $0x1c] sm:$0xf]
        %v1224 = vld [vmem:[%s571 + $0x20] sm:$0xf]
        %v1225 = vld [vmem:[%s571 + $0x24] sm:$0xf]
        %v1226 = vld [vmem:[%s571 + $0x28] sm:$0xf]
        %v1227 = vld [vmem:[%s571 + $0x2c] sm:$0xf]
        %v1228 = vld [vmem:[%s571 + $0x30] sm:$0xf]
        %v1229 = vld [vmem:[%s571 + $0x34] sm:$0xf]
        %v1230 = vld [vmem:[%s571 + $0x38] sm:$0xf]
        %v1231 = vld [vmem:[%s571 + $0x3c] sm:$0xf]
        %v1232 = vpack.c.bf16 %v1186, %v1186
        %v1233 = vpack.c.bf16 %v1199, %v1199
        %v1234 = vpack.c.bf16 %v1212, %v1212
        %vm1235 = vcmask 130048
        %v1237 = vsel %vm1235, %v1232, 0
        %v1240 = vsel %vm1235, %v1233, 0
        %1242 = vmatpush.bf16.xpose.msra.mxu0 0
        %1243 = vmatpush.bf16.xpose.msra.mxu0 0
        %1244 = vmatpush.bf16.xpose.msra.mxu0 0
        %1245 = vmatpush.bf16.xpose.msra.mxu0 0
        %1246 = vmatpush.bf16.xpose.msra.mxu0 0
        %1247 = vmatpush.bf16.xpose.msra.mxu0 0
        %1248 = vmatpush.bf16.xpose.msra.mxu0 0
        %1249 = vmatpush.bf16.xpose.msra.mxu0 %v1240
        %1250 = vmatmul.bf16.gmra.mxu0 %v1237
        %v1251 = vpop.f32.mrf.mxu0
        %v1252 = vadd.f32 0.0, %v1251
        %v1253 = vpop.f32.mrf.mxu0
        %1254 = vdwg.mxu0
        %v1255 = vmul.f32 %v1252, 0.25
        %v1257 = vperm.slane %v1215, 0
        %v1259 = vadd.f32 %v1255, %v1257
        %v1260 = vsel %vm724, %v1259, -inf
        %1261 = vmax.xlane.f32.xlu0 %v1260
        %v1262 = vpop.xlane.xlu0 %1261
        %v1263 = vsub.f32 %v1259, %v1262
        %v1264 = vmul.f32 %v1263, 1.442695
        %v1265 = vpow.pop %v1264
        %v1266 = vsel %vm724, %v1265, 0.0
        %1267 = vadd.xlane.f32.xlu0 %v1266
        %v1268 = vpop.xlane.xlu0 %1267
        %v1269 = vrcp.pop %v1268
        %v1270 = vmul.f32 %v1265, %v1269
        %v1271 = vpack.c.bf16 %v1270, %v1270
        %v1273 = vsel %vm724, %v1271, 0
        %v1276 = vsel %vm728, %v1234, 0
        %1278 = vmatpush.bf16.msra.mxu0 0
        %1279 = vmatpush.bf16.msra.mxu0 0
        %1280 = vmatpush.bf16.msra.mxu0 0
        %1281 = vmatpush.bf16.msra.mxu0 0
        %1282 = vmatpush.bf16.msra.mxu0 0
        %1283 = vmatpush.bf16.msra.mxu0 0
        %1284 = vmatpush.bf16.msra.mxu0 0
        %1285 = vmatpush.bf16.msra.mxu0 %v1276
        %1286 = vmatmul.bf16.gmra.mxu0 %v1273
        %v1287 = vpop.f32.mrf.mxu0
        %v1288 = vadd.f32 0.0, %v1287
        %v1289 = vpop.f32.mrf.mxu0
        %1290 = vdwg.mxu0
        %v1291 = vpack.c.bf16 %v1288, %v1288
        %1293 = vrot.lane.b32.xlu0 %v1232, 112
        %v1294 = vpop.permute.xlu0 %1293
        %1296 = vrot.lane.b32.xlu0 %v1233, 112
        %v1297 = vpop.permute.xlu0 %1296
        %v1299 = vsel %vm1235, %v1294, 0
        %v1302 = vsel %vm1235, %v1297, 0
        %1304 = vmatpush.bf16.xpose.msra.mxu0 0
        %1305 = vmatpush.bf16.xpose.msra.mxu0 0
        %1306 = vmatpush.bf16.xpose.msra.mxu0 0
        %1307 = vmatpush.bf16.xpose.msra.mxu0 0
        %1308 = vmatpush.bf16.xpose.msra.mxu0 0
        %1309 = vmatpush.bf16.xpose.msra.mxu0 0
        %1310 = vmatpush.bf16.xpose.msra.mxu0 0
        %1311 = vmatpush.bf16.xpose.msra.mxu0 %v1302
        %1312 = vmatmul.bf16.gmra.mxu0 %v1299
        %v1313 = vpop.f32.mrf.mxu0
        %v1314 = vadd.f32 0.0, %v1313
        %v1315 = vpop.f32.mrf.mxu0
        %1316 = vdwg.mxu0
        %v1317 = vmul.f32 %v1314, 0.25
        %v1318 = vadd.f32 %v1317, %v1257
        %v1319 = vsel %vm724, %v1318, -inf
        %1320 = vmax.xlane.f32.xlu0 %v1319
        %v1321 = vpop.xlane.xlu0 %1320
        %v1322 = vsub.f32 %v1318, %v1321
        %v1323 = vmul.f32 %v1322, 1.442695
        %v1324 = vpow.pop %v1323
        %v1325 = vsel %vm724, %v1324, 0.0
        %1326 = vadd.xlane.f32.xlu0 %v1325
        %v1327 = vpop.xlane.xlu0 %1326
        %v1328 = vrcp.pop %v1327
        %v1329 = vmul.f32 %v1324, %v1328
        %v1330 = vpack.c.bf16 %v1329, %v1329
        %1332 = vrot.lane.b32.xlu0 %v1234, 112
        %v1333 = vpop.permute.xlu0 %1332
        %v1335 = vsel %vm724, %v1330, 0
        %v1338 = vsel %vm728, %v1333, 0
        %1340 = vmatpush.bf16.msra.mxu0 0
        %1341 = vmatpush.bf16.msra.mxu0 0
        %1342 = vmatpush.bf16.msra.mxu0 0
        %1343 = vmatpush.bf16.msra.mxu0 0
        %1344 = vmatpush.bf16.msra.mxu0 0
        %1345 = vmatpush.bf16.msra.mxu0 0
        %1346 = vmatpush.bf16.msra.mxu0 0
        %1347 = vmatpush.bf16.msra.mxu0 %v1338
        %1348 = vmatmul.bf16.gmra.mxu0 %v1335
        %v1349 = vpop.f32.mrf.mxu0
        %v1350 = vadd.f32 0.0, %v1349
        %v1351 = vpop.f32.mrf.mxu0
        %1352 = vdwg.mxu0
        %v1353 = vpack.c.bf16 %v1350, %v1350
        %v1356 = vunpack.c.l.b16 %v1218
        %v1357 = vunpack.c.l.b16 %v1219
        %v1358 = vpack.c.b16 %v1357, %v1356
        %v1361 = vsel %vm1235, %v1353, 0
        %1363 = vmatpush.bf16.msra.mxu0 0
        %1364 = vmatpush.bf16.msra.mxu0 0
        %1365 = vmatpush.bf16.msra.mxu0 0
        %1366 = vmatpush.bf16.msra.mxu0 0
        %1367 = vmatpush.bf16.msra.mxu0 0
        %1368 = vmatpush.bf16.msra.mxu0 0
        %1369 = vmatpush.bf16.msra.mxu0 0
        %1370 = vmatpush.bf16.msra.mxu0 %v1358
        %1371 = vmatmul.bf16.gmra.mxu0 %v1361
        %v1372 = vpop.f32.mrf.mxu0
        %v1373 = vadd.f32 0.0, %v1372
        %v1374 = vpop.f32.mrf.mxu0
        %1375 = vdwg.mxu0
        %v1378 = vunpack.c.l.b16 %v1216
        %v1379 = vunpack.c.l.b16 %v1217
        %v1380 = vpack.c.b16 %v1379, %v1378
        %v1383 = vsel %vm1235, %v1291, 0
        %1385 = vmatpush.bf16.msra.mxu0 0
        %1386 = vmatpush.bf16.msra.mxu0 0
        %1387 = vmatpush.bf16.msra.mxu0 0
        %1388 = vmatpush.bf16.msra.mxu0 0
        %1389 = vmatpush.bf16.msra.mxu0 0
        %1390 = vmatpush.bf16.msra.mxu0 0
        %1391 = vmatpush.bf16.msra.mxu0 0
        %1392 = vmatpush.bf16.msra.mxu0 %v1380
        %1393 = vmatmul.bf16.gmra.mxu0 %v1383
        %v1394 = vpop.f32.mrf.mxu0
        %v1395 = vadd.f32 %v1373, %v1394
        %v1396 = vpop.f32.mrf.mxu0
        %1397 = vdwg.mxu0
        %1398 = vrot.lane.b32.xlu0 %v1232, 96
        %v1399 = vpop.permute.xlu0 %1398
        %1400 = vrot.lane.b32.xlu0 %v1233, 96
        %v1401 = vpop.permute.xlu0 %1400
        %v1403 = vsel %vm1235, %v1399, 0
        %v1406 = vsel %vm1235, %v1401, 0
        %1408 = vmatpush.bf16.xpose.msra.mxu0 0
        %1409 = vmatpush.bf16.xpose.msra.mxu0 0
        %1410 = vmatpush.bf16.xpose.msra.mxu0 0
        %1411 = vmatpush.bf16.xpose.msra.mxu0 0
        %1412 = vmatpush.bf16.xpose.msra.mxu0 0
        %1413 = vmatpush.bf16.xpose.msra.mxu0 0
        %1414 = vmatpush.bf16.xpose.msra.mxu0 0
        %1415 = vmatpush.bf16.xpose.msra.mxu0 %v1406
        %1416 = vmatmul.bf16.gmra.mxu0 %v1403
        %v1417 = vpop.f32.mrf.mxu0
        %v1418 = vadd.f32 0.0, %v1417
        %v1419 = vpop.f32.mrf.mxu0
        %1420 = vdwg.mxu0
        %v1421 = vmul.f32 %v1418, 0.25
        %v1422 = vadd.f32 %v1421, %v1257
        %v1423 = vsel %vm724, %v1422, -inf
        %1424 = vmax.xlane.f32.xlu0 %v1423
        %v1425 = vpop.xlane.xlu0 %1424
        %v1426 = vsub.f32 %v1422, %v1425
        %v1427 = vmul.f32 %v1426, 1.442695
        %v1428 = vpow.pop %v1427
        %v1429 = vsel %vm724, %v1428, 0.0
        %1430 = vadd.xlane.f32.xlu0 %v1429
        %v1431 = vpop.xlane.xlu0 %1430
        %v1432 = vrcp.pop %v1431
        %v1433 = vmul.f32 %v1428, %v1432
        %v1434 = vpack.c.bf16 %v1433, %v1433
        %1435 = vrot.lane.b32.xlu0 %v1234, 96
        %v1436 = vpop.permute.xlu0 %1435
        %v1438 = vsel %vm724, %v1434, 0
        %v1441 = vsel %vm728, %v1436, 0
        %1443 = vmatpush.bf16.msra.mxu0 0
        %1444 = vmatpush.bf16.msra.mxu0 0
        %1445 = vmatpush.bf16.msra.mxu0 0
        %1446 = vmatpush.bf16.msra.mxu0 0
        %1447 = vmatpush.bf16.msra.mxu0 0
        %1448 = vmatpush.bf16.msra.mxu0 0
        %1449 = vmatpush.bf16.msra.mxu0 0
        %1450 = vmatpush.bf16.msra.mxu0 %v1441
        %1451 = vmatmul.bf16.gmra.mxu0 %v1438
        %v1452 = vpop.f32.mrf.mxu0
        %v1453 = vadd.f32 0.0, %v1452
        %v1454 = vpop.f32.mrf.mxu0
        %1455 = vdwg.mxu0
        %v1456 = vpack.c.bf16 %v1453, %v1453
        %v1459 = vunpack.c.l.b16 %v1220
        %v1460 = vunpack.c.l.b16 %v1221
        %v1461 = vpack.c.b16 %v1460, %v1459
        %v1464 = vsel %vm1235, %v1456, 0
        %1466 = vmatpush.bf16.msra.mxu0 0
        %1467 = vmatpush.bf16.msra.mxu0 0
        %1468 = vmatpush.bf16.msra.mxu0 0
        %1469 = vmatpush.bf16.msra.mxu0 0
        %1470 = vmatpush.bf16.msra.mxu0 0
        %1471 = vmatpush.bf16.msra.mxu0 0
        %1472 = vmatpush.bf16.msra.mxu0 0
        %1473 = vmatpush.bf16.msra.mxu0 %v1461
        %1474 = vmatmul.bf16.gmra.mxu0 %v1464
        %v1475 = vpop.f32.mrf.mxu0
        %v1476 = vadd.f32 0.0, %v1475
        %v1477 = vpop.f32.mrf.mxu0
        %1478 = vdwg.mxu0
        %v1479 = vadd.f32 %v1395, %v1476
        %1480 = vrot.lane.b32.xlu0 %v1232, 80
        %v1481 = vpop.permute.xlu0 %1480
        %1482 = vrot.lane.b32.xlu0 %v1233, 80
        %v1483 = vpop.permute.xlu0 %1482
        %v1485 = vsel %vm1235, %v1481, 0
        %v1488 = vsel %vm1235, %v1483, 0
        %1490 = vmatpush.bf16.xpose.msra.mxu0 0
        %1491 = vmatpush.bf16.xpose.msra.mxu0 0
        %1492 = vmatpush.bf16.xpose.msra.mxu0 0
        %1493 = vmatpush.bf16.xpose.msra.mxu0 0
        %1494 = vmatpush.bf16.xpose.msra.mxu0 0
        %1495 = vmatpush.bf16.xpose.msra.mxu0 0
        %1496 = vmatpush.bf16.xpose.msra.mxu0 0
        %1497 = vmatpush.bf16.xpose.msra.mxu0 %v1488
        %1498 = vmatmul.bf16.gmra.mxu0 %v1485
        %v1499 = vpop.f32.mrf.mxu0
        %v1500 = vadd.f32 0.0, %v1499
        %v1501 = vpop.f32.mrf.mxu0
        %1502 = vdwg.mxu0
        %v1503 = vmul.f32 %v1500, 0.25
        %v1504 = vadd.f32 %v1503, %v1257
        %v1505 = vsel %vm724, %v1504, -inf
        %1506 = vmax.xlane.f32.xlu0 %v1505
        %v1507 = vpop.xlane.xlu0 %1506
        %v1508 = vsub.f32 %v1504, %v1507
        %v1509 = vmul.f32 %v1508, 1.442695
        %v1510 = vpow.pop %v1509
        %v1511 = vsel %vm724, %v1510, 0.0
        %1512 = vadd.xlane.f32.xlu0 %v1511
        %v1513 = vpop.xlane.xlu0 %1512
        %v1514 = vrcp.pop %v1513
        %v1515 = vmul.f32 %v1510, %v1514
        %v1516 = vpack.c.bf16 %v1515, %v1515
        %1517 = vrot.lane.b32.xlu0 %v1234, 80
        %v1518 = vpop.permute.xlu0 %1517
        %v1520 = vsel %vm724, %v1516, 0
        %v1523 = vsel %vm728, %v1518, 0
        %1525 = vmatpush.bf16.msra.mxu0 0
        %1526 = vmatpush.bf16.msra.mxu0 0
        %1527 = vmatpush.bf16.msra.mxu0 0
        %1528 = vmatpush.bf16.msra.mxu0 0
        %1529 = vmatpush.bf16.msra.mxu0 0
        %1530 = vmatpush.bf16.msra.mxu0 0
        %1531 = vmatpush.bf16.msra.mxu0 0
        %1532 = vmatpush.bf16.msra.mxu0 %v1523
        %1533 = vmatmul.bf16.gmra.mxu0 %v1520
        %v1534 = vpop.f32.mrf.mxu0
        %v1535 = vadd.f32 0.0, %v1534
        %v1536 = vpop.f32.mrf.mxu0
        %1537 = vdwg.mxu0
        %v1538 = vpack.c.bf16 %v1535, %v1535
        %v1541 = vunpack.c.l.b16 %v1222
        %v1542 = vunpack.c.l.b16 %v1223
        %v1543 = vpack.c.b16 %v1542, %v1541
        %v1546 = vsel %vm1235, %v1538, 0
        %1548 = vmatpush.bf16.msra.mxu0 0
        %1549 = vmatpush.bf16.msra.mxu0 0
        %1550 = vmatpush.bf16.msra.mxu0 0
        %1551 = vmatpush.bf16.msra.mxu0 0
        %1552 = vmatpush.bf16.msra.mxu0 0
        %1553 = vmatpush.bf16.msra.mxu0 0
        %1554 = vmatpush.bf16.msra.mxu0 0
        %1555 = vmatpush.bf16.msra.mxu0 %v1543
        %1556 = vmatmul.bf16.gmra.mxu0 %v1546
        %v1557 = vpop.f32.mrf.mxu0
        %v1558 = vadd.f32 0.0, %v1557
        %v1559 = vpop.f32.mrf.mxu0
        %1560 = vdwg.mxu0
        %v1561 = vadd.f32 %v1479, %v1558
        %1562 = vrot.lane.b32.xlu0 %v1232, 64
        %v1563 = vpop.permute.xlu0 %1562
        %1564 = vrot.lane.b32.xlu0 %v1233, 64
        %v1565 = vpop.permute.xlu0 %1564
        %v1567 = vsel %vm1235, %v1563, 0
        %v1570 = vsel %vm1235, %v1565, 0
        %1572 = vmatpush.bf16.xpose.msra.mxu0 0
        %1573 = vmatpush.bf16.xpose.msra.mxu0 0
        %1574 = vmatpush.bf16.xpose.msra.mxu0 0
        %1575 = vmatpush.bf16.xpose.msra.mxu0 0
        %1576 = vmatpush.bf16.xpose.msra.mxu0 0
        %1577 = vmatpush.bf16.xpose.msra.mxu0 0
        %1578 = vmatpush.bf16.xpose.msra.mxu0 0
        %1579 = vmatpush.bf16.xpose.msra.mxu0 %v1570
        %1580 = vmatmul.bf16.gmra.mxu0 %v1567
        %v1581 = vpop.f32.mrf.mxu0
        %v1582 = vadd.f32 0.0, %v1581
        %v1583 = vpop.f32.mrf.mxu0
        %1584 = vdwg.mxu0
        %v1585 = vmul.f32 %v1582, 0.25
        %v1586 = vadd.f32 %v1585, %v1257
        %v1587 = vsel %vm724, %v1586, -inf
        %1588 = vmax.xlane.f32.xlu0 %v1587
        %v1589 = vpop.xlane.xlu0 %1588
        %v1590 = vsub.f32 %v1586, %v1589
        %v1591 = vmul.f32 %v1590, 1.442695
        %v1592 = vpow.pop %v1591
        %v1593 = vsel %vm724, %v1592, 0.0
        %1594 = vadd.xlane.f32.xlu0 %v1593
        %v1595 = vpop.xlane.xlu0 %1594
        %v1596 = vrcp.pop %v1595
        %v1597 = vmul.f32 %v1592, %v1596
        %v1598 = vpack.c.bf16 %v1597, %v1597
        %1599 = vrot.lane.b32.xlu0 %v1234, 64
        %v1600 = vpop.permute.xlu0 %1599
        %v1602 = vsel %vm724, %v1598, 0
        %v1605 = vsel %vm728, %v1600, 0
        %1607 = vmatpush.bf16.msra.mxu0 0
        %1608 = vmatpush.bf16.msra.mxu0 0
        %1609 = vmatpush.bf16.msra.mxu0 0
        %1610 = vmatpush.bf16.msra.mxu0 0
        %1611 = vmatpush.bf16.msra.mxu0 0
        %1612 = vmatpush.bf16.msra.mxu0 0
        %1613 = vmatpush.bf16.msra.mxu0 0
        %1614 = vmatpush.bf16.msra.mxu0 %v1605
        %1615 = vmatmul.bf16.gmra.mxu0 %v1602
        %v1616 = vpop.f32.mrf.mxu0
        %v1617 = vadd.f32 0.0, %v1616
        %v1618 = vpop.f32.mrf.mxu0
        %1619 = vdwg.mxu0
        %v1620 = vpack.c.bf16 %v1617, %v1617
        %v1623 = vunpack.c.l.b16 %v1224
        %v1624 = vunpack.c.l.b16 %v1225
        %v1625 = vpack.c.b16 %v1624, %v1623
        %v1628 = vsel %vm1235, %v1620, 0
        %1630 = vmatpush.bf16.msra.mxu0 0
        %1631 = vmatpush.bf16.msra.mxu0 0
        %1632 = vmatpush.bf16.msra.mxu0 0
        %1633 = vmatpush.bf16.msra.mxu0 0
        %1634 = vmatpush.bf16.msra.mxu0 0
        %1635 = vmatpush.bf16.msra.mxu0 0
        %1636 = vmatpush.bf16.msra.mxu0 0
        %1637 = vmatpush.bf16.msra.mxu0 %v1625
        %1638 = vmatmul.bf16.gmra.mxu0 %v1628
        %v1639 = vpop.f32.mrf.mxu0
        %v1640 = vadd.f32 0.0, %v1639
        %v1641 = vpop.f32.mrf.mxu0
        %1642 = vdwg.mxu0
        %v1643 = vadd.f32 %v1561, %v1640
        %1644 = vrot.lane.b32.xlu0 %v1232, 48
        %v1645 = vpop.permute.xlu0 %1644
        %1646 = vrot.lane.b32.xlu0 %v1233, 48
        %v1647 = vpop.permute.xlu0 %1646
        %v1649 = vsel %vm1235, %v1645, 0
        %v1652 = vsel %vm1235, %v1647, 0
        %1654 = vmatpush.bf16.xpose.msra.mxu0 0
        %1655 = vmatpush.bf16.xpose.msra.mxu0 0
        %1656 = vmatpush.bf16.xpose.msra.mxu0 0
        %1657 = vmatpush.bf16.xpose.msra.mxu0 0
        %1658 = vmatpush.bf16.xpose.msra.mxu0 0
        %1659 = vmatpush.bf16.xpose.msra.mxu0 0
        %1660 = vmatpush.bf16.xpose.msra.mxu0 0
        %1661 = vmatpush.bf16.xpose.msra.mxu0 %v1652
        %1662 = vmatmul.bf16.gmra.mxu0 %v1649
        %v1663 = vpop.f32.mrf.mxu0
        %v1664 = vadd.f32 0.0, %v1663
        %v1665 = vpop.f32.mrf.mxu0
        %1666 = vdwg.mxu0
        %v1667 = vmul.f32 %v1664, 0.25
        %v1668 = vadd.f32 %v1667, %v1257
        %v1669 = vsel %vm724, %v1668, -inf
        %1670 = vmax.xlane.f32.xlu0 %v1669
        %v1671 = vpop.xlane.xlu0 %1670
        %v1672 = vsub.f32 %v1668, %v1671
        %v1673 = vmul.f32 %v1672, 1.442695
        %v1674 = vpow.pop %v1673
        %v1675 = vsel %vm724, %v1674, 0.0
        %1676 = vadd.xlane.f32.xlu0 %v1675
        %v1677 = vpop.xlane.xlu0 %1676
        %v1678 = vrcp.pop %v1677
        %v1679 = vmul.f32 %v1674, %v1678
        %v1680 = vpack.c.bf16 %v1679, %v1679
        %1681 = vrot.lane.b32.xlu0 %v1234, 48
        %v1682 = vpop.permute.xlu0 %1681
        %v1684 = vsel %vm724, %v1680, 0
        %v1687 = vsel %vm728, %v1682, 0
        %1689 = vmatpush.bf16.msra.mxu0 0
        %1690 = vmatpush.bf16.msra.mxu0 0
        %1691 = vmatpush.bf16.msra.mxu0 0
        %1692 = vmatpush.bf16.msra.mxu0 0
        %1693 = vmatpush.bf16.msra.mxu0 0
        %1694 = vmatpush.bf16.msra.mxu0 0
        %1695 = vmatpush.bf16.msra.mxu0 0
        %1696 = vmatpush.bf16.msra.mxu0 %v1687
        %1697 = vmatmul.bf16.gmra.mxu0 %v1684
        %v1698 = vpop.f32.mrf.mxu0
        %v1699 = vadd.f32 0.0, %v1698
        %v1700 = vpop.f32.mrf.mxu0
        %1701 = vdwg.mxu0
        %v1702 = vpack.c.bf16 %v1699, %v1699
        %v1705 = vunpack.c.l.b16 %v1226
        %v1706 = vunpack.c.l.b16 %v1227
        %v1707 = vpack.c.b16 %v1706, %v1705
        %v1710 = vsel %vm1235, %v1702, 0
        %1712 = vmatpush.bf16.msra.mxu0 0
        %1713 = vmatpush.bf16.msra.mxu0 0
        %1714 = vmatpush.bf16.msra.mxu0 0
        %1715 = vmatpush.bf16.msra.mxu0 0
        %1716 = vmatpush.bf16.msra.mxu0 0
        %1717 = vmatpush.bf16.msra.mxu0 0
        %1718 = vmatpush.bf16.msra.mxu0 0
        %1719 = vmatpush.bf16.msra.mxu0 %v1707
        %1720 = vmatmul.bf16.gmra.mxu0 %v1710
        %v1721 = vpop.f32.mrf.mxu0
        %v1722 = vadd.f32 0.0, %v1721
        %v1723 = vpop.f32.mrf.mxu0
        %1724 = vdwg.mxu0
        %v1725 = vadd.f32 %v1643, %v1722
        %1726 = vrot.lane.b32.xlu0 %v1232, 32
        %v1727 = vpop.permute.xlu0 %1726
        %1728 = vrot.lane.b32.xlu0 %v1233, 32
        %v1729 = vpop.permute.xlu0 %1728
        %v1731 = vsel %vm1235, %v1727, 0
        %v1734 = vsel %vm1235, %v1729, 0
        %1736 = vmatpush.bf16.xpose.msra.mxu0 0
        %1737 = vmatpush.bf16.xpose.msra.mxu0 0
        %1738 = vmatpush.bf16.xpose.msra.mxu0 0
        %1739 = vmatpush.bf16.xpose.msra.mxu0 0
        %1740 = vmatpush.bf16.xpose.msra.mxu0 0
        %1741 = vmatpush.bf16.xpose.msra.mxu0 0
        %1742 = vmatpush.bf16.xpose.msra.mxu0 0
        %1743 = vmatpush.bf16.xpose.msra.mxu0 %v1734
        %1744 = vmatmul.bf16.gmra.mxu0 %v1731
        %v1745 = vpop.f32.mrf.mxu0
        %v1746 = vadd.f32 0.0, %v1745
        %v1747 = vpop.f32.mrf.mxu0
        %1748 = vdwg.mxu0
        %v1749 = vmul.f32 %v1746, 0.25
        %v1750 = vadd.f32 %v1749, %v1257
        %v1751 = vsel %vm724, %v1750, -inf
        %1752 = vmax.xlane.f32.xlu0 %v1751
        %v1753 = vpop.xlane.xlu0 %1752
        %v1754 = vsub.f32 %v1750, %v1753
        %v1755 = vmul.f32 %v1754, 1.442695
        %v1756 = vpow.pop %v1755
        %v1757 = vsel %vm724, %v1756, 0.0
        %1758 = vadd.xlane.f32.xlu0 %v1757
        %v1759 = vpop.xlane.xlu0 %1758
        %v1760 = vrcp.pop %v1759
        %v1761 = vmul.f32 %v1756, %v1760
        %v1762 = vpack.c.bf16 %v1761, %v1761
        %1763 = vrot.lane.b32.xlu0 %v1234, 32
        %v1764 = vpop.permute.xlu0 %1763
        %v1766 = vsel %vm724, %v1762, 0
        %v1769 = vsel %vm728, %v1764, 0
        %1771 = vmatpush.bf16.msra.mxu0 0
        %1772 = vmatpush.bf16.msra.mxu0 0
        %1773 = vmatpush.bf16.msra.mxu0 0
        %1774 = vmatpush.bf16.msra.mxu0 0
        %1775 = vmatpush.bf16.msra.mxu0 0
        %1776 = vmatpush.bf16.msra.mxu0 0
        %1777 = vmatpush.bf16.msra.mxu0 0
        %1778 = vmatpush.bf16.msra.mxu0 %v1769
        %1779 = vmatmul.bf16.gmra.mxu0 %v1766
        %v1780 = vpop.f32.mrf.mxu0
        %v1781 = vadd.f32 0.0, %v1780
        %v1782 = vpop.f32.mrf.mxu0
        %1783 = vdwg.mxu0
        %v1784 = vpack.c.bf16 %v1781, %v1781
        %v1787 = vunpack.c.l.b16 %v1228
        %v1788 = vunpack.c.l.b16 %v1229
        %v1789 = vpack.c.b16 %v1788, %v1787
        %v1792 = vsel %vm1235, %v1784, 0
        %1794 = vmatpush.bf16.msra.mxu0 0
        %1795 = vmatpush.bf16.msra.mxu0 0
        %1796 = vmatpush.bf16.msra.mxu0 0
        %1797 = vmatpush.bf16.msra.mxu0 0
        %1798 = vmatpush.bf16.msra.mxu0 0
        %1799 = vmatpush.bf16.msra.mxu0 0
        %1800 = vmatpush.bf16.msra.mxu0 0
        %1801 = vmatpush.bf16.msra.mxu0 %v1789
        %1802 = vmatmul.bf16.gmra.mxu0 %v1792
        %v1803 = vpop.f32.mrf.mxu0
        %v1804 = vadd.f32 0.0, %v1803
        %v1805 = vpop.f32.mrf.mxu0
        %1806 = vdwg.mxu0
        %v1807 = vadd.f32 %v1725, %v1804
        %1808 = vrot.lane.b32.xlu0 %v1232, 16
        %v1809 = vpop.permute.xlu0 %1808
        %1810 = vrot.lane.b32.xlu0 %v1233, 16
        %v1811 = vpop.permute.xlu0 %1810
        %v1813 = vsel %vm1235, %v1809, 0
        %v1816 = vsel %vm1235, %v1811, 0
        %1818 = vmatpush.bf16.xpose.msra.mxu0 0
        %1819 = vmatpush.bf16.xpose.msra.mxu0 0
        %1820 = vmatpush.bf16.xpose.msra.mxu0 0
        %1821 = vmatpush.bf16.xpose.msra.mxu0 0
        %1822 = vmatpush.bf16.xpose.msra.mxu0 0
        %1823 = vmatpush.bf16.xpose.msra.mxu0 0
        %1824 = vmatpush.bf16.xpose.msra.mxu0 0
        %1825 = vmatpush.bf16.xpose.msra.mxu0 %v1816
        %1826 = vmatmul.bf16.gmra.mxu0 %v1813
        %v1827 = vpop.f32.mrf.mxu0
        %v1828 = vadd.f32 0.0, %v1827
        %v1829 = vpop.f32.mrf.mxu0
        %1830 = vdwg.mxu0
        %v1831 = vmul.f32 %v1828, 0.25
        %v1832 = vadd.f32 %v1831, %v1257
        %v1833 = vsel %vm724, %v1832, -inf
        %1834 = vmax.xlane.f32.xlu0 %v1833
        %v1835 = vpop.xlane.xlu0 %1834
        %v1836 = vsub.f32 %v1832, %v1835
        %v1837 = vmul.f32 %v1836, 1.442695
        %v1838 = vpow.pop %v1837
        %v1839 = vsel %vm724, %v1838, 0.0
        %1840 = vadd.xlane.f32.xlu0 %v1839
        %v1841 = vpop.xlane.xlu0 %1840
        %v1842 = vrcp.pop %v1841
        %v1843 = vmul.f32 %v1838, %v1842
        %v1844 = vpack.c.bf16 %v1843, %v1843
        %1845 = vrot.lane.b32.xlu0 %v1234, 16
        %v1846 = vpop.permute.xlu0 %1845
        %v1848 = vsel %vm724, %v1844, 0
        %v1851 = vsel %vm728, %v1846, 0
        %1853 = vmatpush.bf16.msra.mxu0 0
        %1854 = vmatpush.bf16.msra.mxu0 0
        %1855 = vmatpush.bf16.msra.mxu0 0
        %1856 = vmatpush.bf16.msra.mxu0 0
        %1857 = vmatpush.bf16.msra.mxu0 0
        %1858 = vmatpush.bf16.msra.mxu0 0
        %1859 = vmatpush.bf16.msra.mxu0 0
        %1860 = vmatpush.bf16.msra.mxu0 %v1851
        %1861 = vmatmul.bf16.gmra.mxu0 %v1848
        %v1862 = vpop.f32.mrf.mxu0
        %v1863 = vadd.f32 0.0, %v1862
        %v1864 = vpop.f32.mrf.mxu0
        %1865 = vdwg.mxu0
        %v1866 = vpack.c.bf16 %v1863, %v1863
        %v1869 = vunpack.c.l.b16 %v1230
        %v1870 = vunpack.c.l.b16 %v1231
        %v1871 = vpack.c.b16 %v1870, %v1869
        %v1874 = vsel %vm1235, %v1866, 0
        %1876 = vmatpush.bf16.msra.mxu0 0
        %1877 = vmatpush.bf16.msra.mxu0 0
        %1878 = vmatpush.bf16.msra.mxu0 0
        %1879 = vmatpush.bf16.msra.mxu0 0
        %1880 = vmatpush.bf16.msra.mxu0 0
        %1881 = vmatpush.bf16.msra.mxu0 0
        %1882 = vmatpush.bf16.msra.mxu0 0
        %1883 = vmatpush.bf16.msra.mxu0 %v1871
        %1884 = vmatmul.bf16.gmra.mxu0 %v1874
        %v1885 = vpop.f32.mrf.mxu0
        %v1886 = vadd.f32 0.0, %v1885
        %v1887 = vpop.f32.mrf.mxu0
        %1888 = vdwg.mxu0
        %v1889 = vadd.f32 %v1807, %v1886
        %v1890 = vadd.f32 %v1006, %v1889
        %v1891 = vld [vmem:[%s580] sm:$0x1]
        %v1893 = vperm.slane %v1891, 0
        %v1895 = vadd.f32 %v1890, %v1893
        %v1896 = vld [vmem:[%s660] sm:$0xff]
        %1898 = vset.pattern.permute.xlu0 0
        %1899 = vperm.xlu0 %1898, %v1896
        %v1900 = vpop.permute.xlu0 %1899
        %v1902 = vmul.f32 %v1895, %v1900
        %1903 = vst [vmem:[#allocation2] sm:$0xff] %v1902
        %p1904 = scmp.eq.s32.totalorder %s37, 3
        // Predicated region
        $region97: #{net_forward.3} parent=63 // pred_check
          %p1905 = pneg %p1904
        $region98: #{net_forward.3} parent=63 // pred_check_branch
          %1907 = sbr.rel (%p1905) target = $region100
        $region99: #{net_forward.3} parent=63 // pred_region
          %1908 = vst [vmem:[%s667] sm:$0xff] %v1902
        $region100: #{net_forward.3} parent=63 // pred_fallthru
          _
        %p1909 = scmp.lt.s32.totalorder %s36, 1
        %s1910 = scalar_select %p1909, %s36, 1
        %s1911 = smul.addr %s1910, 8
        %s1912 = scalar_lea.vmem %s11, %s1911
        // Predicated region
        $region101: #{net_forward.3} parent=63 // pred_check
          %p1913 = pneg %p338
        $region102: #{net_forward.3} parent=63 // pred_check_branch
          %1915 = sbr.rel (%p1913) target = $region104
        $region103: #{net_forward.3} parent=63 // pred_region
          _
        $region104: #{net_forward.3} parent=63 // pred_fallthru
          _
      $region64: #{net_forward.3} parent=5 // pred_fallthru
        _
      %p1916 = scmp.le.s32.totalorder 2, %s27
      // Predicated region
      $region105: #{net_forward.3} parent=5 // pred_check
        %p1917 = pneg %p1916
      $region106: #{net_forward.3} parent=5 // pred_check_branch
        %1919 = sbr.rel (%p1917) target = $region108
      $region107: #{net_forward.3} parent=5 // pred_region
        %s1920 = ssub.s32 %s27, 2
        // Predicated region
        $region109: #{net_forward.3} parent=107 // pred_check
          %p1921 = pneg %p344
        $region110: #{net_forward.3} parent=107 // pred_check_branch
          %1923 = sbr.rel (%p1921) target = $region112
        $region111: #{net_forward.3} parent=107 // pred_region
          %p1924 = scmp.lt.s32.totalorder %s38, 1
          %s1925 = scalar_select %p1924, %s38, 1
          %s1926 = smul.addr %s1925, 8
          %s1927 = scalar_lea.vmem %s11, %s1926
        $region112: #{net_forward.3} parent=107 // pred_fallthru
          _
      $region108: #{net_forward.3} parent=5 // pred_fallthru
        _
    $region6: #{net_forward.3} parent=1 // loop_footer
      %s31 = sadd.s32 1, %s27
    $region7: #{net_forward.3} parent=1 // loop_footer_branch
      %26 = sbr.rel target = $region3
    $region8: #{net_forward.3} parent=1 // loop_exit
      _
    %1928 = vsyncpa [#allocation4], 1
    %s1929 = scalar_lea.sflag [#allocation4], 1
    %1930 = vsyncpa %s1929, 1
    %1931 = vsyncpa [#allocation6], 1
    %s1932 = scalar_lea.sflag [#allocation6], 1
    %1933 = vsyncpa %s1932, 1
    %1934 = vsyncpa [#allocation9], 1
    %s1935 = scalar_lea.sflag [#allocation9], 1
    %1936 = vsyncpa %s1935, 1
    %1937 = vsyncpa [#allocation12], 1
    %s1938 = scalar_lea.sflag [#allocation12], 1
    %1939 = vsyncpa %s1938, 1

// kernel: net_forward.4
$region0: #{net_forward.4}
  #allocation0 [shape = 'u32[]', space=smem, size = 0x4, offset = 0x4, fixed_abs, tag = 'smem constant byte address 0x4 - core index']
  #allocation1 [shape = 'u32[72,128]{1,0:T(1,128)}', space=vmem, size = 0x9000, scoped, tag = 'internal scratch']
  #allocation2 [shape = 'f32[8,128]{1,0:T(8,128)}', space=vmem, size = 0x1000, scoped, tag = 'scratch operand']
  %s0 = inlined_call_operand.vmem [shape: f32[2,8,20], index: 0, kind: input, shape index: {}]
  %s1 = inlined_call_operand.vmem [shape: f32[2,8,1], index: 1, kind: input, shape index: {}]
  %s2 = inlined_call_operand.vmem [shape: f32[2,1,8], index: 2, kind: input, shape index: {}]
  %s3 = inlined_call_operand.vmem [shape: bf16[20,128], index: 3, kind: input, shape index: {}]
  %s4 = inlined_call_operand.hbm [shape: f32[1,128], index: 4, kind: input, shape index: {}]
  %s5 = inlined_call_operand.hbm [shape: bf16[4,3,128,128], index: 5, kind: input, shape index: {}]
  %s6 = inlined_call_operand.hbm [shape: f32[4,1,128], index: 6, kind: input, shape index: {}]
  %s7 = inlined_call_operand.hbm [shape: bf16[4,128,384], index: 7, kind: input, shape index: {}]
  %s8 = inlined_call_operand.vmem [shape: f32[4,1,384], index: 8, kind: input, shape index: {}]
  %s9 = inlined_call_operand.hbm [shape: bf16[4,128,128], index: 9, kind: input, shape index: {}]
  %s10 = inlined_call_operand.hbm [shape: f32[4,1,128], index: 10, kind: input, shape index: {}]
  %s11 = inlined_call_operand.vmem [shape: f32[2,8,128], index: 11, kind: output, shape index: {}]
  %s12 = sld [smem:[#allocation0]]
  $region109: #{net_forward.4} parent=0
    _
  %s14 = ssub.s32 1, %s12
  %s15 = scalar_select 0, %s14, %s12
  $region1: #{net_forward.4} parent=0
    #allocation3 [shape = 'u8[512]{0}', space=vmem, size = 0x400, scoped, tag = 'input window, operand 4, single buffered']
    #allocation4 [shape = 's32[2]{0}', space=sflag, size = 0x8, scoped, tag = 'scoped memory for net_forward.4']
    #allocation5 [shape = 'u8[196608]{0}', space=vmem, size = 0x30000, scoped, tag = 'input window, operand 5']
    #allocation6 [shape = 's32[2]{0}', space=sflag, size = 0x8, scoped, tag = 'scoped memory for net_forward.4']
    #allocation7 [shape = 'u8[1024]{0}', space=vmem, size = 0x400, scoped, tag = 'input window, operand 6']
    #allocation8 [shape = 'u8[196608]{0}', space=vmem, size = 0x30000, scoped, tag = 'input window, operand 7']
    #allocation9 [shape = 's32[2]{0}', space=sflag, size = 0x8, scoped, tag = 'scoped memory for net_forward.4']
    #allocation10 [shape = 'u8[65536]{0}', space=vmem, size = 0x10000, scoped, tag = 'input window, operand 9']
    #allocation11 [shape = 'u8[1024]{0}', space=vmem, size = 0x400, scoped, tag = 'input window, operand 10']
    #allocation12 [shape = 's32[2]{0}', space=sflag, size = 0x8, scoped, tag = 'scoped memory for net_forward.4']
    %16 = vsyncpa [#allocation4], 0
    %17 = vsyncpa [#allocation6], 0
    %s18 = scalar_lea.sflag [#allocation6], 1
    %19 = vsyncpa %s18, 0
    %20 = vsyncpa [#allocation9], 0
    %s21 = scalar_lea.sflag [#allocation9], 1
    %22 = vsyncpa %s21, 0
    %23 = vsyncpa [#allocation12], 0
    %s24 = scalar_lea.sflag [#allocation12], 1
    %25 = vsyncpa %s24, 0
    loop: start=0, step=1, limit=10
    $region2: #{net_forward.4} parent=1 // loop_pre_header
      _
    $region3: #{net_forward.4} parent=1 // loop_header
      %s27 = sphi 0, %s31
      %p28 = scmp.ge.s32.totalorder %s27, 10
      %s34 = sphi 0, %s46
      %s35 = sphi 0, %s42
      %s36 = sphi 0, %s34
      %s37 = sphi 0, %s35
      %s38 = sphi 0, %s36
      %s39 = sphi 0, %s37
      %s49 = sphi 0, %s51
      %s52 = sphi 0, %s49
      %s53 = sphi 0, %s52
      %s69 = sphi 0, %s53
      %s75 = sphi 0, %s77
      %s78 = sphi 0, %s75
      %s79 = sphi 0, %s78
      %s95 = sphi 0, %s79
      %s101 = sphi 0, %s103
      %s104 = sphi 0, %s101
      %s105 = sphi 0, %s104
      %s121 = sphi 0, %s105
      %s125 = sphi 0, %s125
      %s127 = sphi 0, %s125
      %s128 = sphi 0, %s127
      %s142 = sphi 0, %s128
      %s146 = sphi 0, %s146
      %s148 = sphi 0, %s146
      %s149 = sphi 0, %s148
      %s163 = sphi 0, %s149
      %s169 = sphi 0, %s171
      %s172 = sphi 0, %s169
      %s173 = sphi 0, %s172
      %s189 = sphi 0, %s173
      %s195 = sphi 0, %s197
      %s198 = sphi 0, %s195
      %s199 = sphi 0, %s198
      %s215 = sphi 0, %s199
      %s221 = sphi 0, %s223
      %s224 = sphi 0, %s221
      %s225 = sphi 0, %s224
      %s241 = sphi 0, %s225
      %s247 = sphi 0, %s249
      %s250 = sphi 0, %s247
      %s251 = sphi 0, %s250
      %s267 = sphi 0, %s251
      %s273 = sphi 0, %s275
      %s276 = sphi 0, %s273
      %s277 = sphi 0, %s276
      %s293 = sphi 0, %s277
      %s299 = sphi 0, %s301
      %s302 = sphi 0, %s299
      %s303 = sphi 0, %s302
      %s319 = sphi 0, %s303
      %s325 = sphi 0, %s327
      %s328 = sphi 0, %s325
      %s329 = sphi 0, %s328
      %s345 = sphi 0, %s329
    $region4: #{net_forward.4} parent=1 // loop_header_branch
      %30 = sbr.rel (%p28) target = $region8
    $region5: #{net_forward.4} parent=1 // loop_body
      %s32 = ssub.s32 %s27, 1
      %s33 = ssub.s32 %s27, 2
      %s40 = sadd.s32 1, %s35
      %p41 = scmp.ge.s32.totalorder %s40, 4
      %s42 = scalar_select %p41, 0, %s40
      %s43 = sadd.s32 1, %s34
      %s44 = scalar_select %p41, %s43, %s34
      %p45 = scmp.ge.s32.totalorder %s44, 2
      %s46 = scalar_select %p45, 0, %s44
      %s47 = ssub.s32 %s34, %s46
      %p48 = scmp.eq.s32.totalorder %s47, 0
      %s50 = sadd.s32 %s49, 1
      %s51 = scalar_select %p48, %s49, %s50
      %p54 = pneg %p48
      %p55 = scmp.eq.s32.totalorder %s27, 7
      %p56 = por %p54, %p55
      %p57 = scmp.ne.s32.totalorder %s49, %s52
      %p58 = scmp.eq.s32.totalorder %s27, 0
      %p59 = por %p57, %p58
      %p60 = scmp.ne.s32.totalorder %s49, %s52
      %p61 = scmp.eq.s32.totalorder %s32, 7
      %p62 = por %p60, %p61
      %p63 = scmp.ne.s32.totalorder %s52, %s53
      %p64 = scmp.eq.s32.totalorder %s32, 0
      %p65 = por %p63, %p64
      %p66 = scmp.ne.s32.totalorder %s52, %s53
      %p67 = scmp.eq.s32.totalorder %s33, 7
      %p68 = por %p66, %p67
      %p70 = scmp.ne.s32.totalorder %s53, %s69
      %p71 = scmp.eq.s32.totalorder %s33, 0
      %p72 = por %p70, %p71
      %s73 = ssub.s32 %s34, %s46
      %p74 = scmp.eq.s32.totalorder %s73, 0
      %s76 = sadd.s32 %s75, 1
      %s77 = scalar_select %p74, %s75, %s76
      %p80 = pneg %p74
      %p81 = scmp.eq.s32.totalorder %s27, 7
      %p82 = por %p80, %p81
      %p83 = scmp.ne.s32.totalorder %s75, %s78
      %p84 = scmp.eq.s32.totalorder %s27, 0
      %p85 = por %p83, %p84
      %p86 = scmp.ne.s32.totalorder %s75, %s78
      %p87 = scmp.eq.s32.totalorder %s32, 7
      %p88 = por %p86, %p87
      %p89 = scmp.ne.s32.totalorder %s78, %s79
      %p90 = scmp.eq.s32.totalorder %s32, 0
      %p91 = por %p89, %p90
      %p92 = scmp.ne.s32.totalorder %s78, %s79
      %p93 = scmp.eq.s32.totalorder %s33, 7
      %p94 = por %p92, %p93
      %p96 = scmp.ne.s32.totalorder %s79, %s95
      %p97 = scmp.eq.s32.totalorder %s33, 0
      %p98 = por %p96, %p97
      %s99 = ssub.s32 %s34, %s46
      %p100 = scmp.eq.s32.totalorder %s99, 0
      %s102 = sadd.s32 %s101, 1
      %s103 = scalar_select %p100, %s101, %s102
      %p106 = pneg %p100
      %p107 = scmp.eq.s32.totalorder %s27, 7
      %p108 = por %p106, %p107
      %p109 = scmp.ne.s32.totalorder %s101, %s104
      %p110 = scmp.eq.s32.totalorder %s27, 0
      %p111 = por %p109, %p110
      %p112 = scmp.ne.s32.totalorder %s101, %s104
      %p113 = scmp.eq.s32.totalorder %s32, 7
      %p114 = por %p112, %p113
      %p115 = scmp.ne.s32.totalorder %s104, %s105
      %p116 = scmp.eq.s32.totalorder %s32, 0
      %p117 = por %p115, %p116
      %p118 = scmp.ne.s32.totalorder %s104, %s105
      %p119 = scmp.eq.s32.totalorder %s33, 7
      %p120 = por %p118, %p119
      %p122 = scmp.ne.s32.totalorder %s105, %s121
      %p123 = scmp.eq.s32.totalorder %s33, 0
      %p124 = por %p122, %p123
      %s126 = sadd.s32 %s125, 1
      %p129 = scmp.eq.s32.totalorder %s27, 7
      %p130 = scmp.ne.s32.totalorder %s125, %s127
      %p131 = scmp.eq.s32.totalorder %s27, 0
      %p132 = por %p130, %p131
      %p133 = scmp.ne.s32.totalorder %s125, %s127
      %p134 = scmp.eq.s32.totalorder %s32, 7
      %p135 = por %p133, %p134
      %p136 = scmp.ne.s32.totalorder %s127, %s128
      %p137 = scmp.eq.s32.totalorder %s32, 0
      %p138 = por %p136, %p137
      %p139 = scmp.ne.s32.totalorder %s127, %s128
      %p140 = scmp.eq.s32.totalorder %s33, 7
      %p141 = por %p139, %p140
      %p143 = scmp.ne.s32.totalorder %s128, %s142
      %p144 = scmp.eq.s32.totalorder %s33, 0
      %p145 = por %p143, %p144
      %s147 = sadd.s32 %s146, 1
      %p150 = scmp.eq.s32.totalorder %s27, 7
      %p151 = scmp.ne.s32.totalorder %s146, %s148
      %p152 = scmp.eq.s32.totalorder %s27, 0
      %p153 = por %p151, %p152
      %p154 = scmp.ne.s32.totalorder %s146, %s148
      %p155 = scmp.eq.s32.totalorder %s32, 7
      %p156 = por %p154, %p155
      %p157 = scmp.ne.s32.totalorder %s148, %s149
      %p158 = scmp.eq.s32.totalorder %s32, 0
      %p159 = por %p157, %p158
      %p160 = scmp.ne.s32.totalorder %s148, %s149
      %p161 = scmp.eq.s32.totalorder %s33, 7
      %p162 = por %p160, %p161
      %p164 = scmp.ne.s32.totalorder %s149, %s163
      %p165 = scmp.eq.s32.totalorder %s33, 0
      %p166 = por %p164, %p165
      %s167 = ssub.s32 %s35, %s42
      %p168 = scmp.eq.s32.totalorder %s167, 0
      %s170 = sadd.s32 %s169, 1
      %s171 = scalar_select %p168, %s169, %s170
      %p174 = pneg %p168
      %p175 = scmp.eq.s32.totalorder %s27, 7
      %p176 = por %p174, %p175
      %p177 = scmp.ne.s32.totalorder %s169, %s172
      %p178 = scmp.eq.s32.totalorder %s27, 0
      %p179 = por %p177, %p178
      %p180 = scmp.ne.s32.totalorder %s169, %s172
      %p181 = scmp.eq.s32.totalorder %s32, 7
      %p182 = por %p180, %p181
      %p183 = scmp.ne.s32.totalorder %s172, %s173
      %p184 = scmp.eq.s32.totalorder %s32, 0
      %p185 = por %p183, %p184
      %p186 = scmp.ne.s32.totalorder %s172, %s173
      %p187 = scmp.eq.s32.totalorder %s33, 7
      %p188 = por %p186, %p187
      %p190 = scmp.ne.s32.totalorder %s173, %s189
      %p191 = scmp.eq.s32.totalorder %s33, 0
      %p192 = por %p190, %p191
      %s193 = ssub.s32 %s35, %s42
      %p194 = scmp.eq.s32.totalorder %s193, 0
      %s196 = sadd.s32 %s195, 1
      %s197 = scalar_select %p194, %s195, %s196
      %p200 = pneg %p194
      %p201 = scmp.eq.s32.totalorder %s27, 7
      %p202 = por %p200, %p201
      %p203 = scmp.ne.s32.totalorder %s195, %s198
      %p204 = scmp.eq.s32.totalorder %s27, 0
      %p205 = por %p203, %p204
      %p206 = scmp.ne.s32.totalorder %s195, %s198
      %p207 = scmp.eq.s32.totalorder %s32, 7
      %p208 = por %p206, %p207
      %p209 = scmp.ne.s32.totalorder %s198, %s199
      %p210 = scmp.eq.s32.totalorder %s32, 0
      %p211 = por %p209, %p210
      %p212 = scmp.ne.s32.totalorder %s198, %s199
      %p213 = scmp.eq.s32.totalorder %s33, 7
      %p214 = por %p212, %p213
      %p216 = scmp.ne.s32.totalorder %s199, %s215
      %p217 = scmp.eq.s32.totalorder %s33, 0
      %p218 = por %p216, %p217
      %s219 = ssub.s32 %s35, %s42
      %p220 = scmp.eq.s32.totalorder %s219, 0
      %s222 = sadd.s32 %s221, 1
      %s223 = scalar_select %p220, %s221, %s222
      %p226 = pneg %p220
      %p227 = scmp.eq.s32.totalorder %s27, 7
      %p228 = por %p226, %p227
      %p229 = scmp.ne.s32.totalorder %s221, %s224
      %p230 = scmp.eq.s32.totalorder %s27, 0
      %p231 = por %p229, %p230
      %p232 = scmp.ne.s32.totalorder %s221, %s224
      %p233 = scmp.eq.s32.totalorder %s32, 7
      %p234 = por %p232, %p233
      %p235 = scmp.ne.s32.totalorder %s224, %s225
      %p236 = scmp.eq.s32.totalorder %s32, 0
      %p237 = por %p235, %p236
      %p238 = scmp.ne.s32.totalorder %s224, %s225
      %p239 = scmp.eq.s32.totalorder %s33, 7
      %p240 = por %p238, %p239
      %p242 = scmp.ne.s32.totalorder %s225, %s241
      %p243 = scmp.eq.s32.totalorder %s33, 0
      %p244 = por %p242, %p243
      %s245 = ssub.s32 %s35, %s42
      %p246 = scmp.eq.s32.totalorder %s245, 0
      %s248 = sadd.s32 %s247, 1
      %s249 = scalar_select %p246, %s247, %s248
      %p252 = pneg %p246
      %p253 = scmp.eq.s32.totalorder %s27, 7
      %p254 = por %p252, %p253
      %p255 = scmp.ne.s32.totalorder %s247, %s250
      %p256 = scmp.eq.s32.totalorder %s27, 0
      %p257 = por %p255, %p256
      %p258 = scmp.ne.s32.totalorder %s247, %s250
      %p259 = scmp.eq.s32.totalorder %s32, 7
      %p260 = por %p258, %p259
      %p261 = scmp.ne.s32.totalorder %s250, %s251
      %p262 = scmp.eq.s32.totalorder %s32, 0
      %p263 = por %p261, %p262
      %p264 = scmp.ne.s32.totalorder %s250, %s251
      %p265 = scmp.eq.s32.totalorder %s33, 7
      %p266 = por %p264, %p265
      %p268 = scmp.ne.s32.totalorder %s251, %s267
      %p269 = scmp.eq.s32.totalorder %s33, 0
      %p270 = por %p268, %p269
      %s271 = ssub.s32 %s35, %s42
      %p272 = scmp.eq.s32.totalorder %s271, 0
      %s274 = sadd.s32 %s273, 1
      %s275 = scalar_select %p272, %s273, %s274
      %p278 = pneg %p272
      %p279 = scmp.eq.s32.totalorder %s27, 7
      %p280 = por %p278, %p279
      %p281 = scmp.ne.s32.totalorder %s273, %s276
      %p282 = scmp.eq.s32.totalorder %s27, 0
      %p283 = por %p281, %p282
      %p284 = scmp.ne.s32.totalorder %s273, %s276
      %p285 = scmp.eq.s32.totalorder %s32, 7
      %p286 = por %p284, %p285
      %p287 = scmp.ne.s32.totalorder %s276, %s277
      %p288 = scmp.eq.s32.totalorder %s32, 0
      %p289 = por %p287, %p288
      %p290 = scmp.ne.s32.totalorder %s276, %s277
      %p291 = scmp.eq.s32.totalorder %s33, 7
      %p292 = por %p290, %p291
      %p294 = scmp.ne.s32.totalorder %s277, %s293
      %p295 = scmp.eq.s32.totalorder %s33, 0
      %p296 = por %p294, %p295
      %s297 = ssub.s32 %s35, %s42
      %p298 = scmp.eq.s32.totalorder %s297, 0
      %s300 = sadd.s32 %s299, 1
      %s301 = scalar_select %p298, %s299, %s300
      %p304 = pneg %p298
      %p305 = scmp.eq.s32.totalorder %s27, 7
      %p306 = por %p304, %p305
      %p307 = scmp.ne.s32.totalorder %s299, %s302
      %p308 = scmp.eq.s32.totalorder %s27, 0
      %p309 = por %p307, %p308
      %p310 = scmp.ne.s32.totalorder %s299, %s302
      %p311 = scmp.eq.s32.totalorder %s32, 7
      %p312 = por %p310, %p311
      %p313 = scmp.ne.s32.totalorder %s302, %s303
      %p314 = scmp.eq.s32.totalorder %s32, 0
      %p315 = por %p313, %p314
      %p316 = scmp.ne.s32.totalorder %s302, %s303
      %p317 = scmp.eq.s32.totalorder %s33, 7
      %p318 = por %p316, %p317
      %p320 = scmp.ne.s32.totalorder %s303, %s319
      %p321 = scmp.eq.s32.totalorder %s33, 0
      %p322 = por %p320, %p321
      %s323 = ssub.s32 %s34, %s46
      %p324 = scmp.eq.s32.totalorder %s323, 0
      %s326 = sadd.s32 %s325, 1
      %s327 = scalar_select %p324, %s325, %s326
      %p330 = pneg %p324
      %p331 = scmp.eq.s32.totalorder %s27, 7
      %p332 = por %p330, %p331
      %p333 = scmp.ne.s32.totalorder %s325, %s328
      %p334 = scmp.eq.s32.totalorder %s27, 0
      %p335 = por %p333, %p334
      %p336 = scmp.ne.s32.totalorder %s325, %s328
      %p337 = scmp.eq.s32.totalorder %s32, 7
      %p338 = por %p336, %p337
      %p339 = scmp.ne.s32.totalorder %s328, %s329
      %p340 = scmp.eq.s32.totalorder %s32, 0
      %p341 = por %p339, %p340
      %p342 = scmp.ne.s32.totalorder %s328, %s329
      %p343 = scmp.eq.s32.totalorder %s33, 7
      %p344 = por %p342, %p343
      %p346 = scmp.ne.s32.totalorder %s329, %s345
      %p347 = scmp.eq.s32.totalorder %s33, 0
      %p348 = por %p346, %p347
      %p349 = scmp.le.s32.totalorder 1, %s27
      %p350 = scmp.lt.s32.totalorder %s27, 9
      %p351 = pnand %p349, %p350
      %p352 = pneg %p351
      // Predicated region
      $region9: #{net_forward.4} parent=5 // pred_check
        _
      $region10: #{net_forward.4} parent=5 // pred_check_branch
        %354 = sbr.rel (%p351) target = $region12
      $region11: #{net_forward.4} parent=5 // pred_region
        %s355 = ssub.s32 %s27, 1
        // Predicated region
        $region13: #{net_forward.4} parent=11 // pred_check
          %p356 = pneg %p138
        $region14: #{net_forward.4} parent=11 // pred_check_branch
          %358 = sbr.rel (%p356) target = $region16
        $region15: #{net_forward.4} parent=11 // pred_region
          _
        $region16: #{net_forward.4} parent=11 // pred_fallthru
          _
        // Predicated region
        $region17: #{net_forward.4} parent=11 // pred_check
          %p359 = pneg %p159
        $region18: #{net_forward.4} parent=11 // pred_check_branch
          %361 = sbr.rel (%p359) target = $region20
        $region19: #{net_forward.4} parent=11 // pred_region
          %363 = vsyncadd [#allocation4], 0
          %s365 = sshll.u32 %s4, 4
          %s366 = int_to_ptr.hbm [resolvable:$true] %s365
          %s367 = sshll.u32 [#allocation3], 4
          %s368 = int_to_ptr.vmem [resolvable:$true] %s367
          %370 = dma.hbm_to_vmem [thread:$0]  %s366, 16, %s368, [#allocation4]
        $region20: #{net_forward.4} parent=11 // pred_fallthru
          _
      $region12: #{net_forward.4} parent=5 // pred_fallthru
        _
      %p371 = scmp.lt.s32.totalorder %s27, 8
      // Predicated region
      $region21: #{net_forward.4} parent=5 // pred_check
        %p372 = pneg %p371
      $region22: #{net_forward.4} parent=5 // pred_check_branch
        %374 = sbr.rel (%p372) target = $region24
      $region23: #{net_forward.4} parent=5 // pred_region
        // Predicated region
        $region25: #{net_forward.4} parent=23 // pred_check
          %p375 = pneg %p59
        $region26: #{net_forward.4} parent=23 // pred_check_branch
          %377 = sbr.rel (%p375) target = $region28
        $region27: #{net_forward.4} parent=23 // pred_region
          %p378 = scmp.lt.s32.totalorder %s34, 1
          %s379 = scalar_select %p378, %s34, 1
          %s380 = smul.addr %s379, 8
          %s381 = scalar_lea.vmem %s0, %s380
        $region28: #{net_forward.4} parent=23 // pred_fallthru
          _
        // Predicated region
        $region29: #{net_forward.4} parent=23 // pred_check
          %p382 = pneg %p85
        $region30: #{net_forward.4} parent=23 // pred_check_branch
          %384 = sbr.rel (%p382) target = $region32
        $region31: #{net_forward.4} parent=23 // pred_region
          %p385 = scmp.lt.s32.totalorder %s34, 1
          %s386 = scalar_select %p385, %s34, 1
          %s387 = smul.addr %s386, 8
          %s388 = scalar_lea.vmem %s1, %s387
        $region32: #{net_forward.4} parent=23 // pred_fallthru
          _
        // Predicated region
        $region33: #{net_forward.4} parent=23 // pred_check
          %p389 = pneg %p111
        $region34: #{net_forward.4} parent=23 // pred_check_branch
          %391 = sbr.rel (%p389) target = $region36
        $region35: #{net_forward.4} parent=23 // pred_region
          %p392 = scmp.lt.s32.totalorder %s34, 1
          %s393 = scalar_select %p392, %s34, 1
          %s394 = scalar_lea.vmem %s2, %s393
        $region36: #{net_forward.4} parent=23 // pred_fallthru
          _
        // Predicated region
        $region37: #{net_forward.4} parent=23 // pred_check
          %p395 = pneg %p179
        $region38: #{net_forward.4} parent=23 // pred_check_branch
          %397 = sbr.rel (%p395) target = $region40
        $region39: #{net_forward.4} parent=23 // pred_region
          %s398 = sand.u32 %s27, 1
          %s399 = scalar_lea.sflag [#allocation6], %s398
          %s400 = sand.u32 %s169, 1
          %s401 = smul.addr %s400, 192
          %s402 = scalar_lea.vmem [#allocation5], %s401
          %404 = vsyncadd %s399, 0
          %s405 = smul.addr %s35, 48
          %s406 = smul.addr %s405, 4
          %s407 = scalar_lea.hbm %s5, %s406
          %s408 = sshll.u32 %s407, 4
          %s409 = int_to_ptr.hbm [resolvable:$true] %s408
          %s410 = sshll.u32 %s402, 4
          %s411 = int_to_ptr.vmem [resolvable:$true] %s410
          %416 = dma.hbm_to_vmem [thread:$0]  %s409, 3072, %s411, %s399, 64, 64, 4
        $region40: #{net_forward.4} parent=23 // pred_fallthru
          _
        // Predicated region
        $region41: #{net_forward.4} parent=23 // pred_check
          %p417 = pneg %p205
        $region42: #{net_forward.4} parent=23 // pred_check_branch
          %419 = sbr.rel (%p417) target = $region44
        $region43: #{net_forward.4} parent=23 // pred_region
          %s420 = sand.u32 %s27, 1
          %s421 = scalar_lea.sflag [#allocation6], %s420
          %s422 = sand.u32 %s195, 1
          %s423 = scalar_lea.vmem [#allocation7], %s422
          %425 = vsyncadd %s421, 0
          %s426 = scalar_lea.hbm %s6, %s35
          %s428 = sshll.u32 %s426, 4
          %s429 = int_to_ptr.hbm [resolvable:$true] %s428
          %s430 = sshll.u32 %s423, 4
          %s431 = int_to_ptr.vmem [resolvable:$true] %s430
          %433 = dma.hbm_to_vmem [thread:$0]  %s429, 16, %s431, %s421
        $region44: #{net_forward.4} parent=23 // pred_fallthru
          _
        // Predicated region
        $region45: #{net_forward.4} parent=23 // pred_check
          %p434 = pneg %p231
        $region46: #{net_forward.4} parent=23 // pred_check_branch
          %436 = sbr.rel (%p434) target = $region48
        $region47: #{net_forward.4} parent=23 // pred_region
          %s437 = sand.u32 %s27, 1
          %s438 = scalar_lea.sflag [#allocation9], %s437
          %s439 = sand.u32 %s221, 1
          %s440 = smul.addr %s439, 192
          %s441 = scalar_lea.vmem [#allocation8], %s440
          %443 = vsyncadd %s438, 0
          %s444 = smul.addr %s35, 48
          %s445 = smul.addr %s444, 4
          %s446 = scalar_lea.hbm %s7, %s445
          %s447 = sshll.u32 %s446, 4
          %s448 = int_to_ptr.hbm [resolvable:$true] %s447
          %s449 = sshll.u32 %s441, 4
          %s450 = int_to_ptr.vmem [resolvable:$true] %s449
          %455 = dma.hbm_to_vmem [thread:$0]  %s448, 3072, %s450, %s438, 192, 192, 12
        $region48: #{net_forward.4} parent=23 // pred_fallthru
          _
        // Predicated region
        $region49: #{net_forward.4} parent=23 // pred_check
          %p456 = pneg %p257
        $region50: #{net_forward.4} parent=23 // pred_check_branch
          %458 = sbr.rel (%p456) target = $region52
        $region51: #{net_forward.4} parent=23 // pred_region
          %p459 = scmp.lt.s32.totalorder %s35, 3
          %s460 = scalar_select %p459, %s35, 3
          %s461 = smul.addr %s460, 3
          %s462 = scalar_lea.vmem %s8, %s461
        $region52: #{net_forward.4} parent=23 // pred_fallthru
          _
        // Predicated region
        $region53: #{net_forward.4} parent=23 // pred_check
          %p463 = pneg %p283
        $region54: #{net_forward.4} parent=23 // pred_check_branch
          %465 = sbr.rel (%p463) target = $region56
        $region55: #{net_forward.4} parent=23 // pred_region
          %s466 = sand.u32 %s27, 1
          %s467 = scalar_lea.sflag [#allocation9], %s466
          %s468 = sand.u32 %s273, 1
          %s469 = smul.addr %s468, 64
          %s470 = scalar_lea.vmem [#allocation10], %s469
          %472 = vsyncadd %s467, 0
          %s473 = smul.addr %s35, 16
          %s474 = smul.addr %s473, 4
          %s475 = scalar_lea.hbm %s9, %s474
          %s476 = sshll.u32 %s475, 4
          %s477 = int_to_ptr.hbm [resolvable:$true] %s476
          %s478 = sshll.u32 %s470, 4
          %s479 = int_to_ptr.vmem [resolvable:$true] %s478
          %484 = dma.hbm_to_vmem [thread:$0]  %s477, 1024, %s479, %s467, 64, 64, 4
        $region56: #{net_forward.4} parent=23 // pred_fallthru
          _
        // Predicated region
        $region57: #{net_forward.4} parent=23 // pred_check
          %p485 = pneg %p309
        $region58: #{net_forward.4} parent=23 // pred_check_branch
          %487 = sbr.rel (%p485) target = $region60
        $region59: #{net_forward.4} parent=23 // pred_region
          %s488 = sand.u32 %s299, 1
          %s489 = scalar_lea.sflag [#allocation12], %s488
          %s490 = sand.u32 %s299, 1
          %s491 = scalar_lea.vmem [#allocation11], %s490
          %493 = vsyncadd %s489, 0
          %s494 = scalar_lea.hbm %s10, %s35
          %s496 = sshll.u32 %s494, 4
          %s497 = int_to_ptr.hbm [resolvable:$true] %s496
          %s498 = sshll.u32 %s491, 4
          %s499 = int_to_ptr.vmem [resolvable:$true] %s498
          %501 = dma.hbm_to_vmem [thread:$0]  %s497, 16, %s499, %s489
        $region60: #{net_forward.4} parent=23 // pred_fallthru
          _
      $region24: #{net_forward.4} parent=5 // pred_fallthru
        _
      %p502 = scmp.le.s32.totalorder 1, %s27
      %p503 = scmp.lt.s32.totalorder %s27, 9
      %p504 = pnand %p502, %p503
      %p505 = pneg %p504
      // Predicated region
      $region61: #{net_forward.4} parent=5 // pred_check
        _
      $region62: #{net_forward.4} parent=5 // pred_check_branch
        %507 = sbr.rel (%p504) target = $region64
      $region63: #{net_forward.4} parent=5 // pred_region
        %s508 = ssub.s32 %s27, 1
        // Predicated region
        $region65: #{net_forward.4} parent=63 // pred_check
          %p509 = pneg %p159
        $region66: #{net_forward.4} parent=63 // pred_check_branch
          %511 = sbr.rel (%p509) target = $region68
        $region67: #{net_forward.4} parent=63 // pred_region
          %513 = dma.done [#allocation4], 16
        $region68: #{net_forward.4} parent=63 // pred_fallthru
          _
        %s514 = sand.u32 %s32, 1
        %s515 = scalar_lea.sflag [#allocation6], %s514
        %s516 = sand.u32 %s172, 1
        %s517 = smul.addr %s516, 192
        %s518 = scalar_lea.vmem [#allocation5], %s517
        // Predicated region
        $region69: #{net_forward.4} parent=63 // pred_check
          %p519 = pneg %p185
        $region70: #{net_forward.4} parent=63 // pred_check_branch
          %521 = sbr.rel (%p519) target = $region72
        $region71: #{net_forward.4} parent=63 // pred_region
          %523 = dma.done %s515, 3072
        $region72: #{net_forward.4} parent=63 // pred_fallthru
          _
        %s524 = sand.u32 %s32, 1
        %s525 = scalar_lea.sflag [#allocation6], %s524
        %s526 = sand.u32 %s198, 1
        %s527 = scalar_lea.vmem [#allocation7], %s526
        // Predicated region
        $region73: #{net_forward.4} parent=63 // pred_check
          %p528 = pneg %p211
        $region74: #{net_forward.4} parent=63 // pred_check_branch
          %530 = sbr.rel (%p528) target = $region76
        $region75: #{net_forward.4} parent=63 // pred_region
          %532 = dma.done %s525, 16
        $region76: #{net_forward.4} parent=63 // pred_fallthru
          _
        %s533 = sand.u32 %s32, 1
        %s534 = scalar_lea.sflag [#allocation9], %s533
        %s535 = sand.u32 %s224, 1
        %s536 = smul.addr %s535, 192
        %s537 = scalar_lea.vmem [#allocation8], %s536
        // Predicated region
        $region77: #{net_forward.4} parent=63 // pred_check
          %p538 = pneg %p237
        $region78: #{net_forward.4} parent=63 // pred_check_branch
          %540 = sbr.rel (%p538) target = $region80
        $region79: #{net_forward.4} parent=63 // pred_region
          %542 = dma.done %s534, 3072
        $region80: #{net_forward.4} parent=63 // pred_fallthru
          _
        %s543 = sand.u32 %s32, 1
        %s544 = scalar_lea.sflag [#allocation9], %s543
        %s545 = sand.u32 %s276, 1
        %s546 = smul.addr %s545, 64
        %s547 = scalar_lea.vmem [#allocation10], %s546
        // Predicated region
        $region81: #{net_forward.4} parent=63 // pred_check
          %p548 = pneg %p289
        $region82: #{net_forward.4} parent=63 // pred_check_branch
          %550 = sbr.rel (%p548) target = $region84
        $region83: #{net_forward.4} parent=63 // pred_region
          %552 = dma.done %s544, 1024
        $region84: #{net_forward.4} parent=63 // pred_fallthru
          _
        %s553 = sand.u32 %s302, 1
        %s554 = scalar_lea.sflag [#allocation12], %s553
        %s555 = sand.u32 %s302, 1
        %s556 = scalar_lea.vmem [#allocation11], %s555
        // Predicated region
        $region85: #{net_forward.4} parent=63 // pred_check
          %p557 = pneg %p315
        $region86: #{net_forward.4} parent=63 // pred_check_branch
          %559 = sbr.rel (%p557) target = $region88
        $region87: #{net_forward.4} parent=63 // pred_region
          %561 = dma.done %s554, 16
        $region88: #{net_forward.4} parent=63 // pred_fallthru
          _
        %p562 = scmp.lt.s32.totalorder %s36, 1
        %s563 = scalar_select %p562, %s36, 1
        %s564 = smul.addr %s563, 8
        %s565 = scalar_lea.vmem %s0, %s564
        %p566 = pneg %p65
        %p567 = pneg %p62
        %p568 = scmp.lt.s32.totalorder %s36, 1
        %s569 = scalar_select %p568, %s36, 1
        %s570 = smul.addr %s569, 8
        %s571 = scalar_lea.vmem %s1, %s570
        %p572 = pneg %p91
        %p573 = pneg %p88
        %p574 = scmp.lt.s32.totalorder %s36, 1
        %s575 = scalar_select %p574, %s36, 1
        %s576 = scalar_lea.vmem %s2, %s575
        %p577 = pneg %p117
        %p578 = pneg %p114
        %p579 = pneg %p138
        %p580 = pneg %p135
        %p581 = pneg %p159
        %p582 = pneg %p156
        %s583 = sand.u32 %s32, 1
        %s584 = scalar_lea.sflag [#allocation6], %s583
        %s585 = sand.u32 %s172, 1
        %s586 = smul.addr %s585, 192
        %s587 = scalar_lea.vmem [#allocation5], %s586
        %p588 = pneg %p185
        %p589 = pneg %p182
        %s590 = sand.u32 %s32, 1
        %s591 = scalar_lea.sflag [#allocation6], %s590
        %s592 = sand.u32 %s198, 1
        %s593 = scalar_lea.vmem [#allocation7], %s592
        %p594 = pneg %p211
        %p595 = pneg %p208
        %s596 = sand.u32 %s32, 1
        %s597 = scalar_lea.sflag [#allocation9], %s596
        %s598 = sand.u32 %s224, 1
        %s599 = smul.addr %s598, 192
        %s600 = scalar_lea.vmem [#allocation8], %s599
        %p601 = pneg %p237
        %p602 = pneg %p234
        %p603 = scmp.lt.s32.totalorder %s37, 3
        %s604 = scalar_select %p603, %s37, 3
        %s605 = smul.addr %s604, 3
        %s606 = scalar_lea.vmem %s8, %s605
        %p607 = pneg %p263
        %p608 = pneg %p260
        %s609 = sand.u32 %s32, 1
        %s610 = scalar_lea.sflag [#allocation9], %s609
        %s611 = sand.u32 %s276, 1
        %s612 = smul.addr %s611, 64
        %s613 = scalar_lea.vmem [#allocation10], %s612
        %p614 = pneg %p289
        %p615 = pneg %p286
        %s616 = sand.u32 %s302, 1
        %s617 = scalar_lea.sflag [#allocation12], %s616
        %s618 = sand.u32 %s302, 1
        %s619 = scalar_lea.vmem [#allocation11], %s618
        %p620 = pneg %p315
        %p621 = pneg %p312
        %p622 = pneg %p341
        %p623 = pneg %p338
        %p624 = scmp.lt.s32.totalorder %s36, 1
        %s625 = scalar_select %p624, %s36, 1
        %s626 = smul.addr %s625, 8
        %s627 = scalar_lea.vmem %s11, %s626
        %p628 = scmp.lt.s32.totalorder %s36, 1
        %s629 = scalar_select %p628, %s36, 1
        %s630 = smul.addr %s629, 8
        %s631 = scalar_lea.vmem %s0, %s630
        %p632 = scmp.lt.s32.totalorder %s36, 1
        %s633 = scalar_select %p632, %s36, 1
        %s634 = smul.addr %s633, 8
        %s635 = scalar_lea.vmem %s1, %s634
        %p636 = scmp.lt.s32.totalorder %s36, 1
        %s637 = scalar_select %p636, %s36, 1
        %s638 = scalar_lea.vmem %s2, %s637
        %p639 = scmp.lt.s32.totalorder %s37, 3
        %s640 = scalar_select %p639, %s37, 3
        %s641 = smul.addr %s640, 3
        %s642 = scalar_lea.vmem %s8, %s641
        %p643 = scmp.lt.s32.totalorder %s36, 1
        %s644 = scalar_select %p643, %s36, 1
        %s645 = smul.addr %s644, 8
        %s646 = scalar_lea.vmem %s11, %s645
        %p648 = scmp.eq.s32.totalorder %s37, 0
        // Predicated region
        $region89: #{net_forward.4} parent=63 // pred_check
          %p649 = pneg %p648
        $region90: #{net_forward.4} parent=63 // pred_check_branch
          %651 = sbr.rel (%p649) target = $region92
        $region91: #{net_forward.4} parent=63 // pred_region
          %v652 = vld [vmem:[%s631] sm:$0xff]
          %v653 = vpack.c.bf16 %v652, %v652
          %v654 = vld [vmem:[%s3] sm:$0xf]
          %v655 = vld [vmem:[%s3 + $0x4] sm:$0xf]
          %v656 = vld [vmem:[%s3 + $0x8] sm:$0x3]
          %v657 = vld [vmem:[#allocation3] sm:$0x1]
          %v659 = vperm.slane %v657, 0
          %v664 = vunpack.c.l.b16 %v654
          %v665 = vunpack.c.l.b16 %v655
          %v666 = vunpack.c.l.b16 %v656
          %v667 = vpack.c.b16 %v665, %v664
          %v668 = vpack.c.b16 %v666, %v666
          %vm670 = vcmask 162816
          %v672 = vsel %vm670, %v653, 0
          %vm674 = vcmask 1041408
          %v676 = vsel %vm674, %v668, 0
          %678 = vmatpush.bf16.msra.mxu0 0
          %679 = vmatpush.bf16.msra.mxu0 0
          %680 = vmatpush.bf16.msra.mxu0 0
          %681 = vmatpush.bf16.msra.mxu0 0
          %682 = vmatpush.bf16.msra.mxu0 0
          %683 = vmatpush.bf16.msra.mxu0 0
          %684 = vmatpush.bf16.msra.mxu0 %v676
          %685 = vmatpush.bf16.msra.mxu0 %v667
          %686 = vmatmul.bf16.gmra.mxu0 %v672
          %v687 = vpop.f32.mrf.mxu0
          %v688 = vadd.f32 %v659, %v687
          %v689 = vpop.f32.mrf.mxu0
          %690 = vdwg.mxu0
          %691 = vst [vmem:[#allocation2] sm:$0xff] %v688
        $region92: #{net_forward.4} parent=63 // pred_fallthru
          _
        %v692 = vld [vmem:[#allocation2] sm:$0xff]
        %v693 = vld [vmem:[%s527] sm:$0x1]
        %v694 = vpack.c.bf16 %v692, %v692
        %v695 = vlaneseq
        %v696 = vshrl.u32 %v695, 7
        %v697 = vlaneseq
        %v698 = vand.u32 %v697, 127
        %v699 = vadd.s32 %v696, 4294967295
        %vm700 = vcmp.eq.s32.totalorder %v698, %v699
        %v701 = vsel %vm700, 1.0, 0.0
        %v702 = vpack.c.bf16 %v701, %v701
        %vm703 = vcmask 64512
        %v705 = vsel %vm703, %v702, 0
        %vm707 = vcmask 1043456
        %v709 = vsel %vm707, %v694, 0
        %711 = vmatpush.bf16.msra.mxu0 0
        %712 = vmatpush.bf16.msra.mxu0 0
        %713 = vmatpush.bf16.msra.mxu0 0
        %714 = vmatpush.bf16.msra.mxu0 0
        %715 = vmatpush.bf16.msra.mxu0 0
        %716 = vmatpush.bf16.msra.mxu0 0
        %717 = vmatpush.bf16.msra.mxu0 0
        %718 = vmatpush.bf16.msra.mxu0 %v709
        %719 = vmatmul.bf16.gmra.mxu0 %v705
        %v720 = vpop.f32.mrf.mxu0
        %v721 = vadd.f32 0.0, %v720
        %v722 = vpop.f32.mrf.mxu0
        %723 = vdwg.mxu0
        %v724 = vpack.c.bf16 %v721, %v721
        %v725 = vld [vmem:[%s518] sm:$0xf]
        %v726 = vld [vmem:[%s518 + $0x4] sm:$0xf]
        %v727 = vld [vmem:[%s518 + $0x8] sm:$0xf]
        %v728 = vld [vmem:[%s518 + $0xc] sm:$0xf]
        %v729 = vld [vmem:[%s518 + $0x10] sm:$0xf]
        %v730 = vld [vmem:[%s518 + $0x14] sm:$0xf]
        %v731 = vld [vmem:[%s518 + $0x18] sm:$0xf]
        %v732 = vld [vmem:[%s518 + $0x1c] sm:$0xf]
        %v733 = vld [vmem:[%s518 + $0x20] sm:$0xf]
        %v734 = vld [vmem:[%s518 + $0x24] sm:$0xf]
        %v735 = vld [vmem:[%s518 + $0x28] sm:$0xf]
        %v736 = vld [vmem:[%s518 + $0x2c] sm:$0xf]
        %v737 = vld [vmem:[%s518 + $0x30] sm:$0xf]
        %v738 = vld [vmem:[%s518 + $0x34] sm:$0xf]
        %v739 = vld [vmem:[%s518 + $0x38] sm:$0xf]
        %v740 = vld [vmem:[%s518 + $0x3c] sm:$0xf]
        %s741 = scalar_lea.vmem %s518, 64 [#allocation5]
        %v742 = vld [vmem:[%s741] sm:$0xf]
        %v743 = vld [vmem:[%s741 + $0x4] sm:$0xf]
        %v744 = vld [vmem:[%s741 + $0x8] sm:$0xf]
        %v745 = vld [vmem:[%s741 + $0xc] sm:$0xf]
        %v746 = vld [vmem:[%s741 + $0x10] sm:$0xf]
        %v747 = vld [vmem:[%s741 + $0x14] sm:$0xf]
        %v748 = vld [vmem:[%s741 + $0x18] sm:$0xf]
        %v749 = vld [vmem:[%s741 + $0x1c] sm:$0xf]
        %v750 = vld [vmem:[%s741 + $0x20] sm:$0xf]
        %v751 = vld [vmem:[%s741 + $0x24] sm:$0xf]
        %v752 = vld [vmem:[%s741 + $0x28] sm:$0xf]
        %v753 = vld [vmem:[%s741 + $0x2c] sm:$0xf]
        %v754 = vld [vmem:[%s741 + $0x30] sm:$0xf]
        %v755 = vld [vmem:[%s741 + $0x34] sm:$0xf]
        %v756 = vld [vmem:[%s741 + $0x38] sm:$0xf]
        %v757 = vld [vmem:[%s741 + $0x3c] sm:$0xf]
        %v774 = vunpack.c.l.b16 %v742
        %v775 = vunpack.c.l.b16 %v743
        %v776 = vunpack.c.l.b16 %v744
        %v777 = vunpack.c.l.b16 %v745
        %v778 = vunpack.c.l.b16 %v746
        %v779 = vunpack.c.l.b16 %v747
        %v780 = vunpack.c.l.b16 %v748
        %v781 = vunpack.c.l.b16 %v749
        %v782 = vunpack.c.l.b16 %v750
        %v783 = vunpack.c.l.b16 %v751
        %v784 = vunpack.c.l.b16 %v752
        %v785 = vunpack.c.l.b16 %v753
        %v786 = vunpack.c.l.b16 %v754
        %v787 = vunpack.c.l.b16 %v755
        %v788 = vunpack.c.l.b16 %v756
        %v789 = vunpack.c.l.b16 %v757
        %v790 = vpack.c.b16 %v775, %v774
        %v791 = vpack.c.b16 %v777, %v776
        %v792 = vpack.c.b16 %v779, %v778
        %v793 = vpack.c.b16 %v781, %v780
        %v794 = vpack.c.b16 %v783, %v782
        %v795 = vpack.c.b16 %v785, %v784
        %v796 = vpack.c.b16 %v787, %v786
        %v797 = vpack.c.b16 %v789, %v788
        %806 = vmatpush.bf16.msra.mxu0 %v797
        %807 = vmatpush.bf16.msra.mxu0 %v796
        %808 = vmatpush.bf16.msra.mxu0 %v795
        %809 = vmatpush.bf16.msra.mxu0 %v794
        %810 = vmatpush.bf16.msra.mxu0 %v793
        %811 = vmatpush.bf16.msra.mxu0 %v792
        %812 = vmatpush.bf16.msra.mxu0 %v791
        %813 = vmatpush.bf16.msra.mxu0 %v790
        %814 = vmatmul.bf16.gmra.mxu0 %v694
        %v815 = vpop.f32.mrf.mxu0
        %v816 = vadd.f32 0.0, %v815
        %v817 = vpop.f32.mrf.mxu0
        %818 = vdwg.mxu0
        %v835 = vunpack.c.l.b16 %v725
        %v836 = vunpack.c.l.b16 %v726
        %v837 = vunpack.c.l.b16 %v727
        %v838 = vunpack.c.l.b16 %v728
        %v839 = vunpack.c.l.b16 %v729
        %v840 = vunpack.c.l.b16 %v730
        %v841 = vunpack.c.l.b16 %v731
        %v842 = vunpack.c.l.b16 %v732
        %v843 = vunpack.c.l.b16 %v733
        %v844 = vunpack.c.l.b16 %v734
        %v845 = vunpack.c.l.b16 %v735
        %v846 = vunpack.c.l.b16 %v736
        %v847 = vunpack.c.l.b16 %v737
        %v848 = vunpack.c.l.b16 %v738
        %v849 = vunpack.c.l.b16 %v739
        %v850 = vunpack.c.l.b16 %v740
        %v851 = vpack.c.b16 %v836, %v835
        %v852 = vpack.c.b16 %v838, %v837
        %v853 = vpack.c.b16 %v840, %v839
        %v854 = vpack.c.b16 %v842, %v841
        %v855 = vpack.c.b16 %v844, %v843
        %v856 = vpack.c.b16 %v846, %v845
        %v857 = vpack.c.b16 %v848, %v847
        %v858 = vpack.c.b16 %v850, %v849
        %867 = vmatpush.bf16.msra.mxu0 %v858
        %868 = vmatpush.bf16.msra.mxu0 %v857
        %869 = vmatpush.bf16.msra.mxu0 %v856
        %870 = vmatpush.bf16.msra.mxu0 %v855
        %871 = vmatpush.bf16.msra.mxu0 %v854
        %872 = vmatpush.bf16.msra.mxu0 %v853
        %873 = vmatpush.bf16.msra.mxu0 %v852
        %874 = vmatpush.bf16.msra.mxu0 %v851
        %875 = vmatmul.bf16.gmra.mxu0 %v724
        %v876 = vpop.f32.mrf.mxu0
        %v877 = vadd.f32 %v816, %v876
        %v878 = vpop.f32.mrf.mxu0
        %879 = vdwg.mxu0
        %v880 = vadd.s32 %v696, 1
        %vm881 = vcmp.eq.s32.totalorder %v698, %v880
        %v882 = vsel %vm881, 1.0, 0.0
        %v883 = vpack.c.bf16 %v882, %v882
        %v885 = vsel %vm703, %v883, 0
        %887 = vmatpush.bf16.msra.mxu0 0
        %888 = vmatpush.bf16.msra.mxu0 0
        %889 = vmatpush.bf16.msra.mxu0 0
        %890 = vmatpush.bf16.msra.mxu0 0
        %891 = vmatpush.bf16.msra.mxu0 0
        %892 = vmatpush.bf16.msra.mxu0 0
        %893 = vmatpush.bf16.msra.mxu0 0
        %894 = vmatpush.bf16.msra.mxu0 %v709
        %895 = vmatmul.bf16.gmra.mxu0 %v885
        %v896 = vpop.f32.mrf.mxu0
        %v897 = vadd.f32 0.0, %v896
        %v898 = vpop.f32.mrf.mxu0
        %899 = vdwg.mxu0
        %v900 = vpack.c.bf16 %v897, %v897
        %s901 = scalar_lea.vmem %s518, 128 [#allocation5]
        %v902 = vld [vmem:[%s901] sm:$0xf]
        %v903 = vld [vmem:[%s901 + $0x4] sm:$0xf]
        %v904 = vld [vmem:[%s901 + $0x8] sm:$0xf]
        %v905 = vld [vmem:[%s901 + $0xc] sm:$0xf]
        %v906 = vld [vmem:[%s901 + $0x10] sm:$0xf]
        %v907 = vld [vmem:[%s901 + $0x14] sm:$0xf]
        %v908 = vld [vmem:[%s901 + $0x18] sm:$0xf]
        %v909 = vld [vmem:[%s901 + $0x1c] sm:$0xf]
        %v910 = vld [vmem:[%s901 + $0x20] sm:$0xf]
        %v911 = vld [vmem:[%s901 + $0x24] sm:$0xf]
        %v912 = vld [vmem:[%s901 + $0x28] sm:$0xf]
        %v913 = vld [vmem:[%s901 + $0x2c] sm:$0xf]
        %v914 = vld [vmem:[%s901 + $0x30] sm:$0xf]
        %v915 = vld [vmem:[%s901 + $0x34] sm:$0xf]
        %v916 = vld [vmem:[%s901 + $0x38] sm:$0xf]
        %v917 = vld [vmem:[%s901 + $0x3c] sm:$0xf]
        %v934 = vunpack.c.l.b16 %v902
        %v935 = vunpack.c.l.b16 %v903
        %v936 = vunpack.c.l.b16 %v904
        %v937 = vunpack.c.l.b16 %v905
        %v938 = vunpack.c.l.b16 %v906
        %v939 = vunpack.c.l.b16 %v907
        %v940 = vunpack.c.l.b16 %v908
        %v941 = vunpack.c.l.b16 %v909
        %v942 = vunpack.c.l.b16 %v910
        %v943 = vunpack.c.l.b16 %v911
        %v944 = vunpack.c.l.b16 %v912
        %v945 = vunpack.c.l.b16 %v913
        %v946 = vunpack.c.l.b16 %v914
        %v947 = vunpack.c.l.b16 %v915
        %v948 = vunpack.c.l.b16 %v916
        %v949 = vunpack.c.l.b16 %v917
        %v950 = vpack.c.b16 %v935, %v934
        %v951 = vpack.c.b16 %v937, %v936
        %v952 = vpack.c.b16 %v939, %v938
        %v953 = vpack.c.b16 %v941, %v940
        %v954 = vpack.c.b16 %v943, %v942
        %v955 = vpack.c.b16 %v945, %v944
        %v956 = vpack.c.b16 %v947, %v946
        %v957 = vpack.c.b16 %v949, %v948
        %966 = vmatpush.bf16.msra.mxu0 %v957
        %967 = vmatpush.bf16.msra.mxu0 %v956
        %968 = vmatpush.bf16.msra.mxu0 %v955
        %969 = vmatpush.bf16.msra.mxu0 %v954
        %970 = vmatpush.bf16.msra.mxu0 %v953
        %971 = vmatpush.bf16.msra.mxu0 %v952
        %972 = vmatpush.bf16.msra.mxu0 %v951
        %973 = vmatpush.bf16.msra.mxu0 %v950
        %974 = vmatmul.bf16.gmra.mxu0 %v900
        %v975 = vpop.f32.mrf.mxu0
        %v976 = vadd.f32 0.0, %v975
        %v977 = vpop.f32.mrf.mxu0
        %978 = vdwg.mxu0
        %v979 = vadd.f32 %v877, %v976
        %v981 = vperm.slane %v693, 0
        %v983 = vadd.f32 %v979, %v981
        %v984 = vmax.f32 %v983, 0.0
        %v985 = vadd.f32 %v692, %v984
        %v986 = vpack.c.bf16 %v985, %v985
        %v987 = vld [vmem:[%s537] sm:$0xff]
        %v988 = vld [vmem:[%s537 + $0x8] sm:$0xf]
        %v989 = vld [vmem:[%s537 + $0xc] sm:$0xff]
        %v990 = vld [vmem:[%s537 + $0x14] sm:$0xf]
        %v991 = vld [vmem:[%s537 + $0x18] sm:$0xff]
        %v992 = vld [vmem:[%s537 + $0x20] sm:$0xf]
        %v993 = vld [vmem:[%s537 + $0x24] sm:$0xff]
        %v994 = vld [vmem:[%s537 + $0x2c] sm:$0xf]
        %v995 = vld [vmem:[%s537 + $0x30] sm:$0xff]
        %v996 = vld [vmem:[%s537 + $0x38] sm:$0xf]
        %v997 = vld [vmem:[%s537 + $0x3c] sm:$0xff]
        %v998 = vld [vmem:[%s537 + $0x44] sm:$0xf]
        %v999 = vld [vmem:[%s537 + $0x48] sm:$0xff]
        %v1000 = vld [vmem:[%s537 + $0x50] sm:$0xf]
        %v1001 = vld [vmem:[%s537 + $0x54] sm:$0xff]
        %v1002 = vld [vmem:[%s537 + $0x5c] sm:$0xf]
        %v1003 = vld [vmem:[%s537 + $0x60] sm:$0xff]
        %v1004 = vld [vmem:[%s537 + $0x68] sm:$0xf]
        %v1005 = vld [vmem:[%s537 + $0x6c] sm:$0xff]
        %v1006 = vld [vmem:[%s537 + $0x74] sm:$0xf]
        %v1007 = vld [vmem:[%s537 + $0x78] sm:$0xff]
        %v1008 = vld [vmem:[%s537 + $0x80] sm:$0xf]
        %v1009 = vld [vmem:[%s537 + $0x84] sm:$0xff]
        %v1010 = vld [vmem:[%s537 + $0x8c] sm:$0xf]
        %v1011 = vld [vmem:[%s537 + $0x90] sm:$0xff]
        %v1012 = vld [vmem:[%s537 + $0x98] sm:$0xf]
        %v1013 = vld [vmem:[%s537 + $0x9c] sm:$0xff]
        %v1014 = vld [vmem:[%s537 + $0xa4] sm:$0xf]
        %v1015 = vld [vmem:[%s537 + $0xa8] sm:$0xff]
        %v1016 = vld [vmem:[%s537 + $0xb0] sm:$0xf]
        %v1017 = vld [vmem:[%s537 + $0xb4] sm:$0xff]
        %v1018 = vld [vmem:[%s537 + $0xbc] sm:$0xf]
        %v1019 = vld [vmem:[%s642] sm:$0x7]
        %v1021 = vperm.slane %v1019, 0
        %v1022 = vperm.slane %v1019, 1
        %v1023 = vperm.slane %v1019, 2
        %v1059 = vunpack.c.l.b16 %v987
        %v1060 = vunpack.c.h.b16 %v987
        %v1061 = vunpack.c.l.b16 %v988
        %v1062 = vunpack.c.l.b16 %v989
        %v1063 = vunpack.c.h.b16 %v989
        %v1064 = vunpack.c.l.b16 %v990
        %v1065 = vunpack.c.l.b16 %v991
        %v1066 = vunpack.c.h.b16 %v991
        %v1067 = vunpack.c.l.b16 %v992
        %v1068 = vunpack.c.l.b16 %v993
        %v1069 = vunpack.c.h.b16 %v993
        %v1070 = vunpack.c.l.b16 %v994
        %v1071 = vunpack.c.l.b16 %v995
        %v1072 = vunpack.c.h.b16 %v995
        %v1073 = vunpack.c.l.b16 %v996
        %v1074 = vunpack.c.l.b16 %v997
        %v1075 = vunpack.c.h.b16 %v997
        %v1076 = vunpack.c.l.b16 %v998
        %v1077 = vunpack.c.l.b16 %v999
        %v1078 = vunpack.c.h.b16 %v999
        %v1079 = vunpack.c.l.b16 %v1000
        %v1080 = vunpack.c.l.b16 %v1001
        %v1081 = vunpack.c.h.b16 %v1001
        %v1082 = vunpack.c.l.b16 %v1002
        %v1083 = vunpack.c.l.b16 %v1003
        %v1084 = vunpack.c.h.b16 %v1003
        %v1085 = vunpack.c.l.b16 %v1004
        %v1086 = vunpack.c.l.b16 %v1005
        %v1087 = vunpack.c.h.b16 %v1005
        %v1088 = vunpack.c.l.b16 %v1006
        %v1089 = vunpack.c.l.b16 %v1007
        %v1090 = vunpack.c.h.b16 %v1007
        %v1091 = vunpack.c.l.b16 %v1008
        %v1092 = vunpack.c.l.b16 %v1009
        %v1093 = vunpack.c.h.b16 %v1009
        %v1094 = vunpack.c.l.b16 %v1010
        %v1095 = vunpack.c.l.b16 %v1011
        %v1096 = vunpack.c.h.b16 %v1011
        %v1097 = vunpack.c.l.b16 %v1012
        %v1098 = vunpack.c.l.b16 %v1013
        %v1099 = vunpack.c.h.b16 %v1013
        %v1100 = vunpack.c.l.b16 %v1014
        %v1101 = vunpack.c.l.b16 %v1015
        %v1102 = vunpack.c.h.b16 %v1015
        %v1103 = vunpack.c.l.b16 %v1016
        %v1104 = vunpack.c.l.b16 %v1017
        %v1105 = vunpack.c.h.b16 %v1017
        %v1106 = vunpack.c.l.b16 %v1018
        %v1107 = vpack.c.b16 %v1062, %v1059
        %v1108 = vpack.c.b16 %v1063, %v1060
        %v1109 = vpack.c.b16 %v1064, %v1061
        %v1110 = vpack.c.b16 %v1068, %v1065
        %v1111 = vpack.c.b16 %v1069, %v1066
        %v1112 = vpack.c.b16 %v1070, %v1067
        %v1113 = vpack.c.b16 %v1074, %v1071
        %v1114 = vpack.c.b16 %v1075, %v1072
        %v1115 = vpack.c.b16 %v1076, %v1073
        %v1116 = vpack.c.b16 %v1080, %v1077
        %v1117 = vpack.c.b16 %v1081, %v1078
        %v1118 = vpack.c.b16 %v1082, %v1079
        %v1119 = vpack.c.b16 %v1086, %v1083
        %v1120 = vpack.c.b16 %v1087, %v1084
        %v1121 = vpack.c.b16 %v1088, %v1085
        %v1122 = vpack.c.b16 %v1092, %v1089
        %v1123 = vpack.c.b16 %v1093, %v1090
        %v1124 = vpack.c.b16 %v1094, %v1091
        %v1125 = vpack.c.b16 %v1098, %v1095
        %v1126 = vpack.c.b16 %v1099, %v1096
        %v1127 = vpack.c.b16 %v1100, %v1097
        %v1128 = vpack.c.b16 %v1104, %v1101
        %v1129 = vpack.c.b16 %v1105, %v1102
        %v1130 = vpack.c.b16 %v1106, %v1103
        %1155 = vmatpush.bf16.msra.mxu0 %v1128
        %1156 = vmatpush.bf16.msra.mxu0 %v1125
        %1157 = vmatpush.bf16.msra.mxu0 %v1122
        %1158 = vmatpush.bf16.msra.mxu0 %v1119
        %1159 = vmatpush.bf16.msra.mxu0 %v1116
        %1160 = vmatpush.bf16.msra.mxu0 %v1113
        %1161 = vmatpush.bf16.msra.mxu0 %v1110
        %1162 = vmatpush.bf16.msra.mxu0 %v1107
        %1163 = vmatmul.bf16.gmra.mxu0 %v986
        %v1164 = vpop.f32.mrf.mxu0
        %v1165 = vadd.f32 %v1021, %v1164
        %v1166 = vpop.f32.mrf.mxu0
        %1167 = vdwg.mxu0
        %1168 = vmatpush.bf16.msra.mxu0 %v1129
        %1169 = vmatpush.bf16.msra.mxu0 %v1126
        %1170 = vmatpush.bf16.msra.mxu0 %v1123
        %1171 = vmatpush.bf16.msra.mxu0 %v1120
        %1172 = vmatpush.bf16.msra.mxu0 %v1117
        %1173 = vmatpush.bf16.msra.mxu0 %v1114
        %1174 = vmatpush.bf16.msra.mxu0 %v1111
        %1175 = vmatpush.bf16.msra.mxu0 %v1108
        %1176 = vmatmul.bf16.gmra.mxu0 %v986
        %v1177 = vpop.f32.mrf.mxu0
        %v1178 = vadd.f32 %v1022, %v1177
        %v1179 = vpop.f32.mrf.mxu0
        %1180 = vdwg.mxu0
        %1181 = vmatpush.bf16.msra.mxu0 %v1130
        %1182 = vmatpush.bf16.msra.mxu0 %v1127
        %1183 = vmatpush.bf16.msra.mxu0 %v1124
        %1184 = vmatpush.bf16.msra.mxu0 %v1121
        %1185 = vmatpush.bf16.msra.mxu0 %v1118
        %1186 = vmatpush.bf16.msra.mxu0 %v1115
        %1187 = vmatpush.bf16.msra.mxu0 %v1112
        %1188 = vmatpush.bf16.msra.mxu0 %v1109
        %1189 = vmatmul.bf16.gmra.mxu0 %v986
        %v1190 = vpop.f32.mrf.mxu0
        %v1191 = vadd.f32 %v1023, %v1190
        %v1192 = vpop.f32.mrf.mxu0
        %1193 = vdwg.mxu0
        %v1194 = vld [vmem:[%s638] sm:$0x1]
        %v1195 = vld [vmem:[%s547] sm:$0xf]
        %v1196 = vld [vmem:[%s547 + $0x4] sm:$0xf]
        %v1197 = vld [vmem:[%s547 + $0x8] sm:$0xf]
        %v1198 = vld [vmem:[%s547 + $0xc] sm:$0xf]
        %v1199 = vld [vmem:[%s547 + $0x10] sm:$0xf]
        %v1200 = vld [vmem:[%s547 + $0x14] sm:$0xf]
        %v1201 = vld [vmem:[%s547 + $0x18] sm:$0xf]
        %v1202 = vld [vmem:[%s547 + $0x1c] sm:$0xf]
        %v1203 = vld [vmem:[%s547 + $0x20] sm:$0xf]
        %v1204 = vld [vmem:[%s547 + $0x24] sm:$0xf]
        %v1205 = vld [vmem:[%s547 + $0x28] sm:$0xf]
        %v1206 = vld [vmem:[%s547 + $0x2c] sm:$0xf]
        %v1207 = vld [vmem:[%s547 + $0x30] sm:$0xf]
        %v1208 = vld [vmem:[%s547 + $0x34] sm:$0xf]
        %v1209 = vld [vmem:[%s547 + $0x38] sm:$0xf]
        %v1210 = vld [vmem:[%s547 + $0x3c] sm:$0xf]
        %v1211 = vpack.c.bf16 %v1165, %v1165
        %v1212 = vpack.c.bf16 %v1178, %v1178
        %v1213 = vpack.c.bf16 %v1191, %v1191
        %vm1214 = vcmask 130048
        %v1216 = vsel %vm1214, %v1211, 0
        %v1219 = vsel %vm1214, %v1212, 0
        %1221 = vmatpush.bf16.xpose.msra.mxu0 0
        %1222 = vmatpush.bf16.xpose.msra.mxu0 0
        %1223 = vmatpush.bf16.xpose.msra.mxu0 0
        %1224 = vmatpush.bf16.xpose.msra.mxu0 0
        %1225 = vmatpush.bf16.xpose.msra.mxu0 0
        %1226 = vmatpush.bf16.xpose.msra.mxu0 0
        %1227 = vmatpush.bf16.xpose.msra.mxu0 0
        %1228 = vmatpush.bf16.xpose.msra.mxu0 %v1219
        %1229 = vmatmul.bf16.gmra.mxu0 %v1216
        %v1230 = vpop.f32.mrf.mxu0
        %v1231 = vadd.f32 0.0, %v1230
        %v1232 = vpop.f32.mrf.mxu0
        %1233 = vdwg.mxu0
        %v1234 = vmul.f32 %v1231, 0.25
        %v1236 = vperm.slane %v1194, 0
        %v1238 = vadd.f32 %v1234, %v1236
        %v1239 = vsel %vm703, %v1238, -inf
        %1240 = vmax.xlane.f32.xlu0 %v1239
        %v1241 = vpop.xlane.xlu0 %1240
        %v1242 = vsub.f32 %v1238, %v1241
        %v1243 = vmul.f32 %v1242, 1.442695
        %v1244 = vpow.pop %v1243
        %v1245 = vsel %vm703, %v1244, 0.0
        %1246 = vadd.xlane.f32.xlu0 %v1245
        %v1247 = vpop.xlane.xlu0 %1246
        %v1248 = vrcp.pop %v1247
        %v1249 = vmul.f32 %v1244, %v1248
        %v1250 = vpack.c.bf16 %v1249, %v1249
        %v1252 = vsel %vm703, %v1250, 0
        %v1255 = vsel %vm707, %v1213, 0
        %1257 = vmatpush.bf16.msra.mxu0 0
        %1258 = vmatpush.bf16.msra.mxu0 0
        %1259 = vmatpush.bf16.msra.mxu0 0
        %1260 = vmatpush.bf16.msra.mxu0 0
        %1261 = vmatpush.bf16.msra.mxu0 0
        %1262 = vmatpush.bf16.msra.mxu0 0
        %1263 = vmatpush.bf16.msra.mxu0 0
        %1264 = vmatpush.bf16.msra.mxu0 %v1255
        %1265 = vmatmul.bf16.gmra.mxu0 %v1252
        %v1266 = vpop.f32.mrf.mxu0
        %v1267 = vadd.f32 0.0, %v1266
        %v1268 = vpop.f32.mrf.mxu0
        %1269 = vdwg.mxu0
        %v1270 = vpack.c.bf16 %v1267, %v1267
        %1272 = vrot.lane.b32.xlu0 %v1211, 112
        %v1273 = vpop.permute.xlu0 %1272
        %1275 = vrot.lane.b32.xlu0 %v1212, 112
        %v1276 = vpop.permute.xlu0 %1275
        %v1278 = vsel %vm1214, %v1273, 0
        %v1281 = vsel %vm1214, %v1276, 0
        %1283 = vmatpush.bf16.xpose.msra.mxu0 0
        %1284 = vmatpush.bf16.xpose.msra.mxu0 0
        %1285 = vmatpush.bf16.xpose.msra.mxu0 0
        %1286 = vmatpush.bf16.xpose.msra.mxu0 0
        %1287 = vmatpush.bf16.xpose.msra.mxu0 0
        %1288 = vmatpush.bf16.xpose.msra.mxu0 0
        %1289 = vmatpush.bf16.xpose.msra.mxu0 0
        %1290 = vmatpush.bf16.xpose.msra.mxu0 %v1281
        %1291 = vmatmul.bf16.gmra.mxu0 %v1278
        %v1292 = vpop.f32.mrf.mxu0
        %v1293 = vadd.f32 0.0, %v1292
        %v1294 = vpop.f32.mrf.mxu0
        %1295 = vdwg.mxu0
        %v1296 = vmul.f32 %v1293, 0.25
        %v1297 = vadd.f32 %v1296, %v1236
        %v1298 = vsel %vm703, %v1297, -inf
        %1299 = vmax.xlane.f32.xlu0 %v1298
        %v1300 = vpop.xlane.xlu0 %1299
        %v1301 = vsub.f32 %v1297, %v1300
        %v1302 = vmul.f32 %v1301, 1.442695
        %v1303 = vpow.pop %v1302
        %v1304 = vsel %vm703, %v1303, 0.0
        %1305 = vadd.xlane.f32.xlu0 %v1304
        %v1306 = vpop.xlane.xlu0 %1305
        %v1307 = vrcp.pop %v1306
        %v1308 = vmul.f32 %v1303, %v1307
        %v1309 = vpack.c.bf16 %v1308, %v1308
        %1311 = vrot.lane.b32.xlu0 %v1213, 112
        %v1312 = vpop.permute.xlu0 %1311
        %v1314 = vsel %vm703, %v1309, 0
        %v1317 = vsel %vm707, %v1312, 0
        %1319 = vmatpush.bf16.msra.mxu0 0
        %1320 = vmatpush.bf16.msra.mxu0 0
        %1321 = vmatpush.bf16.msra.mxu0 0
        %1322 = vmatpush.bf16.msra.mxu0 0
        %1323 = vmatpush.bf16.msra.mxu0 0
        %1324 = vmatpush.bf16.msra.mxu0 0
        %1325 = vmatpush.bf16.msra.mxu0 0
        %1326 = vmatpush.bf16.msra.mxu0 %v1317
        %1327 = vmatmul.bf16.gmra.mxu0 %v1314
        %v1328 = vpop.f32.mrf.mxu0
        %v1329 = vadd.f32 0.0, %v1328
        %v1330 = vpop.f32.mrf.mxu0
        %1331 = vdwg.mxu0
        %v1332 = vpack.c.bf16 %v1329, %v1329
        %v1335 = vunpack.c.l.b16 %v1197
        %v1336 = vunpack.c.l.b16 %v1198
        %v1337 = vpack.c.b16 %v1336, %v1335
        %v1340 = vsel %vm1214, %v1332, 0
        %1342 = vmatpush.bf16.msra.mxu0 0
        %1343 = vmatpush.bf16.msra.mxu0 0
        %1344 = vmatpush.bf16.msra.mxu0 0
        %1345 = vmatpush.bf16.msra.mxu0 0
        %1346 = vmatpush.bf16.msra.mxu0 0
        %1347 = vmatpush.bf16.msra.mxu0 0
        %1348 = vmatpush.bf16.msra.mxu0 0
        %1349 = vmatpush.bf16.msra.mxu0 %v1337
        %1350 = vmatmul.bf16.gmra.mxu0 %v1340
        %v1351 = vpop.f32.mrf.mxu0
        %v1352 = vadd.f32 0.0, %v1351
        %v1353 = vpop.f32.mrf.mxu0
        %1354 = vdwg.mxu0
        %v1357 = vunpack.c.l.b16 %v1195
        %v1358 = vunpack.c.l.b16 %v1196
        %v1359 = vpack.c.b16 %v1358, %v1357
        %v1362 = vsel %vm1214, %v1270, 0
        %1364 = vmatpush.bf16.msra.mxu0 0
        %1365 = vmatpush.bf16.msra.mxu0 0
        %1366 = vmatpush.bf16.msra.mxu0 0
        %1367 = vmatpush.bf16.msra.mxu0 0
        %1368 = vmatpush.bf16.msra.mxu0 0
        %1369 = vmatpush.bf16.msra.mxu0 0
        %1370 = vmatpush.bf16.msra.mxu0 0
        %1371 = vmatpush.bf16.msra.mxu0 %v1359
        %1372 = vmatmul.bf16.gmra.mxu0 %v1362
        %v1373 = vpop.f32.mrf.mxu0
        %v1374 = vadd.f32 %v1352, %v1373
        %v1375 = vpop.f32.mrf.mxu0
        %1376 = vdwg.mxu0
        %1377 = vrot.lane.b32.xlu0 %v1211, 96
        %v1378 = vpop.permute.xlu0 %1377
        %1379 = vrot.lane.b32.xlu0 %v1212, 96
        %v1380 = vpop.permute.xlu0 %1379
        %v1382 = vsel %vm1214, %v1378, 0
        %v1385 = vsel %vm1214, %v1380, 0
        %1387 = vmatpush.bf16.xpose.msra.mxu0 0
        %1388 = vmatpush.bf16.xpose.msra.mxu0 0
        %1389 = vmatpush.bf16.xpose.msra.mxu0 0
        %1390 = vmatpush.bf16.xpose.msra.mxu0 0
        %1391 = vmatpush.bf16.xpose.msra.mxu0 0
        %1392 = vmatpush.bf16.xpose.msra.mxu0 0
        %1393 = vmatpush.bf16.xpose.msra.mxu0 0
        %1394 = vmatpush.bf16.xpose.msra.mxu0 %v1385
        %1395 = vmatmul.bf16.gmra.mxu0 %v1382
        %v1396 = vpop.f32.mrf.mxu0
        %v1397 = vadd.f32 0.0, %v1396
        %v1398 = vpop.f32.mrf.mxu0
        %1399 = vdwg.mxu0
        %v1400 = vmul.f32 %v1397, 0.25
        %v1401 = vadd.f32 %v1400, %v1236
        %v1402 = vsel %vm703, %v1401, -inf
        %1403 = vmax.xlane.f32.xlu0 %v1402
        %v1404 = vpop.xlane.xlu0 %1403
        %v1405 = vsub.f32 %v1401, %v1404
        %v1406 = vmul.f32 %v1405, 1.442695
        %v1407 = vpow.pop %v1406
        %v1408 = vsel %vm703, %v1407, 0.0
        %1409 = vadd.xlane.f32.xlu0 %v1408
        %v1410 = vpop.xlane.xlu0 %1409
        %v1411 = vrcp.pop %v1410
        %v1412 = vmul.f32 %v1407, %v1411
        %v1413 = vpack.c.bf16 %v1412, %v1412
        %1414 = vrot.lane.b32.xlu0 %v1213, 96
        %v1415 = vpop.permute.xlu0 %1414
        %v1417 = vsel %vm703, %v1413, 0
        %v1420 = vsel %vm707, %v1415, 0
        %1422 = vmatpush.bf16.msra.mxu0 0
        %1423 = vmatpush.bf16.msra.mxu0 0
        %1424 = vmatpush.bf16.msra.mxu0 0
        %1425 = vmatpush.bf16.msra.mxu0 0
        %1426 = vmatpush.bf16.msra.mxu0 0
        %1427 = vmatpush.bf16.msra.mxu0 0
        %1428 = vmatpush.bf16.msra.mxu0 0
        %1429 = vmatpush.bf16.msra.mxu0 %v1420
        %1430 = vmatmul.bf16.gmra.mxu0 %v1417
        %v1431 = vpop.f32.mrf.mxu0
        %v1432 = vadd.f32 0.0, %v1431
        %v1433 = vpop.f32.mrf.mxu0
        %1434 = vdwg.mxu0
        %v1435 = vpack.c.bf16 %v1432, %v1432
        %v1438 = vunpack.c.l.b16 %v1199
        %v1439 = vunpack.c.l.b16 %v1200
        %v1440 = vpack.c.b16 %v1439, %v1438
        %v1443 = vsel %vm1214, %v1435, 0
        %1445 = vmatpush.bf16.msra.mxu0 0
        %1446 = vmatpush.bf16.msra.mxu0 0
        %1447 = vmatpush.bf16.msra.mxu0 0
        %1448 = vmatpush.bf16.msra.mxu0 0
        %1449 = vmatpush.bf16.msra.mxu0 0
        %1450 = vmatpush.bf16.msra.mxu0 0
        %1451 = vmatpush.bf16.msra.mxu0 0
        %1452 = vmatpush.bf16.msra.mxu0 %v1440
        %1453 = vmatmul.bf16.gmra.mxu0 %v1443
        %v1454 = vpop.f32.mrf.mxu0
        %v1455 = vadd.f32 0.0, %v1454
        %v1456 = vpop.f32.mrf.mxu0
        %1457 = vdwg.mxu0
        %v1458 = vadd.f32 %v1374, %v1455
        %1459 = vrot.lane.b32.xlu0 %v1211, 80
        %v1460 = vpop.permute.xlu0 %1459
        %1461 = vrot.lane.b32.xlu0 %v1212, 80
        %v1462 = vpop.permute.xlu0 %1461
        %v1464 = vsel %vm1214, %v1460, 0
        %v1467 = vsel %vm1214, %v1462, 0
        %1469 = vmatpush.bf16.xpose.msra.mxu0 0
        %1470 = vmatpush.bf16.xpose.msra.mxu0 0
        %1471 = vmatpush.bf16.xpose.msra.mxu0 0
        %1472 = vmatpush.bf16.xpose.msra.mxu0 0
        %1473 = vmatpush.bf16.xpose.msra.mxu0 0
        %1474 = vmatpush.bf16.xpose.msra.mxu0 0
        %1475 = vmatpush.bf16.xpose.msra.mxu0 0
        %1476 = vmatpush.bf16.xpose.msra.mxu0 %v1467
        %1477 = vmatmul.bf16.gmra.mxu0 %v1464
        %v1478 = vpop.f32.mrf.mxu0
        %v1479 = vadd.f32 0.0, %v1478
        %v1480 = vpop.f32.mrf.mxu0
        %1481 = vdwg.mxu0
        %v1482 = vmul.f32 %v1479, 0.25
        %v1483 = vadd.f32 %v1482, %v1236
        %v1484 = vsel %vm703, %v1483, -inf
        %1485 = vmax.xlane.f32.xlu0 %v1484
        %v1486 = vpop.xlane.xlu0 %1485
        %v1487 = vsub.f32 %v1483, %v1486
        %v1488 = vmul.f32 %v1487, 1.442695
        %v1489 = vpow.pop %v1488
        %v1490 = vsel %vm703, %v1489, 0.0
        %1491 = vadd.xlane.f32.xlu0 %v1490
        %v1492 = vpop.xlane.xlu0 %1491
        %v1493 = vrcp.pop %v1492
        %v1494 = vmul.f32 %v1489, %v1493
        %v1495 = vpack.c.bf16 %v1494, %v1494
        %1496 = vrot.lane.b32.xlu0 %v1213, 80
        %v1497 = vpop.permute.xlu0 %1496
        %v1499 = vsel %vm703, %v1495, 0
        %v1502 = vsel %vm707, %v1497, 0
        %1504 = vmatpush.bf16.msra.mxu0 0
        %1505 = vmatpush.bf16.msra.mxu0 0
        %1506 = vmatpush.bf16.msra.mxu0 0
        %1507 = vmatpush.bf16.msra.mxu0 0
        %1508 = vmatpush.bf16.msra.mxu0 0
        %1509 = vmatpush.bf16.msra.mxu0 0
        %1510 = vmatpush.bf16.msra.mxu0 0
        %1511 = vmatpush.bf16.msra.mxu0 %v1502
        %1512 = vmatmul.bf16.gmra.mxu0 %v1499
        %v1513 = vpop.f32.mrf.mxu0
        %v1514 = vadd.f32 0.0, %v1513
        %v1515 = vpop.f32.mrf.mxu0
        %1516 = vdwg.mxu0
        %v1517 = vpack.c.bf16 %v1514, %v1514
        %v1520 = vunpack.c.l.b16 %v1201
        %v1521 = vunpack.c.l.b16 %v1202
        %v1522 = vpack.c.b16 %v1521, %v1520
        %v1525 = vsel %vm1214, %v1517, 0
        %1527 = vmatpush.bf16.msra.mxu0 0
        %1528 = vmatpush.bf16.msra.mxu0 0
        %1529 = vmatpush.bf16.msra.mxu0 0
        %1530 = vmatpush.bf16.msra.mxu0 0
        %1531 = vmatpush.bf16.msra.mxu0 0
        %1532 = vmatpush.bf16.msra.mxu0 0
        %1533 = vmatpush.bf16.msra.mxu0 0
        %1534 = vmatpush.bf16.msra.mxu0 %v1522
        %1535 = vmatmul.bf16.gmra.mxu0 %v1525
        %v1536 = vpop.f32.mrf.mxu0
        %v1537 = vadd.f32 0.0, %v1536
        %v1538 = vpop.f32.mrf.mxu0
        %1539 = vdwg.mxu0
        %v1540 = vadd.f32 %v1458, %v1537
        %1541 = vrot.lane.b32.xlu0 %v1211, 64
        %v1542 = vpop.permute.xlu0 %1541
        %1543 = vrot.lane.b32.xlu0 %v1212, 64
        %v1544 = vpop.permute.xlu0 %1543
        %v1546 = vsel %vm1214, %v1542, 0
        %v1549 = vsel %vm1214, %v1544, 0
        %1551 = vmatpush.bf16.xpose.msra.mxu0 0
        %1552 = vmatpush.bf16.xpose.msra.mxu0 0
        %1553 = vmatpush.bf16.xpose.msra.mxu0 0
        %1554 = vmatpush.bf16.xpose.msra.mxu0 0
        %1555 = vmatpush.bf16.xpose.msra.mxu0 0
        %1556 = vmatpush.bf16.xpose.msra.mxu0 0
        %1557 = vmatpush.bf16.xpose.msra.mxu0 0
        %1558 = vmatpush.bf16.xpose.msra.mxu0 %v1549
        %1559 = vmatmul.bf16.gmra.mxu0 %v1546
        %v1560 = vpop.f32.mrf.mxu0
        %v1561 = vadd.f32 0.0, %v1560
        %v1562 = vpop.f32.mrf.mxu0
        %1563 = vdwg.mxu0
        %v1564 = vmul.f32 %v1561, 0.25
        %v1565 = vadd.f32 %v1564, %v1236
        %v1566 = vsel %vm703, %v1565, -inf
        %1567 = vmax.xlane.f32.xlu0 %v1566
        %v1568 = vpop.xlane.xlu0 %1567
        %v1569 = vsub.f32 %v1565, %v1568
        %v1570 = vmul.f32 %v1569, 1.442695
        %v1571 = vpow.pop %v1570
        %v1572 = vsel %vm703, %v1571, 0.0
        %1573 = vadd.xlane.f32.xlu0 %v1572
        %v1574 = vpop.xlane.xlu0 %1573
        %v1575 = vrcp.pop %v1574
        %v1576 = vmul.f32 %v1571, %v1575
        %v1577 = vpack.c.bf16 %v1576, %v1576
        %1578 = vrot.lane.b32.xlu0 %v1213, 64
        %v1579 = vpop.permute.xlu0 %1578
        %v1581 = vsel %vm703, %v1577, 0
        %v1584 = vsel %vm707, %v1579, 0
        %1586 = vmatpush.bf16.msra.mxu0 0
        %1587 = vmatpush.bf16.msra.mxu0 0
        %1588 = vmatpush.bf16.msra.mxu0 0
        %1589 = vmatpush.bf16.msra.mxu0 0
        %1590 = vmatpush.bf16.msra.mxu0 0
        %1591 = vmatpush.bf16.msra.mxu0 0
        %1592 = vmatpush.bf16.msra.mxu0 0
        %1593 = vmatpush.bf16.msra.mxu0 %v1584
        %1594 = vmatmul.bf16.gmra.mxu0 %v1581
        %v1595 = vpop.f32.mrf.mxu0
        %v1596 = vadd.f32 0.0, %v1595
        %v1597 = vpop.f32.mrf.mxu0
        %1598 = vdwg.mxu0
        %v1599 = vpack.c.bf16 %v1596, %v1596
        %v1602 = vunpack.c.l.b16 %v1203
        %v1603 = vunpack.c.l.b16 %v1204
        %v1604 = vpack.c.b16 %v1603, %v1602
        %v1607 = vsel %vm1214, %v1599, 0
        %1609 = vmatpush.bf16.msra.mxu0 0
        %1610 = vmatpush.bf16.msra.mxu0 0
        %1611 = vmatpush.bf16.msra.mxu0 0
        %1612 = vmatpush.bf16.msra.mxu0 0
        %1613 = vmatpush.bf16.msra.mxu0 0
        %1614 = vmatpush.bf16.msra.mxu0 0
        %1615 = vmatpush.bf16.msra.mxu0 0
        %1616 = vmatpush.bf16.msra.mxu0 %v1604
        %1617 = vmatmul.bf16.gmra.mxu0 %v1607
        %v1618 = vpop.f32.mrf.mxu0
        %v1619 = vadd.f32 0.0, %v1618
        %v1620 = vpop.f32.mrf.mxu0
        %1621 = vdwg.mxu0
        %v1622 = vadd.f32 %v1540, %v1619
        %1623 = vrot.lane.b32.xlu0 %v1211, 48
        %v1624 = vpop.permute.xlu0 %1623
        %1625 = vrot.lane.b32.xlu0 %v1212, 48
        %v1626 = vpop.permute.xlu0 %1625
        %v1628 = vsel %vm1214, %v1624, 0
        %v1631 = vsel %vm1214, %v1626, 0
        %1633 = vmatpush.bf16.xpose.msra.mxu0 0
        %1634 = vmatpush.bf16.xpose.msra.mxu0 0
        %1635 = vmatpush.bf16.xpose.msra.mxu0 0
        %1636 = vmatpush.bf16.xpose.msra.mxu0 0
        %1637 = vmatpush.bf16.xpose.msra.mxu0 0
        %1638 = vmatpush.bf16.xpose.msra.mxu0 0
        %1639 = vmatpush.bf16.xpose.msra.mxu0 0
        %1640 = vmatpush.bf16.xpose.msra.mxu0 %v1631
        %1641 = vmatmul.bf16.gmra.mxu0 %v1628
        %v1642 = vpop.f32.mrf.mxu0
        %v1643 = vadd.f32 0.0, %v1642
        %v1644 = vpop.f32.mrf.mxu0
        %1645 = vdwg.mxu0
        %v1646 = vmul.f32 %v1643, 0.25
        %v1647 = vadd.f32 %v1646, %v1236
        %v1648 = vsel %vm703, %v1647, -inf
        %1649 = vmax.xlane.f32.xlu0 %v1648
        %v1650 = vpop.xlane.xlu0 %1649
        %v1651 = vsub.f32 %v1647, %v1650
        %v1652 = vmul.f32 %v1651, 1.442695
        %v1653 = vpow.pop %v1652
        %v1654 = vsel %vm703, %v1653, 0.0
        %1655 = vadd.xlane.f32.xlu0 %v1654
        %v1656 = vpop.xlane.xlu0 %1655
        %v1657 = vrcp.pop %v1656
        %v1658 = vmul.f32 %v1653, %v1657
        %v1659 = vpack.c.bf16 %v1658, %v1658
        %1660 = vrot.lane.b32.xlu0 %v1213, 48
        %v1661 = vpop.permute.xlu0 %1660
        %v1663 = vsel %vm703, %v1659, 0
        %v1666 = vsel %vm707, %v1661, 0
        %1668 = vmatpush.bf16.msra.mxu0 0
        %1669 = vmatpush.bf16.msra.mxu0 0
        %1670 = vmatpush.bf16.msra.mxu0 0
        %1671 = vmatpush.bf16.msra.mxu0 0
        %1672 = vmatpush.bf16.msra.mxu0 0
        %1673 = vmatpush.bf16.msra.mxu0 0
        %1674 = vmatpush.bf16.msra.mxu0 0
        %1675 = vmatpush.bf16.msra.mxu0 %v1666
        %1676 = vmatmul.bf16.gmra.mxu0 %v1663
        %v1677 = vpop.f32.mrf.mxu0
        %v1678 = vadd.f32 0.0, %v1677
        %v1679 = vpop.f32.mrf.mxu0
        %1680 = vdwg.mxu0
        %v1681 = vpack.c.bf16 %v1678, %v1678
        %v1684 = vunpack.c.l.b16 %v1205
        %v1685 = vunpack.c.l.b16 %v1206
        %v1686 = vpack.c.b16 %v1685, %v1684
        %v1689 = vsel %vm1214, %v1681, 0
        %1691 = vmatpush.bf16.msra.mxu0 0
        %1692 = vmatpush.bf16.msra.mxu0 0
        %1693 = vmatpush.bf16.msra.mxu0 0
        %1694 = vmatpush.bf16.msra.mxu0 0
        %1695 = vmatpush.bf16.msra.mxu0 0
        %1696 = vmatpush.bf16.msra.mxu0 0
        %1697 = vmatpush.bf16.msra.mxu0 0
        %1698 = vmatpush.bf16.msra.mxu0 %v1686
        %1699 = vmatmul.bf16.gmra.mxu0 %v1689
        %v1700 = vpop.f32.mrf.mxu0
        %v1701 = vadd.f32 0.0, %v1700
        %v1702 = vpop.f32.mrf.mxu0
        %1703 = vdwg.mxu0
        %v1704 = vadd.f32 %v1622, %v1701
        %1705 = vrot.lane.b32.xlu0 %v1211, 32
        %v1706 = vpop.permute.xlu0 %1705
        %1707 = vrot.lane.b32.xlu0 %v1212, 32
        %v1708 = vpop.permute.xlu0 %1707
        %v1710 = vsel %vm1214, %v1706, 0
        %v1713 = vsel %vm1214, %v1708, 0
        %1715 = vmatpush.bf16.xpose.msra.mxu0 0
        %1716 = vmatpush.bf16.xpose.msra.mxu0 0
        %1717 = vmatpush.bf16.xpose.msra.mxu0 0
        %1718 = vmatpush.bf16.xpose.msra.mxu0 0
        %1719 = vmatpush.bf16.xpose.msra.mxu0 0
        %1720 = vmatpush.bf16.xpose.msra.mxu0 0
        %1721 = vmatpush.bf16.xpose.msra.mxu0 0
        %1722 = vmatpush.bf16.xpose.msra.mxu0 %v1713
        %1723 = vmatmul.bf16.gmra.mxu0 %v1710
        %v1724 = vpop.f32.mrf.mxu0
        %v1725 = vadd.f32 0.0, %v1724
        %v1726 = vpop.f32.mrf.mxu0
        %1727 = vdwg.mxu0
        %v1728 = vmul.f32 %v1725, 0.25
        %v1729 = vadd.f32 %v1728, %v1236
        %v1730 = vsel %vm703, %v1729, -inf
        %1731 = vmax.xlane.f32.xlu0 %v1730
        %v1732 = vpop.xlane.xlu0 %1731
        %v1733 = vsub.f32 %v1729, %v1732
        %v1734 = vmul.f32 %v1733, 1.442695
        %v1735 = vpow.pop %v1734
        %v1736 = vsel %vm703, %v1735, 0.0
        %1737 = vadd.xlane.f32.xlu0 %v1736
        %v1738 = vpop.xlane.xlu0 %1737
        %v1739 = vrcp.pop %v1738
        %v1740 = vmul.f32 %v1735, %v1739
        %v1741 = vpack.c.bf16 %v1740, %v1740
        %1742 = vrot.lane.b32.xlu0 %v1213, 32
        %v1743 = vpop.permute.xlu0 %1742
        %v1745 = vsel %vm703, %v1741, 0
        %v1748 = vsel %vm707, %v1743, 0
        %1750 = vmatpush.bf16.msra.mxu0 0
        %1751 = vmatpush.bf16.msra.mxu0 0
        %1752 = vmatpush.bf16.msra.mxu0 0
        %1753 = vmatpush.bf16.msra.mxu0 0
        %1754 = vmatpush.bf16.msra.mxu0 0
        %1755 = vmatpush.bf16.msra.mxu0 0
        %1756 = vmatpush.bf16.msra.mxu0 0
        %1757 = vmatpush.bf16.msra.mxu0 %v1748
        %1758 = vmatmul.bf16.gmra.mxu0 %v1745
        %v1759 = vpop.f32.mrf.mxu0
        %v1760 = vadd.f32 0.0, %v1759
        %v1761 = vpop.f32.mrf.mxu0
        %1762 = vdwg.mxu0
        %v1763 = vpack.c.bf16 %v1760, %v1760
        %v1766 = vunpack.c.l.b16 %v1207
        %v1767 = vunpack.c.l.b16 %v1208
        %v1768 = vpack.c.b16 %v1767, %v1766
        %v1771 = vsel %vm1214, %v1763, 0
        %1773 = vmatpush.bf16.msra.mxu0 0
        %1774 = vmatpush.bf16.msra.mxu0 0
        %1775 = vmatpush.bf16.msra.mxu0 0
        %1776 = vmatpush.bf16.msra.mxu0 0
        %1777 = vmatpush.bf16.msra.mxu0 0
        %1778 = vmatpush.bf16.msra.mxu0 0
        %1779 = vmatpush.bf16.msra.mxu0 0
        %1780 = vmatpush.bf16.msra.mxu0 %v1768
        %1781 = vmatmul.bf16.gmra.mxu0 %v1771
        %v1782 = vpop.f32.mrf.mxu0
        %v1783 = vadd.f32 0.0, %v1782
        %v1784 = vpop.f32.mrf.mxu0
        %1785 = vdwg.mxu0
        %v1786 = vadd.f32 %v1704, %v1783
        %1787 = vrot.lane.b32.xlu0 %v1211, 16
        %v1788 = vpop.permute.xlu0 %1787
        %1789 = vrot.lane.b32.xlu0 %v1212, 16
        %v1790 = vpop.permute.xlu0 %1789
        %v1792 = vsel %vm1214, %v1788, 0
        %v1795 = vsel %vm1214, %v1790, 0
        %1797 = vmatpush.bf16.xpose.msra.mxu0 0
        %1798 = vmatpush.bf16.xpose.msra.mxu0 0
        %1799 = vmatpush.bf16.xpose.msra.mxu0 0
        %1800 = vmatpush.bf16.xpose.msra.mxu0 0
        %1801 = vmatpush.bf16.xpose.msra.mxu0 0
        %1802 = vmatpush.bf16.xpose.msra.mxu0 0
        %1803 = vmatpush.bf16.xpose.msra.mxu0 0
        %1804 = vmatpush.bf16.xpose.msra.mxu0 %v1795
        %1805 = vmatmul.bf16.gmra.mxu0 %v1792
        %v1806 = vpop.f32.mrf.mxu0
        %v1807 = vadd.f32 0.0, %v1806
        %v1808 = vpop.f32.mrf.mxu0
        %1809 = vdwg.mxu0
        %v1810 = vmul.f32 %v1807, 0.25
        %v1811 = vadd.f32 %v1810, %v1236
        %v1812 = vsel %vm703, %v1811, -inf
        %1813 = vmax.xlane.f32.xlu0 %v1812
        %v1814 = vpop.xlane.xlu0 %1813
        %v1815 = vsub.f32 %v1811, %v1814
        %v1816 = vmul.f32 %v1815, 1.442695
        %v1817 = vpow.pop %v1816
        %v1818 = vsel %vm703, %v1817, 0.0
        %1819 = vadd.xlane.f32.xlu0 %v1818
        %v1820 = vpop.xlane.xlu0 %1819
        %v1821 = vrcp.pop %v1820
        %v1822 = vmul.f32 %v1817, %v1821
        %v1823 = vpack.c.bf16 %v1822, %v1822
        %1824 = vrot.lane.b32.xlu0 %v1213, 16
        %v1825 = vpop.permute.xlu0 %1824
        %v1827 = vsel %vm703, %v1823, 0
        %v1830 = vsel %vm707, %v1825, 0
        %1832 = vmatpush.bf16.msra.mxu0 0
        %1833 = vmatpush.bf16.msra.mxu0 0
        %1834 = vmatpush.bf16.msra.mxu0 0
        %1835 = vmatpush.bf16.msra.mxu0 0
        %1836 = vmatpush.bf16.msra.mxu0 0
        %1837 = vmatpush.bf16.msra.mxu0 0
        %1838 = vmatpush.bf16.msra.mxu0 0
        %1839 = vmatpush.bf16.msra.mxu0 %v1830
        %1840 = vmatmul.bf16.gmra.mxu0 %v1827
        %v1841 = vpop.f32.mrf.mxu0
        %v1842 = vadd.f32 0.0, %v1841
        %v1843 = vpop.f32.mrf.mxu0
        %1844 = vdwg.mxu0
        %v1845 = vpack.c.bf16 %v1842, %v1842
        %v1848 = vunpack.c.l.b16 %v1209
        %v1849 = vunpack.c.l.b16 %v1210
        %v1850 = vpack.c.b16 %v1849, %v1848
        %v1853 = vsel %vm1214, %v1845, 0
        %1855 = vmatpush.bf16.msra.mxu0 0
        %1856 = vmatpush.bf16.msra.mxu0 0
        %1857 = vmatpush.bf16.msra.mxu0 0
        %1858 = vmatpush.bf16.msra.mxu0 0
        %1859 = vmatpush.bf16.msra.mxu0 0
        %1860 = vmatpush.bf16.msra.mxu0 0
        %1861 = vmatpush.bf16.msra.mxu0 0
        %1862 = vmatpush.bf16.msra.mxu0 %v1850
        %1863 = vmatmul.bf16.gmra.mxu0 %v1853
        %v1864 = vpop.f32.mrf.mxu0
        %v1865 = vadd.f32 0.0, %v1864
        %v1866 = vpop.f32.mrf.mxu0
        %1867 = vdwg.mxu0
        %v1868 = vadd.f32 %v1786, %v1865
        %v1869 = vadd.f32 %v985, %v1868
        %v1870 = vld [vmem:[%s556] sm:$0x1]
        %v1872 = vperm.slane %v1870, 0
        %v1874 = vadd.f32 %v1869, %v1872
        %v1875 = vld [vmem:[%s635] sm:$0xff]
        %1877 = vset.pattern.permute.xlu0 0
        %1878 = vperm.xlu0 %1877, %v1875
        %v1879 = vpop.permute.xlu0 %1878
        %v1881 = vmul.f32 %v1874, %v1879
        %1882 = vst [vmem:[#allocation2] sm:$0xff] %v1881
        %p1883 = scmp.eq.s32.totalorder %s37, 3
        // Predicated region
        $region93: #{net_forward.4} parent=63 // pred_check
          %p1884 = pneg %p1883
        $region94: #{net_forward.4} parent=63 // pred_check_branch
          %1886 = sbr.rel (%p1884) target = $region96
        $region95: #{net_forward.4} parent=63 // pred_region
          %1887 = vst [vmem:[%s646] sm:$0xff] %v1881
        $region96: #{net_forward.4} parent=63 // pred_fallthru
          _
        %p1888 = scmp.lt.s32.totalorder %s36, 1
        %s1889 = scalar_select %p1888, %s36, 1
        %s1890 = smul.addr %s1889, 8
        %s1891 = scalar_lea.vmem %s11, %s1890
        // Predicated region
        $region97: #{net_forward.4} parent=63 // pred_check
          %p1892 = pneg %p338
        $region98: #{net_forward.4} parent=63 // pred_check_branch
          %1894 = sbr.rel (%p1892) target = $region100
        $region99: #{net_forward.4} parent=63 // pred_region
          _
        $region100: #{net_forward.4} parent=63 // pred_fallthru
          _
      $region64: #{net_forward.4} parent=5 // pred_fallthru
        _
      %p1895 = scmp.le.s32.totalorder 2, %s27
      // Predicated region
      $region101: #{net_forward.4} parent=5 // pred_check
        %p1896 = pneg %p1895
      $region102: #{net_forward.4} parent=5 // pred_check_branch
        %1898 = sbr.rel (%p1896) target = $region104
      $region103: #{net_forward.4} parent=5 // pred_region
        %s1899 = ssub.s32 %s27, 2
        // Predicated region
        $region105: #{net_forward.4} parent=103 // pred_check
          %p1900 = pneg %p344
        $region106: #{net_forward.4} parent=103 // pred_check_branch
          %1902 = sbr.rel (%p1900) target = $region108
        $region107: #{net_forward.4} parent=103 // pred_region
          %p1903 = scmp.lt.s32.totalorder %s38, 1
          %s1904 = scalar_select %p1903, %s38, 1
          %s1905 = smul.addr %s1904, 8
          %s1906 = scalar_lea.vmem %s11, %s1905
        $region108: #{net_forward.4} parent=103 // pred_fallthru
          _
      $region104: #{net_forward.4} parent=5 // pred_fallthru
        _
    $region6: #{net_forward.4} parent=1 // loop_footer
      %s31 = sadd.s32 1, %s27
    $region7: #{net_forward.4} parent=1 // loop_footer_branch
      %26 = sbr.rel target = $region3
    $region8: #{net_forward.4} parent=1 // loop_exit
      _
    %1907 = vsyncpa [#allocation4], 1
    %s1908 = scalar_lea.sflag [#allocation4], 1
    %1909 = vsyncpa %s1908, 1
    %1910 = vsyncpa [#allocation6], 1
    %s1911 = scalar_lea.sflag [#allocation6], 1
    %1912 = vsyncpa %s1911, 1
    %1913 = vsyncpa [#allocation9], 1
    %s1914 = scalar_lea.sflag [#allocation9], 1
    %1915 = vsyncpa %s1914, 1
    %1916 = vsyncpa [#allocation12], 1
    %s1917 = scalar_lea.sflag [#allocation12], 1
    %1918 = vsyncpa %s1917, 1

</llo_original>
